<compile_context>
chip_gen: v7x
topology: tpu7x:2x2x1
jax: 0.10.0
libtpu: 0.0.40
codegen_flags: <defaults>
</compile_context>

<pallas_src>
import functools

import jax
import jax.numpy as jnp
from jax.experimental import pallas as pl
from jax.experimental.pallas import tpu as pltpu


def _mish(x):
    # mish(x) = x * tanh(softplus(x)).  Single-exp rewrite:
    #   tanh(log(1 + e^x)) = n / (n + 2),  n = e^x (e^x + 2)
    # Clamp before exp so no inf is produced; for x >= 20 the factor is ~1 in f32.
    e = jnp.exp(jnp.minimum(x, 20.0))
    n = e * (e + 2.0)
    return x * (n * pl.reciprocal(n + 2.0, approx=True))


def _point_critic_kernel(pts_ref, st_t_ref,
                         w1_t_ref, b1_c_ref, w2_t_ref, b2_c_ref,
                         wq1a_t_ref, wq1b_t_ref, bq1_c_ref,
                         wq2_t_ref, bq2_c_ref, wq3_t_ref, bq3_ref,
                         out_ref, *, b_tile, n_pts):
    # ---- PointEncoder backbone, transposed layout ---------------------------
    # pts block: (D, M) with M = n_pts * b_tile; columns are point-major within
    # the batch tile (column n*b_tile + b == point n of batch element b).
    pts = pts_ref[...]                              # (D, M)
    w1_t = w1_t_ref[...]                            # (H, D), D == 3
    d_in = w1_t.shape[1]

    # Layer 1 (D -> H) on the VPU: D is tiny, so a few broadcasted
    # multiply-adds beat a K=3 MXU matmul by an order of magnitude.
    h = w1_t[:, 0:1] * pts[0:1, :]                  # (H, 1)*(1, M) -> (H, M)
    for d in range(1, d_in):
        h = h + w1_t[:, d:d + 1] * pts[d:d + 1, :]
    h = _mish(h + b1_c_ref[...])                    # (H, M), lane-dense

    # Layer 2 (H -> E) on the MXU: small 2-D LHS, lane-dense RHS and result.
    e = jnp.dot(w2_t_ref[...], h,
                preferred_element_type=jnp.float32)  # (E, M)

    # Max-pool over points: running elementwise max over lane-aligned
    # 128-wide column slabs (pure VPU; no cross-lane XLU reduce, no relayout).
    feat_t = e[:, 0:b_tile]
    for n in range(1, n_pts):
        feat_t = jnp.maximum(feat_t, e[:, n * b_tile:(n + 1) * b_tile])
    # b2 is point-invariant, so adding it after the pool is exact and cheaper.
    feat_t = feat_t + b2_c_ref[...]                 # (E, b_tile)

    # ---- Q1 MLP, transposed: batch stays on the lane axis -------------------
    st_t = st_t_ref[...]                            # (S, b_tile)
    x = _mish(jnp.dot(wq1a_t_ref[...], feat_t, preferred_element_type=jnp.float32)
              + jnp.dot(wq1b_t_ref[...], st_t, preferred_element_type=jnp.float32)
              + bq1_c_ref[...])                     # (H1, b_tile)
    x = _mish(jnp.dot(wq2_t_ref[...], x, preferred_element_type=jnp.float32)
              + bq2_c_ref[...])                     # (H2, b_tile)
    out_ref[...] = (jnp.dot(wq3_t_ref[...], x, preferred_element_type=jnp.float32)
                    + bq3_ref[...])                 # (1, b_tile), lane-dense


def prepare_params(params):
    """One-time re-layout of the parameters (hoisted out of the hot path)."""
    E = params["w2"].shape[1]
    wq1 = params["wq1"]
    return {
        # PointEncoder backbone (transposed: channels on sublanes)
        "w1_t": params["w1"].T,       # (H, D)
        "b1_c": params["b1"].T,       # (H, 1)
        "w2_t": params["w2"].T,       # (E, H)
        "b2_c": params["b2"].T,       # (E, 1)
        # Q1 head, split into the point-feature and state halves
        "wq1a_t": wq1[:E].T,          # (H1, E)
        "wq1b_t": wq1[E:].T,          # (H1, S)
        "bq1_c": params["bq1"].T,     # (H1, 1)
        "wq2_t": params["wq2"].T,     # (H2, H1)
        "bq2_c": params["bq2"].T,     # (H2, 1)
        "wq3_t": params["wq3"].T,     # (1, H2)
        "bq3": params["bq3"],         # (1, 1)
    }


def point_critic_forward(point, state, kparams, *, pnt_cond_steps=1, b_tile=128):
    """point: (B, T, L, D); state: (B, To, Do) -> (B, 1) f32."""
    assert b_tile % 128 == 0, "b_tile must be a multiple of 128 (lane width)"
    B, T, L, D = point.shape
    assert pnt_cond_steps <= T, "pnt_cond_steps must be <= number of obs steps"
    if pnt_cond_steps < T:
        point = point[:, T - pnt_cond_steps:]
    N = pnt_cond_steps * L
    pts = point.reshape(B, N, D).astype(jnp.float32)
    st = state.reshape(B, -1).astype(jnp.float32)
    S = st.shape[-1]

    nb = pl.cdiv(B, b_tile)
    b_pad = nb * b_tile
    if b_pad != B:                              # pad batch to the tile size
        pts = jnp.pad(pts, ((0, b_pad - B), (0, 0), (0, 0)))
        st = jnp.pad(st, ((0, b_pad - B), (0, 0)))

    # Lane-dense, point-major repack: inside batch tile i, column n*b_tile + b
    # of pts_t holds point n of batch element (i*b_tile + b).
    pts_t = (pts.reshape(nb, b_tile, N, D)
                .transpose(3, 0, 2, 1)
                .reshape(D, nb * N * b_tile))   # (D, nb * M)
    st_t = st.T                                 # (S, b_pad): batch on lanes

    weights = (kparams["w1_t"], kparams["b1_c"], kparams["w2_t"], kparams["b2_c"],
               kparams["wq1a_t"], kparams["wq1b_t"], kparams["bq1_c"],
               kparams["wq2_t"], kparams["bq2_c"], kparams["wq3_t"], kparams["bq3"])

    H = kparams["w1_t"].shape[0]
    E = kparams["w2_t"].shape[0]
    H1 = kparams["wq1a_t"].shape[0]
    H2 = kparams["wq2_t"].shape[0]
    M = N * b_tile

    def const(a):
        return pl.BlockSpec(a.shape, lambda i: (0,) * a.ndim)

    flops = (2 * b_pad * N * (D * H + H * E)
             + 2 * b_pad * (E * H1 + S * H1 + H1 * H2 + H2))
    transcendentals = b_pad * N * H + b_pad * (H1 + H2)   # one exp per Mish elem
    bytes_accessed = 4 * (pts_t.size + st_t.size + b_pad
                          + sum(w.size for w in weights))

    out = pl.pallas_call(
        functools.partial(_point_critic_kernel, b_tile=b_tile, n_pts=N),
        out_shape=jax.ShapeDtypeStruct((1, b_pad), jnp.float32),
        grid=(nb,),
        in_specs=[
            pl.BlockSpec((D, M), lambda i: (0, i)),        # points (lane-dense)
            pl.BlockSpec((S, b_tile), lambda i: (0, i)),   # state  (lane-dense)
        ] + [const(w) for w in weights],
        out_specs=pl.BlockSpec((1, b_tile), lambda i: (0, i)),  # lane-dense row
        compiler_params=pltpu.CompilerParams(
            dimension_semantics=("parallel",),
            vmem_limit_bytes=32 * 1024 * 1024),
        cost_estimate=pl.CostEstimate(flops=flops,
                                      transcendentals=transcendentals,
                                      bytes_accessed=bytes_accessed),
    )(pts_t, st_t, *weights)

    return out[0, :B].reshape(B, 1)


def _reference(point, state, params, pnt_cond_steps):
    """Faithful pure-JAX PointCritic forward (torch Mish semantics)."""
    B, T, L, D = point.shape
    pts = point[:, T - pnt_cond_steps:].reshape(B, -1, D)
    st = state.reshape(B, -1)
    mish = lambda x: x * jnp.tanh(jax.nn.softplus(x))
    h = mish(pts @ params["w1"] + params["b1"])
    e = h @ params["w2"] + params["b2"]
    feat = jnp.max(e, axis=1)
    x = jnp.concatenate([feat, st], axis=-1)
    x = mish(x @ params["wq1"] + params["bq1"])
    x = mish(x @ params["wq2"] + params["bq2"])
    return x @ params["wq3"] + params["bq3"]


def _init_params(key, *, D, H, E, S, mlp_dims):
    ks = jax.random.split(key, 10)

    def dense(k, fan_in, fan_out):
        return (jax.random.normal(k, (fan_in, fan_out), jnp.float32)
                / jnp.sqrt(jnp.float32(fan_in)))

    H1, H2 = mlp_dims
    F = E + S
    return {
        # PointEncoder backbone
        "w1": dense(ks[0], D, H), "b1": 0.01 * jax.random.normal(ks[1], (1, H), jnp.float32),
        "w2": dense(ks[2], H, E), "b2": 0.01 * jax.random.normal(ks[3], (1, E), jnp.float32),
        # Q1 MLP: [E + S, H1, H2, 1]
        "wq1": dense(ks[4], F, H1), "bq1": 0.01 * jax.random.normal(ks[5], (1, H1), jnp.float32),
        "wq2": dense(ks[6], H1, H2), "bq2": 0.01 * jax.random.normal(ks[7], (1, H2), jnp.float32),
        "wq3": dense(ks[8], H2, 1), "bq3": 0.01 * jax.random.normal(ks[9], (1, 1), jnp.float32),
    }


if __name__ == "__main__":
    # Small shapes consistent with PointCritic's forward:
    #   state: (B, To, Do), point: (B, To, L, D)
    B, To, Do = 2, 1, 8
    L, D = 64, 3
    pnt_cond_steps = 1
    spatial_emb = 64        # backbone output dim (E)
    hidden = 32             # backbone per-point hidden dim (H)
    mlp_dims = [32, 32]     # Q1 hidden dims

    key = jax.random.PRNGKey(0)
    k_state, k_point, k_params = jax.random.split(key, 3)
    state = jax.random.normal(k_state, (B, To, Do), jnp.float32)
    point = jax.random.normal(k_point, (B, To, L, D), jnp.float32)

    params = _init_params(k_params, D=D, H=hidden, E=spatial_emb,
                          S=To * Do, mlp_dims=mlp_dims)
    kparams = prepare_params(params)     # one-time weight split / transpose

    fwd = jax.jit(functools.partial(point_critic_forward,
                                    pnt_cond_steps=pnt_cond_steps,
                                    b_tile=128))
    q = fwd(point, state, kparams)
    q = jax.block_until_ready(q)

    q_ref = _reference(point, state, params, pnt_cond_steps)
    assert q.shape == (B, 1), q.shape
    # Approx reciprocal in Mish + split-matmul / transposed summation order =>
    # slightly looser tolerance than bit-exact f32.
    assert jnp.allclose(q, q_ref, rtol=5e-3, atol=5e-3), (q, q_ref)

    print("KERNEL_OK")
</pallas_src>

<mosaic_0001>
module attributes {stable_mosaic.version = 11 : i64} {
  func.func @_point_critic_kernel(%arg0: i32, %arg1: memref<3x8192xf32, #tpu.memory_space<vmem>>, %arg2: memref<8x128xf32, #tpu.memory_space<vmem>>, %arg3: memref<32x3xf32, #tpu.memory_space<vmem>>, %arg4: memref<32x1xf32, #tpu.memory_space<vmem>>, %arg5: memref<64x32xf32, #tpu.memory_space<vmem>>, %arg6: memref<64x1xf32, #tpu.memory_space<vmem>>, %arg7: memref<32x64xf32, #tpu.memory_space<vmem>>, %arg8: memref<32x8xf32, #tpu.memory_space<vmem>>, %arg9: memref<32x1xf32, #tpu.memory_space<vmem>>, %arg10: memref<32x32xf32, #tpu.memory_space<vmem>>, %arg11: memref<32x1xf32, #tpu.memory_space<vmem>>, %arg12: memref<1x32xf32, #tpu.memory_space<vmem>>, %arg13: memref<1x1xf32, #tpu.memory_space<vmem>>, %arg14: memref<1x128xf32, #tpu.memory_space<vmem>>) attributes {dimension_semantics = [#tpu.dimension_semantics<parallel>], iteration_bounds = array<i64: 1>, scalar_prefetch = 0 : i64, scratch_operands = 0 : i64, tpu.core_type = #tpu.core_type<tc>, window_params = [{transform_indices = @transform_0, window_bounds = array<i64: 3, 8192>}, {transform_indices = @transform_1, window_bounds = array<i64: 8, 128>}, {pipeline_mode = #tpu.pipeline_mode<synchronous>, transform_indices = @transform_2, window_bounds = array<i64: 32, 3>}, {pipeline_mode = #tpu.pipeline_mode<synchronous>, transform_indices = @transform_3, window_bounds = array<i64: 32, 1>}, {pipeline_mode = #tpu.pipeline_mode<synchronous>, transform_indices = @transform_4, window_bounds = array<i64: 64, 32>}, {pipeline_mode = #tpu.pipeline_mode<synchronous>, transform_indices = @transform_5, window_bounds = array<i64: 64, 1>}, {pipeline_mode = #tpu.pipeline_mode<synchronous>, transform_indices = @transform_6, window_bounds = array<i64: 32, 64>}, {pipeline_mode = #tpu.pipeline_mode<synchronous>, transform_indices = @transform_7, window_bounds = array<i64: 32, 8>}, {pipeline_mode = #tpu.pipeline_mode<synchronous>, transform_indices = @transform_8, window_bounds = array<i64: 32, 1>}, {pipeline_mode = #tpu.pipeline_mode<synchronous>, transform_indices = @transform_9, window_bounds = array<i64: 32, 32>}, {pipeline_mode = #tpu.pipeline_mode<synchronous>, transform_indices = @transform_10, window_bounds = array<i64: 32, 1>}, {pipeline_mode = #tpu.pipeline_mode<synchronous>, transform_indices = @transform_11, window_bounds = array<i64: 1, 32>}, {pipeline_mode = #tpu.pipeline_mode<synchronous>, transform_indices = @transform_12, window_bounds = array<i64: 1, 1>}, {transform_indices = @transform_13, window_bounds = array<i64: 1, 128>}]} {
    %c0 = arith.constant 0 : index
    %c0_0 = arith.constant 0 : index
    %0 = vector.load %arg1[%c0, %c0_0] : memref<3x8192xf32, #tpu.memory_space<vmem>>, vector<3x8192xf32>
    %c0_1 = arith.constant 0 : index
    %c0_2 = arith.constant 0 : index
    %1 = vector.load %arg3[%c0_1, %c0_2] : memref<32x3xf32, #tpu.memory_space<vmem>>, vector<32x3xf32>
    %2 = vector.extract_strided_slice %1 {offsets = [0, 0], sizes = [32, 1], strides = [1, 1]} : vector<32x3xf32> to vector<32x1xf32>
    %3 = vector.extract_strided_slice %0 {offsets = [0, 0], sizes = [1, 8192], strides = [1, 1]} : vector<3x8192xf32> to vector<1x8192xf32>
    %4 = vector.broadcast %2 : vector<32x1xf32> to vector<32x8192xf32>
    %5 = vector.broadcast %3 : vector<1x8192xf32> to vector<32x8192xf32>
    %6 = arith.mulf %4, %5 : vector<32x8192xf32>
    %7 = vector.extract_strided_slice %1 {offsets = [0, 1], sizes = [32, 1], strides = [1, 1]} : vector<32x3xf32> to vector<32x1xf32>
    %8 = vector.extract_strided_slice %0 {offsets = [1, 0], sizes = [1, 8192], strides = [1, 1]} : vector<3x8192xf32> to vector<1x8192xf32>
    %9 = vector.broadcast %7 : vector<32x1xf32> to vector<32x8192xf32>
    %10 = vector.broadcast %8 : vector<1x8192xf32> to vector<32x8192xf32>
    %11 = arith.mulf %9, %10 : vector<32x8192xf32>
    %12 = arith.addf %6, %11 : vector<32x8192xf32>
    %13 = vector.extract_strided_slice %1 {offsets = [0, 2], sizes = [32, 1], strides = [1, 1]} : vector<32x3xf32> to vector<32x1xf32>
    %14 = vector.extract_strided_slice %0 {offsets = [2, 0], sizes = [1, 8192], strides = [1, 1]} : vector<3x8192xf32> to vector<1x8192xf32>
    %15 = vector.broadcast %13 : vector<32x1xf32> to vector<32x8192xf32>
    %16 = vector.broadcast %14 : vector<1x8192xf32> to vector<32x8192xf32>
    %17 = arith.mulf %15, %16 : vector<32x8192xf32>
    %18 = arith.addf %12, %17 : vector<32x8192xf32>
    %c0_3 = arith.constant 0 : index
    %c0_4 = arith.constant 0 : index
    %19 = vector.load %arg4[%c0_3, %c0_4] : memref<32x1xf32, #tpu.memory_space<vmem>>, vector<32x1xf32>
    %20 = vector.broadcast %19 : vector<32x1xf32> to vector<32x8192xf32>
    %21 = arith.addf %18, %20 : vector<32x8192xf32>
    %cst = arith.constant 2.000000e+01 : f32
    %22 = vector.broadcast %cst : f32 to vector<32x8192xf32>
    %23 = arith.minimumf %21, %22 : vector<32x8192xf32>
    %24 = math.exp %23 : vector<32x8192xf32>
    %cst_5 = arith.constant 2.000000e+00 : f32
    %25 = vector.broadcast %cst_5 : f32 to vector<32x8192xf32>
    %26 = arith.addf %24, %25 : vector<32x8192xf32>
    %27 = arith.mulf %24, %26 : vector<32x8192xf32>
    %cst_6 = arith.constant 2.000000e+00 : f32
    %28 = vector.broadcast %cst_6 : f32 to vector<32x8192xf32>
    %29 = arith.addf %27, %28 : vector<32x8192xf32>
    %30 = tpu.reciprocal %29 {approx = true} : vector<32x8192xf32> -> vector<32x8192xf32>
    %31 = arith.mulf %27, %30 : vector<32x8192xf32>
    %32 = arith.mulf %21, %31 : vector<32x8192xf32>
    %c0_7 = arith.constant 0 : index
    %c0_8 = arith.constant 0 : index
    %33 = vector.load %arg5[%c0_7, %c0_8] : memref<64x32xf32, #tpu.memory_space<vmem>>, vector<64x32xf32>
    %cst_9 = arith.constant dense<0.000000e+00> : vector<64x8192xf32>
    %34 = tpu.matmul %33, %32, %cst_9 {dimension_numbers = #tpu.dot_dimension_numbers<[1], [0], [0], [1], [0, 0, 1, 1], [], []>} : vector<64x32xf32>, vector<32x8192xf32>, vector<64x8192xf32> -> vector<64x8192xf32>
    %35 = vector.extract_strided_slice %34 {offsets = [0, 0], sizes = [64, 128], strides = [1, 1]} : vector<64x8192xf32> to vector<64x128xf32>
    %36 = vector.extract_strided_slice %34 {offsets = [0, 128], sizes = [64, 128], strides = [1, 1]} : vector<64x8192xf32> to vector<64x128xf32>
    %37 = arith.maximumf %35, %36 : vector<64x128xf32>
    %38 = vector.extract_strided_slice %34 {offsets = [0, 256], sizes = [64, 128], strides = [1, 1]} : vector<64x8192xf32> to vector<64x128xf32>
    %39 = arith.maximumf %37, %38 : vector<64x128xf32>
    %40 = vector.extract_strided_slice %34 {offsets = [0, 384], sizes = [64, 128], strides = [1, 1]} : vector<64x8192xf32> to vector<64x128xf32>
    %41 = arith.maximumf %39, %40 : vector<64x128xf32>
    %42 = vector.extract_strided_slice %34 {offsets = [0, 512], sizes = [64, 128], strides = [1, 1]} : vector<64x8192xf32> to vector<64x128xf32>
    %43 = arith.maximumf %41, %42 : vector<64x128xf32>
    %44 = vector.extract_strided_slice %34 {offsets = [0, 640], sizes = [64, 128], strides = [1, 1]} : vector<64x8192xf32> to vector<64x128xf32>
    %45 = arith.maximumf %43, %44 : vector<64x128xf32>
    %46 = vector.extract_strided_slice %34 {offsets = [0, 768], sizes = [64, 128], strides = [1, 1]} : vector<64x8192xf32> to vector<64x128xf32>
    %47 = arith.maximumf %45, %46 : vector<64x128xf32>
    %48 = vector.extract_strided_slice %34 {offsets = [0, 896], sizes = [64, 128], strides = [1, 1]} : vector<64x8192xf32> to vector<64x128xf32>
    %49 = arith.maximumf %47, %48 : vector<64x128xf32>
    %50 = vector.extract_strided_slice %34 {offsets = [0, 1024], sizes = [64, 128], strides = [1, 1]} : vector<64x8192xf32> to vector<64x128xf32>
    %51 = arith.maximumf %49, %50 : vector<64x128xf32>
    %52 = vector.extract_strided_slice %34 {offsets = [0, 1152], sizes = [64, 128], strides = [1, 1]} : vector<64x8192xf32> to vector<64x128xf32>
    %53 = arith.maximumf %51, %52 : vector<64x128xf32>
    %54 = vector.extract_strided_slice %34 {offsets = [0, 1280], sizes = [64, 128], strides = [1, 1]} : vector<64x8192xf32> to vector<64x128xf32>
    %55 = arith.maximumf %53, %54 : vector<64x128xf32>
    %56 = vector.extract_strided_slice %34 {offsets = [0, 1408], sizes = [64, 128], strides = [1, 1]} : vector<64x8192xf32> to vector<64x128xf32>
    %57 = arith.maximumf %55, %56 : vector<64x128xf32>
    %58 = vector.extract_strided_slice %34 {offsets = [0, 1536], sizes = [64, 128], strides = [1, 1]} : vector<64x8192xf32> to vector<64x128xf32>
    %59 = arith.maximumf %57, %58 : vector<64x128xf32>
    %60 = vector.extract_strided_slice %34 {offsets = [0, 1664], sizes = [64, 128], strides = [1, 1]} : vector<64x8192xf32> to vector<64x128xf32>
    %61 = arith.maximumf %59, %60 : vector<64x128xf32>
    %62 = vector.extract_strided_slice %34 {offsets = [0, 1792], sizes = [64, 128], strides = [1, 1]} : vector<64x8192xf32> to vector<64x128xf32>
    %63 = arith.maximumf %61, %62 : vector<64x128xf32>
    %64 = vector.extract_strided_slice %34 {offsets = [0, 1920], sizes = [64, 128], strides = [1, 1]} : vector<64x8192xf32> to vector<64x128xf32>
    %65 = arith.maximumf %63, %64 : vector<64x128xf32>
    %66 = vector.extract_strided_slice %34 {offsets = [0, 2048], sizes = [64, 128], strides = [1, 1]} : vector<64x8192xf32> to vector<64x128xf32>
    %67 = arith.maximumf %65, %66 : vector<64x128xf32>
    %68 = vector.extract_strided_slice %34 {offsets = [0, 2176], sizes = [64, 128], strides = [1, 1]} : vector<64x8192xf32> to vector<64x128xf32>
    %69 = arith.maximumf %67, %68 : vector<64x128xf32>
    %70 = vector.extract_strided_slice %34 {offsets = [0, 2304], sizes = [64, 128], strides = [1, 1]} : vector<64x8192xf32> to vector<64x128xf32>
    %71 = arith.maximumf %69, %70 : vector<64x128xf32>
    %72 = vector.extract_strided_slice %34 {offsets = [0, 2432], sizes = [64, 128], strides = [1, 1]} : vector<64x8192xf32> to vector<64x128xf32>
    %73 = arith.maximumf %71, %72 : vector<64x128xf32>
    %74 = vector.extract_strided_slice %34 {offsets = [0, 2560], sizes = [64, 128], strides = [1, 1]} : vector<64x8192xf32> to vector<64x128xf32>
    %75 = arith.maximumf %73, %74 : vector<64x128xf32>
    %76 = vector.extract_strided_slice %34 {offsets = [0, 2688], sizes = [64, 128], strides = [1, 1]} : vector<64x8192xf32> to vector<64x128xf32>
    %77 = arith.maximumf %75, %76 : vector<64x128xf32>
    %78 = vector.extract_strided_slice %34 {offsets = [0, 2816], sizes = [64, 128], strides = [1, 1]} : vector<64x8192xf32> to vector<64x128xf32>
    %79 = arith.maximumf %77, %78 : vector<64x128xf32>
    %80 = vector.extract_strided_slice %34 {offsets = [0, 2944], sizes = [64, 128], strides = [1, 1]} : vector<64x8192xf32> to vector<64x128xf32>
    %81 = arith.maximumf %79, %80 : vector<64x128xf32>
    %82 = vector.extract_strided_slice %34 {offsets = [0, 3072], sizes = [64, 128], strides = [1, 1]} : vector<64x8192xf32> to vector<64x128xf32>
    %83 = arith.maximumf %81, %82 : vector<64x128xf32>
    %84 = vector.extract_strided_slice %34 {offsets = [0, 3200], sizes = [64, 128], strides = [1, 1]} : vector<64x8192xf32> to vector<64x128xf32>
    %85 = arith.maximumf %83, %84 : vector<64x128xf32>
    %86 = vector.extract_strided_slice %34 {offsets = [0, 3328], sizes = [64, 128], strides = [1, 1]} : vector<64x8192xf32> to vector<64x128xf32>
    %87 = arith.maximumf %85, %86 : vector<64x128xf32>
    %88 = vector.extract_strided_slice %34 {offsets = [0, 3456], sizes = [64, 128], strides = [1, 1]} : vector<64x8192xf32> to vector<64x128xf32>
    %89 = arith.maximumf %87, %88 : vector<64x128xf32>
    %90 = vector.extract_strided_slice %34 {offsets = [0, 3584], sizes = [64, 128], strides = [1, 1]} : vector<64x8192xf32> to vector<64x128xf32>
    %91 = arith.maximumf %89, %90 : vector<64x128xf32>
    %92 = vector.extract_strided_slice %34 {offsets = [0, 3712], sizes = [64, 128], strides = [1, 1]} : vector<64x8192xf32> to vector<64x128xf32>
    %93 = arith.maximumf %91, %92 : vector<64x128xf32>
    %94 = vector.extract_strided_slice %34 {offsets = [0, 3840], sizes = [64, 128], strides = [1, 1]} : vector<64x8192xf32> to vector<64x128xf32>
    %95 = arith.maximumf %93, %94 : vector<64x128xf32>
    %96 = vector.extract_strided_slice %34 {offsets = [0, 3968], sizes = [64, 128], strides = [1, 1]} : vector<64x8192xf32> to vector<64x128xf32>
    %97 = arith.maximumf %95, %96 : vector<64x128xf32>
    %98 = vector.extract_strided_slice %34 {offsets = [0, 4096], sizes = [64, 128], strides = [1, 1]} : vector<64x8192xf32> to vector<64x128xf32>
    %99 = arith.maximumf %97, %98 : vector<64x128xf32>
    %100 = vector.extract_strided_slice %34 {offsets = [0, 4224], sizes = [64, 128], strides = [1, 1]} : vector<64x8192xf32> to vector<64x128xf32>
    %101 = arith.maximumf %99, %100 : vector<64x128xf32>
    %102 = vector.extract_strided_slice %34 {offsets = [0, 4352], sizes = [64, 128], strides = [1, 1]} : vector<64x8192xf32> to vector<64x128xf32>
    %103 = arith.maximumf %101, %102 : vector<64x128xf32>
    %104 = vector.extract_strided_slice %34 {offsets = [0, 4480], sizes = [64, 128], strides = [1, 1]} : vector<64x8192xf32> to vector<64x128xf32>
    %105 = arith.maximumf %103, %104 : vector<64x128xf32>
    %106 = vector.extract_strided_slice %34 {offsets = [0, 4608], sizes = [64, 128], strides = [1, 1]} : vector<64x8192xf32> to vector<64x128xf32>
    %107 = arith.maximumf %105, %106 : vector<64x128xf32>
    %108 = vector.extract_strided_slice %34 {offsets = [0, 4736], sizes = [64, 128], strides = [1, 1]} : vector<64x8192xf32> to vector<64x128xf32>
    %109 = arith.maximumf %107, %108 : vector<64x128xf32>
    %110 = vector.extract_strided_slice %34 {offsets = [0, 4864], sizes = [64, 128], strides = [1, 1]} : vector<64x8192xf32> to vector<64x128xf32>
    %111 = arith.maximumf %109, %110 : vector<64x128xf32>
    %112 = vector.extract_strided_slice %34 {offsets = [0, 4992], sizes = [64, 128], strides = [1, 1]} : vector<64x8192xf32> to vector<64x128xf32>
    %113 = arith.maximumf %111, %112 : vector<64x128xf32>
    %114 = vector.extract_strided_slice %34 {offsets = [0, 5120], sizes = [64, 128], strides = [1, 1]} : vector<64x8192xf32> to vector<64x128xf32>
    %115 = arith.maximumf %113, %114 : vector<64x128xf32>
    %116 = vector.extract_strided_slice %34 {offsets = [0, 5248], sizes = [64, 128], strides = [1, 1]} : vector<64x8192xf32> to vector<64x128xf32>
    %117 = arith.maximumf %115, %116 : vector<64x128xf32>
    %118 = vector.extract_strided_slice %34 {offsets = [0, 5376], sizes = [64, 128], strides = [1, 1]} : vector<64x8192xf32> to vector<64x128xf32>
    %119 = arith.maximumf %117, %118 : vector<64x128xf32>
    %120 = vector.extract_strided_slice %34 {offsets = [0, 5504], sizes = [64, 128], strides = [1, 1]} : vector<64x8192xf32> to vector<64x128xf32>
    %121 = arith.maximumf %119, %120 : vector<64x128xf32>
    %122 = vector.extract_strided_slice %34 {offsets = [0, 5632], sizes = [64, 128], strides = [1, 1]} : vector<64x8192xf32> to vector<64x128xf32>
    %123 = arith.maximumf %121, %122 : vector<64x128xf32>
    %124 = vector.extract_strided_slice %34 {offsets = [0, 5760], sizes = [64, 128], strides = [1, 1]} : vector<64x8192xf32> to vector<64x128xf32>
    %125 = arith.maximumf %123, %124 : vector<64x128xf32>
    %126 = vector.extract_strided_slice %34 {offsets = [0, 5888], sizes = [64, 128], strides = [1, 1]} : vector<64x8192xf32> to vector<64x128xf32>
    %127 = arith.maximumf %125, %126 : vector<64x128xf32>
    %128 = vector.extract_strided_slice %34 {offsets = [0, 6016], sizes = [64, 128], strides = [1, 1]} : vector<64x8192xf32> to vector<64x128xf32>
    %129 = arith.maximumf %127, %128 : vector<64x128xf32>
    %130 = vector.extract_strided_slice %34 {offsets = [0, 6144], sizes = [64, 128], strides = [1, 1]} : vector<64x8192xf32> to vector<64x128xf32>
    %131 = arith.maximumf %129, %130 : vector<64x128xf32>
    %132 = vector.extract_strided_slice %34 {offsets = [0, 6272], sizes = [64, 128], strides = [1, 1]} : vector<64x8192xf32> to vector<64x128xf32>
    %133 = arith.maximumf %131, %132 : vector<64x128xf32>
    %134 = vector.extract_strided_slice %34 {offsets = [0, 6400], sizes = [64, 128], strides = [1, 1]} : vector<64x8192xf32> to vector<64x128xf32>
    %135 = arith.maximumf %133, %134 : vector<64x128xf32>
    %136 = vector.extract_strided_slice %34 {offsets = [0, 6528], sizes = [64, 128], strides = [1, 1]} : vector<64x8192xf32> to vector<64x128xf32>
    %137 = arith.maximumf %135, %136 : vector<64x128xf32>
    %138 = vector.extract_strided_slice %34 {offsets = [0, 6656], sizes = [64, 128], strides = [1, 1]} : vector<64x8192xf32> to vector<64x128xf32>
    %139 = arith.maximumf %137, %138 : vector<64x128xf32>
    %140 = vector.extract_strided_slice %34 {offsets = [0, 6784], sizes = [64, 128], strides = [1, 1]} : vector<64x8192xf32> to vector<64x128xf32>
    %141 = arith.maximumf %139, %140 : vector<64x128xf32>
    %142 = vector.extract_strided_slice %34 {offsets = [0, 6912], sizes = [64, 128], strides = [1, 1]} : vector<64x8192xf32> to vector<64x128xf32>
    %143 = arith.maximumf %141, %142 : vector<64x128xf32>
    %144 = vector.extract_strided_slice %34 {offsets = [0, 7040], sizes = [64, 128], strides = [1, 1]} : vector<64x8192xf32> to vector<64x128xf32>
    %145 = arith.maximumf %143, %144 : vector<64x128xf32>
    %146 = vector.extract_strided_slice %34 {offsets = [0, 7168], sizes = [64, 128], strides = [1, 1]} : vector<64x8192xf32> to vector<64x128xf32>
    %147 = arith.maximumf %145, %146 : vector<64x128xf32>
    %148 = vector.extract_strided_slice %34 {offsets = [0, 7296], sizes = [64, 128], strides = [1, 1]} : vector<64x8192xf32> to vector<64x128xf32>
    %149 = arith.maximumf %147, %148 : vector<64x128xf32>
    %150 = vector.extract_strided_slice %34 {offsets = [0, 7424], sizes = [64, 128], strides = [1, 1]} : vector<64x8192xf32> to vector<64x128xf32>
    %151 = arith.maximumf %149, %150 : vector<64x128xf32>
    %152 = vector.extract_strided_slice %34 {offsets = [0, 7552], sizes = [64, 128], strides = [1, 1]} : vector<64x8192xf32> to vector<64x128xf32>
    %153 = arith.maximumf %151, %152 : vector<64x128xf32>
    %154 = vector.extract_strided_slice %34 {offsets = [0, 7680], sizes = [64, 128], strides = [1, 1]} : vector<64x8192xf32> to vector<64x128xf32>
    %155 = arith.maximumf %153, %154 : vector<64x128xf32>
    %156 = vector.extract_strided_slice %34 {offsets = [0, 7808], sizes = [64, 128], strides = [1, 1]} : vector<64x8192xf32> to vector<64x128xf32>
    %157 = arith.maximumf %155, %156 : vector<64x128xf32>
    %158 = vector.extract_strided_slice %34 {offsets = [0, 7936], sizes = [64, 128], strides = [1, 1]} : vector<64x8192xf32> to vector<64x128xf32>
    %159 = arith.maximumf %157, %158 : vector<64x128xf32>
    %160 = vector.extract_strided_slice %34 {offsets = [0, 8064], sizes = [64, 128], strides = [1, 1]} : vector<64x8192xf32> to vector<64x128xf32>
    %161 = arith.maximumf %159, %160 : vector<64x128xf32>
    %c0_10 = arith.constant 0 : index
    %c0_11 = arith.constant 0 : index
    %162 = vector.load %arg6[%c0_10, %c0_11] : memref<64x1xf32, #tpu.memory_space<vmem>>, vector<64x1xf32>
    %163 = vector.broadcast %162 : vector<64x1xf32> to vector<64x128xf32>
    %164 = arith.addf %161, %163 : vector<64x128xf32>
    %c0_12 = arith.constant 0 : index
    %c0_13 = arith.constant 0 : index
    %165 = vector.load %arg2[%c0_12, %c0_13] : memref<8x128xf32, #tpu.memory_space<vmem>>, vector<8x128xf32>
    %c0_14 = arith.constant 0 : index
    %c0_15 = arith.constant 0 : index
    %166 = vector.load %arg7[%c0_14, %c0_15] : memref<32x64xf32, #tpu.memory_space<vmem>>, vector<32x64xf32>
    %cst_16 = arith.constant dense<0.000000e+00> : vector<32x128xf32>
    %167 = tpu.matmul %166, %164, %cst_16 {dimension_numbers = #tpu.dot_dimension_numbers<[1], [0], [0], [1], [0, 0, 1, 1], [], []>} : vector<32x64xf32>, vector<64x128xf32>, vector<32x128xf32> -> vector<32x128xf32>
    %c0_17 = arith.constant 0 : index
    %c0_18 = arith.constant 0 : index
    %168 = vector.load %arg8[%c0_17, %c0_18] : memref<32x8xf32, #tpu.memory_space<vmem>>, vector<32x8xf32>
    %cst_19 = arith.constant dense<0.000000e+00> : vector<32x128xf32>
    %169 = tpu.matmul %168, %165, %cst_19 {dimension_numbers = #tpu.dot_dimension_numbers<[1], [0], [0], [1], [0, 0, 1, 1], [], []>} : vector<32x8xf32>, vector<8x128xf32>, vector<32x128xf32> -> vector<32x128xf32>
    %170 = arith.addf %167, %169 : vector<32x128xf32>
    %c0_20 = arith.constant 0 : index
    %c0_21 = arith.constant 0 : index
    %171 = vector.load %arg9[%c0_20, %c0_21] : memref<32x1xf32, #tpu.memory_space<vmem>>, vector<32x1xf32>
    %172 = vector.broadcast %171 : vector<32x1xf32> to vector<32x128xf32>
    %173 = arith.addf %170, %172 : vector<32x128xf32>
    %cst_22 = arith.constant 2.000000e+01 : f32
    %174 = vector.broadcast %cst_22 : f32 to vector<32x128xf32>
    %175 = arith.minimumf %173, %174 : vector<32x128xf32>
    %176 = math.exp %175 : vector<32x128xf32>
    %cst_23 = arith.constant 2.000000e+00 : f32
    %177 = vector.broadcast %cst_23 : f32 to vector<32x128xf32>
    %178 = arith.addf %176, %177 : vector<32x128xf32>
    %179 = arith.mulf %176, %178 : vector<32x128xf32>
    %cst_24 = arith.constant 2.000000e+00 : f32
    %180 = vector.broadcast %cst_24 : f32 to vector<32x128xf32>
    %181 = arith.addf %179, %180 : vector<32x128xf32>
    %182 = tpu.reciprocal %181 {approx = true} : vector<32x128xf32> -> vector<32x128xf32>
    %183 = arith.mulf %179, %182 : vector<32x128xf32>
    %184 = arith.mulf %173, %183 : vector<32x128xf32>
    %c0_25 = arith.constant 0 : index
    %c0_26 = arith.constant 0 : index
    %185 = vector.load %arg10[%c0_25, %c0_26] : memref<32x32xf32, #tpu.memory_space<vmem>>, vector<32x32xf32>
    %cst_27 = arith.constant dense<0.000000e+00> : vector<32x128xf32>
    %186 = tpu.matmul %185, %184, %cst_27 {dimension_numbers = #tpu.dot_dimension_numbers<[1], [0], [0], [1], [0, 0, 1, 1], [], []>} : vector<32x32xf32>, vector<32x128xf32>, vector<32x128xf32> -> vector<32x128xf32>
    %c0_28 = arith.constant 0 : index
    %c0_29 = arith.constant 0 : index
    %187 = vector.load %arg11[%c0_28, %c0_29] : memref<32x1xf32, #tpu.memory_space<vmem>>, vector<32x1xf32>
    %188 = vector.broadcast %187 : vector<32x1xf32> to vector<32x128xf32>
    %189 = arith.addf %186, %188 : vector<32x128xf32>
    %cst_30 = arith.constant 2.000000e+01 : f32
    %190 = vector.broadcast %cst_30 : f32 to vector<32x128xf32>
    %191 = arith.minimumf %189, %190 : vector<32x128xf32>
    %192 = math.exp %191 : vector<32x128xf32>
    %cst_31 = arith.constant 2.000000e+00 : f32
    %193 = vector.broadcast %cst_31 : f32 to vector<32x128xf32>
    %194 = arith.addf %192, %193 : vector<32x128xf32>
    %195 = arith.mulf %192, %194 : vector<32x128xf32>
    %cst_32 = arith.constant 2.000000e+00 : f32
    %196 = vector.broadcast %cst_32 : f32 to vector<32x128xf32>
    %197 = arith.addf %195, %196 : vector<32x128xf32>
    %198 = tpu.reciprocal %197 {approx = true} : vector<32x128xf32> -> vector<32x128xf32>
    %199 = arith.mulf %195, %198 : vector<32x128xf32>
    %200 = arith.mulf %189, %199 : vector<32x128xf32>
    %c0_33 = arith.constant 0 : index
    %c0_34 = arith.constant 0 : index
    %201 = vector.load %arg12[%c0_33, %c0_34] : memref<1x32xf32, #tpu.memory_space<vmem>>, vector<1x32xf32>
    %cst_35 = arith.constant dense<0.000000e+00> : vector<1x128xf32>
    %202 = tpu.matmul %201, %200, %cst_35 {dimension_numbers = #tpu.dot_dimension_numbers<[1], [0], [0], [1], [0, 0, 1, 1], [], []>} : vector<1x32xf32>, vector<32x128xf32>, vector<1x128xf32> -> vector<1x128xf32>
    %c0_36 = arith.constant 0 : index
    %c0_37 = arith.constant 0 : index
    %203 = vector.load %arg13[%c0_36, %c0_37] : memref<1x1xf32, #tpu.memory_space<vmem>>, vector<1x1xf32>
    %204 = vector.broadcast %203 : vector<1x1xf32> to vector<1x128xf32>
    %205 = arith.addf %202, %204 : vector<1x128xf32>
    %c0_38 = arith.constant 0 : index
    %c0_39 = arith.constant 0 : index
    %206 = vector.load %arg14[%c0_38, %c0_39] : memref<1x128xf32, #tpu.memory_space<vmem>>, vector<1x128xf32>
    tpu.vector_store %arg14[%c0_38, %c0_39], %205 {strides = array<i32>} : memref<1x128xf32, #tpu.memory_space<vmem>>, vector<1x128xf32>,
    return
  }
  func.func @transform_0(%arg0: i32) -> (i32, i32) {
    %c0_i32 = arith.constant 0 : i32
    %c0_i32_0 = arith.constant 0 : i32
    return %c0_i32, %arg0 : i32, i32
  }
  func.func @transform_1(%arg0: i32) -> (i32, i32) {
    %c0_i32 = arith.constant 0 : i32
    %c0_i32_0 = arith.constant 0 : i32
    return %c0_i32, %arg0 : i32, i32
  }
  func.func @transform_2(%arg0: i32) -> (i32, i32) {
    %c0_i32 = arith.constant 0 : i32
    %c0_i32_0 = arith.constant 0 : i32
    %c0_i32_1 = arith.constant 0 : i32
    return %c0_i32, %c0_i32_0 : i32, i32
  }
  func.func @transform_3(%arg0: i32) -> (i32, i32) {
    %c0_i32 = arith.constant 0 : i32
    %c0_i32_0 = arith.constant 0 : i32
    %c0_i32_1 = arith.constant 0 : i32
    return %c0_i32, %c0_i32_0 : i32, i32
  }
  func.func @transform_4(%arg0: i32) -> (i32, i32) {
    %c0_i32 = arith.constant 0 : i32
    %c0_i32_0 = arith.constant 0 : i32
    %c0_i32_1 = arith.constant 0 : i32
    return %c0_i32, %c0_i32_0 : i32, i32
  }
  func.func @transform_5(%arg0: i32) -> (i32, i32) {
    %c0_i32 = arith.constant 0 : i32
    %c0_i32_0 = arith.constant 0 : i32
    %c0_i32_1 = arith.constant 0 : i32
    return %c0_i32, %c0_i32_0 : i32, i32
  }
  func.func @transform_6(%arg0: i32) -> (i32, i32) {
    %c0_i32 = arith.constant 0 : i32
    %c0_i32_0 = arith.constant 0 : i32
    %c0_i32_1 = arith.constant 0 : i32
    return %c0_i32, %c0_i32_0 : i32, i32
  }
  func.func @transform_7(%arg0: i32) -> (i32, i32) {
    %c0_i32 = arith.constant 0 : i32
    %c0_i32_0 = arith.constant 0 : i32
    %c0_i32_1 = arith.constant 0 : i32
    return %c0_i32, %c0_i32_0 : i32, i32
  }
  func.func @transform_8(%arg0: i32) -> (i32, i32) {
    %c0_i32 = arith.constant 0 : i32
    %c0_i32_0 = arith.constant 0 : i32
    %c0_i32_1 = arith.constant 0 : i32
    return %c0_i32, %c0_i32_0 : i32, i32
  }
  func.func @transform_9(%arg0: i32) -> (i32, i32) {
    %c0_i32 = arith.constant 0 : i32
    %c0_i32_0 = arith.constant 0 : i32
    %c0_i32_1 = arith.constant 0 : i32
    return %c0_i32, %c0_i32_0 : i32, i32
  }
  func.func @transform_10(%arg0: i32) -> (i32, i32) {
    %c0_i32 = arith.constant 0 : i32
    %c0_i32_0 = arith.constant 0 : i32
    %c0_i32_1 = arith.constant 0 : i32
    return %c0_i32, %c0_i32_0 : i32, i32
  }
  func.func @transform_11(%arg0: i32) -> (i32, i32) {
    %c0_i32 = arith.constant 0 : i32
    %c0_i32_0 = arith.constant 0 : i32
    %c0_i32_1 = arith.constant 0 : i32
    return %c0_i32, %c0_i32_0 : i32, i32
  }
  func.func @transform_12(%arg0: i32) -> (i32, i32) {
    %c0_i32 = arith.constant 0 : i32
    %c0_i32_0 = arith.constant 0 : i32
    %c0_i32_1 = arith.constant 0 : i32
    return %c0_i32, %c0_i32_0 : i32, i32
  }
  func.func @transform_13(%arg0: i32) -> (i32, i32) {
    %c0_i32 = arith.constant 0 : i32
    %c0_i32_0 = arith.constant 0 : i32
    return %c0_i32, %arg0 : i32, i32
  }
}

</mosaic_0001>

<llo_original>
// kernel: point_critic_forward.1
$region0: #{point_critic_forward.1}
  #allocation0 [shape = 'u32[]', space=smem, size = 0x4, offset = 0x4, fixed_abs, tag = 'smem constant byte address 0x4 - core index']
  #allocation1 [shape = 'u32[144,128]{1,0:T(1,128)}', space=vmem, size = 0x12000, scoped, tag = 'internal scratch']
  #allocation2 [shape = 'f32[1,1]{1,0:T(1,128)S(1)}', space=vmem, size = 0x200, scoped, tag = 'scoped memory for point_critic_forward.1']
  %s0 = inlined_call_operand.vmem [shape: f32[3,8192], index: 0, kind: input, shape index: {}]
  %s1 = inlined_call_operand.vmem [shape: f32[8,128], index: 1, kind: input, shape index: {}]
  %s2 = inlined_call_operand.vmem [shape: f32[32,3], index: 2, kind: input, shape index: {}]
  %s3 = inlined_call_operand.vmem [shape: f32[32,1], index: 3, kind: input, shape index: {}]
  %s4 = inlined_call_operand.vmem [shape: f32[64,32], index: 4, kind: input, shape index: {}]
  %s5 = inlined_call_operand.vmem [shape: f32[64,1], index: 5, kind: input, shape index: {}]
  %s6 = inlined_call_operand.vmem [shape: f32[32,64], index: 6, kind: input, shape index: {}]
  %s7 = inlined_call_operand.vmem [shape: f32[32,8], index: 7, kind: input, shape index: {}]
  %s8 = inlined_call_operand.vmem [shape: f32[32,1], index: 8, kind: input, shape index: {}]
  %s9 = inlined_call_operand.vmem [shape: f32[32,32], index: 9, kind: input, shape index: {}]
  %s10 = inlined_call_operand.vmem [shape: f32[32,1], index: 10, kind: input, shape index: {}]
  %s11 = inlined_call_operand.vmem [shape: f32[1,32], index: 11, kind: input, shape index: {}]
  %s12 = inlined_call_operand.<no memory space> [shape: f32[1,1], index: 12, kind: input, shape index: {}]
  %s13 = inlined_call_operand.vmem [shape: f32[1,128], index: 13, kind: output, shape index: {}]
  %s14 = sld [smem:[#allocation0]]
  $region62: #{point_critic_forward.1} parent=0
    _
  %s16 = ssub.s32 1, %s14
  %s17 = scalar_select 0, %s16, %s14
  %v18 = vstv %s12
  %19 = vst [vmem:[#allocation2] sm:$0x1] %v18
  // Predicated region
  $region2: #{point_critic_forward.1} parent=0 // pred_check
    _
  $region3: #{point_critic_forward.1} parent=0 // pred_check_branch
    %21 = sbr.rel (0) target = $region5
  $region4: #{point_critic_forward.1} parent=0 // pred_region
    _
  $region5: #{point_critic_forward.1} parent=0 // pred_fallthru
    _
  // Predicated region
  $region6: #{point_critic_forward.1} parent=0 // pred_check
    _
  $region7: #{point_critic_forward.1} parent=0 // pred_check_branch
    %23 = sbr.rel (0) target = $region9
  $region8: #{point_critic_forward.1} parent=0 // pred_region
    _
  $region9: #{point_critic_forward.1} parent=0 // pred_fallthru
    _
  // Predicated region
  $region10: #{point_critic_forward.1} parent=0 // pred_check
    _
  $region11: #{point_critic_forward.1} parent=0 // pred_check_branch
    %25 = sbr.rel (0) target = $region13
  $region12: #{point_critic_forward.1} parent=0 // pred_region
    _
  $region13: #{point_critic_forward.1} parent=0 // pred_fallthru
    _
  // Predicated region
  $region14: #{point_critic_forward.1} parent=0 // pred_check
    _
  $region15: #{point_critic_forward.1} parent=0 // pred_check_branch
    %27 = sbr.rel (0) target = $region17
  $region16: #{point_critic_forward.1} parent=0 // pred_region
    _
  $region17: #{point_critic_forward.1} parent=0 // pred_fallthru
    _
  // Predicated region
  $region18: #{point_critic_forward.1} parent=0 // pred_check
    _
  $region19: #{point_critic_forward.1} parent=0 // pred_check_branch
    %29 = sbr.rel (0) target = $region21
  $region20: #{point_critic_forward.1} parent=0 // pred_region
    _
  $region21: #{point_critic_forward.1} parent=0 // pred_fallthru
    _
  // Predicated region
  $region22: #{point_critic_forward.1} parent=0 // pred_check
    _
  $region23: #{point_critic_forward.1} parent=0 // pred_check_branch
    %31 = sbr.rel (0) target = $region25
  $region24: #{point_critic_forward.1} parent=0 // pred_region
    _
  $region25: #{point_critic_forward.1} parent=0 // pred_fallthru
    _
  // Predicated region
  $region26: #{point_critic_forward.1} parent=0 // pred_check
    _
  $region27: #{point_critic_forward.1} parent=0 // pred_check_branch
    %33 = sbr.rel (0) target = $region29
  $region28: #{point_critic_forward.1} parent=0 // pred_region
    _
  $region29: #{point_critic_forward.1} parent=0 // pred_fallthru
    _
  // Predicated region
  $region30: #{point_critic_forward.1} parent=0 // pred_check
    _
  $region31: #{point_critic_forward.1} parent=0 // pred_check_branch
    %35 = sbr.rel (0) target = $region33
  $region32: #{point_critic_forward.1} parent=0 // pred_region
    _
  $region33: #{point_critic_forward.1} parent=0 // pred_fallthru
    _
  // Predicated region
  $region34: #{point_critic_forward.1} parent=0 // pred_check
    _
  $region35: #{point_critic_forward.1} parent=0 // pred_check_branch
    %37 = sbr.rel (0) target = $region37
  $region36: #{point_critic_forward.1} parent=0 // pred_region
    _
  $region37: #{point_critic_forward.1} parent=0 // pred_fallthru
    _
  // Predicated region
  $region38: #{point_critic_forward.1} parent=0 // pred_check
    _
  $region39: #{point_critic_forward.1} parent=0 // pred_check_branch
    %39 = sbr.rel (0) target = $region41
  $region40: #{point_critic_forward.1} parent=0 // pred_region
    _
  $region41: #{point_critic_forward.1} parent=0 // pred_fallthru
    _
  // Predicated region
  $region42: #{point_critic_forward.1} parent=0 // pred_check
    _
  $region43: #{point_critic_forward.1} parent=0 // pred_check_branch
    %41 = sbr.rel (0) target = $region45
  $region44: #{point_critic_forward.1} parent=0 // pred_region
    _
  $region45: #{point_critic_forward.1} parent=0 // pred_fallthru
    _
  // Predicated region
  $region46: #{point_critic_forward.1} parent=0 // pred_check
    _
  $region47: #{point_critic_forward.1} parent=0 // pred_check_branch
    %43 = sbr.rel (0) target = $region49
  $region48: #{point_critic_forward.1} parent=0 // pred_region
    _
  $region49: #{point_critic_forward.1} parent=0 // pred_fallthru
    _
  // Predicated region
  $region50: #{point_critic_forward.1} parent=0 // pred_check
    _
  $region51: #{point_critic_forward.1} parent=0 // pred_check_branch
    %45 = sbr.rel (0) target = $region53
  $region52: #{point_critic_forward.1} parent=0 // pred_region
    _
  $region53: #{point_critic_forward.1} parent=0 // pred_fallthru
    _
  %v46 = vld [vmem:[%s0] sm:$0x77]
  %v47 = vld [vmem:[%s0 + $0x8] sm:$0x77]
  %v48 = vld [vmem:[%s0 + $0x10] sm:$0x77]
  %v49 = vld [vmem:[%s0 + $0x18] sm:$0x77]
  %v50 = vld [vmem:[%s0 + $0x20] sm:$0x77]
  %v51 = vld [vmem:[%s0 + $0x28] sm:$0x77]
  %v52 = vld [vmem:[%s0 + $0x30] sm:$0x77]
  %v53 = vld [vmem:[%s0 + $0x38] sm:$0x77]
  %v54 = vld [vmem:[%s0 + $0x40] sm:$0x77]
  %v55 = vld [vmem:[%s0 + $0x48] sm:$0x77]
  %v56 = vld [vmem:[%s0 + $0x50] sm:$0x77]
  %v57 = vld [vmem:[%s0 + $0x58] sm:$0x77]
  %v58 = vld [vmem:[%s0 + $0x60] sm:$0x77]
  %v59 = vld [vmem:[%s0 + $0x68] sm:$0x77]
  %v60 = vld [vmem:[%s0 + $0x70] sm:$0x77]
  %v61 = vld [vmem:[%s0 + $0x78] sm:$0x77]
  %v62 = vld [vmem:[%s0 + $0x80] sm:$0x77]
  %v63 = vld [vmem:[%s0 + $0x88] sm:$0x77]
  %v64 = vld [vmem:[%s0 + $0x90] sm:$0x77]
  %v65 = vld [vmem:[%s0 + $0x98] sm:$0x77]
  %v66 = vld [vmem:[%s0 + $0xa0] sm:$0x77]
  %v67 = vld [vmem:[%s0 + $0xa8] sm:$0x77]
  %v68 = vld [vmem:[%s0 + $0xb0] sm:$0x77]
  %v69 = vld [vmem:[%s0 + $0xb8] sm:$0x77]
  %v70 = vld [vmem:[%s0 + $0xc0] sm:$0x77]
  %v71 = vld [vmem:[%s0 + $0xc8] sm:$0x77]
  %v72 = vld [vmem:[%s0 + $0xd0] sm:$0x77]
  %v73 = vld [vmem:[%s0 + $0xd8] sm:$0x77]
  %v74 = vld [vmem:[%s0 + $0xe0] sm:$0x77]
  %v75 = vld [vmem:[%s0 + $0xe8] sm:$0x77]
  %v76 = vld [vmem:[%s0 + $0xf0] sm:$0x77]
  %v77 = vld [vmem:[%s0 + $0xf8] sm:$0x77]
  %v78 = vld [vmem:[%s2] sm:$0xff]
  %v79 = vld [vmem:[%s2 + $0x8] sm:$0xff]
  %v80 = vld [vmem:[%s2 + $0x10] sm:$0xff]
  %v81 = vld [vmem:[%s2 + $0x18] sm:$0xff]
  %83 = vset.pattern.permute.xlu0 0
  %84 = vperm.xlu0 %83, %v78
  %v85 = vpop.permute.xlu0 %84
  %88 = vset.pattern.permute.xlu0 0
  %89 = vperm.xlu0 %88, %v79
  %v90 = vpop.permute.xlu0 %89
  %93 = vset.pattern.permute.xlu0 0
  %94 = vperm.xlu0 %93, %v80
  %v95 = vpop.permute.xlu0 %94
  %98 = vset.pattern.permute.xlu0 0
  %99 = vperm.xlu0 %98, %v81
  %v100 = vpop.permute.xlu0 %99
  %v134 = vlaneseq
  %v135 = vshrl.u32 %v134, 7
  %v136 = vsub.s32 0, %v135
  %v137 = vrot.slane %v46, %v136
  %v138 = vlaneseq
  %v139 = vshrl.u32 %v138, 7
  %v140 = vsub.s32 4, %v139
  %v141 = vrot.slane %v46, %v140
  %v142 = vlaneseq
  %v143 = vshrl.u32 %v142, 7
  %v144 = vsub.s32 0, %v143
  %v145 = vrot.slane %v47, %v144
  %v146 = vlaneseq
  %v147 = vshrl.u32 %v146, 7
  %v148 = vsub.s32 4, %v147
  %v149 = vrot.slane %v47, %v148
  %v150 = vlaneseq
  %v151 = vshrl.u32 %v150, 7
  %v152 = vsub.s32 0, %v151
  %v153 = vrot.slane %v48, %v152
  %v154 = vlaneseq
  %v155 = vshrl.u32 %v154, 7
  %v156 = vsub.s32 4, %v155
  %v157 = vrot.slane %v48, %v156
  %v158 = vlaneseq
  %v159 = vshrl.u32 %v158, 7
  %v160 = vsub.s32 0, %v159
  %v161 = vrot.slane %v49, %v160
  %v162 = vlaneseq
  %v163 = vshrl.u32 %v162, 7
  %v164 = vsub.s32 4, %v163
  %v165 = vrot.slane %v49, %v164
  %v166 = vlaneseq
  %v167 = vshrl.u32 %v166, 7
  %v168 = vsub.s32 0, %v167
  %v169 = vrot.slane %v50, %v168
  %v170 = vlaneseq
  %v171 = vshrl.u32 %v170, 7
  %v172 = vsub.s32 4, %v171
  %v173 = vrot.slane %v50, %v172
  %v174 = vlaneseq
  %v175 = vshrl.u32 %v174, 7
  %v176 = vsub.s32 0, %v175
  %v177 = vrot.slane %v51, %v176
  %v178 = vlaneseq
  %v179 = vshrl.u32 %v178, 7
  %v180 = vsub.s32 4, %v179
  %v181 = vrot.slane %v51, %v180
  %v182 = vlaneseq
  %v183 = vshrl.u32 %v182, 7
  %v184 = vsub.s32 0, %v183
  %v185 = vrot.slane %v52, %v184
  %v186 = vlaneseq
  %v187 = vshrl.u32 %v186, 7
  %v188 = vsub.s32 4, %v187
  %v189 = vrot.slane %v52, %v188
  %v190 = vlaneseq
  %v191 = vshrl.u32 %v190, 7
  %v192 = vsub.s32 0, %v191
  %v193 = vrot.slane %v53, %v192
  %v194 = vlaneseq
  %v195 = vshrl.u32 %v194, 7
  %v196 = vsub.s32 4, %v195
  %v197 = vrot.slane %v53, %v196
  %v198 = vlaneseq
  %v199 = vshrl.u32 %v198, 7
  %v200 = vsub.s32 0, %v199
  %v201 = vrot.slane %v54, %v200
  %v202 = vlaneseq
  %v203 = vshrl.u32 %v202, 7
  %v204 = vsub.s32 4, %v203
  %v205 = vrot.slane %v54, %v204
  %v206 = vlaneseq
  %v207 = vshrl.u32 %v206, 7
  %v208 = vsub.s32 0, %v207
  %v209 = vrot.slane %v55, %v208
  %v210 = vlaneseq
  %v211 = vshrl.u32 %v210, 7
  %v212 = vsub.s32 4, %v211
  %v213 = vrot.slane %v55, %v212
  %v214 = vlaneseq
  %v215 = vshrl.u32 %v214, 7
  %v216 = vsub.s32 0, %v215
  %v217 = vrot.slane %v56, %v216
  %v218 = vlaneseq
  %v219 = vshrl.u32 %v218, 7
  %v220 = vsub.s32 4, %v219
  %v221 = vrot.slane %v56, %v220
  %v222 = vlaneseq
  %v223 = vshrl.u32 %v222, 7
  %v224 = vsub.s32 0, %v223
  %v225 = vrot.slane %v57, %v224
  %v226 = vlaneseq
  %v227 = vshrl.u32 %v226, 7
  %v228 = vsub.s32 4, %v227
  %v229 = vrot.slane %v57, %v228
  %v230 = vlaneseq
  %v231 = vshrl.u32 %v230, 7
  %v232 = vsub.s32 0, %v231
  %v233 = vrot.slane %v58, %v232
  %v234 = vlaneseq
  %v235 = vshrl.u32 %v234, 7
  %v236 = vsub.s32 4, %v235
  %v237 = vrot.slane %v58, %v236
  %v238 = vlaneseq
  %v239 = vshrl.u32 %v238, 7
  %v240 = vsub.s32 0, %v239
  %v241 = vrot.slane %v59, %v240
  %v242 = vlaneseq
  %v243 = vshrl.u32 %v242, 7
  %v244 = vsub.s32 4, %v243
  %v245 = vrot.slane %v59, %v244
  %v246 = vlaneseq
  %v247 = vshrl.u32 %v246, 7
  %v248 = vsub.s32 0, %v247
  %v249 = vrot.slane %v60, %v248
  %v250 = vlaneseq
  %v251 = vshrl.u32 %v250, 7
  %v252 = vsub.s32 4, %v251
  %v253 = vrot.slane %v60, %v252
  %v254 = vlaneseq
  %v255 = vshrl.u32 %v254, 7
  %v256 = vsub.s32 0, %v255
  %v257 = vrot.slane %v61, %v256
  %v258 = vlaneseq
  %v259 = vshrl.u32 %v258, 7
  %v260 = vsub.s32 4, %v259
  %v261 = vrot.slane %v61, %v260
  %v262 = vlaneseq
  %v263 = vshrl.u32 %v262, 7
  %v264 = vsub.s32 0, %v263
  %v265 = vrot.slane %v62, %v264
  %v266 = vlaneseq
  %v267 = vshrl.u32 %v266, 7
  %v268 = vsub.s32 4, %v267
  %v269 = vrot.slane %v62, %v268
  %v270 = vlaneseq
  %v271 = vshrl.u32 %v270, 7
  %v272 = vsub.s32 0, %v271
  %v273 = vrot.slane %v63, %v272
  %v274 = vlaneseq
  %v275 = vshrl.u32 %v274, 7
  %v276 = vsub.s32 4, %v275
  %v277 = vrot.slane %v63, %v276
  %v278 = vlaneseq
  %v279 = vshrl.u32 %v278, 7
  %v280 = vsub.s32 0, %v279
  %v281 = vrot.slane %v64, %v280
  %v282 = vlaneseq
  %v283 = vshrl.u32 %v282, 7
  %v284 = vsub.s32 4, %v283
  %v285 = vrot.slane %v64, %v284
  %v286 = vlaneseq
  %v287 = vshrl.u32 %v286, 7
  %v288 = vsub.s32 0, %v287
  %v289 = vrot.slane %v65, %v288
  %v290 = vlaneseq
  %v291 = vshrl.u32 %v290, 7
  %v292 = vsub.s32 4, %v291
  %v293 = vrot.slane %v65, %v292
  %v294 = vlaneseq
  %v295 = vshrl.u32 %v294, 7
  %v296 = vsub.s32 0, %v295
  %v297 = vrot.slane %v66, %v296
  %v298 = vlaneseq
  %v299 = vshrl.u32 %v298, 7
  %v300 = vsub.s32 4, %v299
  %v301 = vrot.slane %v66, %v300
  %v302 = vlaneseq
  %v303 = vshrl.u32 %v302, 7
  %v304 = vsub.s32 0, %v303
  %v305 = vrot.slane %v67, %v304
  %v306 = vlaneseq
  %v307 = vshrl.u32 %v306, 7
  %v308 = vsub.s32 4, %v307
  %v309 = vrot.slane %v67, %v308
  %v310 = vlaneseq
  %v311 = vshrl.u32 %v310, 7
  %v312 = vsub.s32 0, %v311
  %v313 = vrot.slane %v68, %v312
  %v314 = vlaneseq
  %v315 = vshrl.u32 %v314, 7
  %v316 = vsub.s32 4, %v315
  %v317 = vrot.slane %v68, %v316
  %v318 = vlaneseq
  %v319 = vshrl.u32 %v318, 7
  %v320 = vsub.s32 0, %v319
  %v321 = vrot.slane %v69, %v320
  %v322 = vlaneseq
  %v323 = vshrl.u32 %v322, 7
  %v324 = vsub.s32 4, %v323
  %v325 = vrot.slane %v69, %v324
  %v326 = vlaneseq
  %v327 = vshrl.u32 %v326, 7
  %v328 = vsub.s32 0, %v327
  %v329 = vrot.slane %v70, %v328
  %v330 = vlaneseq
  %v331 = vshrl.u32 %v330, 7
  %v332 = vsub.s32 4, %v331
  %v333 = vrot.slane %v70, %v332
  %v334 = vlaneseq
  %v335 = vshrl.u32 %v334, 7
  %v336 = vsub.s32 0, %v335
  %v337 = vrot.slane %v71, %v336
  %v338 = vlaneseq
  %v339 = vshrl.u32 %v338, 7
  %v340 = vsub.s32 4, %v339
  %v341 = vrot.slane %v71, %v340
  %v342 = vlaneseq
  %v343 = vshrl.u32 %v342, 7
  %v344 = vsub.s32 0, %v343
  %v345 = vrot.slane %v72, %v344
  %v346 = vlaneseq
  %v347 = vshrl.u32 %v346, 7
  %v348 = vsub.s32 4, %v347
  %v349 = vrot.slane %v72, %v348
  %v350 = vlaneseq
  %v351 = vshrl.u32 %v350, 7
  %v352 = vsub.s32 0, %v351
  %v353 = vrot.slane %v73, %v352
  %v354 = vlaneseq
  %v355 = vshrl.u32 %v354, 7
  %v356 = vsub.s32 4, %v355
  %v357 = vrot.slane %v73, %v356
  %v358 = vlaneseq
  %v359 = vshrl.u32 %v358, 7
  %v360 = vsub.s32 0, %v359
  %v361 = vrot.slane %v74, %v360
  %v362 = vlaneseq
  %v363 = vshrl.u32 %v362, 7
  %v364 = vsub.s32 4, %v363
  %v365 = vrot.slane %v74, %v364
  %v366 = vlaneseq
  %v367 = vshrl.u32 %v366, 7
  %v368 = vsub.s32 0, %v367
  %v369 = vrot.slane %v75, %v368
  %v370 = vlaneseq
  %v371 = vshrl.u32 %v370, 7
  %v372 = vsub.s32 4, %v371
  %v373 = vrot.slane %v75, %v372
  %v374 = vlaneseq
  %v375 = vshrl.u32 %v374, 7
  %v376 = vsub.s32 0, %v375
  %v377 = vrot.slane %v76, %v376
  %v378 = vlaneseq
  %v379 = vshrl.u32 %v378, 7
  %v380 = vsub.s32 4, %v379
  %v381 = vrot.slane %v76, %v380
  %v382 = vlaneseq
  %v383 = vshrl.u32 %v382, 7
  %v384 = vsub.s32 0, %v383
  %v385 = vrot.slane %v77, %v384
  %v386 = vlaneseq
  %v387 = vshrl.u32 %v386, 7
  %v388 = vsub.s32 4, %v387
  %v389 = vrot.slane %v77, %v388
  %v454 = vlaneseq
  %v455 = vshrl.u32 %v454, 7
  %v456 = vsub.s32 0, %v455
  %v457 = vrot.slane %v137, %v456
  %v458 = vlaneseq
  %v459 = vshrl.u32 %v458, 7
  %v460 = vsub.s32 0, %v459
  %v461 = vrot.slane %v141, %v460
  %v462 = vlaneseq
  %v463 = vshrl.u32 %v462, 7
  %v464 = vsub.s32 0, %v463
  %v465 = vrot.slane %v145, %v464
  %v466 = vlaneseq
  %v467 = vshrl.u32 %v466, 7
  %v468 = vsub.s32 0, %v467
  %v469 = vrot.slane %v149, %v468
  %v470 = vlaneseq
  %v471 = vshrl.u32 %v470, 7
  %v472 = vsub.s32 0, %v471
  %v473 = vrot.slane %v153, %v472
  %v474 = vlaneseq
  %v475 = vshrl.u32 %v474, 7
  %v476 = vsub.s32 0, %v475
  %v477 = vrot.slane %v157, %v476
  %v478 = vlaneseq
  %v479 = vshrl.u32 %v478, 7
  %v480 = vsub.s32 0, %v479
  %v481 = vrot.slane %v161, %v480
  %v482 = vlaneseq
  %v483 = vshrl.u32 %v482, 7
  %v484 = vsub.s32 0, %v483
  %v485 = vrot.slane %v165, %v484
  %v486 = vlaneseq
  %v487 = vshrl.u32 %v486, 7
  %v488 = vsub.s32 0, %v487
  %v489 = vrot.slane %v169, %v488
  %v490 = vlaneseq
  %v491 = vshrl.u32 %v490, 7
  %v492 = vsub.s32 0, %v491
  %v493 = vrot.slane %v173, %v492
  %v494 = vlaneseq
  %v495 = vshrl.u32 %v494, 7
  %v496 = vsub.s32 0, %v495
  %v497 = vrot.slane %v177, %v496
  %v498 = vlaneseq
  %v499 = vshrl.u32 %v498, 7
  %v500 = vsub.s32 0, %v499
  %v501 = vrot.slane %v181, %v500
  %v502 = vlaneseq
  %v503 = vshrl.u32 %v502, 7
  %v504 = vsub.s32 0, %v503
  %v505 = vrot.slane %v185, %v504
  %v506 = vlaneseq
  %v507 = vshrl.u32 %v506, 7
  %v508 = vsub.s32 0, %v507
  %v509 = vrot.slane %v189, %v508
  %v510 = vlaneseq
  %v511 = vshrl.u32 %v510, 7
  %v512 = vsub.s32 0, %v511
  %v513 = vrot.slane %v193, %v512
  %v514 = vlaneseq
  %v515 = vshrl.u32 %v514, 7
  %v516 = vsub.s32 0, %v515
  %v517 = vrot.slane %v197, %v516
  %v518 = vlaneseq
  %v519 = vshrl.u32 %v518, 7
  %v520 = vsub.s32 0, %v519
  %v521 = vrot.slane %v201, %v520
  %v522 = vlaneseq
  %v523 = vshrl.u32 %v522, 7
  %v524 = vsub.s32 0, %v523
  %v525 = vrot.slane %v205, %v524
  %v526 = vlaneseq
  %v527 = vshrl.u32 %v526, 7
  %v528 = vsub.s32 0, %v527
  %v529 = vrot.slane %v209, %v528
  %v530 = vlaneseq
  %v531 = vshrl.u32 %v530, 7
  %v532 = vsub.s32 0, %v531
  %v533 = vrot.slane %v213, %v532
  %v534 = vlaneseq
  %v535 = vshrl.u32 %v534, 7
  %v536 = vsub.s32 0, %v535
  %v537 = vrot.slane %v217, %v536
  %v538 = vlaneseq
  %v539 = vshrl.u32 %v538, 7
  %v540 = vsub.s32 0, %v539
  %v541 = vrot.slane %v221, %v540
  %v542 = vlaneseq
  %v543 = vshrl.u32 %v542, 7
  %v544 = vsub.s32 0, %v543
  %v545 = vrot.slane %v225, %v544
  %v546 = vlaneseq
  %v547 = vshrl.u32 %v546, 7
  %v548 = vsub.s32 0, %v547
  %v549 = vrot.slane %v229, %v548
  %v550 = vlaneseq
  %v551 = vshrl.u32 %v550, 7
  %v552 = vsub.s32 0, %v551
  %v553 = vrot.slane %v233, %v552
  %v554 = vlaneseq
  %v555 = vshrl.u32 %v554, 7
  %v556 = vsub.s32 0, %v555
  %v557 = vrot.slane %v237, %v556
  %v558 = vlaneseq
  %v559 = vshrl.u32 %v558, 7
  %v560 = vsub.s32 0, %v559
  %v561 = vrot.slane %v241, %v560
  %v562 = vlaneseq
  %v563 = vshrl.u32 %v562, 7
  %v564 = vsub.s32 0, %v563
  %v565 = vrot.slane %v245, %v564
  %v566 = vlaneseq
  %v567 = vshrl.u32 %v566, 7
  %v568 = vsub.s32 0, %v567
  %v569 = vrot.slane %v249, %v568
  %v570 = vlaneseq
  %v571 = vshrl.u32 %v570, 7
  %v572 = vsub.s32 0, %v571
  %v573 = vrot.slane %v253, %v572
  %v574 = vlaneseq
  %v575 = vshrl.u32 %v574, 7
  %v576 = vsub.s32 0, %v575
  %v577 = vrot.slane %v257, %v576
  %v578 = vlaneseq
  %v579 = vshrl.u32 %v578, 7
  %v580 = vsub.s32 0, %v579
  %v581 = vrot.slane %v261, %v580
  %v582 = vlaneseq
  %v583 = vshrl.u32 %v582, 7
  %v584 = vsub.s32 0, %v583
  %v585 = vrot.slane %v265, %v584
  %v586 = vlaneseq
  %v587 = vshrl.u32 %v586, 7
  %v588 = vsub.s32 0, %v587
  %v589 = vrot.slane %v269, %v588
  %v590 = vlaneseq
  %v591 = vshrl.u32 %v590, 7
  %v592 = vsub.s32 0, %v591
  %v593 = vrot.slane %v273, %v592
  %v594 = vlaneseq
  %v595 = vshrl.u32 %v594, 7
  %v596 = vsub.s32 0, %v595
  %v597 = vrot.slane %v277, %v596
  %v598 = vlaneseq
  %v599 = vshrl.u32 %v598, 7
  %v600 = vsub.s32 0, %v599
  %v601 = vrot.slane %v281, %v600
  %v602 = vlaneseq
  %v603 = vshrl.u32 %v602, 7
  %v604 = vsub.s32 0, %v603
  %v605 = vrot.slane %v285, %v604
  %v606 = vlaneseq
  %v607 = vshrl.u32 %v606, 7
  %v608 = vsub.s32 0, %v607
  %v609 = vrot.slane %v289, %v608
  %v610 = vlaneseq
  %v611 = vshrl.u32 %v610, 7
  %v612 = vsub.s32 0, %v611
  %v613 = vrot.slane %v293, %v612
  %v614 = vlaneseq
  %v615 = vshrl.u32 %v614, 7
  %v616 = vsub.s32 0, %v615
  %v617 = vrot.slane %v297, %v616
  %v618 = vlaneseq
  %v619 = vshrl.u32 %v618, 7
  %v620 = vsub.s32 0, %v619
  %v621 = vrot.slane %v301, %v620
  %v622 = vlaneseq
  %v623 = vshrl.u32 %v622, 7
  %v624 = vsub.s32 0, %v623
  %v625 = vrot.slane %v305, %v624
  %v626 = vlaneseq
  %v627 = vshrl.u32 %v626, 7
  %v628 = vsub.s32 0, %v627
  %v629 = vrot.slane %v309, %v628
  %v630 = vlaneseq
  %v631 = vshrl.u32 %v630, 7
  %v632 = vsub.s32 0, %v631
  %v633 = vrot.slane %v313, %v632
  %v634 = vlaneseq
  %v635 = vshrl.u32 %v634, 7
  %v636 = vsub.s32 0, %v635
  %v637 = vrot.slane %v317, %v636
  %v638 = vlaneseq
  %v639 = vshrl.u32 %v638, 7
  %v640 = vsub.s32 0, %v639
  %v641 = vrot.slane %v321, %v640
  %v642 = vlaneseq
  %v643 = vshrl.u32 %v642, 7
  %v644 = vsub.s32 0, %v643
  %v645 = vrot.slane %v325, %v644
  %v646 = vlaneseq
  %v647 = vshrl.u32 %v646, 7
  %v648 = vsub.s32 0, %v647
  %v649 = vrot.slane %v329, %v648
  %v650 = vlaneseq
  %v651 = vshrl.u32 %v650, 7
  %v652 = vsub.s32 0, %v651
  %v653 = vrot.slane %v333, %v652
  %v654 = vlaneseq
  %v655 = vshrl.u32 %v654, 7
  %v656 = vsub.s32 0, %v655
  %v657 = vrot.slane %v337, %v656
  %v658 = vlaneseq
  %v659 = vshrl.u32 %v658, 7
  %v660 = vsub.s32 0, %v659
  %v661 = vrot.slane %v341, %v660
  %v662 = vlaneseq
  %v663 = vshrl.u32 %v662, 7
  %v664 = vsub.s32 0, %v663
  %v665 = vrot.slane %v345, %v664
  %v666 = vlaneseq
  %v667 = vshrl.u32 %v666, 7
  %v668 = vsub.s32 0, %v667
  %v669 = vrot.slane %v349, %v668
  %v670 = vlaneseq
  %v671 = vshrl.u32 %v670, 7
  %v672 = vsub.s32 0, %v671
  %v673 = vrot.slane %v353, %v672
  %v674 = vlaneseq
  %v675 = vshrl.u32 %v674, 7
  %v676 = vsub.s32 0, %v675
  %v677 = vrot.slane %v357, %v676
  %v678 = vlaneseq
  %v679 = vshrl.u32 %v678, 7
  %v680 = vsub.s32 0, %v679
  %v681 = vrot.slane %v361, %v680
  %v682 = vlaneseq
  %v683 = vshrl.u32 %v682, 7
  %v684 = vsub.s32 0, %v683
  %v685 = vrot.slane %v365, %v684
  %v686 = vlaneseq
  %v687 = vshrl.u32 %v686, 7
  %v688 = vsub.s32 0, %v687
  %v689 = vrot.slane %v369, %v688
  %v690 = vlaneseq
  %v691 = vshrl.u32 %v690, 7
  %v692 = vsub.s32 0, %v691
  %v693 = vrot.slane %v373, %v692
  %v694 = vlaneseq
  %v695 = vshrl.u32 %v694, 7
  %v696 = vsub.s32 0, %v695
  %v697 = vrot.slane %v377, %v696
  %v698 = vlaneseq
  %v699 = vshrl.u32 %v698, 7
  %v700 = vsub.s32 0, %v699
  %v701 = vrot.slane %v381, %v700
  %v702 = vlaneseq
  %v703 = vshrl.u32 %v702, 7
  %v704 = vsub.s32 0, %v703
  %v705 = vrot.slane %v385, %v704
  %v706 = vlaneseq
  %v707 = vshrl.u32 %v706, 7
  %v708 = vsub.s32 0, %v707
  %v709 = vrot.slane %v389, %v708
  %v710 = vmul.f32 %v85, %v457
  %v711 = vmul.f32 %v85, %v461
  %v712 = vmul.f32 %v85, %v465
  %v713 = vmul.f32 %v85, %v469
  %v714 = vmul.f32 %v85, %v473
  %v715 = vmul.f32 %v85, %v477
  %v716 = vmul.f32 %v85, %v481
  %v717 = vmul.f32 %v85, %v485
  %v718 = vmul.f32 %v85, %v489
  %v719 = vmul.f32 %v85, %v493
  %v720 = vmul.f32 %v85, %v497
  %v721 = vmul.f32 %v85, %v501
  %v722 = vmul.f32 %v85, %v505
  %v723 = vmul.f32 %v85, %v509
  %v724 = vmul.f32 %v85, %v513
  %v725 = vmul.f32 %v85, %v517
  %v726 = vmul.f32 %v85, %v521
  %v727 = vmul.f32 %v85, %v525
  %v728 = vmul.f32 %v85, %v529
  %v729 = vmul.f32 %v85, %v533
  %v730 = vmul.f32 %v85, %v537
  %v731 = vmul.f32 %v85, %v541
  %v732 = vmul.f32 %v85, %v545
  %v733 = vmul.f32 %v85, %v549
  %v734 = vmul.f32 %v85, %v553
  %v735 = vmul.f32 %v85, %v557
  %v736 = vmul.f32 %v85, %v561
  %v737 = vmul.f32 %v85, %v565
  %v738 = vmul.f32 %v85, %v569
  %v739 = vmul.f32 %v85, %v573
  %v740 = vmul.f32 %v85, %v577
  %v741 = vmul.f32 %v85, %v581
  %v742 = vmul.f32 %v85, %v585
  %v743 = vmul.f32 %v85, %v589
  %v744 = vmul.f32 %v85, %v593
  %v745 = vmul.f32 %v85, %v597
  %v746 = vmul.f32 %v85, %v601
  %v747 = vmul.f32 %v85, %v605
  %v748 = vmul.f32 %v85, %v609
  %v749 = vmul.f32 %v85, %v613
  %v750 = vmul.f32 %v85, %v617
  %v751 = vmul.f32 %v85, %v621
  %v752 = vmul.f32 %v85, %v625
  %v753 = vmul.f32 %v85, %v629
  %v754 = vmul.f32 %v85, %v633
  %v755 = vmul.f32 %v85, %v637
  %v756 = vmul.f32 %v85, %v641
  %v757 = vmul.f32 %v85, %v645
  %v758 = vmul.f32 %v85, %v649
  %v759 = vmul.f32 %v85, %v653
  %v760 = vmul.f32 %v85, %v657
  %v761 = vmul.f32 %v85, %v661
  %v762 = vmul.f32 %v85, %v665
  %v763 = vmul.f32 %v85, %v669
  %v764 = vmul.f32 %v85, %v673
  %v765 = vmul.f32 %v85, %v677
  %v766 = vmul.f32 %v85, %v681
  %v767 = vmul.f32 %v85, %v685
  %v768 = vmul.f32 %v85, %v689
  %v769 = vmul.f32 %v85, %v693
  %v770 = vmul.f32 %v85, %v697
  %v771 = vmul.f32 %v85, %v701
  %v772 = vmul.f32 %v85, %v705
  %v773 = vmul.f32 %v85, %v709
  %v774 = vmul.f32 %v90, %v457
  %v775 = vmul.f32 %v90, %v461
  %v776 = vmul.f32 %v90, %v465
  %v777 = vmul.f32 %v90, %v469
  %v778 = vmul.f32 %v90, %v473
  %v779 = vmul.f32 %v90, %v477
  %v780 = vmul.f32 %v90, %v481
  %v781 = vmul.f32 %v90, %v485
  %v782 = vmul.f32 %v90, %v489
  %v783 = vmul.f32 %v90, %v493
  %v784 = vmul.f32 %v90, %v497
  %v785 = vmul.f32 %v90, %v501
  %v786 = vmul.f32 %v90, %v505
  %v787 = vmul.f32 %v90, %v509
  %v788 = vmul.f32 %v90, %v513
  %v789 = vmul.f32 %v90, %v517
  %v790 = vmul.f32 %v90, %v521
  %v791 = vmul.f32 %v90, %v525
  %v792 = vmul.f32 %v90, %v529
  %v793 = vmul.f32 %v90, %v533
  %v794 = vmul.f32 %v90, %v537
  %v795 = vmul.f32 %v90, %v541
  %v796 = vmul.f32 %v90, %v545
  %v797 = vmul.f32 %v90, %v549
  %v798 = vmul.f32 %v90, %v553
  %v799 = vmul.f32 %v90, %v557
  %v800 = vmul.f32 %v90, %v561
  %v801 = vmul.f32 %v90, %v565
  %v802 = vmul.f32 %v90, %v569
  %v803 = vmul.f32 %v90, %v573
  %v804 = vmul.f32 %v90, %v577
  %v805 = vmul.f32 %v90, %v581
  %v806 = vmul.f32 %v90, %v585
  %v807 = vmul.f32 %v90, %v589
  %v808 = vmul.f32 %v90, %v593
  %v809 = vmul.f32 %v90, %v597
  %v810 = vmul.f32 %v90, %v601
  %v811 = vmul.f32 %v90, %v605
  %v812 = vmul.f32 %v90, %v609
  %v813 = vmul.f32 %v90, %v613
  %v814 = vmul.f32 %v90, %v617
  %v815 = vmul.f32 %v90, %v621
  %v816 = vmul.f32 %v90, %v625
  %v817 = vmul.f32 %v90, %v629
  %v818 = vmul.f32 %v90, %v633
  %v819 = vmul.f32 %v90, %v637
  %v820 = vmul.f32 %v90, %v641
  %v821 = vmul.f32 %v90, %v645
  %v822 = vmul.f32 %v90, %v649
  %v823 = vmul.f32 %v90, %v653
  %v824 = vmul.f32 %v90, %v657
  %v825 = vmul.f32 %v90, %v661
  %v826 = vmul.f32 %v90, %v665
  %v827 = vmul.f32 %v90, %v669
  %v828 = vmul.f32 %v90, %v673
  %v829 = vmul.f32 %v90, %v677
  %v830 = vmul.f32 %v90, %v681
  %v831 = vmul.f32 %v90, %v685
  %v832 = vmul.f32 %v90, %v689
  %v833 = vmul.f32 %v90, %v693
  %v834 = vmul.f32 %v90, %v697
  %v835 = vmul.f32 %v90, %v701
  %v836 = vmul.f32 %v90, %v705
  %v837 = vmul.f32 %v90, %v709
  %v838 = vmul.f32 %v95, %v457
  %v839 = vmul.f32 %v95, %v461
  %v840 = vmul.f32 %v95, %v465
  %v841 = vmul.f32 %v95, %v469
  %v842 = vmul.f32 %v95, %v473
  %v843 = vmul.f32 %v95, %v477
  %v844 = vmul.f32 %v95, %v481
  %v845 = vmul.f32 %v95, %v485
  %v846 = vmul.f32 %v95, %v489
  %v847 = vmul.f32 %v95, %v493
  %v848 = vmul.f32 %v95, %v497
  %v849 = vmul.f32 %v95, %v501
  %v850 = vmul.f32 %v95, %v505
  %v851 = vmul.f32 %v95, %v509
  %v852 = vmul.f32 %v95, %v513
  %v853 = vmul.f32 %v95, %v517
  %v854 = vmul.f32 %v95, %v521
  %v855 = vmul.f32 %v95, %v525
  %v856 = vmul.f32 %v95, %v529
  %v857 = vmul.f32 %v95, %v533
  %v858 = vmul.f32 %v95, %v537
  %v859 = vmul.f32 %v95, %v541
  %v860 = vmul.f32 %v95, %v545
  %v861 = vmul.f32 %v95, %v549
  %v862 = vmul.f32 %v95, %v553
  %v863 = vmul.f32 %v95, %v557
  %v864 = vmul.f32 %v95, %v561
  %v865 = vmul.f32 %v95, %v565
  %v866 = vmul.f32 %v95, %v569
  %v867 = vmul.f32 %v95, %v573
  %v868 = vmul.f32 %v95, %v577
  %v869 = vmul.f32 %v95, %v581
  %v870 = vmul.f32 %v95, %v585
  %v871 = vmul.f32 %v95, %v589
  %v872 = vmul.f32 %v95, %v593
  %v873 = vmul.f32 %v95, %v597
  %v874 = vmul.f32 %v95, %v601
  %v875 = vmul.f32 %v95, %v605
  %v876 = vmul.f32 %v95, %v609
  %v877 = vmul.f32 %v95, %v613
  %v878 = vmul.f32 %v95, %v617
  %v879 = vmul.f32 %v95, %v621
  %v880 = vmul.f32 %v95, %v625
  %v881 = vmul.f32 %v95, %v629
  %v882 = vmul.f32 %v95, %v633
  %v883 = vmul.f32 %v95, %v637
  %v884 = vmul.f32 %v95, %v641
  %v885 = vmul.f32 %v95, %v645
  %v886 = vmul.f32 %v95, %v649
  %v887 = vmul.f32 %v95, %v653
  %v888 = vmul.f32 %v95, %v657
  %v889 = vmul.f32 %v95, %v661
  %v890 = vmul.f32 %v95, %v665
  %v891 = vmul.f32 %v95, %v669
  %v892 = vmul.f32 %v95, %v673
  %v893 = vmul.f32 %v95, %v677
  %v894 = vmul.f32 %v95, %v681
  %v895 = vmul.f32 %v95, %v685
  %v896 = vmul.f32 %v95, %v689
  %v897 = vmul.f32 %v95, %v693
  %v898 = vmul.f32 %v95, %v697
  %v899 = vmul.f32 %v95, %v701
  %v900 = vmul.f32 %v95, %v705
  %v901 = vmul.f32 %v95, %v709
  %v902 = vmul.f32 %v100, %v457
  %v903 = vmul.f32 %v100, %v461
  %v904 = vmul.f32 %v100, %v465
  %v905 = vmul.f32 %v100, %v469
  %v906 = vmul.f32 %v100, %v473
  %v907 = vmul.f32 %v100, %v477
  %v908 = vmul.f32 %v100, %v481
  %v909 = vmul.f32 %v100, %v485
  %v910 = vmul.f32 %v100, %v489
  %v911 = vmul.f32 %v100, %v493
  %v912 = vmul.f32 %v100, %v497
  %v913 = vmul.f32 %v100, %v501
  %v914 = vmul.f32 %v100, %v505
  %v915 = vmul.f32 %v100, %v509
  %v916 = vmul.f32 %v100, %v513
  %v917 = vmul.f32 %v100, %v517
  %v918 = vmul.f32 %v100, %v521
  %v919 = vmul.f32 %v100, %v525
  %v920 = vmul.f32 %v100, %v529
  %v921 = vmul.f32 %v100, %v533
  %v922 = vmul.f32 %v100, %v537
  %v923 = vmul.f32 %v100, %v541
  %v924 = vmul.f32 %v100, %v545
  %v925 = vmul.f32 %v100, %v549
  %v926 = vmul.f32 %v100, %v553
  %v927 = vmul.f32 %v100, %v557
  %v928 = vmul.f32 %v100, %v561
  %v929 = vmul.f32 %v100, %v565
  %v930 = vmul.f32 %v100, %v569
  %v931 = vmul.f32 %v100, %v573
  %v932 = vmul.f32 %v100, %v577
  %v933 = vmul.f32 %v100, %v581
  %v934 = vmul.f32 %v100, %v585
  %v935 = vmul.f32 %v100, %v589
  %v936 = vmul.f32 %v100, %v593
  %v937 = vmul.f32 %v100, %v597
  %v938 = vmul.f32 %v100, %v601
  %v939 = vmul.f32 %v100, %v605
  %v940 = vmul.f32 %v100, %v609
  %v941 = vmul.f32 %v100, %v613
  %v942 = vmul.f32 %v100, %v617
  %v943 = vmul.f32 %v100, %v621
  %v944 = vmul.f32 %v100, %v625
  %v945 = vmul.f32 %v100, %v629
  %v946 = vmul.f32 %v100, %v633
  %v947 = vmul.f32 %v100, %v637
  %v948 = vmul.f32 %v100, %v641
  %v949 = vmul.f32 %v100, %v645
  %v950 = vmul.f32 %v100, %v649
  %v951 = vmul.f32 %v100, %v653
  %v952 = vmul.f32 %v100, %v657
  %v953 = vmul.f32 %v100, %v661
  %v954 = vmul.f32 %v100, %v665
  %v955 = vmul.f32 %v100, %v669
  %v956 = vmul.f32 %v100, %v673
  %v957 = vmul.f32 %v100, %v677
  %v958 = vmul.f32 %v100, %v681
  %v959 = vmul.f32 %v100, %v685
  %v960 = vmul.f32 %v100, %v689
  %v961 = vmul.f32 %v100, %v693
  %v962 = vmul.f32 %v100, %v697
  %v963 = vmul.f32 %v100, %v701
  %v964 = vmul.f32 %v100, %v705
  %v965 = vmul.f32 %v100, %v709
  %966 = vset.pattern.permute.xlu0 1
  %967 = vperm.xlu0 %966, %v78
  %v968 = vpop.permute.xlu0 %967
  %970 = vset.pattern.permute.xlu0 1
  %971 = vperm.xlu0 %970, %v79
  %v972 = vpop.permute.xlu0 %971
  %974 = vset.pattern.permute.xlu0 1
  %975 = vperm.xlu0 %974, %v80
  %v976 = vpop.permute.xlu0 %975
  %978 = vset.pattern.permute.xlu0 1
  %979 = vperm.xlu0 %978, %v81
  %v980 = vpop.permute.xlu0 %979
  %v982 = vlaneseq
  %v983 = vshrl.u32 %v982, 7
  %v984 = vsub.s32 1, %v983
  %v985 = vrot.slane %v46, %v984
  %v986 = vlaneseq
  %v987 = vshrl.u32 %v986, 7
  %v988 = vsub.s32 5, %v987
  %v989 = vrot.slane %v46, %v988
  %v990 = vlaneseq
  %v991 = vshrl.u32 %v990, 7
  %v992 = vsub.s32 1, %v991
  %v993 = vrot.slane %v47, %v992
  %v994 = vlaneseq
  %v995 = vshrl.u32 %v994, 7
  %v996 = vsub.s32 5, %v995
  %v997 = vrot.slane %v47, %v996
  %v998 = vlaneseq
  %v999 = vshrl.u32 %v998, 7
  %v1000 = vsub.s32 1, %v999
  %v1001 = vrot.slane %v48, %v1000
  %v1002 = vlaneseq
  %v1003 = vshrl.u32 %v1002, 7
  %v1004 = vsub.s32 5, %v1003
  %v1005 = vrot.slane %v48, %v1004
  %v1006 = vlaneseq
  %v1007 = vshrl.u32 %v1006, 7
  %v1008 = vsub.s32 1, %v1007
  %v1009 = vrot.slane %v49, %v1008
  %v1010 = vlaneseq
  %v1011 = vshrl.u32 %v1010, 7
  %v1012 = vsub.s32 5, %v1011
  %v1013 = vrot.slane %v49, %v1012
  %v1014 = vlaneseq
  %v1015 = vshrl.u32 %v1014, 7
  %v1016 = vsub.s32 1, %v1015
  %v1017 = vrot.slane %v50, %v1016
  %v1018 = vlaneseq
  %v1019 = vshrl.u32 %v1018, 7
  %v1020 = vsub.s32 5, %v1019
  %v1021 = vrot.slane %v50, %v1020
  %v1022 = vlaneseq
  %v1023 = vshrl.u32 %v1022, 7
  %v1024 = vsub.s32 1, %v1023
  %v1025 = vrot.slane %v51, %v1024
  %v1026 = vlaneseq
  %v1027 = vshrl.u32 %v1026, 7
  %v1028 = vsub.s32 5, %v1027
  %v1029 = vrot.slane %v51, %v1028
  %v1030 = vlaneseq
  %v1031 = vshrl.u32 %v1030, 7
  %v1032 = vsub.s32 1, %v1031
  %v1033 = vrot.slane %v52, %v1032
  %v1034 = vlaneseq
  %v1035 = vshrl.u32 %v1034, 7
  %v1036 = vsub.s32 5, %v1035
  %v1037 = vrot.slane %v52, %v1036
  %v1038 = vlaneseq
  %v1039 = vshrl.u32 %v1038, 7
  %v1040 = vsub.s32 1, %v1039
  %v1041 = vrot.slane %v53, %v1040
  %v1042 = vlaneseq
  %v1043 = vshrl.u32 %v1042, 7
  %v1044 = vsub.s32 5, %v1043
  %v1045 = vrot.slane %v53, %v1044
  %v1046 = vlaneseq
  %v1047 = vshrl.u32 %v1046, 7
  %v1048 = vsub.s32 1, %v1047
  %v1049 = vrot.slane %v54, %v1048
  %v1050 = vlaneseq
  %v1051 = vshrl.u32 %v1050, 7
  %v1052 = vsub.s32 5, %v1051
  %v1053 = vrot.slane %v54, %v1052
  %v1054 = vlaneseq
  %v1055 = vshrl.u32 %v1054, 7
  %v1056 = vsub.s32 1, %v1055
  %v1057 = vrot.slane %v55, %v1056
  %v1058 = vlaneseq
  %v1059 = vshrl.u32 %v1058, 7
  %v1060 = vsub.s32 5, %v1059
  %v1061 = vrot.slane %v55, %v1060
  %v1062 = vlaneseq
  %v1063 = vshrl.u32 %v1062, 7
  %v1064 = vsub.s32 1, %v1063
  %v1065 = vrot.slane %v56, %v1064
  %v1066 = vlaneseq
  %v1067 = vshrl.u32 %v1066, 7
  %v1068 = vsub.s32 5, %v1067
  %v1069 = vrot.slane %v56, %v1068
  %v1070 = vlaneseq
  %v1071 = vshrl.u32 %v1070, 7
  %v1072 = vsub.s32 1, %v1071
  %v1073 = vrot.slane %v57, %v1072
  %v1074 = vlaneseq
  %v1075 = vshrl.u32 %v1074, 7
  %v1076 = vsub.s32 5, %v1075
  %v1077 = vrot.slane %v57, %v1076
  %v1078 = vlaneseq
  %v1079 = vshrl.u32 %v1078, 7
  %v1080 = vsub.s32 1, %v1079
  %v1081 = vrot.slane %v58, %v1080
  %v1082 = vlaneseq
  %v1083 = vshrl.u32 %v1082, 7
  %v1084 = vsub.s32 5, %v1083
  %v1085 = vrot.slane %v58, %v1084
  %v1086 = vlaneseq
  %v1087 = vshrl.u32 %v1086, 7
  %v1088 = vsub.s32 1, %v1087
  %v1089 = vrot.slane %v59, %v1088
  %v1090 = vlaneseq
  %v1091 = vshrl.u32 %v1090, 7
  %v1092 = vsub.s32 5, %v1091
  %v1093 = vrot.slane %v59, %v1092
  %v1094 = vlaneseq
  %v1095 = vshrl.u32 %v1094, 7
  %v1096 = vsub.s32 1, %v1095
  %v1097 = vrot.slane %v60, %v1096
  %v1098 = vlaneseq
  %v1099 = vshrl.u32 %v1098, 7
  %v1100 = vsub.s32 5, %v1099
  %v1101 = vrot.slane %v60, %v1100
  %v1102 = vlaneseq
  %v1103 = vshrl.u32 %v1102, 7
  %v1104 = vsub.s32 1, %v1103
  %v1105 = vrot.slane %v61, %v1104
  %v1106 = vlaneseq
  %v1107 = vshrl.u32 %v1106, 7
  %v1108 = vsub.s32 5, %v1107
  %v1109 = vrot.slane %v61, %v1108
  %v1110 = vlaneseq
  %v1111 = vshrl.u32 %v1110, 7
  %v1112 = vsub.s32 1, %v1111
  %v1113 = vrot.slane %v62, %v1112
  %v1114 = vlaneseq
  %v1115 = vshrl.u32 %v1114, 7
  %v1116 = vsub.s32 5, %v1115
  %v1117 = vrot.slane %v62, %v1116
  %v1118 = vlaneseq
  %v1119 = vshrl.u32 %v1118, 7
  %v1120 = vsub.s32 1, %v1119
  %v1121 = vrot.slane %v63, %v1120
  %v1122 = vlaneseq
  %v1123 = vshrl.u32 %v1122, 7
  %v1124 = vsub.s32 5, %v1123
  %v1125 = vrot.slane %v63, %v1124
  %v1126 = vlaneseq
  %v1127 = vshrl.u32 %v1126, 7
  %v1128 = vsub.s32 1, %v1127
  %v1129 = vrot.slane %v64, %v1128
  %v1130 = vlaneseq
  %v1131 = vshrl.u32 %v1130, 7
  %v1132 = vsub.s32 5, %v1131
  %v1133 = vrot.slane %v64, %v1132
  %v1134 = vlaneseq
  %v1135 = vshrl.u32 %v1134, 7
  %v1136 = vsub.s32 1, %v1135
  %v1137 = vrot.slane %v65, %v1136
  %v1138 = vlaneseq
  %v1139 = vshrl.u32 %v1138, 7
  %v1140 = vsub.s32 5, %v1139
  %v1141 = vrot.slane %v65, %v1140
  %v1142 = vlaneseq
  %v1143 = vshrl.u32 %v1142, 7
  %v1144 = vsub.s32 1, %v1143
  %v1145 = vrot.slane %v66, %v1144
  %v1146 = vlaneseq
  %v1147 = vshrl.u32 %v1146, 7
  %v1148 = vsub.s32 5, %v1147
  %v1149 = vrot.slane %v66, %v1148
  %v1150 = vlaneseq
  %v1151 = vshrl.u32 %v1150, 7
  %v1152 = vsub.s32 1, %v1151
  %v1153 = vrot.slane %v67, %v1152
  %v1154 = vlaneseq
  %v1155 = vshrl.u32 %v1154, 7
  %v1156 = vsub.s32 5, %v1155
  %v1157 = vrot.slane %v67, %v1156
  %v1158 = vlaneseq
  %v1159 = vshrl.u32 %v1158, 7
  %v1160 = vsub.s32 1, %v1159
  %v1161 = vrot.slane %v68, %v1160
  %v1162 = vlaneseq
  %v1163 = vshrl.u32 %v1162, 7
  %v1164 = vsub.s32 5, %v1163
  %v1165 = vrot.slane %v68, %v1164
  %v1166 = vlaneseq
  %v1167 = vshrl.u32 %v1166, 7
  %v1168 = vsub.s32 1, %v1167
  %v1169 = vrot.slane %v69, %v1168
  %v1170 = vlaneseq
  %v1171 = vshrl.u32 %v1170, 7
  %v1172 = vsub.s32 5, %v1171
  %v1173 = vrot.slane %v69, %v1172
  %v1174 = vlaneseq
  %v1175 = vshrl.u32 %v1174, 7
  %v1176 = vsub.s32 1, %v1175
  %v1177 = vrot.slane %v70, %v1176
  %v1178 = vlaneseq
  %v1179 = vshrl.u32 %v1178, 7
  %v1180 = vsub.s32 5, %v1179
  %v1181 = vrot.slane %v70, %v1180
  %v1182 = vlaneseq
  %v1183 = vshrl.u32 %v1182, 7
  %v1184 = vsub.s32 1, %v1183
  %v1185 = vrot.slane %v71, %v1184
  %v1186 = vlaneseq
  %v1187 = vshrl.u32 %v1186, 7
  %v1188 = vsub.s32 5, %v1187
  %v1189 = vrot.slane %v71, %v1188
  %v1190 = vlaneseq
  %v1191 = vshrl.u32 %v1190, 7
  %v1192 = vsub.s32 1, %v1191
  %v1193 = vrot.slane %v72, %v1192
  %v1194 = vlaneseq
  %v1195 = vshrl.u32 %v1194, 7
  %v1196 = vsub.s32 5, %v1195
  %v1197 = vrot.slane %v72, %v1196
  %v1198 = vlaneseq
  %v1199 = vshrl.u32 %v1198, 7
  %v1200 = vsub.s32 1, %v1199
  %v1201 = vrot.slane %v73, %v1200
  %v1202 = vlaneseq
  %v1203 = vshrl.u32 %v1202, 7
  %v1204 = vsub.s32 5, %v1203
  %v1205 = vrot.slane %v73, %v1204
  %v1206 = vlaneseq
  %v1207 = vshrl.u32 %v1206, 7
  %v1208 = vsub.s32 1, %v1207
  %v1209 = vrot.slane %v74, %v1208
  %v1210 = vlaneseq
  %v1211 = vshrl.u32 %v1210, 7
  %v1212 = vsub.s32 5, %v1211
  %v1213 = vrot.slane %v74, %v1212
  %v1214 = vlaneseq
  %v1215 = vshrl.u32 %v1214, 7
  %v1216 = vsub.s32 1, %v1215
  %v1217 = vrot.slane %v75, %v1216
  %v1218 = vlaneseq
  %v1219 = vshrl.u32 %v1218, 7
  %v1220 = vsub.s32 5, %v1219
  %v1221 = vrot.slane %v75, %v1220
  %v1222 = vlaneseq
  %v1223 = vshrl.u32 %v1222, 7
  %v1224 = vsub.s32 1, %v1223
  %v1225 = vrot.slane %v76, %v1224
  %v1226 = vlaneseq
  %v1227 = vshrl.u32 %v1226, 7
  %v1228 = vsub.s32 5, %v1227
  %v1229 = vrot.slane %v76, %v1228
  %v1230 = vlaneseq
  %v1231 = vshrl.u32 %v1230, 7
  %v1232 = vsub.s32 1, %v1231
  %v1233 = vrot.slane %v77, %v1232
  %v1234 = vlaneseq
  %v1235 = vshrl.u32 %v1234, 7
  %v1236 = vsub.s32 5, %v1235
  %v1237 = vrot.slane %v77, %v1236
  %v1302 = vlaneseq
  %v1303 = vshrl.u32 %v1302, 7
  %v1304 = vsub.s32 1, %v1303
  %v1305 = vrot.slane %v985, %v1304
  %v1306 = vlaneseq
  %v1307 = vshrl.u32 %v1306, 7
  %v1308 = vsub.s32 1, %v1307
  %v1309 = vrot.slane %v989, %v1308
  %v1310 = vlaneseq
  %v1311 = vshrl.u32 %v1310, 7
  %v1312 = vsub.s32 1, %v1311
  %v1313 = vrot.slane %v993, %v1312
  %v1314 = vlaneseq
  %v1315 = vshrl.u32 %v1314, 7
  %v1316 = vsub.s32 1, %v1315
  %v1317 = vrot.slane %v997, %v1316
  %v1318 = vlaneseq
  %v1319 = vshrl.u32 %v1318, 7
  %v1320 = vsub.s32 1, %v1319
  %v1321 = vrot.slane %v1001, %v1320
  %v1322 = vlaneseq
  %v1323 = vshrl.u32 %v1322, 7
  %v1324 = vsub.s32 1, %v1323
  %v1325 = vrot.slane %v1005, %v1324
  %v1326 = vlaneseq
  %v1327 = vshrl.u32 %v1326, 7
  %v1328 = vsub.s32 1, %v1327
  %v1329 = vrot.slane %v1009, %v1328
  %v1330 = vlaneseq
  %v1331 = vshrl.u32 %v1330, 7
  %v1332 = vsub.s32 1, %v1331
  %v1333 = vrot.slane %v1013, %v1332
  %v1334 = vlaneseq
  %v1335 = vshrl.u32 %v1334, 7
  %v1336 = vsub.s32 1, %v1335
  %v1337 = vrot.slane %v1017, %v1336
  %v1338 = vlaneseq
  %v1339 = vshrl.u32 %v1338, 7
  %v1340 = vsub.s32 1, %v1339
  %v1341 = vrot.slane %v1021, %v1340
  %v1342 = vlaneseq
  %v1343 = vshrl.u32 %v1342, 7
  %v1344 = vsub.s32 1, %v1343
  %v1345 = vrot.slane %v1025, %v1344
  %v1346 = vlaneseq
  %v1347 = vshrl.u32 %v1346, 7
  %v1348 = vsub.s32 1, %v1347
  %v1349 = vrot.slane %v1029, %v1348
  %v1350 = vlaneseq
  %v1351 = vshrl.u32 %v1350, 7
  %v1352 = vsub.s32 1, %v1351
  %v1353 = vrot.slane %v1033, %v1352
  %v1354 = vlaneseq
  %v1355 = vshrl.u32 %v1354, 7
  %v1356 = vsub.s32 1, %v1355
  %v1357 = vrot.slane %v1037, %v1356
  %v1358 = vlaneseq
  %v1359 = vshrl.u32 %v1358, 7
  %v1360 = vsub.s32 1, %v1359
  %v1361 = vrot.slane %v1041, %v1360
  %v1362 = vlaneseq
  %v1363 = vshrl.u32 %v1362, 7
  %v1364 = vsub.s32 1, %v1363
  %v1365 = vrot.slane %v1045, %v1364
  %v1366 = vlaneseq
  %v1367 = vshrl.u32 %v1366, 7
  %v1368 = vsub.s32 1, %v1367
  %v1369 = vrot.slane %v1049, %v1368
  %v1370 = vlaneseq
  %v1371 = vshrl.u32 %v1370, 7
  %v1372 = vsub.s32 1, %v1371
  %v1373 = vrot.slane %v1053, %v1372
  %v1374 = vlaneseq
  %v1375 = vshrl.u32 %v1374, 7
  %v1376 = vsub.s32 1, %v1375
  %v1377 = vrot.slane %v1057, %v1376
  %v1378 = vlaneseq
  %v1379 = vshrl.u32 %v1378, 7
  %v1380 = vsub.s32 1, %v1379
  %v1381 = vrot.slane %v1061, %v1380
  %v1382 = vlaneseq
  %v1383 = vshrl.u32 %v1382, 7
  %v1384 = vsub.s32 1, %v1383
  %v1385 = vrot.slane %v1065, %v1384
  %v1386 = vlaneseq
  %v1387 = vshrl.u32 %v1386, 7
  %v1388 = vsub.s32 1, %v1387
  %v1389 = vrot.slane %v1069, %v1388
  %v1390 = vlaneseq
  %v1391 = vshrl.u32 %v1390, 7
  %v1392 = vsub.s32 1, %v1391
  %v1393 = vrot.slane %v1073, %v1392
  %v1394 = vlaneseq
  %v1395 = vshrl.u32 %v1394, 7
  %v1396 = vsub.s32 1, %v1395
  %v1397 = vrot.slane %v1077, %v1396
  %v1398 = vlaneseq
  %v1399 = vshrl.u32 %v1398, 7
  %v1400 = vsub.s32 1, %v1399
  %v1401 = vrot.slane %v1081, %v1400
  %v1402 = vlaneseq
  %v1403 = vshrl.u32 %v1402, 7
  %v1404 = vsub.s32 1, %v1403
  %v1405 = vrot.slane %v1085, %v1404
  %v1406 = vlaneseq
  %v1407 = vshrl.u32 %v1406, 7
  %v1408 = vsub.s32 1, %v1407
  %v1409 = vrot.slane %v1089, %v1408
  %v1410 = vlaneseq
  %v1411 = vshrl.u32 %v1410, 7
  %v1412 = vsub.s32 1, %v1411
  %v1413 = vrot.slane %v1093, %v1412
  %v1414 = vlaneseq
  %v1415 = vshrl.u32 %v1414, 7
  %v1416 = vsub.s32 1, %v1415
  %v1417 = vrot.slane %v1097, %v1416
  %v1418 = vlaneseq
  %v1419 = vshrl.u32 %v1418, 7
  %v1420 = vsub.s32 1, %v1419
  %v1421 = vrot.slane %v1101, %v1420
  %v1422 = vlaneseq
  %v1423 = vshrl.u32 %v1422, 7
  %v1424 = vsub.s32 1, %v1423
  %v1425 = vrot.slane %v1105, %v1424
  %v1426 = vlaneseq
  %v1427 = vshrl.u32 %v1426, 7
  %v1428 = vsub.s32 1, %v1427
  %v1429 = vrot.slane %v1109, %v1428
  %v1430 = vlaneseq
  %v1431 = vshrl.u32 %v1430, 7
  %v1432 = vsub.s32 1, %v1431
  %v1433 = vrot.slane %v1113, %v1432
  %v1434 = vlaneseq
  %v1435 = vshrl.u32 %v1434, 7
  %v1436 = vsub.s32 1, %v1435
  %v1437 = vrot.slane %v1117, %v1436
  %v1438 = vlaneseq
  %v1439 = vshrl.u32 %v1438, 7
  %v1440 = vsub.s32 1, %v1439
  %v1441 = vrot.slane %v1121, %v1440
  %v1442 = vlaneseq
  %v1443 = vshrl.u32 %v1442, 7
  %v1444 = vsub.s32 1, %v1443
  %v1445 = vrot.slane %v1125, %v1444
  %v1446 = vlaneseq
  %v1447 = vshrl.u32 %v1446, 7
  %v1448 = vsub.s32 1, %v1447
  %v1449 = vrot.slane %v1129, %v1448
  %v1450 = vlaneseq
  %v1451 = vshrl.u32 %v1450, 7
  %v1452 = vsub.s32 1, %v1451
  %v1453 = vrot.slane %v1133, %v1452
  %v1454 = vlaneseq
  %v1455 = vshrl.u32 %v1454, 7
  %v1456 = vsub.s32 1, %v1455
  %v1457 = vrot.slane %v1137, %v1456
  %v1458 = vlaneseq
  %v1459 = vshrl.u32 %v1458, 7
  %v1460 = vsub.s32 1, %v1459
  %v1461 = vrot.slane %v1141, %v1460
  %v1462 = vlaneseq
  %v1463 = vshrl.u32 %v1462, 7
  %v1464 = vsub.s32 1, %v1463
  %v1465 = vrot.slane %v1145, %v1464
  %v1466 = vlaneseq
  %v1467 = vshrl.u32 %v1466, 7
  %v1468 = vsub.s32 1, %v1467
  %v1469 = vrot.slane %v1149, %v1468
  %v1470 = vlaneseq
  %v1471 = vshrl.u32 %v1470, 7
  %v1472 = vsub.s32 1, %v1471
  %v1473 = vrot.slane %v1153, %v1472
  %v1474 = vlaneseq
  %v1475 = vshrl.u32 %v1474, 7
  %v1476 = vsub.s32 1, %v1475
  %v1477 = vrot.slane %v1157, %v1476
  %v1478 = vlaneseq
  %v1479 = vshrl.u32 %v1478, 7
  %v1480 = vsub.s32 1, %v1479
  %v1481 = vrot.slane %v1161, %v1480
  %v1482 = vlaneseq
  %v1483 = vshrl.u32 %v1482, 7
  %v1484 = vsub.s32 1, %v1483
  %v1485 = vrot.slane %v1165, %v1484
  %v1486 = vlaneseq
  %v1487 = vshrl.u32 %v1486, 7
  %v1488 = vsub.s32 1, %v1487
  %v1489 = vrot.slane %v1169, %v1488
  %v1490 = vlaneseq
  %v1491 = vshrl.u32 %v1490, 7
  %v1492 = vsub.s32 1, %v1491
  %v1493 = vrot.slane %v1173, %v1492
  %v1494 = vlaneseq
  %v1495 = vshrl.u32 %v1494, 7
  %v1496 = vsub.s32 1, %v1495
  %v1497 = vrot.slane %v1177, %v1496
  %v1498 = vlaneseq
  %v1499 = vshrl.u32 %v1498, 7
  %v1500 = vsub.s32 1, %v1499
  %v1501 = vrot.slane %v1181, %v1500
  %v1502 = vlaneseq
  %v1503 = vshrl.u32 %v1502, 7
  %v1504 = vsub.s32 1, %v1503
  %v1505 = vrot.slane %v1185, %v1504
  %v1506 = vlaneseq
  %v1507 = vshrl.u32 %v1506, 7
  %v1508 = vsub.s32 1, %v1507
  %v1509 = vrot.slane %v1189, %v1508
  %v1510 = vlaneseq
  %v1511 = vshrl.u32 %v1510, 7
  %v1512 = vsub.s32 1, %v1511
  %v1513 = vrot.slane %v1193, %v1512
  %v1514 = vlaneseq
  %v1515 = vshrl.u32 %v1514, 7
  %v1516 = vsub.s32 1, %v1515
  %v1517 = vrot.slane %v1197, %v1516
  %v1518 = vlaneseq
  %v1519 = vshrl.u32 %v1518, 7
  %v1520 = vsub.s32 1, %v1519
  %v1521 = vrot.slane %v1201, %v1520
  %v1522 = vlaneseq
  %v1523 = vshrl.u32 %v1522, 7
  %v1524 = vsub.s32 1, %v1523
  %v1525 = vrot.slane %v1205, %v1524
  %v1526 = vlaneseq
  %v1527 = vshrl.u32 %v1526, 7
  %v1528 = vsub.s32 1, %v1527
  %v1529 = vrot.slane %v1209, %v1528
  %v1530 = vlaneseq
  %v1531 = vshrl.u32 %v1530, 7
  %v1532 = vsub.s32 1, %v1531
  %v1533 = vrot.slane %v1213, %v1532
  %v1534 = vlaneseq
  %v1535 = vshrl.u32 %v1534, 7
  %v1536 = vsub.s32 1, %v1535
  %v1537 = vrot.slane %v1217, %v1536
  %v1538 = vlaneseq
  %v1539 = vshrl.u32 %v1538, 7
  %v1540 = vsub.s32 1, %v1539
  %v1541 = vrot.slane %v1221, %v1540
  %v1542 = vlaneseq
  %v1543 = vshrl.u32 %v1542, 7
  %v1544 = vsub.s32 1, %v1543
  %v1545 = vrot.slane %v1225, %v1544
  %v1546 = vlaneseq
  %v1547 = vshrl.u32 %v1546, 7
  %v1548 = vsub.s32 1, %v1547
  %v1549 = vrot.slane %v1229, %v1548
  %v1550 = vlaneseq
  %v1551 = vshrl.u32 %v1550, 7
  %v1552 = vsub.s32 1, %v1551
  %v1553 = vrot.slane %v1233, %v1552
  %v1554 = vlaneseq
  %v1555 = vshrl.u32 %v1554, 7
  %v1556 = vsub.s32 1, %v1555
  %v1557 = vrot.slane %v1237, %v1556
  %v1558 = vmul.f32 %v968, %v1305
  %v1559 = vmul.f32 %v968, %v1309
  %v1560 = vmul.f32 %v968, %v1313
  %v1561 = vmul.f32 %v968, %v1317
  %v1562 = vmul.f32 %v968, %v1321
  %v1563 = vmul.f32 %v968, %v1325
  %v1564 = vmul.f32 %v968, %v1329
  %v1565 = vmul.f32 %v968, %v1333
  %v1566 = vmul.f32 %v968, %v1337
  %v1567 = vmul.f32 %v968, %v1341
  %v1568 = vmul.f32 %v968, %v1345
  %v1569 = vmul.f32 %v968, %v1349
  %v1570 = vmul.f32 %v968, %v1353
  %v1571 = vmul.f32 %v968, %v1357
  %v1572 = vmul.f32 %v968, %v1361
  %v1573 = vmul.f32 %v968, %v1365
  %v1574 = vmul.f32 %v968, %v1369
  %v1575 = vmul.f32 %v968, %v1373
  %v1576 = vmul.f32 %v968, %v1377
  %v1577 = vmul.f32 %v968, %v1381
  %v1578 = vmul.f32 %v968, %v1385
  %v1579 = vmul.f32 %v968, %v1389
  %v1580 = vmul.f32 %v968, %v1393
  %v1581 = vmul.f32 %v968, %v1397
  %v1582 = vmul.f32 %v968, %v1401
  %v1583 = vmul.f32 %v968, %v1405
  %v1584 = vmul.f32 %v968, %v1409
  %v1585 = vmul.f32 %v968, %v1413
  %v1586 = vmul.f32 %v968, %v1417
  %v1587 = vmul.f32 %v968, %v1421
  %v1588 = vmul.f32 %v968, %v1425
  %v1589 = vmul.f32 %v968, %v1429
  %v1590 = vmul.f32 %v968, %v1433
  %v1591 = vmul.f32 %v968, %v1437
  %v1592 = vmul.f32 %v968, %v1441
  %v1593 = vmul.f32 %v968, %v1445
  %v1594 = vmul.f32 %v968, %v1449
  %v1595 = vmul.f32 %v968, %v1453
  %v1596 = vmul.f32 %v968, %v1457
  %v1597 = vmul.f32 %v968, %v1461
  %v1598 = vmul.f32 %v968, %v1465
  %v1599 = vmul.f32 %v968, %v1469
  %v1600 = vmul.f32 %v968, %v1473
  %v1601 = vmul.f32 %v968, %v1477
  %v1602 = vmul.f32 %v968, %v1481
  %v1603 = vmul.f32 %v968, %v1485
  %v1604 = vmul.f32 %v968, %v1489
  %v1605 = vmul.f32 %v968, %v1493
  %v1606 = vmul.f32 %v968, %v1497
  %v1607 = vmul.f32 %v968, %v1501
  %v1608 = vmul.f32 %v968, %v1505
  %v1609 = vmul.f32 %v968, %v1509
  %v1610 = vmul.f32 %v968, %v1513
  %v1611 = vmul.f32 %v968, %v1517
  %v1612 = vmul.f32 %v968, %v1521
  %v1613 = vmul.f32 %v968, %v1525
  %v1614 = vmul.f32 %v968, %v1529
  %v1615 = vmul.f32 %v968, %v1533
  %v1616 = vmul.f32 %v968, %v1537
  %v1617 = vmul.f32 %v968, %v1541
  %v1618 = vmul.f32 %v968, %v1545
  %v1619 = vmul.f32 %v968, %v1549
  %v1620 = vmul.f32 %v968, %v1553
  %v1621 = vmul.f32 %v968, %v1557
  %v1622 = vmul.f32 %v972, %v1305
  %v1623 = vmul.f32 %v972, %v1309
  %v1624 = vmul.f32 %v972, %v1313
  %v1625 = vmul.f32 %v972, %v1317
  %v1626 = vmul.f32 %v972, %v1321
  %v1627 = vmul.f32 %v972, %v1325
  %v1628 = vmul.f32 %v972, %v1329
  %v1629 = vmul.f32 %v972, %v1333
  %v1630 = vmul.f32 %v972, %v1337
  %v1631 = vmul.f32 %v972, %v1341
  %v1632 = vmul.f32 %v972, %v1345
  %v1633 = vmul.f32 %v972, %v1349
  %v1634 = vmul.f32 %v972, %v1353
  %v1635 = vmul.f32 %v972, %v1357
  %v1636 = vmul.f32 %v972, %v1361
  %v1637 = vmul.f32 %v972, %v1365
  %v1638 = vmul.f32 %v972, %v1369
  %v1639 = vmul.f32 %v972, %v1373
  %v1640 = vmul.f32 %v972, %v1377
  %v1641 = vmul.f32 %v972, %v1381
  %v1642 = vmul.f32 %v972, %v1385
  %v1643 = vmul.f32 %v972, %v1389
  %v1644 = vmul.f32 %v972, %v1393
  %v1645 = vmul.f32 %v972, %v1397
  %v1646 = vmul.f32 %v972, %v1401
  %v1647 = vmul.f32 %v972, %v1405
  %v1648 = vmul.f32 %v972, %v1409
  %v1649 = vmul.f32 %v972, %v1413
  %v1650 = vmul.f32 %v972, %v1417
  %v1651 = vmul.f32 %v972, %v1421
  %v1652 = vmul.f32 %v972, %v1425
  %v1653 = vmul.f32 %v972, %v1429
  %v1654 = vmul.f32 %v972, %v1433
  %v1655 = vmul.f32 %v972, %v1437
  %v1656 = vmul.f32 %v972, %v1441
  %v1657 = vmul.f32 %v972, %v1445
  %v1658 = vmul.f32 %v972, %v1449
  %v1659 = vmul.f32 %v972, %v1453
  %v1660 = vmul.f32 %v972, %v1457
  %v1661 = vmul.f32 %v972, %v1461
  %v1662 = vmul.f32 %v972, %v1465
  %v1663 = vmul.f32 %v972, %v1469
  %v1664 = vmul.f32 %v972, %v1473
  %v1665 = vmul.f32 %v972, %v1477
  %v1666 = vmul.f32 %v972, %v1481
  %v1667 = vmul.f32 %v972, %v1485
  %v1668 = vmul.f32 %v972, %v1489
  %v1669 = vmul.f32 %v972, %v1493
  %v1670 = vmul.f32 %v972, %v1497
  %v1671 = vmul.f32 %v972, %v1501
  %v1672 = vmul.f32 %v972, %v1505
  %v1673 = vmul.f32 %v972, %v1509
  %v1674 = vmul.f32 %v972, %v1513
  %v1675 = vmul.f32 %v972, %v1517
  %v1676 = vmul.f32 %v972, %v1521
  %v1677 = vmul.f32 %v972, %v1525
  %v1678 = vmul.f32 %v972, %v1529
  %v1679 = vmul.f32 %v972, %v1533
  %v1680 = vmul.f32 %v972, %v1537
  %v1681 = vmul.f32 %v972, %v1541
  %v1682 = vmul.f32 %v972, %v1545
  %v1683 = vmul.f32 %v972, %v1549
  %v1684 = vmul.f32 %v972, %v1553
  %v1685 = vmul.f32 %v972, %v1557
  %v1686 = vmul.f32 %v976, %v1305
  %v1687 = vmul.f32 %v976, %v1309
  %v1688 = vmul.f32 %v976, %v1313
  %v1689 = vmul.f32 %v976, %v1317
  %v1690 = vmul.f32 %v976, %v1321
  %v1691 = vmul.f32 %v976, %v1325
  %v1692 = vmul.f32 %v976, %v1329
  %v1693 = vmul.f32 %v976, %v1333
  %v1694 = vmul.f32 %v976, %v1337
  %v1695 = vmul.f32 %v976, %v1341
  %v1696 = vmul.f32 %v976, %v1345
  %v1697 = vmul.f32 %v976, %v1349
  %v1698 = vmul.f32 %v976, %v1353
  %v1699 = vmul.f32 %v976, %v1357
  %v1700 = vmul.f32 %v976, %v1361
  %v1701 = vmul.f32 %v976, %v1365
  %v1702 = vmul.f32 %v976, %v1369
  %v1703 = vmul.f32 %v976, %v1373
  %v1704 = vmul.f32 %v976, %v1377
  %v1705 = vmul.f32 %v976, %v1381
  %v1706 = vmul.f32 %v976, %v1385
  %v1707 = vmul.f32 %v976, %v1389
  %v1708 = vmul.f32 %v976, %v1393
  %v1709 = vmul.f32 %v976, %v1397
  %v1710 = vmul.f32 %v976, %v1401
  %v1711 = vmul.f32 %v976, %v1405
  %v1712 = vmul.f32 %v976, %v1409
  %v1713 = vmul.f32 %v976, %v1413
  %v1714 = vmul.f32 %v976, %v1417
  %v1715 = vmul.f32 %v976, %v1421
  %v1716 = vmul.f32 %v976, %v1425
  %v1717 = vmul.f32 %v976, %v1429
  %v1718 = vmul.f32 %v976, %v1433
  %v1719 = vmul.f32 %v976, %v1437
  %v1720 = vmul.f32 %v976, %v1441
  %v1721 = vmul.f32 %v976, %v1445
  %v1722 = vmul.f32 %v976, %v1449
  %v1723 = vmul.f32 %v976, %v1453
  %v1724 = vmul.f32 %v976, %v1457
  %v1725 = vmul.f32 %v976, %v1461
  %v1726 = vmul.f32 %v976, %v1465
  %v1727 = vmul.f32 %v976, %v1469
  %v1728 = vmul.f32 %v976, %v1473
  %v1729 = vmul.f32 %v976, %v1477
  %v1730 = vmul.f32 %v976, %v1481
  %v1731 = vmul.f32 %v976, %v1485
  %v1732 = vmul.f32 %v976, %v1489
  %v1733 = vmul.f32 %v976, %v1493
  %v1734 = vmul.f32 %v976, %v1497
  %v1735 = vmul.f32 %v976, %v1501
  %v1736 = vmul.f32 %v976, %v1505
  %v1737 = vmul.f32 %v976, %v1509
  %v1738 = vmul.f32 %v976, %v1513
  %v1739 = vmul.f32 %v976, %v1517
  %v1740 = vmul.f32 %v976, %v1521
  %v1741 = vmul.f32 %v976, %v1525
  %v1742 = vmul.f32 %v976, %v1529
  %v1743 = vmul.f32 %v976, %v1533
  %v1744 = vmul.f32 %v976, %v1537
  %v1745 = vmul.f32 %v976, %v1541
  %v1746 = vmul.f32 %v976, %v1545
  %v1747 = vmul.f32 %v976, %v1549
  %v1748 = vmul.f32 %v976, %v1553
  %v1749 = vmul.f32 %v976, %v1557
  %v1750 = vmul.f32 %v980, %v1305
  %v1751 = vmul.f32 %v980, %v1309
  %v1752 = vmul.f32 %v980, %v1313
  %v1753 = vmul.f32 %v980, %v1317
  %v1754 = vmul.f32 %v980, %v1321
  %v1755 = vmul.f32 %v980, %v1325
  %v1756 = vmul.f32 %v980, %v1329
  %v1757 = vmul.f32 %v980, %v1333
  %v1758 = vmul.f32 %v980, %v1337
  %v1759 = vmul.f32 %v980, %v1341
  %v1760 = vmul.f32 %v980, %v1345
  %v1761 = vmul.f32 %v980, %v1349
  %v1762 = vmul.f32 %v980, %v1353
  %v1763 = vmul.f32 %v980, %v1357
  %v1764 = vmul.f32 %v980, %v1361
  %v1765 = vmul.f32 %v980, %v1365
  %v1766 = vmul.f32 %v980, %v1369
  %v1767 = vmul.f32 %v980, %v1373
  %v1768 = vmul.f32 %v980, %v1377
  %v1769 = vmul.f32 %v980, %v1381
  %v1770 = vmul.f32 %v980, %v1385
  %v1771 = vmul.f32 %v980, %v1389
  %v1772 = vmul.f32 %v980, %v1393
  %v1773 = vmul.f32 %v980, %v1397
  %v1774 = vmul.f32 %v980, %v1401
  %v1775 = vmul.f32 %v980, %v1405
  %v1776 = vmul.f32 %v980, %v1409
  %v1777 = vmul.f32 %v980, %v1413
  %v1778 = vmul.f32 %v980, %v1417
  %v1779 = vmul.f32 %v980, %v1421
  %v1780 = vmul.f32 %v980, %v1425
  %v1781 = vmul.f32 %v980, %v1429
  %v1782 = vmul.f32 %v980, %v1433
  %v1783 = vmul.f32 %v980, %v1437
  %v1784 = vmul.f32 %v980, %v1441
  %v1785 = vmul.f32 %v980, %v1445
  %v1786 = vmul.f32 %v980, %v1449
  %v1787 = vmul.f32 %v980, %v1453
  %v1788 = vmul.f32 %v980, %v1457
  %v1789 = vmul.f32 %v980, %v1461
  %v1790 = vmul.f32 %v980, %v1465
  %v1791 = vmul.f32 %v980, %v1469
  %v1792 = vmul.f32 %v980, %v1473
  %v1793 = vmul.f32 %v980, %v1477
  %v1794 = vmul.f32 %v980, %v1481
  %v1795 = vmul.f32 %v980, %v1485
  %v1796 = vmul.f32 %v980, %v1489
  %v1797 = vmul.f32 %v980, %v1493
  %v1798 = vmul.f32 %v980, %v1497
  %v1799 = vmul.f32 %v980, %v1501
  %v1800 = vmul.f32 %v980, %v1505
  %v1801 = vmul.f32 %v980, %v1509
  %v1802 = vmul.f32 %v980, %v1513
  %v1803 = vmul.f32 %v980, %v1517
  %v1804 = vmul.f32 %v980, %v1521
  %v1805 = vmul.f32 %v980, %v1525
  %v1806 = vmul.f32 %v980, %v1529
  %v1807 = vmul.f32 %v980, %v1533
  %v1808 = vmul.f32 %v980, %v1537
  %v1809 = vmul.f32 %v980, %v1541
  %v1810 = vmul.f32 %v980, %v1545
  %v1811 = vmul.f32 %v980, %v1549
  %v1812 = vmul.f32 %v980, %v1553
  %v1813 = vmul.f32 %v980, %v1557
  %v1814 = vadd.f32 %v710, %v1558
  %v1815 = vadd.f32 %v711, %v1559
  %v1816 = vadd.f32 %v712, %v1560
  %v1817 = vadd.f32 %v713, %v1561
  %v1818 = vadd.f32 %v714, %v1562
  %v1819 = vadd.f32 %v715, %v1563
  %v1820 = vadd.f32 %v716, %v1564
  %v1821 = vadd.f32 %v717, %v1565
  %v1822 = vadd.f32 %v718, %v1566
  %v1823 = vadd.f32 %v719, %v1567
  %v1824 = vadd.f32 %v720, %v1568
  %v1825 = vadd.f32 %v721, %v1569
  %v1826 = vadd.f32 %v722, %v1570
  %v1827 = vadd.f32 %v723, %v1571
  %v1828 = vadd.f32 %v724, %v1572
  %v1829 = vadd.f32 %v725, %v1573
  %v1830 = vadd.f32 %v726, %v1574
  %v1831 = vadd.f32 %v727, %v1575
  %v1832 = vadd.f32 %v728, %v1576
  %v1833 = vadd.f32 %v729, %v1577
  %v1834 = vadd.f32 %v730, %v1578
  %v1835 = vadd.f32 %v731, %v1579
  %v1836 = vadd.f32 %v732, %v1580
  %v1837 = vadd.f32 %v733, %v1581
  %v1838 = vadd.f32 %v734, %v1582
  %v1839 = vadd.f32 %v735, %v1583
  %v1840 = vadd.f32 %v736, %v1584
  %v1841 = vadd.f32 %v737, %v1585
  %v1842 = vadd.f32 %v738, %v1586
  %v1843 = vadd.f32 %v739, %v1587
  %v1844 = vadd.f32 %v740, %v1588
  %v1845 = vadd.f32 %v741, %v1589
  %v1846 = vadd.f32 %v742, %v1590
  %v1847 = vadd.f32 %v743, %v1591
  %v1848 = vadd.f32 %v744, %v1592
  %v1849 = vadd.f32 %v745, %v1593
  %v1850 = vadd.f32 %v746, %v1594
  %v1851 = vadd.f32 %v747, %v1595
  %v1852 = vadd.f32 %v748, %v1596
  %v1853 = vadd.f32 %v749, %v1597
  %v1854 = vadd.f32 %v750, %v1598
  %v1855 = vadd.f32 %v751, %v1599
  %v1856 = vadd.f32 %v752, %v1600
  %v1857 = vadd.f32 %v753, %v1601
  %v1858 = vadd.f32 %v754, %v1602
  %v1859 = vadd.f32 %v755, %v1603
  %v1860 = vadd.f32 %v756, %v1604
  %v1861 = vadd.f32 %v757, %v1605
  %v1862 = vadd.f32 %v758, %v1606
  %v1863 = vadd.f32 %v759, %v1607
  %v1864 = vadd.f32 %v760, %v1608
  %v1865 = vadd.f32 %v761, %v1609
  %v1866 = vadd.f32 %v762, %v1610
  %v1867 = vadd.f32 %v763, %v1611
  %v1868 = vadd.f32 %v764, %v1612
  %v1869 = vadd.f32 %v765, %v1613
  %v1870 = vadd.f32 %v766, %v1614
  %v1871 = vadd.f32 %v767, %v1615
  %v1872 = vadd.f32 %v768, %v1616
  %v1873 = vadd.f32 %v769, %v1617
  %v1874 = vadd.f32 %v770, %v1618
  %v1875 = vadd.f32 %v771, %v1619
  %v1876 = vadd.f32 %v772, %v1620
  %v1877 = vadd.f32 %v773, %v1621
  %v1878 = vadd.f32 %v774, %v1622
  %v1879 = vadd.f32 %v775, %v1623
  %v1880 = vadd.f32 %v776, %v1624
  %v1881 = vadd.f32 %v777, %v1625
  %v1882 = vadd.f32 %v778, %v1626
  %v1883 = vadd.f32 %v779, %v1627
  %v1884 = vadd.f32 %v780, %v1628
  %v1885 = vadd.f32 %v781, %v1629
  %v1886 = vadd.f32 %v782, %v1630
  %v1887 = vadd.f32 %v783, %v1631
  %v1888 = vadd.f32 %v784, %v1632
  %v1889 = vadd.f32 %v785, %v1633
  %v1890 = vadd.f32 %v786, %v1634
  %v1891 = vadd.f32 %v787, %v1635
  %v1892 = vadd.f32 %v788, %v1636
  %v1893 = vadd.f32 %v789, %v1637
  %v1894 = vadd.f32 %v790, %v1638
  %v1895 = vadd.f32 %v791, %v1639
  %v1896 = vadd.f32 %v792, %v1640
  %v1897 = vadd.f32 %v793, %v1641
  %v1898 = vadd.f32 %v794, %v1642
  %v1899 = vadd.f32 %v795, %v1643
  %v1900 = vadd.f32 %v796, %v1644
  %v1901 = vadd.f32 %v797, %v1645
  %v1902 = vadd.f32 %v798, %v1646
  %v1903 = vadd.f32 %v799, %v1647
  %v1904 = vadd.f32 %v800, %v1648
  %v1905 = vadd.f32 %v801, %v1649
  %v1906 = vadd.f32 %v802, %v1650
  %v1907 = vadd.f32 %v803, %v1651
  %v1908 = vadd.f32 %v804, %v1652
  %v1909 = vadd.f32 %v805, %v1653
  %v1910 = vadd.f32 %v806, %v1654
  %v1911 = vadd.f32 %v807, %v1655
  %v1912 = vadd.f32 %v808, %v1656
  %v1913 = vadd.f32 %v809, %v1657
  %v1914 = vadd.f32 %v810, %v1658
  %v1915 = vadd.f32 %v811, %v1659
  %v1916 = vadd.f32 %v812, %v1660
  %v1917 = vadd.f32 %v813, %v1661
  %v1918 = vadd.f32 %v814, %v1662
  %v1919 = vadd.f32 %v815, %v1663
  %v1920 = vadd.f32 %v816, %v1664
  %v1921 = vadd.f32 %v817, %v1665
  %v1922 = vadd.f32 %v818, %v1666
  %v1923 = vadd.f32 %v819, %v1667
  %v1924 = vadd.f32 %v820, %v1668
  %v1925 = vadd.f32 %v821, %v1669
  %v1926 = vadd.f32 %v822, %v1670
  %v1927 = vadd.f32 %v823, %v1671
  %v1928 = vadd.f32 %v824, %v1672
  %v1929 = vadd.f32 %v825, %v1673
  %v1930 = vadd.f32 %v826, %v1674
  %v1931 = vadd.f32 %v827, %v1675
  %v1932 = vadd.f32 %v828, %v1676
  %v1933 = vadd.f32 %v829, %v1677
  %v1934 = vadd.f32 %v830, %v1678
  %v1935 = vadd.f32 %v831, %v1679
  %v1936 = vadd.f32 %v832, %v1680
  %v1937 = vadd.f32 %v833, %v1681
  %v1938 = vadd.f32 %v834, %v1682
  %v1939 = vadd.f32 %v835, %v1683
  %v1940 = vadd.f32 %v836, %v1684
  %v1941 = vadd.f32 %v837, %v1685
  %v1942 = vadd.f32 %v838, %v1686
  %v1943 = vadd.f32 %v839, %v1687
  %v1944 = vadd.f32 %v840, %v1688
  %v1945 = vadd.f32 %v841, %v1689
  %v1946 = vadd.f32 %v842, %v1690
  %v1947 = vadd.f32 %v843, %v1691
  %v1948 = vadd.f32 %v844, %v1692
  %v1949 = vadd.f32 %v845, %v1693
  %v1950 = vadd.f32 %v846, %v1694
  %v1951 = vadd.f32 %v847, %v1695
  %v1952 = vadd.f32 %v848, %v1696
  %v1953 = vadd.f32 %v849, %v1697
  %v1954 = vadd.f32 %v850, %v1698
  %v1955 = vadd.f32 %v851, %v1699
  %v1956 = vadd.f32 %v852, %v1700
  %v1957 = vadd.f32 %v853, %v1701
  %v1958 = vadd.f32 %v854, %v1702
  %v1959 = vadd.f32 %v855, %v1703
  %v1960 = vadd.f32 %v856, %v1704
  %v1961 = vadd.f32 %v857, %v1705
  %v1962 = vadd.f32 %v858, %v1706
  %v1963 = vadd.f32 %v859, %v1707
  %v1964 = vadd.f32 %v860, %v1708
  %v1965 = vadd.f32 %v861, %v1709
  %v1966 = vadd.f32 %v862, %v1710
  %v1967 = vadd.f32 %v863, %v1711
  %v1968 = vadd.f32 %v864, %v1712
  %v1969 = vadd.f32 %v865, %v1713
  %v1970 = vadd.f32 %v866, %v1714
  %v1971 = vadd.f32 %v867, %v1715
  %v1972 = vadd.f32 %v868, %v1716
  %v1973 = vadd.f32 %v869, %v1717
  %v1974 = vadd.f32 %v870, %v1718
  %v1975 = vadd.f32 %v871, %v1719
  %v1976 = vadd.f32 %v872, %v1720
  %v1977 = vadd.f32 %v873, %v1721
  %v1978 = vadd.f32 %v874, %v1722
  %v1979 = vadd.f32 %v875, %v1723
  %v1980 = vadd.f32 %v876, %v1724
  %v1981 = vadd.f32 %v877, %v1725
  %v1982 = vadd.f32 %v878, %v1726
  %v1983 = vadd.f32 %v879, %v1727
  %v1984 = vadd.f32 %v880, %v1728
  %v1985 = vadd.f32 %v881, %v1729
  %v1986 = vadd.f32 %v882, %v1730
  %v1987 = vadd.f32 %v883, %v1731
  %v1988 = vadd.f32 %v884, %v1732
  %v1989 = vadd.f32 %v885, %v1733
  %v1990 = vadd.f32 %v886, %v1734
  %v1991 = vadd.f32 %v887, %v1735
  %v1992 = vadd.f32 %v888, %v1736
  %v1993 = vadd.f32 %v889, %v1737
  %v1994 = vadd.f32 %v890, %v1738
  %v1995 = vadd.f32 %v891, %v1739
  %v1996 = vadd.f32 %v892, %v1740
  %v1997 = vadd.f32 %v893, %v1741
  %v1998 = vadd.f32 %v894, %v1742
  %v1999 = vadd.f32 %v895, %v1743
  %v2000 = vadd.f32 %v896, %v1744
  %v2001 = vadd.f32 %v897, %v1745
  %v2002 = vadd.f32 %v898, %v1746
  %v2003 = vadd.f32 %v899, %v1747
  %v2004 = vadd.f32 %v900, %v1748
  %v2005 = vadd.f32 %v901, %v1749
  %v2006 = vadd.f32 %v902, %v1750
  %v2007 = vadd.f32 %v903, %v1751
  %v2008 = vadd.f32 %v904, %v1752
  %v2009 = vadd.f32 %v905, %v1753
  %v2010 = vadd.f32 %v906, %v1754
  %v2011 = vadd.f32 %v907, %v1755
  %v2012 = vadd.f32 %v908, %v1756
  %v2013 = vadd.f32 %v909, %v1757
  %v2014 = vadd.f32 %v910, %v1758
  %v2015 = vadd.f32 %v911, %v1759
  %v2016 = vadd.f32 %v912, %v1760
  %v2017 = vadd.f32 %v913, %v1761
  %v2018 = vadd.f32 %v914, %v1762
  %v2019 = vadd.f32 %v915, %v1763
  %v2020 = vadd.f32 %v916, %v1764
  %v2021 = vadd.f32 %v917, %v1765
  %v2022 = vadd.f32 %v918, %v1766
  %v2023 = vadd.f32 %v919, %v1767
  %v2024 = vadd.f32 %v920, %v1768
  %v2025 = vadd.f32 %v921, %v1769
  %v2026 = vadd.f32 %v922, %v1770
  %v2027 = vadd.f32 %v923, %v1771
  %v2028 = vadd.f32 %v924, %v1772
  %v2029 = vadd.f32 %v925, %v1773
  %v2030 = vadd.f32 %v926, %v1774
  %v2031 = vadd.f32 %v927, %v1775
  %v2032 = vadd.f32 %v928, %v1776
  %v2033 = vadd.f32 %v929, %v1777
  %v2034 = vadd.f32 %v930, %v1778
  %v2035 = vadd.f32 %v931, %v1779
  %v2036 = vadd.f32 %v932, %v1780
  %v2037 = vadd.f32 %v933, %v1781
  %v2038 = vadd.f32 %v934, %v1782
  %v2039 = vadd.f32 %v935, %v1783
  %v2040 = vadd.f32 %v936, %v1784
  %v2041 = vadd.f32 %v937, %v1785
  %v2042 = vadd.f32 %v938, %v1786
  %v2043 = vadd.f32 %v939, %v1787
  %v2044 = vadd.f32 %v940, %v1788
  %v2045 = vadd.f32 %v941, %v1789
  %v2046 = vadd.f32 %v942, %v1790
  %v2047 = vadd.f32 %v943, %v1791
  %v2048 = vadd.f32 %v944, %v1792
  %v2049 = vadd.f32 %v945, %v1793
  %v2050 = vadd.f32 %v946, %v1794
  %v2051 = vadd.f32 %v947, %v1795
  %v2052 = vadd.f32 %v948, %v1796
  %v2053 = vadd.f32 %v949, %v1797
  %v2054 = vadd.f32 %v950, %v1798
  %v2055 = vadd.f32 %v951, %v1799
  %v2056 = vadd.f32 %v952, %v1800
  %v2057 = vadd.f32 %v953, %v1801
  %v2058 = vadd.f32 %v954, %v1802
  %v2059 = vadd.f32 %v955, %v1803
  %v2060 = vadd.f32 %v956, %v1804
  %v2061 = vadd.f32 %v957, %v1805
  %v2062 = vadd.f32 %v958, %v1806
  %v2063 = vadd.f32 %v959, %v1807
  %v2064 = vadd.f32 %v960, %v1808
  %v2065 = vadd.f32 %v961, %v1809
  %v2066 = vadd.f32 %v962, %v1810
  %v2067 = vadd.f32 %v963, %v1811
  %v2068 = vadd.f32 %v964, %v1812
  %v2069 = vadd.f32 %v965, %v1813
  %2070 = vset.pattern.permute.xlu0 2
  %2071 = vperm.xlu0 %2070, %v78
  %v2072 = vpop.permute.xlu0 %2071
  %2074 = vset.pattern.permute.xlu0 2
  %2075 = vperm.xlu0 %2074, %v79
  %v2076 = vpop.permute.xlu0 %2075
  %2078 = vset.pattern.permute.xlu0 2
  %2079 = vperm.xlu0 %2078, %v80
  %v2080 = vpop.permute.xlu0 %2079
  %2082 = vset.pattern.permute.xlu0 2
  %2083 = vperm.xlu0 %2082, %v81
  %v2084 = vpop.permute.xlu0 %2083
  %v2086 = vlaneseq
  %v2087 = vshrl.u32 %v2086, 7
  %v2088 = vsub.s32 2, %v2087
  %v2089 = vrot.slane %v46, %v2088
  %v2090 = vlaneseq
  %v2091 = vshrl.u32 %v2090, 7
  %v2092 = vsub.s32 6, %v2091
  %v2093 = vrot.slane %v46, %v2092
  %v2094 = vlaneseq
  %v2095 = vshrl.u32 %v2094, 7
  %v2096 = vsub.s32 2, %v2095
  %v2097 = vrot.slane %v47, %v2096
  %v2098 = vlaneseq
  %v2099 = vshrl.u32 %v2098, 7
  %v2100 = vsub.s32 6, %v2099
  %v2101 = vrot.slane %v47, %v2100
  %v2102 = vlaneseq
  %v2103 = vshrl.u32 %v2102, 7
  %v2104 = vsub.s32 2, %v2103
  %v2105 = vrot.slane %v48, %v2104
  %v2106 = vlaneseq
  %v2107 = vshrl.u32 %v2106, 7
  %v2108 = vsub.s32 6, %v2107
  %v2109 = vrot.slane %v48, %v2108
  %v2110 = vlaneseq
  %v2111 = vshrl.u32 %v2110, 7
  %v2112 = vsub.s32 2, %v2111
  %v2113 = vrot.slane %v49, %v2112
  %v2114 = vlaneseq
  %v2115 = vshrl.u32 %v2114, 7
  %v2116 = vsub.s32 6, %v2115
  %v2117 = vrot.slane %v49, %v2116
  %v2118 = vlaneseq
  %v2119 = vshrl.u32 %v2118, 7
  %v2120 = vsub.s32 2, %v2119
  %v2121 = vrot.slane %v50, %v2120
  %v2122 = vlaneseq
  %v2123 = vshrl.u32 %v2122, 7
  %v2124 = vsub.s32 6, %v2123
  %v2125 = vrot.slane %v50, %v2124
  %v2126 = vlaneseq
  %v2127 = vshrl.u32 %v2126, 7
  %v2128 = vsub.s32 2, %v2127
  %v2129 = vrot.slane %v51, %v2128
  %v2130 = vlaneseq
  %v2131 = vshrl.u32 %v2130, 7
  %v2132 = vsub.s32 6, %v2131
  %v2133 = vrot.slane %v51, %v2132
  %v2134 = vlaneseq
  %v2135 = vshrl.u32 %v2134, 7
  %v2136 = vsub.s32 2, %v2135
  %v2137 = vrot.slane %v52, %v2136
  %v2138 = vlaneseq
  %v2139 = vshrl.u32 %v2138, 7
  %v2140 = vsub.s32 6, %v2139
  %v2141 = vrot.slane %v52, %v2140
  %v2142 = vlaneseq
  %v2143 = vshrl.u32 %v2142, 7
  %v2144 = vsub.s32 2, %v2143
  %v2145 = vrot.slane %v53, %v2144
  %v2146 = vlaneseq
  %v2147 = vshrl.u32 %v2146, 7
  %v2148 = vsub.s32 6, %v2147
  %v2149 = vrot.slane %v53, %v2148
  %v2150 = vlaneseq
  %v2151 = vshrl.u32 %v2150, 7
  %v2152 = vsub.s32 2, %v2151
  %v2153 = vrot.slane %v54, %v2152
  %v2154 = vlaneseq
  %v2155 = vshrl.u32 %v2154, 7
  %v2156 = vsub.s32 6, %v2155
  %v2157 = vrot.slane %v54, %v2156
  %v2158 = vlaneseq
  %v2159 = vshrl.u32 %v2158, 7
  %v2160 = vsub.s32 2, %v2159
  %v2161 = vrot.slane %v55, %v2160
  %v2162 = vlaneseq
  %v2163 = vshrl.u32 %v2162, 7
  %v2164 = vsub.s32 6, %v2163
  %v2165 = vrot.slane %v55, %v2164
  %v2166 = vlaneseq
  %v2167 = vshrl.u32 %v2166, 7
  %v2168 = vsub.s32 2, %v2167
  %v2169 = vrot.slane %v56, %v2168
  %v2170 = vlaneseq
  %v2171 = vshrl.u32 %v2170, 7
  %v2172 = vsub.s32 6, %v2171
  %v2173 = vrot.slane %v56, %v2172
  %v2174 = vlaneseq
  %v2175 = vshrl.u32 %v2174, 7
  %v2176 = vsub.s32 2, %v2175
  %v2177 = vrot.slane %v57, %v2176
  %v2178 = vlaneseq
  %v2179 = vshrl.u32 %v2178, 7
  %v2180 = vsub.s32 6, %v2179
  %v2181 = vrot.slane %v57, %v2180
  %v2182 = vlaneseq
  %v2183 = vshrl.u32 %v2182, 7
  %v2184 = vsub.s32 2, %v2183
  %v2185 = vrot.slane %v58, %v2184
  %v2186 = vlaneseq
  %v2187 = vshrl.u32 %v2186, 7
  %v2188 = vsub.s32 6, %v2187
  %v2189 = vrot.slane %v58, %v2188
  %v2190 = vlaneseq
  %v2191 = vshrl.u32 %v2190, 7
  %v2192 = vsub.s32 2, %v2191
  %v2193 = vrot.slane %v59, %v2192
  %v2194 = vlaneseq
  %v2195 = vshrl.u32 %v2194, 7
  %v2196 = vsub.s32 6, %v2195
  %v2197 = vrot.slane %v59, %v2196
  %v2198 = vlaneseq
  %v2199 = vshrl.u32 %v2198, 7
  %v2200 = vsub.s32 2, %v2199
  %v2201 = vrot.slane %v60, %v2200
  %v2202 = vlaneseq
  %v2203 = vshrl.u32 %v2202, 7
  %v2204 = vsub.s32 6, %v2203
  %v2205 = vrot.slane %v60, %v2204
  %v2206 = vlaneseq
  %v2207 = vshrl.u32 %v2206, 7
  %v2208 = vsub.s32 2, %v2207
  %v2209 = vrot.slane %v61, %v2208
  %v2210 = vlaneseq
  %v2211 = vshrl.u32 %v2210, 7
  %v2212 = vsub.s32 6, %v2211
  %v2213 = vrot.slane %v61, %v2212
  %v2214 = vlaneseq
  %v2215 = vshrl.u32 %v2214, 7
  %v2216 = vsub.s32 2, %v2215
  %v2217 = vrot.slane %v62, %v2216
  %v2218 = vlaneseq
  %v2219 = vshrl.u32 %v2218, 7
  %v2220 = vsub.s32 6, %v2219
  %v2221 = vrot.slane %v62, %v2220
  %v2222 = vlaneseq
  %v2223 = vshrl.u32 %v2222, 7
  %v2224 = vsub.s32 2, %v2223
  %v2225 = vrot.slane %v63, %v2224
  %v2226 = vlaneseq
  %v2227 = vshrl.u32 %v2226, 7
  %v2228 = vsub.s32 6, %v2227
  %v2229 = vrot.slane %v63, %v2228
  %v2230 = vlaneseq
  %v2231 = vshrl.u32 %v2230, 7
  %v2232 = vsub.s32 2, %v2231
  %v2233 = vrot.slane %v64, %v2232
  %v2234 = vlaneseq
  %v2235 = vshrl.u32 %v2234, 7
  %v2236 = vsub.s32 6, %v2235
  %v2237 = vrot.slane %v64, %v2236
  %v2238 = vlaneseq
  %v2239 = vshrl.u32 %v2238, 7
  %v2240 = vsub.s32 2, %v2239
  %v2241 = vrot.slane %v65, %v2240
  %v2242 = vlaneseq
  %v2243 = vshrl.u32 %v2242, 7
  %v2244 = vsub.s32 6, %v2243
  %v2245 = vrot.slane %v65, %v2244
  %v2246 = vlaneseq
  %v2247 = vshrl.u32 %v2246, 7
  %v2248 = vsub.s32 2, %v2247
  %v2249 = vrot.slane %v66, %v2248
  %v2250 = vlaneseq
  %v2251 = vshrl.u32 %v2250, 7
  %v2252 = vsub.s32 6, %v2251
  %v2253 = vrot.slane %v66, %v2252
  %v2254 = vlaneseq
  %v2255 = vshrl.u32 %v2254, 7
  %v2256 = vsub.s32 2, %v2255
  %v2257 = vrot.slane %v67, %v2256
  %v2258 = vlaneseq
  %v2259 = vshrl.u32 %v2258, 7
  %v2260 = vsub.s32 6, %v2259
  %v2261 = vrot.slane %v67, %v2260
  %v2262 = vlaneseq
  %v2263 = vshrl.u32 %v2262, 7
  %v2264 = vsub.s32 2, %v2263
  %v2265 = vrot.slane %v68, %v2264
  %v2266 = vlaneseq
  %v2267 = vshrl.u32 %v2266, 7
  %v2268 = vsub.s32 6, %v2267
  %v2269 = vrot.slane %v68, %v2268
  %v2270 = vlaneseq
  %v2271 = vshrl.u32 %v2270, 7
  %v2272 = vsub.s32 2, %v2271
  %v2273 = vrot.slane %v69, %v2272
  %v2274 = vlaneseq
  %v2275 = vshrl.u32 %v2274, 7
  %v2276 = vsub.s32 6, %v2275
  %v2277 = vrot.slane %v69, %v2276
  %v2278 = vlaneseq
  %v2279 = vshrl.u32 %v2278, 7
  %v2280 = vsub.s32 2, %v2279
  %v2281 = vrot.slane %v70, %v2280
  %v2282 = vlaneseq
  %v2283 = vshrl.u32 %v2282, 7
  %v2284 = vsub.s32 6, %v2283
  %v2285 = vrot.slane %v70, %v2284
  %v2286 = vlaneseq
  %v2287 = vshrl.u32 %v2286, 7
  %v2288 = vsub.s32 2, %v2287
  %v2289 = vrot.slane %v71, %v2288
  %v2290 = vlaneseq
  %v2291 = vshrl.u32 %v2290, 7
  %v2292 = vsub.s32 6, %v2291
  %v2293 = vrot.slane %v71, %v2292
  %v2294 = vlaneseq
  %v2295 = vshrl.u32 %v2294, 7
  %v2296 = vsub.s32 2, %v2295
  %v2297 = vrot.slane %v72, %v2296
  %v2298 = vlaneseq
  %v2299 = vshrl.u32 %v2298, 7
  %v2300 = vsub.s32 6, %v2299
  %v2301 = vrot.slane %v72, %v2300
  %v2302 = vlaneseq
  %v2303 = vshrl.u32 %v2302, 7
  %v2304 = vsub.s32 2, %v2303
  %v2305 = vrot.slane %v73, %v2304
  %v2306 = vlaneseq
  %v2307 = vshrl.u32 %v2306, 7
  %v2308 = vsub.s32 6, %v2307
  %v2309 = vrot.slane %v73, %v2308
  %v2310 = vlaneseq
  %v2311 = vshrl.u32 %v2310, 7
  %v2312 = vsub.s32 2, %v2311
  %v2313 = vrot.slane %v74, %v2312
  %v2314 = vlaneseq
  %v2315 = vshrl.u32 %v2314, 7
  %v2316 = vsub.s32 6, %v2315
  %v2317 = vrot.slane %v74, %v2316
  %v2318 = vlaneseq
  %v2319 = vshrl.u32 %v2318, 7
  %v2320 = vsub.s32 2, %v2319
  %v2321 = vrot.slane %v75, %v2320
  %v2322 = vlaneseq
  %v2323 = vshrl.u32 %v2322, 7
  %v2324 = vsub.s32 6, %v2323
  %v2325 = vrot.slane %v75, %v2324
  %v2326 = vlaneseq
  %v2327 = vshrl.u32 %v2326, 7
  %v2328 = vsub.s32 2, %v2327
  %v2329 = vrot.slane %v76, %v2328
  %v2330 = vlaneseq
  %v2331 = vshrl.u32 %v2330, 7
  %v2332 = vsub.s32 6, %v2331
  %v2333 = vrot.slane %v76, %v2332
  %v2334 = vlaneseq
  %v2335 = vshrl.u32 %v2334, 7
  %v2336 = vsub.s32 2, %v2335
  %v2337 = vrot.slane %v77, %v2336
  %v2338 = vlaneseq
  %v2339 = vshrl.u32 %v2338, 7
  %v2340 = vsub.s32 6, %v2339
  %v2341 = vrot.slane %v77, %v2340
  %v2406 = vlaneseq
  %v2407 = vshrl.u32 %v2406, 7
  %v2408 = vsub.s32 2, %v2407
  %v2409 = vrot.slane %v2089, %v2408
  %v2410 = vlaneseq
  %v2411 = vshrl.u32 %v2410, 7
  %v2412 = vsub.s32 2, %v2411
  %v2413 = vrot.slane %v2093, %v2412
  %v2414 = vlaneseq
  %v2415 = vshrl.u32 %v2414, 7
  %v2416 = vsub.s32 2, %v2415
  %v2417 = vrot.slane %v2097, %v2416
  %v2418 = vlaneseq
  %v2419 = vshrl.u32 %v2418, 7
  %v2420 = vsub.s32 2, %v2419
  %v2421 = vrot.slane %v2101, %v2420
  %v2422 = vlaneseq
  %v2423 = vshrl.u32 %v2422, 7
  %v2424 = vsub.s32 2, %v2423
  %v2425 = vrot.slane %v2105, %v2424
  %v2426 = vlaneseq
  %v2427 = vshrl.u32 %v2426, 7
  %v2428 = vsub.s32 2, %v2427
  %v2429 = vrot.slane %v2109, %v2428
  %v2430 = vlaneseq
  %v2431 = vshrl.u32 %v2430, 7
  %v2432 = vsub.s32 2, %v2431
  %v2433 = vrot.slane %v2113, %v2432
  %v2434 = vlaneseq
  %v2435 = vshrl.u32 %v2434, 7
  %v2436 = vsub.s32 2, %v2435
  %v2437 = vrot.slane %v2117, %v2436
  %v2438 = vlaneseq
  %v2439 = vshrl.u32 %v2438, 7
  %v2440 = vsub.s32 2, %v2439
  %v2441 = vrot.slane %v2121, %v2440
  %v2442 = vlaneseq
  %v2443 = vshrl.u32 %v2442, 7
  %v2444 = vsub.s32 2, %v2443
  %v2445 = vrot.slane %v2125, %v2444
  %v2446 = vlaneseq
  %v2447 = vshrl.u32 %v2446, 7
  %v2448 = vsub.s32 2, %v2447
  %v2449 = vrot.slane %v2129, %v2448
  %v2450 = vlaneseq
  %v2451 = vshrl.u32 %v2450, 7
  %v2452 = vsub.s32 2, %v2451
  %v2453 = vrot.slane %v2133, %v2452
  %v2454 = vlaneseq
  %v2455 = vshrl.u32 %v2454, 7
  %v2456 = vsub.s32 2, %v2455
  %v2457 = vrot.slane %v2137, %v2456
  %v2458 = vlaneseq
  %v2459 = vshrl.u32 %v2458, 7
  %v2460 = vsub.s32 2, %v2459
  %v2461 = vrot.slane %v2141, %v2460
  %v2462 = vlaneseq
  %v2463 = vshrl.u32 %v2462, 7
  %v2464 = vsub.s32 2, %v2463
  %v2465 = vrot.slane %v2145, %v2464
  %v2466 = vlaneseq
  %v2467 = vshrl.u32 %v2466, 7
  %v2468 = vsub.s32 2, %v2467
  %v2469 = vrot.slane %v2149, %v2468
  %v2470 = vlaneseq
  %v2471 = vshrl.u32 %v2470, 7
  %v2472 = vsub.s32 2, %v2471
  %v2473 = vrot.slane %v2153, %v2472
  %v2474 = vlaneseq
  %v2475 = vshrl.u32 %v2474, 7
  %v2476 = vsub.s32 2, %v2475
  %v2477 = vrot.slane %v2157, %v2476
  %v2478 = vlaneseq
  %v2479 = vshrl.u32 %v2478, 7
  %v2480 = vsub.s32 2, %v2479
  %v2481 = vrot.slane %v2161, %v2480
  %v2482 = vlaneseq
  %v2483 = vshrl.u32 %v2482, 7
  %v2484 = vsub.s32 2, %v2483
  %v2485 = vrot.slane %v2165, %v2484
  %v2486 = vlaneseq
  %v2487 = vshrl.u32 %v2486, 7
  %v2488 = vsub.s32 2, %v2487
  %v2489 = vrot.slane %v2169, %v2488
  %v2490 = vlaneseq
  %v2491 = vshrl.u32 %v2490, 7
  %v2492 = vsub.s32 2, %v2491
  %v2493 = vrot.slane %v2173, %v2492
  %v2494 = vlaneseq
  %v2495 = vshrl.u32 %v2494, 7
  %v2496 = vsub.s32 2, %v2495
  %v2497 = vrot.slane %v2177, %v2496
  %v2498 = vlaneseq
  %v2499 = vshrl.u32 %v2498, 7
  %v2500 = vsub.s32 2, %v2499
  %v2501 = vrot.slane %v2181, %v2500
  %v2502 = vlaneseq
  %v2503 = vshrl.u32 %v2502, 7
  %v2504 = vsub.s32 2, %v2503
  %v2505 = vrot.slane %v2185, %v2504
  %v2506 = vlaneseq
  %v2507 = vshrl.u32 %v2506, 7
  %v2508 = vsub.s32 2, %v2507
  %v2509 = vrot.slane %v2189, %v2508
  %v2510 = vlaneseq
  %v2511 = vshrl.u32 %v2510, 7
  %v2512 = vsub.s32 2, %v2511
  %v2513 = vrot.slane %v2193, %v2512
  %v2514 = vlaneseq
  %v2515 = vshrl.u32 %v2514, 7
  %v2516 = vsub.s32 2, %v2515
  %v2517 = vrot.slane %v2197, %v2516
  %v2518 = vlaneseq
  %v2519 = vshrl.u32 %v2518, 7
  %v2520 = vsub.s32 2, %v2519
  %v2521 = vrot.slane %v2201, %v2520
  %v2522 = vlaneseq
  %v2523 = vshrl.u32 %v2522, 7
  %v2524 = vsub.s32 2, %v2523
  %v2525 = vrot.slane %v2205, %v2524
  %v2526 = vlaneseq
  %v2527 = vshrl.u32 %v2526, 7
  %v2528 = vsub.s32 2, %v2527
  %v2529 = vrot.slane %v2209, %v2528
  %v2530 = vlaneseq
  %v2531 = vshrl.u32 %v2530, 7
  %v2532 = vsub.s32 2, %v2531
  %v2533 = vrot.slane %v2213, %v2532
  %v2534 = vlaneseq
  %v2535 = vshrl.u32 %v2534, 7
  %v2536 = vsub.s32 2, %v2535
  %v2537 = vrot.slane %v2217, %v2536
  %v2538 = vlaneseq
  %v2539 = vshrl.u32 %v2538, 7
  %v2540 = vsub.s32 2, %v2539
  %v2541 = vrot.slane %v2221, %v2540
  %v2542 = vlaneseq
  %v2543 = vshrl.u32 %v2542, 7
  %v2544 = vsub.s32 2, %v2543
  %v2545 = vrot.slane %v2225, %v2544
  %v2546 = vlaneseq
  %v2547 = vshrl.u32 %v2546, 7
  %v2548 = vsub.s32 2, %v2547
  %v2549 = vrot.slane %v2229, %v2548
  %v2550 = vlaneseq
  %v2551 = vshrl.u32 %v2550, 7
  %v2552 = vsub.s32 2, %v2551
  %v2553 = vrot.slane %v2233, %v2552
  %v2554 = vlaneseq
  %v2555 = vshrl.u32 %v2554, 7
  %v2556 = vsub.s32 2, %v2555
  %v2557 = vrot.slane %v2237, %v2556
  %v2558 = vlaneseq
  %v2559 = vshrl.u32 %v2558, 7
  %v2560 = vsub.s32 2, %v2559
  %v2561 = vrot.slane %v2241, %v2560
  %v2562 = vlaneseq
  %v2563 = vshrl.u32 %v2562, 7
  %v2564 = vsub.s32 2, %v2563
  %v2565 = vrot.slane %v2245, %v2564
  %v2566 = vlaneseq
  %v2567 = vshrl.u32 %v2566, 7
  %v2568 = vsub.s32 2, %v2567
  %v2569 = vrot.slane %v2249, %v2568
  %v2570 = vlaneseq
  %v2571 = vshrl.u32 %v2570, 7
  %v2572 = vsub.s32 2, %v2571
  %v2573 = vrot.slane %v2253, %v2572
  %v2574 = vlaneseq
  %v2575 = vshrl.u32 %v2574, 7
  %v2576 = vsub.s32 2, %v2575
  %v2577 = vrot.slane %v2257, %v2576
  %v2578 = vlaneseq
  %v2579 = vshrl.u32 %v2578, 7
  %v2580 = vsub.s32 2, %v2579
  %v2581 = vrot.slane %v2261, %v2580
  %v2582 = vlaneseq
  %v2583 = vshrl.u32 %v2582, 7
  %v2584 = vsub.s32 2, %v2583
  %v2585 = vrot.slane %v2265, %v2584
  %v2586 = vlaneseq
  %v2587 = vshrl.u32 %v2586, 7
  %v2588 = vsub.s32 2, %v2587
  %v2589 = vrot.slane %v2269, %v2588
  %v2590 = vlaneseq
  %v2591 = vshrl.u32 %v2590, 7
  %v2592 = vsub.s32 2, %v2591
  %v2593 = vrot.slane %v2273, %v2592
  %v2594 = vlaneseq
  %v2595 = vshrl.u32 %v2594, 7
  %v2596 = vsub.s32 2, %v2595
  %v2597 = vrot.slane %v2277, %v2596
  %v2598 = vlaneseq
  %v2599 = vshrl.u32 %v2598, 7
  %v2600 = vsub.s32 2, %v2599
  %v2601 = vrot.slane %v2281, %v2600
  %v2602 = vlaneseq
  %v2603 = vshrl.u32 %v2602, 7
  %v2604 = vsub.s32 2, %v2603
  %v2605 = vrot.slane %v2285, %v2604
  %v2606 = vlaneseq
  %v2607 = vshrl.u32 %v2606, 7
  %v2608 = vsub.s32 2, %v2607
  %v2609 = vrot.slane %v2289, %v2608
  %v2610 = vlaneseq
  %v2611 = vshrl.u32 %v2610, 7
  %v2612 = vsub.s32 2, %v2611
  %v2613 = vrot.slane %v2293, %v2612
  %v2614 = vlaneseq
  %v2615 = vshrl.u32 %v2614, 7
  %v2616 = vsub.s32 2, %v2615
  %v2617 = vrot.slane %v2297, %v2616
  %v2618 = vlaneseq
  %v2619 = vshrl.u32 %v2618, 7
  %v2620 = vsub.s32 2, %v2619
  %v2621 = vrot.slane %v2301, %v2620
  %v2622 = vlaneseq
  %v2623 = vshrl.u32 %v2622, 7
  %v2624 = vsub.s32 2, %v2623
  %v2625 = vrot.slane %v2305, %v2624
  %v2626 = vlaneseq
  %v2627 = vshrl.u32 %v2626, 7
  %v2628 = vsub.s32 2, %v2627
  %v2629 = vrot.slane %v2309, %v2628
  %v2630 = vlaneseq
  %v2631 = vshrl.u32 %v2630, 7
  %v2632 = vsub.s32 2, %v2631
  %v2633 = vrot.slane %v2313, %v2632
  %v2634 = vlaneseq
  %v2635 = vshrl.u32 %v2634, 7
  %v2636 = vsub.s32 2, %v2635
  %v2637 = vrot.slane %v2317, %v2636
  %v2638 = vlaneseq
  %v2639 = vshrl.u32 %v2638, 7
  %v2640 = vsub.s32 2, %v2639
  %v2641 = vrot.slane %v2321, %v2640
  %v2642 = vlaneseq
  %v2643 = vshrl.u32 %v2642, 7
  %v2644 = vsub.s32 2, %v2643
  %v2645 = vrot.slane %v2325, %v2644
  %v2646 = vlaneseq
  %v2647 = vshrl.u32 %v2646, 7
  %v2648 = vsub.s32 2, %v2647
  %v2649 = vrot.slane %v2329, %v2648
  %v2650 = vlaneseq
  %v2651 = vshrl.u32 %v2650, 7
  %v2652 = vsub.s32 2, %v2651
  %v2653 = vrot.slane %v2333, %v2652
  %v2654 = vlaneseq
  %v2655 = vshrl.u32 %v2654, 7
  %v2656 = vsub.s32 2, %v2655
  %v2657 = vrot.slane %v2337, %v2656
  %v2658 = vlaneseq
  %v2659 = vshrl.u32 %v2658, 7
  %v2660 = vsub.s32 2, %v2659
  %v2661 = vrot.slane %v2341, %v2660
  %v2662 = vmul.f32 %v2072, %v2409
  %v2663 = vmul.f32 %v2072, %v2413
  %v2664 = vmul.f32 %v2072, %v2417
  %v2665 = vmul.f32 %v2072, %v2421
  %v2666 = vmul.f32 %v2072, %v2425
  %v2667 = vmul.f32 %v2072, %v2429
  %v2668 = vmul.f32 %v2072, %v2433
  %v2669 = vmul.f32 %v2072, %v2437
  %v2670 = vmul.f32 %v2072, %v2441
  %v2671 = vmul.f32 %v2072, %v2445
  %v2672 = vmul.f32 %v2072, %v2449
  %v2673 = vmul.f32 %v2072, %v2453
  %v2674 = vmul.f32 %v2072, %v2457
  %v2675 = vmul.f32 %v2072, %v2461
  %v2676 = vmul.f32 %v2072, %v2465
  %v2677 = vmul.f32 %v2072, %v2469
  %v2678 = vmul.f32 %v2072, %v2473
  %v2679 = vmul.f32 %v2072, %v2477
  %v2680 = vmul.f32 %v2072, %v2481
  %v2681 = vmul.f32 %v2072, %v2485
  %v2682 = vmul.f32 %v2072, %v2489
  %v2683 = vmul.f32 %v2072, %v2493
  %v2684 = vmul.f32 %v2072, %v2497
  %v2685 = vmul.f32 %v2072, %v2501
  %v2686 = vmul.f32 %v2072, %v2505
  %v2687 = vmul.f32 %v2072, %v2509
  %v2688 = vmul.f32 %v2072, %v2513
  %v2689 = vmul.f32 %v2072, %v2517
  %v2690 = vmul.f32 %v2072, %v2521
  %v2691 = vmul.f32 %v2072, %v2525
  %v2692 = vmul.f32 %v2072, %v2529
  %v2693 = vmul.f32 %v2072, %v2533
  %v2694 = vmul.f32 %v2072, %v2537
  %v2695 = vmul.f32 %v2072, %v2541
  %v2696 = vmul.f32 %v2072, %v2545
  %v2697 = vmul.f32 %v2072, %v2549
  %v2698 = vmul.f32 %v2072, %v2553
  %v2699 = vmul.f32 %v2072, %v2557
  %v2700 = vmul.f32 %v2072, %v2561
  %v2701 = vmul.f32 %v2072, %v2565
  %v2702 = vmul.f32 %v2072, %v2569
  %v2703 = vmul.f32 %v2072, %v2573
  %v2704 = vmul.f32 %v2072, %v2577
  %v2705 = vmul.f32 %v2072, %v2581
  %v2706 = vmul.f32 %v2072, %v2585
  %v2707 = vmul.f32 %v2072, %v2589
  %v2708 = vmul.f32 %v2072, %v2593
  %v2709 = vmul.f32 %v2072, %v2597
  %v2710 = vmul.f32 %v2072, %v2601
  %v2711 = vmul.f32 %v2072, %v2605
  %v2712 = vmul.f32 %v2072, %v2609
  %v2713 = vmul.f32 %v2072, %v2613
  %v2714 = vmul.f32 %v2072, %v2617
  %v2715 = vmul.f32 %v2072, %v2621
  %v2716 = vmul.f32 %v2072, %v2625
  %v2717 = vmul.f32 %v2072, %v2629
  %v2718 = vmul.f32 %v2072, %v2633
  %v2719 = vmul.f32 %v2072, %v2637
  %v2720 = vmul.f32 %v2072, %v2641
  %v2721 = vmul.f32 %v2072, %v2645
  %v2722 = vmul.f32 %v2072, %v2649
  %v2723 = vmul.f32 %v2072, %v2653
  %v2724 = vmul.f32 %v2072, %v2657
  %v2725 = vmul.f32 %v2072, %v2661
  %v2726 = vmul.f32 %v2076, %v2409
  %v2727 = vmul.f32 %v2076, %v2413
  %v2728 = vmul.f32 %v2076, %v2417
  %v2729 = vmul.f32 %v2076, %v2421
  %v2730 = vmul.f32 %v2076, %v2425
  %v2731 = vmul.f32 %v2076, %v2429
  %v2732 = vmul.f32 %v2076, %v2433
  %v2733 = vmul.f32 %v2076, %v2437
  %v2734 = vmul.f32 %v2076, %v2441
  %v2735 = vmul.f32 %v2076, %v2445
  %v2736 = vmul.f32 %v2076, %v2449
  %v2737 = vmul.f32 %v2076, %v2453
  %v2738 = vmul.f32 %v2076, %v2457
  %v2739 = vmul.f32 %v2076, %v2461
  %v2740 = vmul.f32 %v2076, %v2465
  %v2741 = vmul.f32 %v2076, %v2469
  %v2742 = vmul.f32 %v2076, %v2473
  %v2743 = vmul.f32 %v2076, %v2477
  %v2744 = vmul.f32 %v2076, %v2481
  %v2745 = vmul.f32 %v2076, %v2485
  %v2746 = vmul.f32 %v2076, %v2489
  %v2747 = vmul.f32 %v2076, %v2493
  %v2748 = vmul.f32 %v2076, %v2497
  %v2749 = vmul.f32 %v2076, %v2501
  %v2750 = vmul.f32 %v2076, %v2505
  %v2751 = vmul.f32 %v2076, %v2509
  %v2752 = vmul.f32 %v2076, %v2513
  %v2753 = vmul.f32 %v2076, %v2517
  %v2754 = vmul.f32 %v2076, %v2521
  %v2755 = vmul.f32 %v2076, %v2525
  %v2756 = vmul.f32 %v2076, %v2529
  %v2757 = vmul.f32 %v2076, %v2533
  %v2758 = vmul.f32 %v2076, %v2537
  %v2759 = vmul.f32 %v2076, %v2541
  %v2760 = vmul.f32 %v2076, %v2545
  %v2761 = vmul.f32 %v2076, %v2549
  %v2762 = vmul.f32 %v2076, %v2553
  %v2763 = vmul.f32 %v2076, %v2557
  %v2764 = vmul.f32 %v2076, %v2561
  %v2765 = vmul.f32 %v2076, %v2565
  %v2766 = vmul.f32 %v2076, %v2569
  %v2767 = vmul.f32 %v2076, %v2573
  %v2768 = vmul.f32 %v2076, %v2577
  %v2769 = vmul.f32 %v2076, %v2581
  %v2770 = vmul.f32 %v2076, %v2585
  %v2771 = vmul.f32 %v2076, %v2589
  %v2772 = vmul.f32 %v2076, %v2593
  %v2773 = vmul.f32 %v2076, %v2597
  %v2774 = vmul.f32 %v2076, %v2601
  %v2775 = vmul.f32 %v2076, %v2605
  %v2776 = vmul.f32 %v2076, %v2609
  %v2777 = vmul.f32 %v2076, %v2613
  %v2778 = vmul.f32 %v2076, %v2617
  %v2779 = vmul.f32 %v2076, %v2621
  %v2780 = vmul.f32 %v2076, %v2625
  %v2781 = vmul.f32 %v2076, %v2629
  %v2782 = vmul.f32 %v2076, %v2633
  %v2783 = vmul.f32 %v2076, %v2637
  %v2784 = vmul.f32 %v2076, %v2641
  %v2785 = vmul.f32 %v2076, %v2645
  %v2786 = vmul.f32 %v2076, %v2649
  %v2787 = vmul.f32 %v2076, %v2653
  %v2788 = vmul.f32 %v2076, %v2657
  %v2789 = vmul.f32 %v2076, %v2661
  %v2790 = vmul.f32 %v2080, %v2409
  %v2791 = vmul.f32 %v2080, %v2413
  %v2792 = vmul.f32 %v2080, %v2417
  %v2793 = vmul.f32 %v2080, %v2421
  %v2794 = vmul.f32 %v2080, %v2425
  %v2795 = vmul.f32 %v2080, %v2429
  %v2796 = vmul.f32 %v2080, %v2433
  %v2797 = vmul.f32 %v2080, %v2437
  %v2798 = vmul.f32 %v2080, %v2441
  %v2799 = vmul.f32 %v2080, %v2445
  %v2800 = vmul.f32 %v2080, %v2449
  %v2801 = vmul.f32 %v2080, %v2453
  %v2802 = vmul.f32 %v2080, %v2457
  %v2803 = vmul.f32 %v2080, %v2461
  %v2804 = vmul.f32 %v2080, %v2465
  %v2805 = vmul.f32 %v2080, %v2469
  %v2806 = vmul.f32 %v2080, %v2473
  %v2807 = vmul.f32 %v2080, %v2477
  %v2808 = vmul.f32 %v2080, %v2481
  %v2809 = vmul.f32 %v2080, %v2485
  %v2810 = vmul.f32 %v2080, %v2489
  %v2811 = vmul.f32 %v2080, %v2493
  %v2812 = vmul.f32 %v2080, %v2497
  %v2813 = vmul.f32 %v2080, %v2501
  %v2814 = vmul.f32 %v2080, %v2505
  %v2815 = vmul.f32 %v2080, %v2509
  %v2816 = vmul.f32 %v2080, %v2513
  %v2817 = vmul.f32 %v2080, %v2517
  %v2818 = vmul.f32 %v2080, %v2521
  %v2819 = vmul.f32 %v2080, %v2525
  %v2820 = vmul.f32 %v2080, %v2529
  %v2821 = vmul.f32 %v2080, %v2533
  %v2822 = vmul.f32 %v2080, %v2537
  %v2823 = vmul.f32 %v2080, %v2541
  %v2824 = vmul.f32 %v2080, %v2545
  %v2825 = vmul.f32 %v2080, %v2549
  %v2826 = vmul.f32 %v2080, %v2553
  %v2827 = vmul.f32 %v2080, %v2557
  %v2828 = vmul.f32 %v2080, %v2561
  %v2829 = vmul.f32 %v2080, %v2565
  %v2830 = vmul.f32 %v2080, %v2569
  %v2831 = vmul.f32 %v2080, %v2573
  %v2832 = vmul.f32 %v2080, %v2577
  %v2833 = vmul.f32 %v2080, %v2581
  %v2834 = vmul.f32 %v2080, %v2585
  %v2835 = vmul.f32 %v2080, %v2589
  %v2836 = vmul.f32 %v2080, %v2593
  %v2837 = vmul.f32 %v2080, %v2597
  %v2838 = vmul.f32 %v2080, %v2601
  %v2839 = vmul.f32 %v2080, %v2605
  %v2840 = vmul.f32 %v2080, %v2609
  %v2841 = vmul.f32 %v2080, %v2613
  %v2842 = vmul.f32 %v2080, %v2617
  %v2843 = vmul.f32 %v2080, %v2621
  %v2844 = vmul.f32 %v2080, %v2625
  %v2845 = vmul.f32 %v2080, %v2629
  %v2846 = vmul.f32 %v2080, %v2633
  %v2847 = vmul.f32 %v2080, %v2637
  %v2848 = vmul.f32 %v2080, %v2641
  %v2849 = vmul.f32 %v2080, %v2645
  %v2850 = vmul.f32 %v2080, %v2649
  %v2851 = vmul.f32 %v2080, %v2653
  %v2852 = vmul.f32 %v2080, %v2657
  %v2853 = vmul.f32 %v2080, %v2661
  %v2854 = vmul.f32 %v2084, %v2409
  %v2855 = vmul.f32 %v2084, %v2413
  %v2856 = vmul.f32 %v2084, %v2417
  %v2857 = vmul.f32 %v2084, %v2421
  %v2858 = vmul.f32 %v2084, %v2425
  %v2859 = vmul.f32 %v2084, %v2429
  %v2860 = vmul.f32 %v2084, %v2433
  %v2861 = vmul.f32 %v2084, %v2437
  %v2862 = vmul.f32 %v2084, %v2441
  %v2863 = vmul.f32 %v2084, %v2445
  %v2864 = vmul.f32 %v2084, %v2449
  %v2865 = vmul.f32 %v2084, %v2453
  %v2866 = vmul.f32 %v2084, %v2457
  %v2867 = vmul.f32 %v2084, %v2461
  %v2868 = vmul.f32 %v2084, %v2465
  %v2869 = vmul.f32 %v2084, %v2469
  %v2870 = vmul.f32 %v2084, %v2473
  %v2871 = vmul.f32 %v2084, %v2477
  %v2872 = vmul.f32 %v2084, %v2481
  %v2873 = vmul.f32 %v2084, %v2485
  %v2874 = vmul.f32 %v2084, %v2489
  %v2875 = vmul.f32 %v2084, %v2493
  %v2876 = vmul.f32 %v2084, %v2497
  %v2877 = vmul.f32 %v2084, %v2501
  %v2878 = vmul.f32 %v2084, %v2505
  %v2879 = vmul.f32 %v2084, %v2509
  %v2880 = vmul.f32 %v2084, %v2513
  %v2881 = vmul.f32 %v2084, %v2517
  %v2882 = vmul.f32 %v2084, %v2521
  %v2883 = vmul.f32 %v2084, %v2525
  %v2884 = vmul.f32 %v2084, %v2529
  %v2885 = vmul.f32 %v2084, %v2533
  %v2886 = vmul.f32 %v2084, %v2537
  %v2887 = vmul.f32 %v2084, %v2541
  %v2888 = vmul.f32 %v2084, %v2545
  %v2889 = vmul.f32 %v2084, %v2549
  %v2890 = vmul.f32 %v2084, %v2553
  %v2891 = vmul.f32 %v2084, %v2557
  %v2892 = vmul.f32 %v2084, %v2561
  %v2893 = vmul.f32 %v2084, %v2565
  %v2894 = vmul.f32 %v2084, %v2569
  %v2895 = vmul.f32 %v2084, %v2573
  %v2896 = vmul.f32 %v2084, %v2577
  %v2897 = vmul.f32 %v2084, %v2581
  %v2898 = vmul.f32 %v2084, %v2585
  %v2899 = vmul.f32 %v2084, %v2589
  %v2900 = vmul.f32 %v2084, %v2593
  %v2901 = vmul.f32 %v2084, %v2597
  %v2902 = vmul.f32 %v2084, %v2601
  %v2903 = vmul.f32 %v2084, %v2605
  %v2904 = vmul.f32 %v2084, %v2609
  %v2905 = vmul.f32 %v2084, %v2613
  %v2906 = vmul.f32 %v2084, %v2617
  %v2907 = vmul.f32 %v2084, %v2621
  %v2908 = vmul.f32 %v2084, %v2625
  %v2909 = vmul.f32 %v2084, %v2629
  %v2910 = vmul.f32 %v2084, %v2633
  %v2911 = vmul.f32 %v2084, %v2637
  %v2912 = vmul.f32 %v2084, %v2641
  %v2913 = vmul.f32 %v2084, %v2645
  %v2914 = vmul.f32 %v2084, %v2649
  %v2915 = vmul.f32 %v2084, %v2653
  %v2916 = vmul.f32 %v2084, %v2657
  %v2917 = vmul.f32 %v2084, %v2661
  %v2918 = vadd.f32 %v1814, %v2662
  %v2919 = vadd.f32 %v1815, %v2663
  %v2920 = vadd.f32 %v1816, %v2664
  %v2921 = vadd.f32 %v1817, %v2665
  %v2922 = vadd.f32 %v1818, %v2666
  %v2923 = vadd.f32 %v1819, %v2667
  %v2924 = vadd.f32 %v1820, %v2668
  %v2925 = vadd.f32 %v1821, %v2669
  %v2926 = vadd.f32 %v1822, %v2670
  %v2927 = vadd.f32 %v1823, %v2671
  %v2928 = vadd.f32 %v1824, %v2672
  %v2929 = vadd.f32 %v1825, %v2673
  %v2930 = vadd.f32 %v1826, %v2674
  %v2931 = vadd.f32 %v1827, %v2675
  %v2932 = vadd.f32 %v1828, %v2676
  %v2933 = vadd.f32 %v1829, %v2677
  %v2934 = vadd.f32 %v1830, %v2678
  %v2935 = vadd.f32 %v1831, %v2679
  %v2936 = vadd.f32 %v1832, %v2680
  %v2937 = vadd.f32 %v1833, %v2681
  %v2938 = vadd.f32 %v1834, %v2682
  %v2939 = vadd.f32 %v1835, %v2683
  %v2940 = vadd.f32 %v1836, %v2684
  %v2941 = vadd.f32 %v1837, %v2685
  %v2942 = vadd.f32 %v1838, %v2686
  %v2943 = vadd.f32 %v1839, %v2687
  %v2944 = vadd.f32 %v1840, %v2688
  %v2945 = vadd.f32 %v1841, %v2689
  %v2946 = vadd.f32 %v1842, %v2690
  %v2947 = vadd.f32 %v1843, %v2691
  %v2948 = vadd.f32 %v1844, %v2692
  %v2949 = vadd.f32 %v1845, %v2693
  %v2950 = vadd.f32 %v1846, %v2694
  %v2951 = vadd.f32 %v1847, %v2695
  %v2952 = vadd.f32 %v1848, %v2696
  %v2953 = vadd.f32 %v1849, %v2697
  %v2954 = vadd.f32 %v1850, %v2698
  %v2955 = vadd.f32 %v1851, %v2699
  %v2956 = vadd.f32 %v1852, %v2700
  %v2957 = vadd.f32 %v1853, %v2701
  %v2958 = vadd.f32 %v1854, %v2702
  %v2959 = vadd.f32 %v1855, %v2703
  %v2960 = vadd.f32 %v1856, %v2704
  %v2961 = vadd.f32 %v1857, %v2705
  %v2962 = vadd.f32 %v1858, %v2706
  %v2963 = vadd.f32 %v1859, %v2707
  %v2964 = vadd.f32 %v1860, %v2708
  %v2965 = vadd.f32 %v1861, %v2709
  %v2966 = vadd.f32 %v1862, %v2710
  %v2967 = vadd.f32 %v1863, %v2711
  %v2968 = vadd.f32 %v1864, %v2712
  %v2969 = vadd.f32 %v1865, %v2713
  %v2970 = vadd.f32 %v1866, %v2714
  %v2971 = vadd.f32 %v1867, %v2715
  %v2972 = vadd.f32 %v1868, %v2716
  %v2973 = vadd.f32 %v1869, %v2717
  %v2974 = vadd.f32 %v1870, %v2718
  %v2975 = vadd.f32 %v1871, %v2719
  %v2976 = vadd.f32 %v1872, %v2720
  %v2977 = vadd.f32 %v1873, %v2721
  %v2978 = vadd.f32 %v1874, %v2722
  %v2979 = vadd.f32 %v1875, %v2723
  %v2980 = vadd.f32 %v1876, %v2724
  %v2981 = vadd.f32 %v1877, %v2725
  %v2982 = vadd.f32 %v1878, %v2726
  %v2983 = vadd.f32 %v1879, %v2727
  %v2984 = vadd.f32 %v1880, %v2728
  %v2985 = vadd.f32 %v1881, %v2729
  %v2986 = vadd.f32 %v1882, %v2730
  %v2987 = vadd.f32 %v1883, %v2731
  %v2988 = vadd.f32 %v1884, %v2732
  %v2989 = vadd.f32 %v1885, %v2733
  %v2990 = vadd.f32 %v1886, %v2734
  %v2991 = vadd.f32 %v1887, %v2735
  %v2992 = vadd.f32 %v1888, %v2736
  %v2993 = vadd.f32 %v1889, %v2737
  %v2994 = vadd.f32 %v1890, %v2738
  %v2995 = vadd.f32 %v1891, %v2739
  %v2996 = vadd.f32 %v1892, %v2740
  %v2997 = vadd.f32 %v1893, %v2741
  %v2998 = vadd.f32 %v1894, %v2742
  %v2999 = vadd.f32 %v1895, %v2743
  %v3000 = vadd.f32 %v1896, %v2744
  %v3001 = vadd.f32 %v1897, %v2745
  %v3002 = vadd.f32 %v1898, %v2746
  %v3003 = vadd.f32 %v1899, %v2747
  %v3004 = vadd.f32 %v1900, %v2748
  %v3005 = vadd.f32 %v1901, %v2749
  %v3006 = vadd.f32 %v1902, %v2750
  %v3007 = vadd.f32 %v1903, %v2751
  %v3008 = vadd.f32 %v1904, %v2752
  %v3009 = vadd.f32 %v1905, %v2753
  %v3010 = vadd.f32 %v1906, %v2754
  %v3011 = vadd.f32 %v1907, %v2755
  %v3012 = vadd.f32 %v1908, %v2756
  %v3013 = vadd.f32 %v1909, %v2757
  %v3014 = vadd.f32 %v1910, %v2758
  %v3015 = vadd.f32 %v1911, %v2759
  %v3016 = vadd.f32 %v1912, %v2760
  %v3017 = vadd.f32 %v1913, %v2761
  %v3018 = vadd.f32 %v1914, %v2762
  %v3019 = vadd.f32 %v1915, %v2763
  %v3020 = vadd.f32 %v1916, %v2764
  %v3021 = vadd.f32 %v1917, %v2765
  %v3022 = vadd.f32 %v1918, %v2766
  %v3023 = vadd.f32 %v1919, %v2767
  %v3024 = vadd.f32 %v1920, %v2768
  %v3025 = vadd.f32 %v1921, %v2769
  %v3026 = vadd.f32 %v1922, %v2770
  %v3027 = vadd.f32 %v1923, %v2771
  %v3028 = vadd.f32 %v1924, %v2772
  %v3029 = vadd.f32 %v1925, %v2773
  %v3030 = vadd.f32 %v1926, %v2774
  %v3031 = vadd.f32 %v1927, %v2775
  %v3032 = vadd.f32 %v1928, %v2776
  %v3033 = vadd.f32 %v1929, %v2777
  %v3034 = vadd.f32 %v1930, %v2778
  %v3035 = vadd.f32 %v1931, %v2779
  %v3036 = vadd.f32 %v1932, %v2780
  %v3037 = vadd.f32 %v1933, %v2781
  %v3038 = vadd.f32 %v1934, %v2782
  %v3039 = vadd.f32 %v1935, %v2783
  %v3040 = vadd.f32 %v1936, %v2784
  %v3041 = vadd.f32 %v1937, %v2785
  %v3042 = vadd.f32 %v1938, %v2786
  %v3043 = vadd.f32 %v1939, %v2787
  %v3044 = vadd.f32 %v1940, %v2788
  %v3045 = vadd.f32 %v1941, %v2789
  %v3046 = vadd.f32 %v1942, %v2790
  %v3047 = vadd.f32 %v1943, %v2791
  %v3048 = vadd.f32 %v1944, %v2792
  %v3049 = vadd.f32 %v1945, %v2793
  %v3050 = vadd.f32 %v1946, %v2794
  %v3051 = vadd.f32 %v1947, %v2795
  %v3052 = vadd.f32 %v1948, %v2796
  %v3053 = vadd.f32 %v1949, %v2797
  %v3054 = vadd.f32 %v1950, %v2798
  %v3055 = vadd.f32 %v1951, %v2799
  %v3056 = vadd.f32 %v1952, %v2800
  %v3057 = vadd.f32 %v1953, %v2801
  %v3058 = vadd.f32 %v1954, %v2802
  %v3059 = vadd.f32 %v1955, %v2803
  %v3060 = vadd.f32 %v1956, %v2804
  %v3061 = vadd.f32 %v1957, %v2805
  %v3062 = vadd.f32 %v1958, %v2806
  %v3063 = vadd.f32 %v1959, %v2807
  %v3064 = vadd.f32 %v1960, %v2808
  %v3065 = vadd.f32 %v1961, %v2809
  %v3066 = vadd.f32 %v1962, %v2810
  %v3067 = vadd.f32 %v1963, %v2811
  %v3068 = vadd.f32 %v1964, %v2812
  %v3069 = vadd.f32 %v1965, %v2813
  %v3070 = vadd.f32 %v1966, %v2814
  %v3071 = vadd.f32 %v1967, %v2815
  %v3072 = vadd.f32 %v1968, %v2816
  %v3073 = vadd.f32 %v1969, %v2817
  %v3074 = vadd.f32 %v1970, %v2818
  %v3075 = vadd.f32 %v1971, %v2819
  %v3076 = vadd.f32 %v1972, %v2820
  %v3077 = vadd.f32 %v1973, %v2821
  %v3078 = vadd.f32 %v1974, %v2822
  %v3079 = vadd.f32 %v1975, %v2823
  %v3080 = vadd.f32 %v1976, %v2824
  %v3081 = vadd.f32 %v1977, %v2825
  %v3082 = vadd.f32 %v1978, %v2826
  %v3083 = vadd.f32 %v1979, %v2827
  %v3084 = vadd.f32 %v1980, %v2828
  %v3085 = vadd.f32 %v1981, %v2829
  %v3086 = vadd.f32 %v1982, %v2830
  %v3087 = vadd.f32 %v1983, %v2831
  %v3088 = vadd.f32 %v1984, %v2832
  %v3089 = vadd.f32 %v1985, %v2833
  %v3090 = vadd.f32 %v1986, %v2834
  %v3091 = vadd.f32 %v1987, %v2835
  %v3092 = vadd.f32 %v1988, %v2836
  %v3093 = vadd.f32 %v1989, %v2837
  %v3094 = vadd.f32 %v1990, %v2838
  %v3095 = vadd.f32 %v1991, %v2839
  %v3096 = vadd.f32 %v1992, %v2840
  %v3097 = vadd.f32 %v1993, %v2841
  %v3098 = vadd.f32 %v1994, %v2842
  %v3099 = vadd.f32 %v1995, %v2843
  %v3100 = vadd.f32 %v1996, %v2844
  %v3101 = vadd.f32 %v1997, %v2845
  %v3102 = vadd.f32 %v1998, %v2846
  %v3103 = vadd.f32 %v1999, %v2847
  %v3104 = vadd.f32 %v2000, %v2848
  %v3105 = vadd.f32 %v2001, %v2849
  %v3106 = vadd.f32 %v2002, %v2850
  %v3107 = vadd.f32 %v2003, %v2851
  %v3108 = vadd.f32 %v2004, %v2852
  %v3109 = vadd.f32 %v2005, %v2853
  %v3110 = vadd.f32 %v2006, %v2854
  %v3111 = vadd.f32 %v2007, %v2855
  %v3112 = vadd.f32 %v2008, %v2856
  %v3113 = vadd.f32 %v2009, %v2857
  %v3114 = vadd.f32 %v2010, %v2858
  %v3115 = vadd.f32 %v2011, %v2859
  %v3116 = vadd.f32 %v2012, %v2860
  %v3117 = vadd.f32 %v2013, %v2861
  %v3118 = vadd.f32 %v2014, %v2862
  %v3119 = vadd.f32 %v2015, %v2863
  %v3120 = vadd.f32 %v2016, %v2864
  %v3121 = vadd.f32 %v2017, %v2865
  %v3122 = vadd.f32 %v2018, %v2866
  %v3123 = vadd.f32 %v2019, %v2867
  %v3124 = vadd.f32 %v2020, %v2868
  %v3125 = vadd.f32 %v2021, %v2869
  %v3126 = vadd.f32 %v2022, %v2870
  %v3127 = vadd.f32 %v2023, %v2871
  %v3128 = vadd.f32 %v2024, %v2872
  %v3129 = vadd.f32 %v2025, %v2873
  %v3130 = vadd.f32 %v2026, %v2874
  %v3131 = vadd.f32 %v2027, %v2875
  %v3132 = vadd.f32 %v2028, %v2876
  %v3133 = vadd.f32 %v2029, %v2877
  %v3134 = vadd.f32 %v2030, %v2878
  %v3135 = vadd.f32 %v2031, %v2879
  %v3136 = vadd.f32 %v2032, %v2880
  %v3137 = vadd.f32 %v2033, %v2881
  %v3138 = vadd.f32 %v2034, %v2882
  %v3139 = vadd.f32 %v2035, %v2883
  %v3140 = vadd.f32 %v2036, %v2884
  %v3141 = vadd.f32 %v2037, %v2885
  %v3142 = vadd.f32 %v2038, %v2886
  %v3143 = vadd.f32 %v2039, %v2887
  %v3144 = vadd.f32 %v2040, %v2888
  %v3145 = vadd.f32 %v2041, %v2889
  %v3146 = vadd.f32 %v2042, %v2890
  %v3147 = vadd.f32 %v2043, %v2891
  %v3148 = vadd.f32 %v2044, %v2892
  %v3149 = vadd.f32 %v2045, %v2893
  %v3150 = vadd.f32 %v2046, %v2894
  %v3151 = vadd.f32 %v2047, %v2895
  %v3152 = vadd.f32 %v2048, %v2896
  %v3153 = vadd.f32 %v2049, %v2897
  %v3154 = vadd.f32 %v2050, %v2898
  %v3155 = vadd.f32 %v2051, %v2899
  %v3156 = vadd.f32 %v2052, %v2900
  %v3157 = vadd.f32 %v2053, %v2901
  %v3158 = vadd.f32 %v2054, %v2902
  %v3159 = vadd.f32 %v2055, %v2903
  %v3160 = vadd.f32 %v2056, %v2904
  %v3161 = vadd.f32 %v2057, %v2905
  %v3162 = vadd.f32 %v2058, %v2906
  %v3163 = vadd.f32 %v2059, %v2907
  %v3164 = vadd.f32 %v2060, %v2908
  %v3165 = vadd.f32 %v2061, %v2909
  %v3166 = vadd.f32 %v2062, %v2910
  %v3167 = vadd.f32 %v2063, %v2911
  %v3168 = vadd.f32 %v2064, %v2912
  %v3169 = vadd.f32 %v2065, %v2913
  %v3170 = vadd.f32 %v2066, %v2914
  %v3171 = vadd.f32 %v2067, %v2915
  %v3172 = vadd.f32 %v2068, %v2916
  %v3173 = vadd.f32 %v2069, %v2917
  %v3174 = vld [vmem:[%s3] sm:$0xff]
  %v3175 = vld [vmem:[%s3 + $0x8] sm:$0xff]
  %v3176 = vld [vmem:[%s3 + $0x10] sm:$0xff]
  %v3177 = vld [vmem:[%s3 + $0x18] sm:$0xff]
  %3179 = vset.pattern.permute.xlu0 0
  %3180 = vperm.xlu0 %3179, %v3174
  %v3181 = vpop.permute.xlu0 %3180
  %3184 = vset.pattern.permute.xlu0 0
  %3185 = vperm.xlu0 %3184, %v3175
  %v3186 = vpop.permute.xlu0 %3185
  %3189 = vset.pattern.permute.xlu0 0
  %3190 = vperm.xlu0 %3189, %v3176
  %v3191 = vpop.permute.xlu0 %3190
  %3194 = vset.pattern.permute.xlu0 0
  %3195 = vperm.xlu0 %3194, %v3177
  %v3196 = vpop.permute.xlu0 %3195
  %v3198 = vadd.f32 %v2918, %v3181
  %v3199 = vadd.f32 %v2919, %v3181
  %v3200 = vadd.f32 %v2920, %v3181
  %v3201 = vadd.f32 %v2921, %v3181
  %v3202 = vadd.f32 %v2922, %v3181
  %v3203 = vadd.f32 %v2923, %v3181
  %v3204 = vadd.f32 %v2924, %v3181
  %v3205 = vadd.f32 %v2925, %v3181
  %v3206 = vadd.f32 %v2926, %v3181
  %v3207 = vadd.f32 %v2927, %v3181
  %v3208 = vadd.f32 %v2928, %v3181
  %v3209 = vadd.f32 %v2929, %v3181
  %v3210 = vadd.f32 %v2930, %v3181
  %v3211 = vadd.f32 %v2931, %v3181
  %v3212 = vadd.f32 %v2932, %v3181
  %v3213 = vadd.f32 %v2933, %v3181
  %v3214 = vadd.f32 %v2934, %v3181
  %v3215 = vadd.f32 %v2935, %v3181
  %v3216 = vadd.f32 %v2936, %v3181
  %v3217 = vadd.f32 %v2937, %v3181
  %v3218 = vadd.f32 %v2938, %v3181
  %v3219 = vadd.f32 %v2939, %v3181
  %v3220 = vadd.f32 %v2940, %v3181
  %v3221 = vadd.f32 %v2941, %v3181
  %v3222 = vadd.f32 %v2942, %v3181
  %v3223 = vadd.f32 %v2943, %v3181
  %v3224 = vadd.f32 %v2944, %v3181
  %v3225 = vadd.f32 %v2945, %v3181
  %v3226 = vadd.f32 %v2946, %v3181
  %v3227 = vadd.f32 %v2947, %v3181
  %v3228 = vadd.f32 %v2948, %v3181
  %v3229 = vadd.f32 %v2949, %v3181
  %v3230 = vadd.f32 %v2950, %v3181
  %v3231 = vadd.f32 %v2951, %v3181
  %v3232 = vadd.f32 %v2952, %v3181
  %v3233 = vadd.f32 %v2953, %v3181
  %v3234 = vadd.f32 %v2954, %v3181
  %v3235 = vadd.f32 %v2955, %v3181
  %v3236 = vadd.f32 %v2956, %v3181
  %v3237 = vadd.f32 %v2957, %v3181
  %v3238 = vadd.f32 %v2958, %v3181
  %v3239 = vadd.f32 %v2959, %v3181
  %v3240 = vadd.f32 %v2960, %v3181
  %v3241 = vadd.f32 %v2961, %v3181
  %v3242 = vadd.f32 %v2962, %v3181
  %v3243 = vadd.f32 %v2963, %v3181
  %v3244 = vadd.f32 %v2964, %v3181
  %v3245 = vadd.f32 %v2965, %v3181
  %v3246 = vadd.f32 %v2966, %v3181
  %v3247 = vadd.f32 %v2967, %v3181
  %v3248 = vadd.f32 %v2968, %v3181
  %v3249 = vadd.f32 %v2969, %v3181
  %v3250 = vadd.f32 %v2970, %v3181
  %v3251 = vadd.f32 %v2971, %v3181
  %v3252 = vadd.f32 %v2972, %v3181
  %v3253 = vadd.f32 %v2973, %v3181
  %v3254 = vadd.f32 %v2974, %v3181
  %v3255 = vadd.f32 %v2975, %v3181
  %v3256 = vadd.f32 %v2976, %v3181
  %v3257 = vadd.f32 %v2977, %v3181
  %v3258 = vadd.f32 %v2978, %v3181
  %v3259 = vadd.f32 %v2979, %v3181
  %v3260 = vadd.f32 %v2980, %v3181
  %v3261 = vadd.f32 %v2981, %v3181
  %v3262 = vadd.f32 %v2982, %v3186
  %v3263 = vadd.f32 %v2983, %v3186
  %v3264 = vadd.f32 %v2984, %v3186
  %v3265 = vadd.f32 %v2985, %v3186
  %v3266 = vadd.f32 %v2986, %v3186
  %v3267 = vadd.f32 %v2987, %v3186
  %v3268 = vadd.f32 %v2988, %v3186
  %v3269 = vadd.f32 %v2989, %v3186
  %v3270 = vadd.f32 %v2990, %v3186
  %v3271 = vadd.f32 %v2991, %v3186
  %v3272 = vadd.f32 %v2992, %v3186
  %v3273 = vadd.f32 %v2993, %v3186
  %v3274 = vadd.f32 %v2994, %v3186
  %v3275 = vadd.f32 %v2995, %v3186
  %v3276 = vadd.f32 %v2996, %v3186
  %v3277 = vadd.f32 %v2997, %v3186
  %v3278 = vadd.f32 %v2998, %v3186
  %v3279 = vadd.f32 %v2999, %v3186
  %v3280 = vadd.f32 %v3000, %v3186
  %v3281 = vadd.f32 %v3001, %v3186
  %v3282 = vadd.f32 %v3002, %v3186
  %v3283 = vadd.f32 %v3003, %v3186
  %v3284 = vadd.f32 %v3004, %v3186
  %v3285 = vadd.f32 %v3005, %v3186
  %v3286 = vadd.f32 %v3006, %v3186
  %v3287 = vadd.f32 %v3007, %v3186
  %v3288 = vadd.f32 %v3008, %v3186
  %v3289 = vadd.f32 %v3009, %v3186
  %v3290 = vadd.f32 %v3010, %v3186
  %v3291 = vadd.f32 %v3011, %v3186
  %v3292 = vadd.f32 %v3012, %v3186
  %v3293 = vadd.f32 %v3013, %v3186
  %v3294 = vadd.f32 %v3014, %v3186
  %v3295 = vadd.f32 %v3015, %v3186
  %v3296 = vadd.f32 %v3016, %v3186
  %v3297 = vadd.f32 %v3017, %v3186
  %v3298 = vadd.f32 %v3018, %v3186
  %v3299 = vadd.f32 %v3019, %v3186
  %v3300 = vadd.f32 %v3020, %v3186
  %v3301 = vadd.f32 %v3021, %v3186
  %v3302 = vadd.f32 %v3022, %v3186
  %v3303 = vadd.f32 %v3023, %v3186
  %v3304 = vadd.f32 %v3024, %v3186
  %v3305 = vadd.f32 %v3025, %v3186
  %v3306 = vadd.f32 %v3026, %v3186
  %v3307 = vadd.f32 %v3027, %v3186
  %v3308 = vadd.f32 %v3028, %v3186
  %v3309 = vadd.f32 %v3029, %v3186
  %v3310 = vadd.f32 %v3030, %v3186
  %v3311 = vadd.f32 %v3031, %v3186
  %v3312 = vadd.f32 %v3032, %v3186
  %v3313 = vadd.f32 %v3033, %v3186
  %v3314 = vadd.f32 %v3034, %v3186
  %v3315 = vadd.f32 %v3035, %v3186
  %v3316 = vadd.f32 %v3036, %v3186
  %v3317 = vadd.f32 %v3037, %v3186
  %v3318 = vadd.f32 %v3038, %v3186
  %v3319 = vadd.f32 %v3039, %v3186
  %v3320 = vadd.f32 %v3040, %v3186
  %v3321 = vadd.f32 %v3041, %v3186
  %v3322 = vadd.f32 %v3042, %v3186
  %v3323 = vadd.f32 %v3043, %v3186
  %v3324 = vadd.f32 %v3044, %v3186
  %v3325 = vadd.f32 %v3045, %v3186
  %v3326 = vadd.f32 %v3046, %v3191
  %v3327 = vadd.f32 %v3047, %v3191
  %v3328 = vadd.f32 %v3048, %v3191
  %v3329 = vadd.f32 %v3049, %v3191
  %v3330 = vadd.f32 %v3050, %v3191
  %v3331 = vadd.f32 %v3051, %v3191
  %v3332 = vadd.f32 %v3052, %v3191
  %v3333 = vadd.f32 %v3053, %v3191
  %v3334 = vadd.f32 %v3054, %v3191
  %v3335 = vadd.f32 %v3055, %v3191
  %v3336 = vadd.f32 %v3056, %v3191
  %v3337 = vadd.f32 %v3057, %v3191
  %v3338 = vadd.f32 %v3058, %v3191
  %v3339 = vadd.f32 %v3059, %v3191
  %v3340 = vadd.f32 %v3060, %v3191
  %v3341 = vadd.f32 %v3061, %v3191
  %v3342 = vadd.f32 %v3062, %v3191
  %v3343 = vadd.f32 %v3063, %v3191
  %v3344 = vadd.f32 %v3064, %v3191
  %v3345 = vadd.f32 %v3065, %v3191
  %v3346 = vadd.f32 %v3066, %v3191
  %v3347 = vadd.f32 %v3067, %v3191
  %v3348 = vadd.f32 %v3068, %v3191
  %v3349 = vadd.f32 %v3069, %v3191
  %v3350 = vadd.f32 %v3070, %v3191
  %v3351 = vadd.f32 %v3071, %v3191
  %v3352 = vadd.f32 %v3072, %v3191
  %v3353 = vadd.f32 %v3073, %v3191
  %v3354 = vadd.f32 %v3074, %v3191
  %v3355 = vadd.f32 %v3075, %v3191
  %v3356 = vadd.f32 %v3076, %v3191
  %v3357 = vadd.f32 %v3077, %v3191
  %v3358 = vadd.f32 %v3078, %v3191
  %v3359 = vadd.f32 %v3079, %v3191
  %v3360 = vadd.f32 %v3080, %v3191
  %v3361 = vadd.f32 %v3081, %v3191
  %v3362 = vadd.f32 %v3082, %v3191
  %v3363 = vadd.f32 %v3083, %v3191
  %v3364 = vadd.f32 %v3084, %v3191
  %v3365 = vadd.f32 %v3085, %v3191
  %v3366 = vadd.f32 %v3086, %v3191
  %v3367 = vadd.f32 %v3087, %v3191
  %v3368 = vadd.f32 %v3088, %v3191
  %v3369 = vadd.f32 %v3089, %v3191
  %v3370 = vadd.f32 %v3090, %v3191
  %v3371 = vadd.f32 %v3091, %v3191
  %v3372 = vadd.f32 %v3092, %v3191
  %v3373 = vadd.f32 %v3093, %v3191
  %v3374 = vadd.f32 %v3094, %v3191
  %v3375 = vadd.f32 %v3095, %v3191
  %v3376 = vadd.f32 %v3096, %v3191
  %v3377 = vadd.f32 %v3097, %v3191
  %v3378 = vadd.f32 %v3098, %v3191
  %v3379 = vadd.f32 %v3099, %v3191
  %v3380 = vadd.f32 %v3100, %v3191
  %v3381 = vadd.f32 %v3101, %v3191
  %v3382 = vadd.f32 %v3102, %v3191
  %v3383 = vadd.f32 %v3103, %v3191
  %v3384 = vadd.f32 %v3104, %v3191
  %v3385 = vadd.f32 %v3105, %v3191
  %v3386 = vadd.f32 %v3106, %v3191
  %v3387 = vadd.f32 %v3107, %v3191
  %v3388 = vadd.f32 %v3108, %v3191
  %v3389 = vadd.f32 %v3109, %v3191
  %v3390 = vadd.f32 %v3110, %v3196
  %v3391 = vadd.f32 %v3111, %v3196
  %v3392 = vadd.f32 %v3112, %v3196
  %v3393 = vadd.f32 %v3113, %v3196
  %v3394 = vadd.f32 %v3114, %v3196
  %v3395 = vadd.f32 %v3115, %v3196
  %v3396 = vadd.f32 %v3116, %v3196
  %v3397 = vadd.f32 %v3117, %v3196
  %v3398 = vadd.f32 %v3118, %v3196
  %v3399 = vadd.f32 %v3119, %v3196
  %v3400 = vadd.f32 %v3120, %v3196
  %v3401 = vadd.f32 %v3121, %v3196
  %v3402 = vadd.f32 %v3122, %v3196
  %v3403 = vadd.f32 %v3123, %v3196
  %v3404 = vadd.f32 %v3124, %v3196
  %v3405 = vadd.f32 %v3125, %v3196
  %v3406 = vadd.f32 %v3126, %v3196
  %v3407 = vadd.f32 %v3127, %v3196
  %v3408 = vadd.f32 %v3128, %v3196
  %v3409 = vadd.f32 %v3129, %v3196
  %v3410 = vadd.f32 %v3130, %v3196
  %v3411 = vadd.f32 %v3131, %v3196
  %v3412 = vadd.f32 %v3132, %v3196
  %v3413 = vadd.f32 %v3133, %v3196
  %v3414 = vadd.f32 %v3134, %v3196
  %v3415 = vadd.f32 %v3135, %v3196
  %v3416 = vadd.f32 %v3136, %v3196
  %v3417 = vadd.f32 %v3137, %v3196
  %v3418 = vadd.f32 %v3138, %v3196
  %v3419 = vadd.f32 %v3139, %v3196
  %v3420 = vadd.f32 %v3140, %v3196
  %v3421 = vadd.f32 %v3141, %v3196
  %v3422 = vadd.f32 %v3142, %v3196
  %v3423 = vadd.f32 %v3143, %v3196
  %v3424 = vadd.f32 %v3144, %v3196
  %v3425 = vadd.f32 %v3145, %v3196
  %v3426 = vadd.f32 %v3146, %v3196
  %v3427 = vadd.f32 %v3147, %v3196
  %v3428 = vadd.f32 %v3148, %v3196
  %v3429 = vadd.f32 %v3149, %v3196
  %v3430 = vadd.f32 %v3150, %v3196
  %v3431 = vadd.f32 %v3151, %v3196
  %v3432 = vadd.f32 %v3152, %v3196
  %v3433 = vadd.f32 %v3153, %v3196
  %v3434 = vadd.f32 %v3154, %v3196
  %v3435 = vadd.f32 %v3155, %v3196
  %v3436 = vadd.f32 %v3156, %v3196
  %v3437 = vadd.f32 %v3157, %v3196
  %v3438 = vadd.f32 %v3158, %v3196
  %v3439 = vadd.f32 %v3159, %v3196
  %v3440 = vadd.f32 %v3160, %v3196
  %v3441 = vadd.f32 %v3161, %v3196
  %v3442 = vadd.f32 %v3162, %v3196
  %v3443 = vadd.f32 %v3163, %v3196
  %v3444 = vadd.f32 %v3164, %v3196
  %v3445 = vadd.f32 %v3165, %v3196
  %v3446 = vadd.f32 %v3166, %v3196
  %v3447 = vadd.f32 %v3167, %v3196
  %v3448 = vadd.f32 %v3168, %v3196
  %v3449 = vadd.f32 %v3169, %v3196
  %v3450 = vadd.f32 %v3170, %v3196
  %v3451 = vadd.f32 %v3171, %v3196
  %v3452 = vadd.f32 %v3172, %v3196
  %v3453 = vadd.f32 %v3173, %v3196
  %v3454 = vmin.f32 %v3198, 20.0
  %v3455 = vmin.f32 %v3199, 20.0
  %v3456 = vmin.f32 %v3200, 20.0
  %v3457 = vmin.f32 %v3201, 20.0
  %v3458 = vmin.f32 %v3202, 20.0
  %v3459 = vmin.f32 %v3203, 20.0
  %v3460 = vmin.f32 %v3204, 20.0
  %v3461 = vmin.f32 %v3205, 20.0
  %v3462 = vmin.f32 %v3206, 20.0
  %v3463 = vmin.f32 %v3207, 20.0
  %v3464 = vmin.f32 %v3208, 20.0
  %v3465 = vmin.f32 %v3209, 20.0
  %v3466 = vmin.f32 %v3210, 20.0
  %v3467 = vmin.f32 %v3211, 20.0
  %v3468 = vmin.f32 %v3212, 20.0
  %v3469 = vmin.f32 %v3213, 20.0
  %v3470 = vmin.f32 %v3214, 20.0
  %v3471 = vmin.f32 %v3215, 20.0
  %v3472 = vmin.f32 %v3216, 20.0
  %v3473 = vmin.f32 %v3217, 20.0
  %v3474 = vmin.f32 %v3218, 20.0
  %v3475 = vmin.f32 %v3219, 20.0
  %v3476 = vmin.f32 %v3220, 20.0
  %v3477 = vmin.f32 %v3221, 20.0
  %v3478 = vmin.f32 %v3222, 20.0
  %v3479 = vmin.f32 %v3223, 20.0
  %v3480 = vmin.f32 %v3224, 20.0
  %v3481 = vmin.f32 %v3225, 20.0
  %v3482 = vmin.f32 %v3226, 20.0
  %v3483 = vmin.f32 %v3227, 20.0
  %v3484 = vmin.f32 %v3228, 20.0
  %v3485 = vmin.f32 %v3229, 20.0
  %v3486 = vmin.f32 %v3230, 20.0
  %v3487 = vmin.f32 %v3231, 20.0
  %v3488 = vmin.f32 %v3232, 20.0
  %v3489 = vmin.f32 %v3233, 20.0
  %v3490 = vmin.f32 %v3234, 20.0
  %v3491 = vmin.f32 %v3235, 20.0
  %v3492 = vmin.f32 %v3236, 20.0
  %v3493 = vmin.f32 %v3237, 20.0
  %v3494 = vmin.f32 %v3238, 20.0
  %v3495 = vmin.f32 %v3239, 20.0
  %v3496 = vmin.f32 %v3240, 20.0
  %v3497 = vmin.f32 %v3241, 20.0
  %v3498 = vmin.f32 %v3242, 20.0
  %v3499 = vmin.f32 %v3243, 20.0
  %v3500 = vmin.f32 %v3244, 20.0
  %v3501 = vmin.f32 %v3245, 20.0
  %v3502 = vmin.f32 %v3246, 20.0
  %v3503 = vmin.f32 %v3247, 20.0
  %v3504 = vmin.f32 %v3248, 20.0
  %v3505 = vmin.f32 %v3249, 20.0
  %v3506 = vmin.f32 %v3250, 20.0
  %v3507 = vmin.f32 %v3251, 20.0
  %v3508 = vmin.f32 %v3252, 20.0
  %v3509 = vmin.f32 %v3253, 20.0
  %v3510 = vmin.f32 %v3254, 20.0
  %v3511 = vmin.f32 %v3255, 20.0
  %v3512 = vmin.f32 %v3256, 20.0
  %v3513 = vmin.f32 %v3257, 20.0
  %v3514 = vmin.f32 %v3258, 20.0
  %v3515 = vmin.f32 %v3259, 20.0
  %v3516 = vmin.f32 %v3260, 20.0
  %v3517 = vmin.f32 %v3261, 20.0
  %v3518 = vmin.f32 %v3262, 20.0
  %v3519 = vmin.f32 %v3263, 20.0
  %v3520 = vmin.f32 %v3264, 20.0
  %v3521 = vmin.f32 %v3265, 20.0
  %v3522 = vmin.f32 %v3266, 20.0
  %v3523 = vmin.f32 %v3267, 20.0
  %v3524 = vmin.f32 %v3268, 20.0
  %v3525 = vmin.f32 %v3269, 20.0
  %v3526 = vmin.f32 %v3270, 20.0
  %v3527 = vmin.f32 %v3271, 20.0
  %v3528 = vmin.f32 %v3272, 20.0
  %v3529 = vmin.f32 %v3273, 20.0
  %v3530 = vmin.f32 %v3274, 20.0
  %v3531 = vmin.f32 %v3275, 20.0
  %v3532 = vmin.f32 %v3276, 20.0
  %v3533 = vmin.f32 %v3277, 20.0
  %v3534 = vmin.f32 %v3278, 20.0
  %v3535 = vmin.f32 %v3279, 20.0
  %v3536 = vmin.f32 %v3280, 20.0
  %v3537 = vmin.f32 %v3281, 20.0
  %v3538 = vmin.f32 %v3282, 20.0
  %v3539 = vmin.f32 %v3283, 20.0
  %v3540 = vmin.f32 %v3284, 20.0
  %v3541 = vmin.f32 %v3285, 20.0
  %v3542 = vmin.f32 %v3286, 20.0
  %v3543 = vmin.f32 %v3287, 20.0
  %v3544 = vmin.f32 %v3288, 20.0
  %v3545 = vmin.f32 %v3289, 20.0
  %v3546 = vmin.f32 %v3290, 20.0
  %v3547 = vmin.f32 %v3291, 20.0
  %v3548 = vmin.f32 %v3292, 20.0
  %v3549 = vmin.f32 %v3293, 20.0
  %v3550 = vmin.f32 %v3294, 20.0
  %v3551 = vmin.f32 %v3295, 20.0
  %v3552 = vmin.f32 %v3296, 20.0
  %v3553 = vmin.f32 %v3297, 20.0
  %v3554 = vmin.f32 %v3298, 20.0
  %v3555 = vmin.f32 %v3299, 20.0
  %v3556 = vmin.f32 %v3300, 20.0
  %v3557 = vmin.f32 %v3301, 20.0
  %v3558 = vmin.f32 %v3302, 20.0
  %v3559 = vmin.f32 %v3303, 20.0
  %v3560 = vmin.f32 %v3304, 20.0
  %v3561 = vmin.f32 %v3305, 20.0
  %v3562 = vmin.f32 %v3306, 20.0
  %v3563 = vmin.f32 %v3307, 20.0
  %v3564 = vmin.f32 %v3308, 20.0
  %v3565 = vmin.f32 %v3309, 20.0
  %v3566 = vmin.f32 %v3310, 20.0
  %v3567 = vmin.f32 %v3311, 20.0
  %v3568 = vmin.f32 %v3312, 20.0
  %v3569 = vmin.f32 %v3313, 20.0
  %v3570 = vmin.f32 %v3314, 20.0
  %v3571 = vmin.f32 %v3315, 20.0
  %v3572 = vmin.f32 %v3316, 20.0
  %v3573 = vmin.f32 %v3317, 20.0
  %v3574 = vmin.f32 %v3318, 20.0
  %v3575 = vmin.f32 %v3319, 20.0
  %v3576 = vmin.f32 %v3320, 20.0
  %v3577 = vmin.f32 %v3321, 20.0
  %v3578 = vmin.f32 %v3322, 20.0
  %v3579 = vmin.f32 %v3323, 20.0
  %v3580 = vmin.f32 %v3324, 20.0
  %v3581 = vmin.f32 %v3325, 20.0
  %v3582 = vmin.f32 %v3326, 20.0
  %v3583 = vmin.f32 %v3327, 20.0
  %v3584 = vmin.f32 %v3328, 20.0
  %v3585 = vmin.f32 %v3329, 20.0
  %v3586 = vmin.f32 %v3330, 20.0
  %v3587 = vmin.f32 %v3331, 20.0
  %v3588 = vmin.f32 %v3332, 20.0
  %v3589 = vmin.f32 %v3333, 20.0
  %v3590 = vmin.f32 %v3334, 20.0
  %v3591 = vmin.f32 %v3335, 20.0
  %v3592 = vmin.f32 %v3336, 20.0
  %v3593 = vmin.f32 %v3337, 20.0
  %v3594 = vmin.f32 %v3338, 20.0
  %v3595 = vmin.f32 %v3339, 20.0
  %v3596 = vmin.f32 %v3340, 20.0
  %v3597 = vmin.f32 %v3341, 20.0
  %v3598 = vmin.f32 %v3342, 20.0
  %v3599 = vmin.f32 %v3343, 20.0
  %v3600 = vmin.f32 %v3344, 20.0
  %v3601 = vmin.f32 %v3345, 20.0
  %v3602 = vmin.f32 %v3346, 20.0
  %v3603 = vmin.f32 %v3347, 20.0
  %v3604 = vmin.f32 %v3348, 20.0
  %v3605 = vmin.f32 %v3349, 20.0
  %v3606 = vmin.f32 %v3350, 20.0
  %v3607 = vmin.f32 %v3351, 20.0
  %v3608 = vmin.f32 %v3352, 20.0
  %v3609 = vmin.f32 %v3353, 20.0
  %v3610 = vmin.f32 %v3354, 20.0
  %v3611 = vmin.f32 %v3355, 20.0
  %v3612 = vmin.f32 %v3356, 20.0
  %v3613 = vmin.f32 %v3357, 20.0
  %v3614 = vmin.f32 %v3358, 20.0
  %v3615 = vmin.f32 %v3359, 20.0
  %v3616 = vmin.f32 %v3360, 20.0
  %v3617 = vmin.f32 %v3361, 20.0
  %v3618 = vmin.f32 %v3362, 20.0
  %v3619 = vmin.f32 %v3363, 20.0
  %v3620 = vmin.f32 %v3364, 20.0
  %v3621 = vmin.f32 %v3365, 20.0
  %v3622 = vmin.f32 %v3366, 20.0
  %v3623 = vmin.f32 %v3367, 20.0
  %v3624 = vmin.f32 %v3368, 20.0
  %v3625 = vmin.f32 %v3369, 20.0
  %v3626 = vmin.f32 %v3370, 20.0
  %v3627 = vmin.f32 %v3371, 20.0
  %v3628 = vmin.f32 %v3372, 20.0
  %v3629 = vmin.f32 %v3373, 20.0
  %v3630 = vmin.f32 %v3374, 20.0
  %v3631 = vmin.f32 %v3375, 20.0
  %v3632 = vmin.f32 %v3376, 20.0
  %v3633 = vmin.f32 %v3377, 20.0
  %v3634 = vmin.f32 %v3378, 20.0
  %v3635 = vmin.f32 %v3379, 20.0
  %v3636 = vmin.f32 %v3380, 20.0
  %v3637 = vmin.f32 %v3381, 20.0
  %v3638 = vmin.f32 %v3382, 20.0
  %v3639 = vmin.f32 %v3383, 20.0
  %v3640 = vmin.f32 %v3384, 20.0
  %v3641 = vmin.f32 %v3385, 20.0
  %v3642 = vmin.f32 %v3386, 20.0
  %v3643 = vmin.f32 %v3387, 20.0
  %v3644 = vmin.f32 %v3388, 20.0
  %v3645 = vmin.f32 %v3389, 20.0
  %v3646 = vmin.f32 %v3390, 20.0
  %v3647 = vmin.f32 %v3391, 20.0
  %v3648 = vmin.f32 %v3392, 20.0
  %v3649 = vmin.f32 %v3393, 20.0
  %v3650 = vmin.f32 %v3394, 20.0
  %v3651 = vmin.f32 %v3395, 20.0
  %v3652 = vmin.f32 %v3396, 20.0
  %v3653 = vmin.f32 %v3397, 20.0
  %v3654 = vmin.f32 %v3398, 20.0
  %v3655 = vmin.f32 %v3399, 20.0
  %v3656 = vmin.f32 %v3400, 20.0
  %v3657 = vmin.f32 %v3401, 20.0
  %v3658 = vmin.f32 %v3402, 20.0
  %v3659 = vmin.f32 %v3403, 20.0
  %v3660 = vmin.f32 %v3404, 20.0
  %v3661 = vmin.f32 %v3405, 20.0
  %v3662 = vmin.f32 %v3406, 20.0
  %v3663 = vmin.f32 %v3407, 20.0
  %v3664 = vmin.f32 %v3408, 20.0
  %v3665 = vmin.f32 %v3409, 20.0
  %v3666 = vmin.f32 %v3410, 20.0
  %v3667 = vmin.f32 %v3411, 20.0
  %v3668 = vmin.f32 %v3412, 20.0
  %v3669 = vmin.f32 %v3413, 20.0
  %v3670 = vmin.f32 %v3414, 20.0
  %v3671 = vmin.f32 %v3415, 20.0
  %v3672 = vmin.f32 %v3416, 20.0
  %v3673 = vmin.f32 %v3417, 20.0
  %v3674 = vmin.f32 %v3418, 20.0
  %v3675 = vmin.f32 %v3419, 20.0
  %v3676 = vmin.f32 %v3420, 20.0
  %v3677 = vmin.f32 %v3421, 20.0
  %v3678 = vmin.f32 %v3422, 20.0
  %v3679 = vmin.f32 %v3423, 20.0
  %v3680 = vmin.f32 %v3424, 20.0
  %v3681 = vmin.f32 %v3425, 20.0
  %v3682 = vmin.f32 %v3426, 20.0
  %v3683 = vmin.f32 %v3427, 20.0
  %v3684 = vmin.f32 %v3428, 20.0
  %v3685 = vmin.f32 %v3429, 20.0
  %v3686 = vmin.f32 %v3430, 20.0
  %v3687 = vmin.f32 %v3431, 20.0
  %v3688 = vmin.f32 %v3432, 20.0
  %v3689 = vmin.f32 %v3433, 20.0
  %v3690 = vmin.f32 %v3434, 20.0
  %v3691 = vmin.f32 %v3435, 20.0
  %v3692 = vmin.f32 %v3436, 20.0
  %v3693 = vmin.f32 %v3437, 20.0
  %v3694 = vmin.f32 %v3438, 20.0
  %v3695 = vmin.f32 %v3439, 20.0
  %v3696 = vmin.f32 %v3440, 20.0
  %v3697 = vmin.f32 %v3441, 20.0
  %v3698 = vmin.f32 %v3442, 20.0
  %v3699 = vmin.f32 %v3443, 20.0
  %v3700 = vmin.f32 %v3444, 20.0
  %v3701 = vmin.f32 %v3445, 20.0
  %v3702 = vmin.f32 %v3446, 20.0
  %v3703 = vmin.f32 %v3447, 20.0
  %v3704 = vmin.f32 %v3448, 20.0
  %v3705 = vmin.f32 %v3449, 20.0
  %v3706 = vmin.f32 %v3450, 20.0
  %v3707 = vmin.f32 %v3451, 20.0
  %v3708 = vmin.f32 %v3452, 20.0
  %v3709 = vmin.f32 %v3453, 20.0
  %v3710 = vmul.f32 %v3454, 1.442695
  %v3711 = vpow.pop %v3710
  %v3712 = vmul.f32 %v3455, 1.442695
  %v3713 = vpow.pop %v3712
  %v3714 = vmul.f32 %v3456, 1.442695
  %v3715 = vpow.pop %v3714
  %v3716 = vmul.f32 %v3457, 1.442695
  %v3717 = vpow.pop %v3716
  %v3718 = vmul.f32 %v3458, 1.442695
  %v3719 = vpow.pop %v3718
  %v3720 = vmul.f32 %v3459, 1.442695
  %v3721 = vpow.pop %v3720
  %v3722 = vmul.f32 %v3460, 1.442695
  %v3723 = vpow.pop %v3722
  %v3724 = vmul.f32 %v3461, 1.442695
  %v3725 = vpow.pop %v3724
  %v3726 = vmul.f32 %v3462, 1.442695
  %v3727 = vpow.pop %v3726
  %v3728 = vmul.f32 %v3463, 1.442695
  %v3729 = vpow.pop %v3728
  %v3730 = vmul.f32 %v3464, 1.442695
  %v3731 = vpow.pop %v3730
  %v3732 = vmul.f32 %v3465, 1.442695
  %v3733 = vpow.pop %v3732
  %v3734 = vmul.f32 %v3466, 1.442695
  %v3735 = vpow.pop %v3734
  %v3736 = vmul.f32 %v3467, 1.442695
  %v3737 = vpow.pop %v3736
  %v3738 = vmul.f32 %v3468, 1.442695
  %v3739 = vpow.pop %v3738
  %v3740 = vmul.f32 %v3469, 1.442695
  %v3741 = vpow.pop %v3740
  %v3742 = vmul.f32 %v3470, 1.442695
  %v3743 = vpow.pop %v3742
  %v3744 = vmul.f32 %v3471, 1.442695
  %v3745 = vpow.pop %v3744
  %v3746 = vmul.f32 %v3472, 1.442695
  %v3747 = vpow.pop %v3746
  %v3748 = vmul.f32 %v3473, 1.442695
  %v3749 = vpow.pop %v3748
  %v3750 = vmul.f32 %v3474, 1.442695
  %v3751 = vpow.pop %v3750
  %v3752 = vmul.f32 %v3475, 1.442695
  %v3753 = vpow.pop %v3752
  %v3754 = vmul.f32 %v3476, 1.442695
  %v3755 = vpow.pop %v3754
  %v3756 = vmul.f32 %v3477, 1.442695
  %v3757 = vpow.pop %v3756
  %v3758 = vmul.f32 %v3478, 1.442695
  %v3759 = vpow.pop %v3758
  %v3760 = vmul.f32 %v3479, 1.442695
  %v3761 = vpow.pop %v3760
  %v3762 = vmul.f32 %v3480, 1.442695
  %v3763 = vpow.pop %v3762
  %v3764 = vmul.f32 %v3481, 1.442695
  %v3765 = vpow.pop %v3764
  %v3766 = vmul.f32 %v3482, 1.442695
  %v3767 = vpow.pop %v3766
  %v3768 = vmul.f32 %v3483, 1.442695
  %v3769 = vpow.pop %v3768
  %v3770 = vmul.f32 %v3484, 1.442695
  %v3771 = vpow.pop %v3770
  %v3772 = vmul.f32 %v3485, 1.442695
  %v3773 = vpow.pop %v3772
  %v3774 = vmul.f32 %v3486, 1.442695
  %v3775 = vpow.pop %v3774
  %v3776 = vmul.f32 %v3487, 1.442695
  %v3777 = vpow.pop %v3776
  %v3778 = vmul.f32 %v3488, 1.442695
  %v3779 = vpow.pop %v3778
  %v3780 = vmul.f32 %v3489, 1.442695
  %v3781 = vpow.pop %v3780
  %v3782 = vmul.f32 %v3490, 1.442695
  %v3783 = vpow.pop %v3782
  %v3784 = vmul.f32 %v3491, 1.442695
  %v3785 = vpow.pop %v3784
  %v3786 = vmul.f32 %v3492, 1.442695
  %v3787 = vpow.pop %v3786
  %v3788 = vmul.f32 %v3493, 1.442695
  %v3789 = vpow.pop %v3788
  %v3790 = vmul.f32 %v3494, 1.442695
  %v3791 = vpow.pop %v3790
  %v3792 = vmul.f32 %v3495, 1.442695
  %v3793 = vpow.pop %v3792
  %v3794 = vmul.f32 %v3496, 1.442695
  %v3795 = vpow.pop %v3794
  %v3796 = vmul.f32 %v3497, 1.442695
  %v3797 = vpow.pop %v3796
  %v3798 = vmul.f32 %v3498, 1.442695
  %v3799 = vpow.pop %v3798
  %v3800 = vmul.f32 %v3499, 1.442695
  %v3801 = vpow.pop %v3800
  %v3802 = vmul.f32 %v3500, 1.442695
  %v3803 = vpow.pop %v3802
  %v3804 = vmul.f32 %v3501, 1.442695
  %v3805 = vpow.pop %v3804
  %v3806 = vmul.f32 %v3502, 1.442695
  %v3807 = vpow.pop %v3806
  %v3808 = vmul.f32 %v3503, 1.442695
  %v3809 = vpow.pop %v3808
  %v3810 = vmul.f32 %v3504, 1.442695
  %v3811 = vpow.pop %v3810
  %v3812 = vmul.f32 %v3505, 1.442695
  %v3813 = vpow.pop %v3812
  %v3814 = vmul.f32 %v3506, 1.442695
  %v3815 = vpow.pop %v3814
  %v3816 = vmul.f32 %v3507, 1.442695
  %v3817 = vpow.pop %v3816
  %v3818 = vmul.f32 %v3508, 1.442695
  %v3819 = vpow.pop %v3818
  %v3820 = vmul.f32 %v3509, 1.442695
  %v3821 = vpow.pop %v3820
  %v3822 = vmul.f32 %v3510, 1.442695
  %v3823 = vpow.pop %v3822
  %v3824 = vmul.f32 %v3511, 1.442695
  %v3825 = vpow.pop %v3824
  %v3826 = vmul.f32 %v3512, 1.442695
  %v3827 = vpow.pop %v3826
  %v3828 = vmul.f32 %v3513, 1.442695
  %v3829 = vpow.pop %v3828
  %v3830 = vmul.f32 %v3514, 1.442695
  %v3831 = vpow.pop %v3830
  %v3832 = vmul.f32 %v3515, 1.442695
  %v3833 = vpow.pop %v3832
  %v3834 = vmul.f32 %v3516, 1.442695
  %v3835 = vpow.pop %v3834
  %v3836 = vmul.f32 %v3517, 1.442695
  %v3837 = vpow.pop %v3836
  %v3838 = vmul.f32 %v3518, 1.442695
  %v3839 = vpow.pop %v3838
  %v3840 = vmul.f32 %v3519, 1.442695
  %v3841 = vpow.pop %v3840
  %v3842 = vmul.f32 %v3520, 1.442695
  %v3843 = vpow.pop %v3842
  %v3844 = vmul.f32 %v3521, 1.442695
  %v3845 = vpow.pop %v3844
  %v3846 = vmul.f32 %v3522, 1.442695
  %v3847 = vpow.pop %v3846
  %v3848 = vmul.f32 %v3523, 1.442695
  %v3849 = vpow.pop %v3848
  %v3850 = vmul.f32 %v3524, 1.442695
  %v3851 = vpow.pop %v3850
  %v3852 = vmul.f32 %v3525, 1.442695
  %v3853 = vpow.pop %v3852
  %v3854 = vmul.f32 %v3526, 1.442695
  %v3855 = vpow.pop %v3854
  %v3856 = vmul.f32 %v3527, 1.442695
  %v3857 = vpow.pop %v3856
  %v3858 = vmul.f32 %v3528, 1.442695
  %v3859 = vpow.pop %v3858
  %v3860 = vmul.f32 %v3529, 1.442695
  %v3861 = vpow.pop %v3860
  %v3862 = vmul.f32 %v3530, 1.442695
  %v3863 = vpow.pop %v3862
  %v3864 = vmul.f32 %v3531, 1.442695
  %v3865 = vpow.pop %v3864
  %v3866 = vmul.f32 %v3532, 1.442695
  %v3867 = vpow.pop %v3866
  %v3868 = vmul.f32 %v3533, 1.442695
  %v3869 = vpow.pop %v3868
  %v3870 = vmul.f32 %v3534, 1.442695
  %v3871 = vpow.pop %v3870
  %v3872 = vmul.f32 %v3535, 1.442695
  %v3873 = vpow.pop %v3872
  %v3874 = vmul.f32 %v3536, 1.442695
  %v3875 = vpow.pop %v3874
  %v3876 = vmul.f32 %v3537, 1.442695
  %v3877 = vpow.pop %v3876
  %v3878 = vmul.f32 %v3538, 1.442695
  %v3879 = vpow.pop %v3878
  %v3880 = vmul.f32 %v3539, 1.442695
  %v3881 = vpow.pop %v3880
  %v3882 = vmul.f32 %v3540, 1.442695
  %v3883 = vpow.pop %v3882
  %v3884 = vmul.f32 %v3541, 1.442695
  %v3885 = vpow.pop %v3884
  %v3886 = vmul.f32 %v3542, 1.442695
  %v3887 = vpow.pop %v3886
  %v3888 = vmul.f32 %v3543, 1.442695
  %v3889 = vpow.pop %v3888
  %v3890 = vmul.f32 %v3544, 1.442695
  %v3891 = vpow.pop %v3890
  %v3892 = vmul.f32 %v3545, 1.442695
  %v3893 = vpow.pop %v3892
  %v3894 = vmul.f32 %v3546, 1.442695
  %v3895 = vpow.pop %v3894
  %v3896 = vmul.f32 %v3547, 1.442695
  %v3897 = vpow.pop %v3896
  %v3898 = vmul.f32 %v3548, 1.442695
  %v3899 = vpow.pop %v3898
  %v3900 = vmul.f32 %v3549, 1.442695
  %v3901 = vpow.pop %v3900
  %v3902 = vmul.f32 %v3550, 1.442695
  %v3903 = vpow.pop %v3902
  %v3904 = vmul.f32 %v3551, 1.442695
  %v3905 = vpow.pop %v3904
  %v3906 = vmul.f32 %v3552, 1.442695
  %v3907 = vpow.pop %v3906
  %v3908 = vmul.f32 %v3553, 1.442695
  %v3909 = vpow.pop %v3908
  %v3910 = vmul.f32 %v3554, 1.442695
  %v3911 = vpow.pop %v3910
  %v3912 = vmul.f32 %v3555, 1.442695
  %v3913 = vpow.pop %v3912
  %v3914 = vmul.f32 %v3556, 1.442695
  %v3915 = vpow.pop %v3914
  %v3916 = vmul.f32 %v3557, 1.442695
  %v3917 = vpow.pop %v3916
  %v3918 = vmul.f32 %v3558, 1.442695
  %v3919 = vpow.pop %v3918
  %v3920 = vmul.f32 %v3559, 1.442695
  %v3921 = vpow.pop %v3920
  %v3922 = vmul.f32 %v3560, 1.442695
  %v3923 = vpow.pop %v3922
  %v3924 = vmul.f32 %v3561, 1.442695
  %v3925 = vpow.pop %v3924
  %v3926 = vmul.f32 %v3562, 1.442695
  %v3927 = vpow.pop %v3926
  %v3928 = vmul.f32 %v3563, 1.442695
  %v3929 = vpow.pop %v3928
  %v3930 = vmul.f32 %v3564, 1.442695
  %v3931 = vpow.pop %v3930
  %v3932 = vmul.f32 %v3565, 1.442695
  %v3933 = vpow.pop %v3932
  %v3934 = vmul.f32 %v3566, 1.442695
  %v3935 = vpow.pop %v3934
  %v3936 = vmul.f32 %v3567, 1.442695
  %v3937 = vpow.pop %v3936
  %v3938 = vmul.f32 %v3568, 1.442695
  %v3939 = vpow.pop %v3938
  %v3940 = vmul.f32 %v3569, 1.442695
  %v3941 = vpow.pop %v3940
  %v3942 = vmul.f32 %v3570, 1.442695
  %v3943 = vpow.pop %v3942
  %v3944 = vmul.f32 %v3571, 1.442695
  %v3945 = vpow.pop %v3944
  %v3946 = vmul.f32 %v3572, 1.442695
  %v3947 = vpow.pop %v3946
  %v3948 = vmul.f32 %v3573, 1.442695
  %v3949 = vpow.pop %v3948
  %v3950 = vmul.f32 %v3574, 1.442695
  %v3951 = vpow.pop %v3950
  %v3952 = vmul.f32 %v3575, 1.442695
  %v3953 = vpow.pop %v3952
  %v3954 = vmul.f32 %v3576, 1.442695
  %v3955 = vpow.pop %v3954
  %v3956 = vmul.f32 %v3577, 1.442695
  %v3957 = vpow.pop %v3956
  %v3958 = vmul.f32 %v3578, 1.442695
  %v3959 = vpow.pop %v3958
  %v3960 = vmul.f32 %v3579, 1.442695
  %v3961 = vpow.pop %v3960
  %v3962 = vmul.f32 %v3580, 1.442695
  %v3963 = vpow.pop %v3962
  %v3964 = vmul.f32 %v3581, 1.442695
  %v3965 = vpow.pop %v3964
  %v3966 = vmul.f32 %v3582, 1.442695
  %v3967 = vpow.pop %v3966
  %v3968 = vmul.f32 %v3583, 1.442695
  %v3969 = vpow.pop %v3968
  %v3970 = vmul.f32 %v3584, 1.442695
  %v3971 = vpow.pop %v3970
  %v3972 = vmul.f32 %v3585, 1.442695
  %v3973 = vpow.pop %v3972
  %v3974 = vmul.f32 %v3586, 1.442695
  %v3975 = vpow.pop %v3974
  %v3976 = vmul.f32 %v3587, 1.442695
  %v3977 = vpow.pop %v3976
  %v3978 = vmul.f32 %v3588, 1.442695
  %v3979 = vpow.pop %v3978
  %v3980 = vmul.f32 %v3589, 1.442695
  %v3981 = vpow.pop %v3980
  %v3982 = vmul.f32 %v3590, 1.442695
  %v3983 = vpow.pop %v3982
  %v3984 = vmul.f32 %v3591, 1.442695
  %v3985 = vpow.pop %v3984
  %v3986 = vmul.f32 %v3592, 1.442695
  %v3987 = vpow.pop %v3986
  %v3988 = vmul.f32 %v3593, 1.442695
  %v3989 = vpow.pop %v3988
  %v3990 = vmul.f32 %v3594, 1.442695
  %v3991 = vpow.pop %v3990
  %v3992 = vmul.f32 %v3595, 1.442695
  %v3993 = vpow.pop %v3992
  %v3994 = vmul.f32 %v3596, 1.442695
  %v3995 = vpow.pop %v3994
  %v3996 = vmul.f32 %v3597, 1.442695
  %v3997 = vpow.pop %v3996
  %v3998 = vmul.f32 %v3598, 1.442695
  %v3999 = vpow.pop %v3998
  %v4000 = vmul.f32 %v3599, 1.442695
  %v4001 = vpow.pop %v4000
  %v4002 = vmul.f32 %v3600, 1.442695
  %v4003 = vpow.pop %v4002
  %v4004 = vmul.f32 %v3601, 1.442695
  %v4005 = vpow.pop %v4004
  %v4006 = vmul.f32 %v3602, 1.442695
  %v4007 = vpow.pop %v4006
  %v4008 = vmul.f32 %v3603, 1.442695
  %v4009 = vpow.pop %v4008
  %v4010 = vmul.f32 %v3604, 1.442695
  %v4011 = vpow.pop %v4010
  %v4012 = vmul.f32 %v3605, 1.442695
  %v4013 = vpow.pop %v4012
  %v4014 = vmul.f32 %v3606, 1.442695
  %v4015 = vpow.pop %v4014
  %v4016 = vmul.f32 %v3607, 1.442695
  %v4017 = vpow.pop %v4016
  %v4018 = vmul.f32 %v3608, 1.442695
  %v4019 = vpow.pop %v4018
  %v4020 = vmul.f32 %v3609, 1.442695
  %v4021 = vpow.pop %v4020
  %v4022 = vmul.f32 %v3610, 1.442695
  %v4023 = vpow.pop %v4022
  %v4024 = vmul.f32 %v3611, 1.442695
  %v4025 = vpow.pop %v4024
  %v4026 = vmul.f32 %v3612, 1.442695
  %v4027 = vpow.pop %v4026
  %v4028 = vmul.f32 %v3613, 1.442695
  %v4029 = vpow.pop %v4028
  %v4030 = vmul.f32 %v3614, 1.442695
  %v4031 = vpow.pop %v4030
  %v4032 = vmul.f32 %v3615, 1.442695
  %v4033 = vpow.pop %v4032
  %v4034 = vmul.f32 %v3616, 1.442695
  %v4035 = vpow.pop %v4034
  %v4036 = vmul.f32 %v3617, 1.442695
  %v4037 = vpow.pop %v4036
  %v4038 = vmul.f32 %v3618, 1.442695
  %v4039 = vpow.pop %v4038
  %v4040 = vmul.f32 %v3619, 1.442695
  %v4041 = vpow.pop %v4040
  %v4042 = vmul.f32 %v3620, 1.442695
  %v4043 = vpow.pop %v4042
  %v4044 = vmul.f32 %v3621, 1.442695
  %v4045 = vpow.pop %v4044
  %v4046 = vmul.f32 %v3622, 1.442695
  %v4047 = vpow.pop %v4046
  %v4048 = vmul.f32 %v3623, 1.442695
  %v4049 = vpow.pop %v4048
  %v4050 = vmul.f32 %v3624, 1.442695
  %v4051 = vpow.pop %v4050
  %v4052 = vmul.f32 %v3625, 1.442695
  %v4053 = vpow.pop %v4052
  %v4054 = vmul.f32 %v3626, 1.442695
  %v4055 = vpow.pop %v4054
  %v4056 = vmul.f32 %v3627, 1.442695
  %v4057 = vpow.pop %v4056
  %v4058 = vmul.f32 %v3628, 1.442695
  %v4059 = vpow.pop %v4058
  %v4060 = vmul.f32 %v3629, 1.442695
  %v4061 = vpow.pop %v4060
  %v4062 = vmul.f32 %v3630, 1.442695
  %v4063 = vpow.pop %v4062
  %v4064 = vmul.f32 %v3631, 1.442695
  %v4065 = vpow.pop %v4064
  %v4066 = vmul.f32 %v3632, 1.442695
  %v4067 = vpow.pop %v4066
  %v4068 = vmul.f32 %v3633, 1.442695
  %v4069 = vpow.pop %v4068
  %v4070 = vmul.f32 %v3634, 1.442695
  %v4071 = vpow.pop %v4070
  %v4072 = vmul.f32 %v3635, 1.442695
  %v4073 = vpow.pop %v4072
  %v4074 = vmul.f32 %v3636, 1.442695
  %v4075 = vpow.pop %v4074
  %v4076 = vmul.f32 %v3637, 1.442695
  %v4077 = vpow.pop %v4076
  %v4078 = vmul.f32 %v3638, 1.442695
  %v4079 = vpow.pop %v4078
  %v4080 = vmul.f32 %v3639, 1.442695
  %v4081 = vpow.pop %v4080
  %v4082 = vmul.f32 %v3640, 1.442695
  %v4083 = vpow.pop %v4082
  %v4084 = vmul.f32 %v3641, 1.442695
  %v4085 = vpow.pop %v4084
  %v4086 = vmul.f32 %v3642, 1.442695
  %v4087 = vpow.pop %v4086
  %v4088 = vmul.f32 %v3643, 1.442695
  %v4089 = vpow.pop %v4088
  %v4090 = vmul.f32 %v3644, 1.442695
  %v4091 = vpow.pop %v4090
  %v4092 = vmul.f32 %v3645, 1.442695
  %v4093 = vpow.pop %v4092
  %v4094 = vmul.f32 %v3646, 1.442695
  %v4095 = vpow.pop %v4094
  %v4096 = vmul.f32 %v3647, 1.442695
  %v4097 = vpow.pop %v4096
  %v4098 = vmul.f32 %v3648, 1.442695
  %v4099 = vpow.pop %v4098
  %v4100 = vmul.f32 %v3649, 1.442695
  %v4101 = vpow.pop %v4100
  %v4102 = vmul.f32 %v3650, 1.442695
  %v4103 = vpow.pop %v4102
  %v4104 = vmul.f32 %v3651, 1.442695
  %v4105 = vpow.pop %v4104
  %v4106 = vmul.f32 %v3652, 1.442695
  %v4107 = vpow.pop %v4106
  %v4108 = vmul.f32 %v3653, 1.442695
  %v4109 = vpow.pop %v4108
  %v4110 = vmul.f32 %v3654, 1.442695
  %v4111 = vpow.pop %v4110
  %v4112 = vmul.f32 %v3655, 1.442695
  %v4113 = vpow.pop %v4112
  %v4114 = vmul.f32 %v3656, 1.442695
  %v4115 = vpow.pop %v4114
  %v4116 = vmul.f32 %v3657, 1.442695
  %v4117 = vpow.pop %v4116
  %v4118 = vmul.f32 %v3658, 1.442695
  %v4119 = vpow.pop %v4118
  %v4120 = vmul.f32 %v3659, 1.442695
  %v4121 = vpow.pop %v4120
  %v4122 = vmul.f32 %v3660, 1.442695
  %v4123 = vpow.pop %v4122
  %v4124 = vmul.f32 %v3661, 1.442695
  %v4125 = vpow.pop %v4124
  %v4126 = vmul.f32 %v3662, 1.442695
  %v4127 = vpow.pop %v4126
  %v4128 = vmul.f32 %v3663, 1.442695
  %v4129 = vpow.pop %v4128
  %v4130 = vmul.f32 %v3664, 1.442695
  %v4131 = vpow.pop %v4130
  %v4132 = vmul.f32 %v3665, 1.442695
  %v4133 = vpow.pop %v4132
  %v4134 = vmul.f32 %v3666, 1.442695
  %v4135 = vpow.pop %v4134
  %v4136 = vmul.f32 %v3667, 1.442695
  %v4137 = vpow.pop %v4136
  %v4138 = vmul.f32 %v3668, 1.442695
  %v4139 = vpow.pop %v4138
  %v4140 = vmul.f32 %v3669, 1.442695
  %v4141 = vpow.pop %v4140
  %v4142 = vmul.f32 %v3670, 1.442695
  %v4143 = vpow.pop %v4142
  %v4144 = vmul.f32 %v3671, 1.442695
  %v4145 = vpow.pop %v4144
  %v4146 = vmul.f32 %v3672, 1.442695
  %v4147 = vpow.pop %v4146
  %v4148 = vmul.f32 %v3673, 1.442695
  %v4149 = vpow.pop %v4148
  %v4150 = vmul.f32 %v3674, 1.442695
  %v4151 = vpow.pop %v4150
  %v4152 = vmul.f32 %v3675, 1.442695
  %v4153 = vpow.pop %v4152
  %v4154 = vmul.f32 %v3676, 1.442695
  %v4155 = vpow.pop %v4154
  %v4156 = vmul.f32 %v3677, 1.442695
  %v4157 = vpow.pop %v4156
  %v4158 = vmul.f32 %v3678, 1.442695
  %v4159 = vpow.pop %v4158
  %v4160 = vmul.f32 %v3679, 1.442695
  %v4161 = vpow.pop %v4160
  %v4162 = vmul.f32 %v3680, 1.442695
  %v4163 = vpow.pop %v4162
  %v4164 = vmul.f32 %v3681, 1.442695
  %v4165 = vpow.pop %v4164
  %v4166 = vmul.f32 %v3682, 1.442695
  %v4167 = vpow.pop %v4166
  %v4168 = vmul.f32 %v3683, 1.442695
  %v4169 = vpow.pop %v4168
  %v4170 = vmul.f32 %v3684, 1.442695
  %v4171 = vpow.pop %v4170
  %v4172 = vmul.f32 %v3685, 1.442695
  %v4173 = vpow.pop %v4172
  %v4174 = vmul.f32 %v3686, 1.442695
  %v4175 = vpow.pop %v4174
  %v4176 = vmul.f32 %v3687, 1.442695
  %v4177 = vpow.pop %v4176
  %v4178 = vmul.f32 %v3688, 1.442695
  %v4179 = vpow.pop %v4178
  %v4180 = vmul.f32 %v3689, 1.442695
  %v4181 = vpow.pop %v4180
  %v4182 = vmul.f32 %v3690, 1.442695
  %v4183 = vpow.pop %v4182
  %v4184 = vmul.f32 %v3691, 1.442695
  %v4185 = vpow.pop %v4184
  %v4186 = vmul.f32 %v3692, 1.442695
  %v4187 = vpow.pop %v4186
  %v4188 = vmul.f32 %v3693, 1.442695
  %v4189 = vpow.pop %v4188
  %v4190 = vmul.f32 %v3694, 1.442695
  %v4191 = vpow.pop %v4190
  %v4192 = vmul.f32 %v3695, 1.442695
  %v4193 = vpow.pop %v4192
  %v4194 = vmul.f32 %v3696, 1.442695
  %v4195 = vpow.pop %v4194
  %v4196 = vmul.f32 %v3697, 1.442695
  %v4197 = vpow.pop %v4196
  %v4198 = vmul.f32 %v3698, 1.442695
  %v4199 = vpow.pop %v4198
  %v4200 = vmul.f32 %v3699, 1.442695
  %v4201 = vpow.pop %v4200
  %v4202 = vmul.f32 %v3700, 1.442695
  %v4203 = vpow.pop %v4202
  %v4204 = vmul.f32 %v3701, 1.442695
  %v4205 = vpow.pop %v4204
  %v4206 = vmul.f32 %v3702, 1.442695
  %v4207 = vpow.pop %v4206
  %v4208 = vmul.f32 %v3703, 1.442695
  %v4209 = vpow.pop %v4208
  %v4210 = vmul.f32 %v3704, 1.442695
  %v4211 = vpow.pop %v4210
  %v4212 = vmul.f32 %v3705, 1.442695
  %v4213 = vpow.pop %v4212
  %v4214 = vmul.f32 %v3706, 1.442695
  %v4215 = vpow.pop %v4214
  %v4216 = vmul.f32 %v3707, 1.442695
  %v4217 = vpow.pop %v4216
  %v4218 = vmul.f32 %v3708, 1.442695
  %v4219 = vpow.pop %v4218
  %v4220 = vmul.f32 %v3709, 1.442695
  %v4221 = vpow.pop %v4220
  %v4222 = vadd.f32 %v3711, 2.0
  %v4223 = vadd.f32 %v3713, 2.0
  %v4224 = vadd.f32 %v3715, 2.0
  %v4225 = vadd.f32 %v3717, 2.0
  %v4226 = vadd.f32 %v3719, 2.0
  %v4227 = vadd.f32 %v3721, 2.0
  %v4228 = vadd.f32 %v3723, 2.0
  %v4229 = vadd.f32 %v3725, 2.0
  %v4230 = vadd.f32 %v3727, 2.0
  %v4231 = vadd.f32 %v3729, 2.0
  %v4232 = vadd.f32 %v3731, 2.0
  %v4233 = vadd.f32 %v3733, 2.0
  %v4234 = vadd.f32 %v3735, 2.0
  %v4235 = vadd.f32 %v3737, 2.0
  %v4236 = vadd.f32 %v3739, 2.0
  %v4237 = vadd.f32 %v3741, 2.0
  %v4238 = vadd.f32 %v3743, 2.0
  %v4239 = vadd.f32 %v3745, 2.0
  %v4240 = vadd.f32 %v3747, 2.0
  %v4241 = vadd.f32 %v3749, 2.0
  %v4242 = vadd.f32 %v3751, 2.0
  %v4243 = vadd.f32 %v3753, 2.0
  %v4244 = vadd.f32 %v3755, 2.0
  %v4245 = vadd.f32 %v3757, 2.0
  %v4246 = vadd.f32 %v3759, 2.0
  %v4247 = vadd.f32 %v3761, 2.0
  %v4248 = vadd.f32 %v3763, 2.0
  %v4249 = vadd.f32 %v3765, 2.0
  %v4250 = vadd.f32 %v3767, 2.0
  %v4251 = vadd.f32 %v3769, 2.0
  %v4252 = vadd.f32 %v3771, 2.0
  %v4253 = vadd.f32 %v3773, 2.0
  %v4254 = vadd.f32 %v3775, 2.0
  %v4255 = vadd.f32 %v3777, 2.0
  %v4256 = vadd.f32 %v3779, 2.0
  %v4257 = vadd.f32 %v3781, 2.0
  %v4258 = vadd.f32 %v3783, 2.0
  %v4259 = vadd.f32 %v3785, 2.0
  %v4260 = vadd.f32 %v3787, 2.0
  %v4261 = vadd.f32 %v3789, 2.0
  %v4262 = vadd.f32 %v3791, 2.0
  %v4263 = vadd.f32 %v3793, 2.0
  %v4264 = vadd.f32 %v3795, 2.0
  %v4265 = vadd.f32 %v3797, 2.0
  %v4266 = vadd.f32 %v3799, 2.0
  %v4267 = vadd.f32 %v3801, 2.0
  %v4268 = vadd.f32 %v3803, 2.0
  %v4269 = vadd.f32 %v3805, 2.0
  %v4270 = vadd.f32 %v3807, 2.0
  %v4271 = vadd.f32 %v3809, 2.0
  %v4272 = vadd.f32 %v3811, 2.0
  %v4273 = vadd.f32 %v3813, 2.0
  %v4274 = vadd.f32 %v3815, 2.0
  %v4275 = vadd.f32 %v3817, 2.0
  %v4276 = vadd.f32 %v3819, 2.0
  %v4277 = vadd.f32 %v3821, 2.0
  %v4278 = vadd.f32 %v3823, 2.0
  %v4279 = vadd.f32 %v3825, 2.0
  %v4280 = vadd.f32 %v3827, 2.0
  %v4281 = vadd.f32 %v3829, 2.0
  %v4282 = vadd.f32 %v3831, 2.0
  %v4283 = vadd.f32 %v3833, 2.0
  %v4284 = vadd.f32 %v3835, 2.0
  %v4285 = vadd.f32 %v3837, 2.0
  %v4286 = vadd.f32 %v3839, 2.0
  %v4287 = vadd.f32 %v3841, 2.0
  %v4288 = vadd.f32 %v3843, 2.0
  %v4289 = vadd.f32 %v3845, 2.0
  %v4290 = vadd.f32 %v3847, 2.0
  %v4291 = vadd.f32 %v3849, 2.0
  %v4292 = vadd.f32 %v3851, 2.0
  %v4293 = vadd.f32 %v3853, 2.0
  %v4294 = vadd.f32 %v3855, 2.0
  %v4295 = vadd.f32 %v3857, 2.0
  %v4296 = vadd.f32 %v3859, 2.0
  %v4297 = vadd.f32 %v3861, 2.0
  %v4298 = vadd.f32 %v3863, 2.0
  %v4299 = vadd.f32 %v3865, 2.0
  %v4300 = vadd.f32 %v3867, 2.0
  %v4301 = vadd.f32 %v3869, 2.0
  %v4302 = vadd.f32 %v3871, 2.0
  %v4303 = vadd.f32 %v3873, 2.0
  %v4304 = vadd.f32 %v3875, 2.0
  %v4305 = vadd.f32 %v3877, 2.0
  %v4306 = vadd.f32 %v3879, 2.0
  %v4307 = vadd.f32 %v3881, 2.0
  %v4308 = vadd.f32 %v3883, 2.0
  %v4309 = vadd.f32 %v3885, 2.0
  %v4310 = vadd.f32 %v3887, 2.0
  %v4311 = vadd.f32 %v3889, 2.0
  %v4312 = vadd.f32 %v3891, 2.0
  %v4313 = vadd.f32 %v3893, 2.0
  %v4314 = vadd.f32 %v3895, 2.0
  %v4315 = vadd.f32 %v3897, 2.0
  %v4316 = vadd.f32 %v3899, 2.0
  %v4317 = vadd.f32 %v3901, 2.0
  %v4318 = vadd.f32 %v3903, 2.0
  %v4319 = vadd.f32 %v3905, 2.0
  %v4320 = vadd.f32 %v3907, 2.0
  %v4321 = vadd.f32 %v3909, 2.0
  %v4322 = vadd.f32 %v3911, 2.0
  %v4323 = vadd.f32 %v3913, 2.0
  %v4324 = vadd.f32 %v3915, 2.0
  %v4325 = vadd.f32 %v3917, 2.0
  %v4326 = vadd.f32 %v3919, 2.0
  %v4327 = vadd.f32 %v3921, 2.0
  %v4328 = vadd.f32 %v3923, 2.0
  %v4329 = vadd.f32 %v3925, 2.0
  %v4330 = vadd.f32 %v3927, 2.0
  %v4331 = vadd.f32 %v3929, 2.0
  %v4332 = vadd.f32 %v3931, 2.0
  %v4333 = vadd.f32 %v3933, 2.0
  %v4334 = vadd.f32 %v3935, 2.0
  %v4335 = vadd.f32 %v3937, 2.0
  %v4336 = vadd.f32 %v3939, 2.0
  %v4337 = vadd.f32 %v3941, 2.0
  %v4338 = vadd.f32 %v3943, 2.0
  %v4339 = vadd.f32 %v3945, 2.0
  %v4340 = vadd.f32 %v3947, 2.0
  %v4341 = vadd.f32 %v3949, 2.0
  %v4342 = vadd.f32 %v3951, 2.0
  %v4343 = vadd.f32 %v3953, 2.0
  %v4344 = vadd.f32 %v3955, 2.0
  %v4345 = vadd.f32 %v3957, 2.0
  %v4346 = vadd.f32 %v3959, 2.0
  %v4347 = vadd.f32 %v3961, 2.0
  %v4348 = vadd.f32 %v3963, 2.0
  %v4349 = vadd.f32 %v3965, 2.0
  %v4350 = vadd.f32 %v3967, 2.0
  %v4351 = vadd.f32 %v3969, 2.0
  %v4352 = vadd.f32 %v3971, 2.0
  %v4353 = vadd.f32 %v3973, 2.0
  %v4354 = vadd.f32 %v3975, 2.0
  %v4355 = vadd.f32 %v3977, 2.0
  %v4356 = vadd.f32 %v3979, 2.0
  %v4357 = vadd.f32 %v3981, 2.0
  %v4358 = vadd.f32 %v3983, 2.0
  %v4359 = vadd.f32 %v3985, 2.0
  %v4360 = vadd.f32 %v3987, 2.0
  %v4361 = vadd.f32 %v3989, 2.0
  %v4362 = vadd.f32 %v3991, 2.0
  %v4363 = vadd.f32 %v3993, 2.0
  %v4364 = vadd.f32 %v3995, 2.0
  %v4365 = vadd.f32 %v3997, 2.0
  %v4366 = vadd.f32 %v3999, 2.0
  %v4367 = vadd.f32 %v4001, 2.0
  %v4368 = vadd.f32 %v4003, 2.0
  %v4369 = vadd.f32 %v4005, 2.0
  %v4370 = vadd.f32 %v4007, 2.0
  %v4371 = vadd.f32 %v4009, 2.0
  %v4372 = vadd.f32 %v4011, 2.0
  %v4373 = vadd.f32 %v4013, 2.0
  %v4374 = vadd.f32 %v4015, 2.0
  %v4375 = vadd.f32 %v4017, 2.0
  %v4376 = vadd.f32 %v4019, 2.0
  %v4377 = vadd.f32 %v4021, 2.0
  %v4378 = vadd.f32 %v4023, 2.0
  %v4379 = vadd.f32 %v4025, 2.0
  %v4380 = vadd.f32 %v4027, 2.0
  %v4381 = vadd.f32 %v4029, 2.0
  %v4382 = vadd.f32 %v4031, 2.0
  %v4383 = vadd.f32 %v4033, 2.0
  %v4384 = vadd.f32 %v4035, 2.0
  %v4385 = vadd.f32 %v4037, 2.0
  %v4386 = vadd.f32 %v4039, 2.0
  %v4387 = vadd.f32 %v4041, 2.0
  %v4388 = vadd.f32 %v4043, 2.0
  %v4389 = vadd.f32 %v4045, 2.0
  %v4390 = vadd.f32 %v4047, 2.0
  %v4391 = vadd.f32 %v4049, 2.0
  %v4392 = vadd.f32 %v4051, 2.0
  %v4393 = vadd.f32 %v4053, 2.0
  %v4394 = vadd.f32 %v4055, 2.0
  %v4395 = vadd.f32 %v4057, 2.0
  %v4396 = vadd.f32 %v4059, 2.0
  %v4397 = vadd.f32 %v4061, 2.0
  %v4398 = vadd.f32 %v4063, 2.0
  %v4399 = vadd.f32 %v4065, 2.0
  %v4400 = vadd.f32 %v4067, 2.0
  %v4401 = vadd.f32 %v4069, 2.0
  %v4402 = vadd.f32 %v4071, 2.0
  %v4403 = vadd.f32 %v4073, 2.0
  %v4404 = vadd.f32 %v4075, 2.0
  %v4405 = vadd.f32 %v4077, 2.0
  %v4406 = vadd.f32 %v4079, 2.0
  %v4407 = vadd.f32 %v4081, 2.0
  %v4408 = vadd.f32 %v4083, 2.0
  %v4409 = vadd.f32 %v4085, 2.0
  %v4410 = vadd.f32 %v4087, 2.0
  %v4411 = vadd.f32 %v4089, 2.0
  %v4412 = vadd.f32 %v4091, 2.0
  %v4413 = vadd.f32 %v4093, 2.0
  %v4414 = vadd.f32 %v4095, 2.0
  %v4415 = vadd.f32 %v4097, 2.0
  %v4416 = vadd.f32 %v4099, 2.0
  %v4417 = vadd.f32 %v4101, 2.0
  %v4418 = vadd.f32 %v4103, 2.0
  %v4419 = vadd.f32 %v4105, 2.0
  %v4420 = vadd.f32 %v4107, 2.0
  %v4421 = vadd.f32 %v4109, 2.0
  %v4422 = vadd.f32 %v4111, 2.0
  %v4423 = vadd.f32 %v4113, 2.0
  %v4424 = vadd.f32 %v4115, 2.0
  %v4425 = vadd.f32 %v4117, 2.0
  %v4426 = vadd.f32 %v4119, 2.0
  %v4427 = vadd.f32 %v4121, 2.0
  %v4428 = vadd.f32 %v4123, 2.0
  %v4429 = vadd.f32 %v4125, 2.0
  %v4430 = vadd.f32 %v4127, 2.0
  %v4431 = vadd.f32 %v4129, 2.0
  %v4432 = vadd.f32 %v4131, 2.0
  %v4433 = vadd.f32 %v4133, 2.0
  %v4434 = vadd.f32 %v4135, 2.0
  %v4435 = vadd.f32 %v4137, 2.0
  %v4436 = vadd.f32 %v4139, 2.0
  %v4437 = vadd.f32 %v4141, 2.0
  %v4438 = vadd.f32 %v4143, 2.0
  %v4439 = vadd.f32 %v4145, 2.0
  %v4440 = vadd.f32 %v4147, 2.0
  %v4441 = vadd.f32 %v4149, 2.0
  %v4442 = vadd.f32 %v4151, 2.0
  %v4443 = vadd.f32 %v4153, 2.0
  %v4444 = vadd.f32 %v4155, 2.0
  %v4445 = vadd.f32 %v4157, 2.0
  %v4446 = vadd.f32 %v4159, 2.0
  %v4447 = vadd.f32 %v4161, 2.0
  %v4448 = vadd.f32 %v4163, 2.0
  %v4449 = vadd.f32 %v4165, 2.0
  %v4450 = vadd.f32 %v4167, 2.0
  %v4451 = vadd.f32 %v4169, 2.0
  %v4452 = vadd.f32 %v4171, 2.0
  %v4453 = vadd.f32 %v4173, 2.0
  %v4454 = vadd.f32 %v4175, 2.0
  %v4455 = vadd.f32 %v4177, 2.0
  %v4456 = vadd.f32 %v4179, 2.0
  %v4457 = vadd.f32 %v4181, 2.0
  %v4458 = vadd.f32 %v4183, 2.0
  %v4459 = vadd.f32 %v4185, 2.0
  %v4460 = vadd.f32 %v4187, 2.0
  %v4461 = vadd.f32 %v4189, 2.0
  %v4462 = vadd.f32 %v4191, 2.0
  %v4463 = vadd.f32 %v4193, 2.0
  %v4464 = vadd.f32 %v4195, 2.0
  %v4465 = vadd.f32 %v4197, 2.0
  %v4466 = vadd.f32 %v4199, 2.0
  %v4467 = vadd.f32 %v4201, 2.0
  %v4468 = vadd.f32 %v4203, 2.0
  %v4469 = vadd.f32 %v4205, 2.0
  %v4470 = vadd.f32 %v4207, 2.0
  %v4471 = vadd.f32 %v4209, 2.0
  %v4472 = vadd.f32 %v4211, 2.0
  %v4473 = vadd.f32 %v4213, 2.0
  %v4474 = vadd.f32 %v4215, 2.0
  %v4475 = vadd.f32 %v4217, 2.0
  %v4476 = vadd.f32 %v4219, 2.0
  %v4477 = vadd.f32 %v4221, 2.0
  %v4478 = vmul.f32 %v3711, %v4222
  %v4479 = vmul.f32 %v3713, %v4223
  %v4480 = vmul.f32 %v3715, %v4224
  %v4481 = vmul.f32 %v3717, %v4225
  %v4482 = vmul.f32 %v3719, %v4226
  %v4483 = vmul.f32 %v3721, %v4227
  %v4484 = vmul.f32 %v3723, %v4228
  %v4485 = vmul.f32 %v3725, %v4229
  %v4486 = vmul.f32 %v3727, %v4230
  %v4487 = vmul.f32 %v3729, %v4231
  %v4488 = vmul.f32 %v3731, %v4232
  %v4489 = vmul.f32 %v3733, %v4233
  %v4490 = vmul.f32 %v3735, %v4234
  %v4491 = vmul.f32 %v3737, %v4235
  %v4492 = vmul.f32 %v3739, %v4236
  %v4493 = vmul.f32 %v3741, %v4237
  %v4494 = vmul.f32 %v3743, %v4238
  %v4495 = vmul.f32 %v3745, %v4239
  %v4496 = vmul.f32 %v3747, %v4240
  %v4497 = vmul.f32 %v3749, %v4241
  %v4498 = vmul.f32 %v3751, %v4242
  %v4499 = vmul.f32 %v3753, %v4243
  %v4500 = vmul.f32 %v3755, %v4244
  %v4501 = vmul.f32 %v3757, %v4245
  %v4502 = vmul.f32 %v3759, %v4246
  %v4503 = vmul.f32 %v3761, %v4247
  %v4504 = vmul.f32 %v3763, %v4248
  %v4505 = vmul.f32 %v3765, %v4249
  %v4506 = vmul.f32 %v3767, %v4250
  %v4507 = vmul.f32 %v3769, %v4251
  %v4508 = vmul.f32 %v3771, %v4252
  %v4509 = vmul.f32 %v3773, %v4253
  %v4510 = vmul.f32 %v3775, %v4254
  %v4511 = vmul.f32 %v3777, %v4255
  %v4512 = vmul.f32 %v3779, %v4256
  %v4513 = vmul.f32 %v3781, %v4257
  %v4514 = vmul.f32 %v3783, %v4258
  %v4515 = vmul.f32 %v3785, %v4259
  %v4516 = vmul.f32 %v3787, %v4260
  %v4517 = vmul.f32 %v3789, %v4261
  %v4518 = vmul.f32 %v3791, %v4262
  %v4519 = vmul.f32 %v3793, %v4263
  %v4520 = vmul.f32 %v3795, %v4264
  %v4521 = vmul.f32 %v3797, %v4265
  %v4522 = vmul.f32 %v3799, %v4266
  %v4523 = vmul.f32 %v3801, %v4267
  %v4524 = vmul.f32 %v3803, %v4268
  %v4525 = vmul.f32 %v3805, %v4269
  %v4526 = vmul.f32 %v3807, %v4270
  %v4527 = vmul.f32 %v3809, %v4271
  %v4528 = vmul.f32 %v3811, %v4272
  %v4529 = vmul.f32 %v3813, %v4273
  %v4530 = vmul.f32 %v3815, %v4274
  %v4531 = vmul.f32 %v3817, %v4275
  %v4532 = vmul.f32 %v3819, %v4276
  %v4533 = vmul.f32 %v3821, %v4277
  %v4534 = vmul.f32 %v3823, %v4278
  %v4535 = vmul.f32 %v3825, %v4279
  %v4536 = vmul.f32 %v3827, %v4280
  %v4537 = vmul.f32 %v3829, %v4281
  %v4538 = vmul.f32 %v3831, %v4282
  %v4539 = vmul.f32 %v3833, %v4283
  %v4540 = vmul.f32 %v3835, %v4284
  %v4541 = vmul.f32 %v3837, %v4285
  %v4542 = vmul.f32 %v3839, %v4286
  %v4543 = vmul.f32 %v3841, %v4287
  %v4544 = vmul.f32 %v3843, %v4288
  %v4545 = vmul.f32 %v3845, %v4289
  %v4546 = vmul.f32 %v3847, %v4290
  %v4547 = vmul.f32 %v3849, %v4291
  %v4548 = vmul.f32 %v3851, %v4292
  %v4549 = vmul.f32 %v3853, %v4293
  %v4550 = vmul.f32 %v3855, %v4294
  %v4551 = vmul.f32 %v3857, %v4295
  %v4552 = vmul.f32 %v3859, %v4296
  %v4553 = vmul.f32 %v3861, %v4297
  %v4554 = vmul.f32 %v3863, %v4298
  %v4555 = vmul.f32 %v3865, %v4299
  %v4556 = vmul.f32 %v3867, %v4300
  %v4557 = vmul.f32 %v3869, %v4301
  %v4558 = vmul.f32 %v3871, %v4302
  %v4559 = vmul.f32 %v3873, %v4303
  %v4560 = vmul.f32 %v3875, %v4304
  %v4561 = vmul.f32 %v3877, %v4305
  %v4562 = vmul.f32 %v3879, %v4306
  %v4563 = vmul.f32 %v3881, %v4307
  %v4564 = vmul.f32 %v3883, %v4308
  %v4565 = vmul.f32 %v3885, %v4309
  %v4566 = vmul.f32 %v3887, %v4310
  %v4567 = vmul.f32 %v3889, %v4311
  %v4568 = vmul.f32 %v3891, %v4312
  %v4569 = vmul.f32 %v3893, %v4313
  %v4570 = vmul.f32 %v3895, %v4314
  %v4571 = vmul.f32 %v3897, %v4315
  %v4572 = vmul.f32 %v3899, %v4316
  %v4573 = vmul.f32 %v3901, %v4317
  %v4574 = vmul.f32 %v3903, %v4318
  %v4575 = vmul.f32 %v3905, %v4319
  %v4576 = vmul.f32 %v3907, %v4320
  %v4577 = vmul.f32 %v3909, %v4321
  %v4578 = vmul.f32 %v3911, %v4322
  %v4579 = vmul.f32 %v3913, %v4323
  %v4580 = vmul.f32 %v3915, %v4324
  %v4581 = vmul.f32 %v3917, %v4325
  %v4582 = vmul.f32 %v3919, %v4326
  %v4583 = vmul.f32 %v3921, %v4327
  %v4584 = vmul.f32 %v3923, %v4328
  %v4585 = vmul.f32 %v3925, %v4329
  %v4586 = vmul.f32 %v3927, %v4330
  %v4587 = vmul.f32 %v3929, %v4331
  %v4588 = vmul.f32 %v3931, %v4332
  %v4589 = vmul.f32 %v3933, %v4333
  %v4590 = vmul.f32 %v3935, %v4334
  %v4591 = vmul.f32 %v3937, %v4335
  %v4592 = vmul.f32 %v3939, %v4336
  %v4593 = vmul.f32 %v3941, %v4337
  %v4594 = vmul.f32 %v3943, %v4338
  %v4595 = vmul.f32 %v3945, %v4339
  %v4596 = vmul.f32 %v3947, %v4340
  %v4597 = vmul.f32 %v3949, %v4341
  %v4598 = vmul.f32 %v3951, %v4342
  %v4599 = vmul.f32 %v3953, %v4343
  %v4600 = vmul.f32 %v3955, %v4344
  %v4601 = vmul.f32 %v3957, %v4345
  %v4602 = vmul.f32 %v3959, %v4346
  %v4603 = vmul.f32 %v3961, %v4347
  %v4604 = vmul.f32 %v3963, %v4348
  %v4605 = vmul.f32 %v3965, %v4349
  %v4606 = vmul.f32 %v3967, %v4350
  %v4607 = vmul.f32 %v3969, %v4351
  %v4608 = vmul.f32 %v3971, %v4352
  %v4609 = vmul.f32 %v3973, %v4353
  %v4610 = vmul.f32 %v3975, %v4354
  %v4611 = vmul.f32 %v3977, %v4355
  %v4612 = vmul.f32 %v3979, %v4356
  %v4613 = vmul.f32 %v3981, %v4357
  %v4614 = vmul.f32 %v3983, %v4358
  %v4615 = vmul.f32 %v3985, %v4359
  %v4616 = vmul.f32 %v3987, %v4360
  %v4617 = vmul.f32 %v3989, %v4361
  %v4618 = vmul.f32 %v3991, %v4362
  %v4619 = vmul.f32 %v3993, %v4363
  %v4620 = vmul.f32 %v3995, %v4364
  %v4621 = vmul.f32 %v3997, %v4365
  %v4622 = vmul.f32 %v3999, %v4366
  %v4623 = vmul.f32 %v4001, %v4367
  %v4624 = vmul.f32 %v4003, %v4368
  %v4625 = vmul.f32 %v4005, %v4369
  %v4626 = vmul.f32 %v4007, %v4370
  %v4627 = vmul.f32 %v4009, %v4371
  %v4628 = vmul.f32 %v4011, %v4372
  %v4629 = vmul.f32 %v4013, %v4373
  %v4630 = vmul.f32 %v4015, %v4374
  %v4631 = vmul.f32 %v4017, %v4375
  %v4632 = vmul.f32 %v4019, %v4376
  %v4633 = vmul.f32 %v4021, %v4377
  %v4634 = vmul.f32 %v4023, %v4378
  %v4635 = vmul.f32 %v4025, %v4379
  %v4636 = vmul.f32 %v4027, %v4380
  %v4637 = vmul.f32 %v4029, %v4381
  %v4638 = vmul.f32 %v4031, %v4382
  %v4639 = vmul.f32 %v4033, %v4383
  %v4640 = vmul.f32 %v4035, %v4384
  %v4641 = vmul.f32 %v4037, %v4385
  %v4642 = vmul.f32 %v4039, %v4386
  %v4643 = vmul.f32 %v4041, %v4387
  %v4644 = vmul.f32 %v4043, %v4388
  %v4645 = vmul.f32 %v4045, %v4389
  %v4646 = vmul.f32 %v4047, %v4390
  %v4647 = vmul.f32 %v4049, %v4391
  %v4648 = vmul.f32 %v4051, %v4392
  %v4649 = vmul.f32 %v4053, %v4393
  %v4650 = vmul.f32 %v4055, %v4394
  %v4651 = vmul.f32 %v4057, %v4395
  %v4652 = vmul.f32 %v4059, %v4396
  %v4653 = vmul.f32 %v4061, %v4397
  %v4654 = vmul.f32 %v4063, %v4398
  %v4655 = vmul.f32 %v4065, %v4399
  %v4656 = vmul.f32 %v4067, %v4400
  %v4657 = vmul.f32 %v4069, %v4401
  %v4658 = vmul.f32 %v4071, %v4402
  %v4659 = vmul.f32 %v4073, %v4403
  %v4660 = vmul.f32 %v4075, %v4404
  %v4661 = vmul.f32 %v4077, %v4405
  %v4662 = vmul.f32 %v4079, %v4406
  %v4663 = vmul.f32 %v4081, %v4407
  %v4664 = vmul.f32 %v4083, %v4408
  %v4665 = vmul.f32 %v4085, %v4409
  %v4666 = vmul.f32 %v4087, %v4410
  %v4667 = vmul.f32 %v4089, %v4411
  %v4668 = vmul.f32 %v4091, %v4412
  %v4669 = vmul.f32 %v4093, %v4413
  %v4670 = vmul.f32 %v4095, %v4414
  %v4671 = vmul.f32 %v4097, %v4415
  %v4672 = vmul.f32 %v4099, %v4416
  %v4673 = vmul.f32 %v4101, %v4417
  %v4674 = vmul.f32 %v4103, %v4418
  %v4675 = vmul.f32 %v4105, %v4419
  %v4676 = vmul.f32 %v4107, %v4420
  %v4677 = vmul.f32 %v4109, %v4421
  %v4678 = vmul.f32 %v4111, %v4422
  %v4679 = vmul.f32 %v4113, %v4423
  %v4680 = vmul.f32 %v4115, %v4424
  %v4681 = vmul.f32 %v4117, %v4425
  %v4682 = vmul.f32 %v4119, %v4426
  %v4683 = vmul.f32 %v4121, %v4427
  %v4684 = vmul.f32 %v4123, %v4428
  %v4685 = vmul.f32 %v4125, %v4429
  %v4686 = vmul.f32 %v4127, %v4430
  %v4687 = vmul.f32 %v4129, %v4431
  %v4688 = vmul.f32 %v4131, %v4432
  %v4689 = vmul.f32 %v4133, %v4433
  %v4690 = vmul.f32 %v4135, %v4434
  %v4691 = vmul.f32 %v4137, %v4435
  %v4692 = vmul.f32 %v4139, %v4436
  %v4693 = vmul.f32 %v4141, %v4437
  %v4694 = vmul.f32 %v4143, %v4438
  %v4695 = vmul.f32 %v4145, %v4439
  %v4696 = vmul.f32 %v4147, %v4440
  %v4697 = vmul.f32 %v4149, %v4441
  %v4698 = vmul.f32 %v4151, %v4442
  %v4699 = vmul.f32 %v4153, %v4443
  %v4700 = vmul.f32 %v4155, %v4444
  %v4701 = vmul.f32 %v4157, %v4445
  %v4702 = vmul.f32 %v4159, %v4446
  %v4703 = vmul.f32 %v4161, %v4447
  %v4704 = vmul.f32 %v4163, %v4448
  %v4705 = vmul.f32 %v4165, %v4449
  %v4706 = vmul.f32 %v4167, %v4450
  %v4707 = vmul.f32 %v4169, %v4451
  %v4708 = vmul.f32 %v4171, %v4452
  %v4709 = vmul.f32 %v4173, %v4453
  %v4710 = vmul.f32 %v4175, %v4454
  %v4711 = vmul.f32 %v4177, %v4455
  %v4712 = vmul.f32 %v4179, %v4456
  %v4713 = vmul.f32 %v4181, %v4457
  %v4714 = vmul.f32 %v4183, %v4458
  %v4715 = vmul.f32 %v4185, %v4459
  %v4716 = vmul.f32 %v4187, %v4460
  %v4717 = vmul.f32 %v4189, %v4461
  %v4718 = vmul.f32 %v4191, %v4462
  %v4719 = vmul.f32 %v4193, %v4463
  %v4720 = vmul.f32 %v4195, %v4464
  %v4721 = vmul.f32 %v4197, %v4465
  %v4722 = vmul.f32 %v4199, %v4466
  %v4723 = vmul.f32 %v4201, %v4467
  %v4724 = vmul.f32 %v4203, %v4468
  %v4725 = vmul.f32 %v4205, %v4469
  %v4726 = vmul.f32 %v4207, %v4470
  %v4727 = vmul.f32 %v4209, %v4471
  %v4728 = vmul.f32 %v4211, %v4472
  %v4729 = vmul.f32 %v4213, %v4473
  %v4730 = vmul.f32 %v4215, %v4474
  %v4731 = vmul.f32 %v4217, %v4475
  %v4732 = vmul.f32 %v4219, %v4476
  %v4733 = vmul.f32 %v4221, %v4477
  %v4734 = vadd.f32 %v4478, 2.0
  %v4735 = vadd.f32 %v4479, 2.0
  %v4736 = vadd.f32 %v4480, 2.0
  %v4737 = vadd.f32 %v4481, 2.0
  %v4738 = vadd.f32 %v4482, 2.0
  %v4739 = vadd.f32 %v4483, 2.0
  %v4740 = vadd.f32 %v4484, 2.0
  %v4741 = vadd.f32 %v4485, 2.0
  %v4742 = vadd.f32 %v4486, 2.0
  %v4743 = vadd.f32 %v4487, 2.0
  %v4744 = vadd.f32 %v4488, 2.0
  %v4745 = vadd.f32 %v4489, 2.0
  %v4746 = vadd.f32 %v4490, 2.0
  %v4747 = vadd.f32 %v4491, 2.0
  %v4748 = vadd.f32 %v4492, 2.0
  %v4749 = vadd.f32 %v4493, 2.0
  %v4750 = vadd.f32 %v4494, 2.0
  %v4751 = vadd.f32 %v4495, 2.0
  %v4752 = vadd.f32 %v4496, 2.0
  %v4753 = vadd.f32 %v4497, 2.0
  %v4754 = vadd.f32 %v4498, 2.0
  %v4755 = vadd.f32 %v4499, 2.0
  %v4756 = vadd.f32 %v4500, 2.0
  %v4757 = vadd.f32 %v4501, 2.0
  %v4758 = vadd.f32 %v4502, 2.0
  %v4759 = vadd.f32 %v4503, 2.0
  %v4760 = vadd.f32 %v4504, 2.0
  %v4761 = vadd.f32 %v4505, 2.0
  %v4762 = vadd.f32 %v4506, 2.0
  %v4763 = vadd.f32 %v4507, 2.0
  %v4764 = vadd.f32 %v4508, 2.0
  %v4765 = vadd.f32 %v4509, 2.0
  %v4766 = vadd.f32 %v4510, 2.0
  %v4767 = vadd.f32 %v4511, 2.0
  %v4768 = vadd.f32 %v4512, 2.0
  %v4769 = vadd.f32 %v4513, 2.0
  %v4770 = vadd.f32 %v4514, 2.0
  %v4771 = vadd.f32 %v4515, 2.0
  %v4772 = vadd.f32 %v4516, 2.0
  %v4773 = vadd.f32 %v4517, 2.0
  %v4774 = vadd.f32 %v4518, 2.0
  %v4775 = vadd.f32 %v4519, 2.0
  %v4776 = vadd.f32 %v4520, 2.0
  %v4777 = vadd.f32 %v4521, 2.0
  %v4778 = vadd.f32 %v4522, 2.0
  %v4779 = vadd.f32 %v4523, 2.0
  %v4780 = vadd.f32 %v4524, 2.0
  %v4781 = vadd.f32 %v4525, 2.0
  %v4782 = vadd.f32 %v4526, 2.0
  %v4783 = vadd.f32 %v4527, 2.0
  %v4784 = vadd.f32 %v4528, 2.0
  %v4785 = vadd.f32 %v4529, 2.0
  %v4786 = vadd.f32 %v4530, 2.0
  %v4787 = vadd.f32 %v4531, 2.0
  %v4788 = vadd.f32 %v4532, 2.0
  %v4789 = vadd.f32 %v4533, 2.0
  %v4790 = vadd.f32 %v4534, 2.0
  %v4791 = vadd.f32 %v4535, 2.0
  %v4792 = vadd.f32 %v4536, 2.0
  %v4793 = vadd.f32 %v4537, 2.0
  %v4794 = vadd.f32 %v4538, 2.0
  %v4795 = vadd.f32 %v4539, 2.0
  %v4796 = vadd.f32 %v4540, 2.0
  %v4797 = vadd.f32 %v4541, 2.0
  %v4798 = vadd.f32 %v4542, 2.0
  %v4799 = vadd.f32 %v4543, 2.0
  %v4800 = vadd.f32 %v4544, 2.0
  %v4801 = vadd.f32 %v4545, 2.0
  %v4802 = vadd.f32 %v4546, 2.0
  %v4803 = vadd.f32 %v4547, 2.0
  %v4804 = vadd.f32 %v4548, 2.0
  %v4805 = vadd.f32 %v4549, 2.0
  %v4806 = vadd.f32 %v4550, 2.0
  %v4807 = vadd.f32 %v4551, 2.0
  %v4808 = vadd.f32 %v4552, 2.0
  %v4809 = vadd.f32 %v4553, 2.0
  %v4810 = vadd.f32 %v4554, 2.0
  %v4811 = vadd.f32 %v4555, 2.0
  %v4812 = vadd.f32 %v4556, 2.0
  %v4813 = vadd.f32 %v4557, 2.0
  %v4814 = vadd.f32 %v4558, 2.0
  %v4815 = vadd.f32 %v4559, 2.0
  %v4816 = vadd.f32 %v4560, 2.0
  %v4817 = vadd.f32 %v4561, 2.0
  %v4818 = vadd.f32 %v4562, 2.0
  %v4819 = vadd.f32 %v4563, 2.0
  %v4820 = vadd.f32 %v4564, 2.0
  %v4821 = vadd.f32 %v4565, 2.0
  %v4822 = vadd.f32 %v4566, 2.0
  %v4823 = vadd.f32 %v4567, 2.0
  %v4824 = vadd.f32 %v4568, 2.0
  %v4825 = vadd.f32 %v4569, 2.0
  %v4826 = vadd.f32 %v4570, 2.0
  %v4827 = vadd.f32 %v4571, 2.0
  %v4828 = vadd.f32 %v4572, 2.0
  %v4829 = vadd.f32 %v4573, 2.0
  %v4830 = vadd.f32 %v4574, 2.0
  %v4831 = vadd.f32 %v4575, 2.0
  %v4832 = vadd.f32 %v4576, 2.0
  %v4833 = vadd.f32 %v4577, 2.0
  %v4834 = vadd.f32 %v4578, 2.0
  %v4835 = vadd.f32 %v4579, 2.0
  %v4836 = vadd.f32 %v4580, 2.0
  %v4837 = vadd.f32 %v4581, 2.0
  %v4838 = vadd.f32 %v4582, 2.0
  %v4839 = vadd.f32 %v4583, 2.0
  %v4840 = vadd.f32 %v4584, 2.0
  %v4841 = vadd.f32 %v4585, 2.0
  %v4842 = vadd.f32 %v4586, 2.0
  %v4843 = vadd.f32 %v4587, 2.0
  %v4844 = vadd.f32 %v4588, 2.0
  %v4845 = vadd.f32 %v4589, 2.0
  %v4846 = vadd.f32 %v4590, 2.0
  %v4847 = vadd.f32 %v4591, 2.0
  %v4848 = vadd.f32 %v4592, 2.0
  %v4849 = vadd.f32 %v4593, 2.0
  %v4850 = vadd.f32 %v4594, 2.0
  %v4851 = vadd.f32 %v4595, 2.0
  %v4852 = vadd.f32 %v4596, 2.0
  %v4853 = vadd.f32 %v4597, 2.0
  %v4854 = vadd.f32 %v4598, 2.0
  %v4855 = vadd.f32 %v4599, 2.0
  %v4856 = vadd.f32 %v4600, 2.0
  %v4857 = vadd.f32 %v4601, 2.0
  %v4858 = vadd.f32 %v4602, 2.0
  %v4859 = vadd.f32 %v4603, 2.0
  %v4860 = vadd.f32 %v4604, 2.0
  %v4861 = vadd.f32 %v4605, 2.0
  %v4862 = vadd.f32 %v4606, 2.0
  %v4863 = vadd.f32 %v4607, 2.0
  %v4864 = vadd.f32 %v4608, 2.0
  %v4865 = vadd.f32 %v4609, 2.0
  %v4866 = vadd.f32 %v4610, 2.0
  %v4867 = vadd.f32 %v4611, 2.0
  %v4868 = vadd.f32 %v4612, 2.0
  %v4869 = vadd.f32 %v4613, 2.0
  %v4870 = vadd.f32 %v4614, 2.0
  %v4871 = vadd.f32 %v4615, 2.0
  %v4872 = vadd.f32 %v4616, 2.0
  %v4873 = vadd.f32 %v4617, 2.0
  %v4874 = vadd.f32 %v4618, 2.0
  %v4875 = vadd.f32 %v4619, 2.0
  %v4876 = vadd.f32 %v4620, 2.0
  %v4877 = vadd.f32 %v4621, 2.0
  %v4878 = vadd.f32 %v4622, 2.0
  %v4879 = vadd.f32 %v4623, 2.0
  %v4880 = vadd.f32 %v4624, 2.0
  %v4881 = vadd.f32 %v4625, 2.0
  %v4882 = vadd.f32 %v4626, 2.0
  %v4883 = vadd.f32 %v4627, 2.0
  %v4884 = vadd.f32 %v4628, 2.0
  %v4885 = vadd.f32 %v4629, 2.0
  %v4886 = vadd.f32 %v4630, 2.0
  %v4887 = vadd.f32 %v4631, 2.0
  %v4888 = vadd.f32 %v4632, 2.0
  %v4889 = vadd.f32 %v4633, 2.0
  %v4890 = vadd.f32 %v4634, 2.0
  %v4891 = vadd.f32 %v4635, 2.0
  %v4892 = vadd.f32 %v4636, 2.0
  %v4893 = vadd.f32 %v4637, 2.0
  %v4894 = vadd.f32 %v4638, 2.0
  %v4895 = vadd.f32 %v4639, 2.0
  %v4896 = vadd.f32 %v4640, 2.0
  %v4897 = vadd.f32 %v4641, 2.0
  %v4898 = vadd.f32 %v4642, 2.0
  %v4899 = vadd.f32 %v4643, 2.0
  %v4900 = vadd.f32 %v4644, 2.0
  %v4901 = vadd.f32 %v4645, 2.0
  %v4902 = vadd.f32 %v4646, 2.0
  %v4903 = vadd.f32 %v4647, 2.0
  %v4904 = vadd.f32 %v4648, 2.0
  %v4905 = vadd.f32 %v4649, 2.0
  %v4906 = vadd.f32 %v4650, 2.0
  %v4907 = vadd.f32 %v4651, 2.0
  %v4908 = vadd.f32 %v4652, 2.0
  %v4909 = vadd.f32 %v4653, 2.0
  %v4910 = vadd.f32 %v4654, 2.0
  %v4911 = vadd.f32 %v4655, 2.0
  %v4912 = vadd.f32 %v4656, 2.0
  %v4913 = vadd.f32 %v4657, 2.0
  %v4914 = vadd.f32 %v4658, 2.0
  %v4915 = vadd.f32 %v4659, 2.0
  %v4916 = vadd.f32 %v4660, 2.0
  %v4917 = vadd.f32 %v4661, 2.0
  %v4918 = vadd.f32 %v4662, 2.0
  %v4919 = vadd.f32 %v4663, 2.0
  %v4920 = vadd.f32 %v4664, 2.0
  %v4921 = vadd.f32 %v4665, 2.0
  %v4922 = vadd.f32 %v4666, 2.0
  %v4923 = vadd.f32 %v4667, 2.0
  %v4924 = vadd.f32 %v4668, 2.0
  %v4925 = vadd.f32 %v4669, 2.0
  %v4926 = vadd.f32 %v4670, 2.0
  %v4927 = vadd.f32 %v4671, 2.0
  %v4928 = vadd.f32 %v4672, 2.0
  %v4929 = vadd.f32 %v4673, 2.0
  %v4930 = vadd.f32 %v4674, 2.0
  %v4931 = vadd.f32 %v4675, 2.0
  %v4932 = vadd.f32 %v4676, 2.0
  %v4933 = vadd.f32 %v4677, 2.0
  %v4934 = vadd.f32 %v4678, 2.0
  %v4935 = vadd.f32 %v4679, 2.0
  %v4936 = vadd.f32 %v4680, 2.0
  %v4937 = vadd.f32 %v4681, 2.0
  %v4938 = vadd.f32 %v4682, 2.0
  %v4939 = vadd.f32 %v4683, 2.0
  %v4940 = vadd.f32 %v4684, 2.0
  %v4941 = vadd.f32 %v4685, 2.0
  %v4942 = vadd.f32 %v4686, 2.0
  %v4943 = vadd.f32 %v4687, 2.0
  %v4944 = vadd.f32 %v4688, 2.0
  %v4945 = vadd.f32 %v4689, 2.0
  %v4946 = vadd.f32 %v4690, 2.0
  %v4947 = vadd.f32 %v4691, 2.0
  %v4948 = vadd.f32 %v4692, 2.0
  %v4949 = vadd.f32 %v4693, 2.0
  %v4950 = vadd.f32 %v4694, 2.0
  %v4951 = vadd.f32 %v4695, 2.0
  %v4952 = vadd.f32 %v4696, 2.0
  %v4953 = vadd.f32 %v4697, 2.0
  %v4954 = vadd.f32 %v4698, 2.0
  %v4955 = vadd.f32 %v4699, 2.0
  %v4956 = vadd.f32 %v4700, 2.0
  %v4957 = vadd.f32 %v4701, 2.0
  %v4958 = vadd.f32 %v4702, 2.0
  %v4959 = vadd.f32 %v4703, 2.0
  %v4960 = vadd.f32 %v4704, 2.0
  %v4961 = vadd.f32 %v4705, 2.0
  %v4962 = vadd.f32 %v4706, 2.0
  %v4963 = vadd.f32 %v4707, 2.0
  %v4964 = vadd.f32 %v4708, 2.0
  %v4965 = vadd.f32 %v4709, 2.0
  %v4966 = vadd.f32 %v4710, 2.0
  %v4967 = vadd.f32 %v4711, 2.0
  %v4968 = vadd.f32 %v4712, 2.0
  %v4969 = vadd.f32 %v4713, 2.0
  %v4970 = vadd.f32 %v4714, 2.0
  %v4971 = vadd.f32 %v4715, 2.0
  %v4972 = vadd.f32 %v4716, 2.0
  %v4973 = vadd.f32 %v4717, 2.0
  %v4974 = vadd.f32 %v4718, 2.0
  %v4975 = vadd.f32 %v4719, 2.0
  %v4976 = vadd.f32 %v4720, 2.0
  %v4977 = vadd.f32 %v4721, 2.0
  %v4978 = vadd.f32 %v4722, 2.0
  %v4979 = vadd.f32 %v4723, 2.0
  %v4980 = vadd.f32 %v4724, 2.0
  %v4981 = vadd.f32 %v4725, 2.0
  %v4982 = vadd.f32 %v4726, 2.0
  %v4983 = vadd.f32 %v4727, 2.0
  %v4984 = vadd.f32 %v4728, 2.0
  %v4985 = vadd.f32 %v4729, 2.0
  %v4986 = vadd.f32 %v4730, 2.0
  %v4987 = vadd.f32 %v4731, 2.0
  %v4988 = vadd.f32 %v4732, 2.0
  %v4989 = vadd.f32 %v4733, 2.0
  %v4990 = vrcp.pop %v4734
  %v4991 = vrcp.pop %v4735
  %v4992 = vrcp.pop %v4736
  %v4993 = vrcp.pop %v4737
  %v4994 = vrcp.pop %v4738
  %v4995 = vrcp.pop %v4739
  %v4996 = vrcp.pop %v4740
  %v4997 = vrcp.pop %v4741
  %v4998 = vrcp.pop %v4742
  %v4999 = vrcp.pop %v4743
  %v5000 = vrcp.pop %v4744
  %v5001 = vrcp.pop %v4745
  %v5002 = vrcp.pop %v4746
  %v5003 = vrcp.pop %v4747
  %v5004 = vrcp.pop %v4748
  %v5005 = vrcp.pop %v4749
  %v5006 = vrcp.pop %v4750
  %v5007 = vrcp.pop %v4751
  %v5008 = vrcp.pop %v4752
  %v5009 = vrcp.pop %v4753
  %v5010 = vrcp.pop %v4754
  %v5011 = vrcp.pop %v4755
  %v5012 = vrcp.pop %v4756
  %v5013 = vrcp.pop %v4757
  %v5014 = vrcp.pop %v4758
  %v5015 = vrcp.pop %v4759
  %v5016 = vrcp.pop %v4760
  %v5017 = vrcp.pop %v4761
  %v5018 = vrcp.pop %v4762
  %v5019 = vrcp.pop %v4763
  %v5020 = vrcp.pop %v4764
  %v5021 = vrcp.pop %v4765
  %v5022 = vrcp.pop %v4766
  %v5023 = vrcp.pop %v4767
  %v5024 = vrcp.pop %v4768
  %v5025 = vrcp.pop %v4769
  %v5026 = vrcp.pop %v4770
  %v5027 = vrcp.pop %v4771
  %v5028 = vrcp.pop %v4772
  %v5029 = vrcp.pop %v4773
  %v5030 = vrcp.pop %v4774
  %v5031 = vrcp.pop %v4775
  %v5032 = vrcp.pop %v4776
  %v5033 = vrcp.pop %v4777
  %v5034 = vrcp.pop %v4778
  %v5035 = vrcp.pop %v4779
  %v5036 = vrcp.pop %v4780
  %v5037 = vrcp.pop %v4781
  %v5038 = vrcp.pop %v4782
  %v5039 = vrcp.pop %v4783
  %v5040 = vrcp.pop %v4784
  %v5041 = vrcp.pop %v4785
  %v5042 = vrcp.pop %v4786
  %v5043 = vrcp.pop %v4787
  %v5044 = vrcp.pop %v4788
  %v5045 = vrcp.pop %v4789
  %v5046 = vrcp.pop %v4790
  %v5047 = vrcp.pop %v4791
  %v5048 = vrcp.pop %v4792
  %v5049 = vrcp.pop %v4793
  %v5050 = vrcp.pop %v4794
  %v5051 = vrcp.pop %v4795
  %v5052 = vrcp.pop %v4796
  %v5053 = vrcp.pop %v4797
  %v5054 = vrcp.pop %v4798
  %v5055 = vrcp.pop %v4799
  %v5056 = vrcp.pop %v4800
  %v5057 = vrcp.pop %v4801
  %v5058 = vrcp.pop %v4802
  %v5059 = vrcp.pop %v4803
  %v5060 = vrcp.pop %v4804
  %v5061 = vrcp.pop %v4805
  %v5062 = vrcp.pop %v4806
  %v5063 = vrcp.pop %v4807
  %v5064 = vrcp.pop %v4808
  %v5065 = vrcp.pop %v4809
  %v5066 = vrcp.pop %v4810
  %v5067 = vrcp.pop %v4811
  %v5068 = vrcp.pop %v4812
  %v5069 = vrcp.pop %v4813
  %v5070 = vrcp.pop %v4814
  %v5071 = vrcp.pop %v4815
  %v5072 = vrcp.pop %v4816
  %v5073 = vrcp.pop %v4817
  %v5074 = vrcp.pop %v4818
  %v5075 = vrcp.pop %v4819
  %v5076 = vrcp.pop %v4820
  %v5077 = vrcp.pop %v4821
  %v5078 = vrcp.pop %v4822
  %v5079 = vrcp.pop %v4823
  %v5080 = vrcp.pop %v4824
  %v5081 = vrcp.pop %v4825
  %v5082 = vrcp.pop %v4826
  %v5083 = vrcp.pop %v4827
  %v5084 = vrcp.pop %v4828
  %v5085 = vrcp.pop %v4829
  %v5086 = vrcp.pop %v4830
  %v5087 = vrcp.pop %v4831
  %v5088 = vrcp.pop %v4832
  %v5089 = vrcp.pop %v4833
  %v5090 = vrcp.pop %v4834
  %v5091 = vrcp.pop %v4835
  %v5092 = vrcp.pop %v4836
  %v5093 = vrcp.pop %v4837
  %v5094 = vrcp.pop %v4838
  %v5095 = vrcp.pop %v4839
  %v5096 = vrcp.pop %v4840
  %v5097 = vrcp.pop %v4841
  %v5098 = vrcp.pop %v4842
  %v5099 = vrcp.pop %v4843
  %v5100 = vrcp.pop %v4844
  %v5101 = vrcp.pop %v4845
  %v5102 = vrcp.pop %v4846
  %v5103 = vrcp.pop %v4847
  %v5104 = vrcp.pop %v4848
  %v5105 = vrcp.pop %v4849
  %v5106 = vrcp.pop %v4850
  %v5107 = vrcp.pop %v4851
  %v5108 = vrcp.pop %v4852
  %v5109 = vrcp.pop %v4853
  %v5110 = vrcp.pop %v4854
  %v5111 = vrcp.pop %v4855
  %v5112 = vrcp.pop %v4856
  %v5113 = vrcp.pop %v4857
  %v5114 = vrcp.pop %v4858
  %v5115 = vrcp.pop %v4859
  %v5116 = vrcp.pop %v4860
  %v5117 = vrcp.pop %v4861
  %v5118 = vrcp.pop %v4862
  %v5119 = vrcp.pop %v4863
  %v5120 = vrcp.pop %v4864
  %v5121 = vrcp.pop %v4865
  %v5122 = vrcp.pop %v4866
  %v5123 = vrcp.pop %v4867
  %v5124 = vrcp.pop %v4868
  %v5125 = vrcp.pop %v4869
  %v5126 = vrcp.pop %v4870
  %v5127 = vrcp.pop %v4871
  %v5128 = vrcp.pop %v4872
  %v5129 = vrcp.pop %v4873
  %v5130 = vrcp.pop %v4874
  %v5131 = vrcp.pop %v4875
  %v5132 = vrcp.pop %v4876
  %v5133 = vrcp.pop %v4877
  %v5134 = vrcp.pop %v4878
  %v5135 = vrcp.pop %v4879
  %v5136 = vrcp.pop %v4880
  %v5137 = vrcp.pop %v4881
  %v5138 = vrcp.pop %v4882
  %v5139 = vrcp.pop %v4883
  %v5140 = vrcp.pop %v4884
  %v5141 = vrcp.pop %v4885
  %v5142 = vrcp.pop %v4886
  %v5143 = vrcp.pop %v4887
  %v5144 = vrcp.pop %v4888
  %v5145 = vrcp.pop %v4889
  %v5146 = vrcp.pop %v4890
  %v5147 = vrcp.pop %v4891
  %v5148 = vrcp.pop %v4892
  %v5149 = vrcp.pop %v4893
  %v5150 = vrcp.pop %v4894
  %v5151 = vrcp.pop %v4895
  %v5152 = vrcp.pop %v4896
  %v5153 = vrcp.pop %v4897
  %v5154 = vrcp.pop %v4898
  %v5155 = vrcp.pop %v4899
  %v5156 = vrcp.pop %v4900
  %v5157 = vrcp.pop %v4901
  %v5158 = vrcp.pop %v4902
  %v5159 = vrcp.pop %v4903
  %v5160 = vrcp.pop %v4904
  %v5161 = vrcp.pop %v4905
  %v5162 = vrcp.pop %v4906
  %v5163 = vrcp.pop %v4907
  %v5164 = vrcp.pop %v4908
  %v5165 = vrcp.pop %v4909
  %v5166 = vrcp.pop %v4910
  %v5167 = vrcp.pop %v4911
  %v5168 = vrcp.pop %v4912
  %v5169 = vrcp.pop %v4913
  %v5170 = vrcp.pop %v4914
  %v5171 = vrcp.pop %v4915
  %v5172 = vrcp.pop %v4916
  %v5173 = vrcp.pop %v4917
  %v5174 = vrcp.pop %v4918
  %v5175 = vrcp.pop %v4919
  %v5176 = vrcp.pop %v4920
  %v5177 = vrcp.pop %v4921
  %v5178 = vrcp.pop %v4922
  %v5179 = vrcp.pop %v4923
  %v5180 = vrcp.pop %v4924
  %v5181 = vrcp.pop %v4925
  %v5182 = vrcp.pop %v4926
  %v5183 = vrcp.pop %v4927
  %v5184 = vrcp.pop %v4928
  %v5185 = vrcp.pop %v4929
  %v5186 = vrcp.pop %v4930
  %v5187 = vrcp.pop %v4931
  %v5188 = vrcp.pop %v4932
  %v5189 = vrcp.pop %v4933
  %v5190 = vrcp.pop %v4934
  %v5191 = vrcp.pop %v4935
  %v5192 = vrcp.pop %v4936
  %v5193 = vrcp.pop %v4937
  %v5194 = vrcp.pop %v4938
  %v5195 = vrcp.pop %v4939
  %v5196 = vrcp.pop %v4940
  %v5197 = vrcp.pop %v4941
  %v5198 = vrcp.pop %v4942
  %v5199 = vrcp.pop %v4943
  %v5200 = vrcp.pop %v4944
  %v5201 = vrcp.pop %v4945
  %v5202 = vrcp.pop %v4946
  %v5203 = vrcp.pop %v4947
  %v5204 = vrcp.pop %v4948
  %v5205 = vrcp.pop %v4949
  %v5206 = vrcp.pop %v4950
  %v5207 = vrcp.pop %v4951
  %v5208 = vrcp.pop %v4952
  %v5209 = vrcp.pop %v4953
  %v5210 = vrcp.pop %v4954
  %v5211 = vrcp.pop %v4955
  %v5212 = vrcp.pop %v4956
  %v5213 = vrcp.pop %v4957
  %v5214 = vrcp.pop %v4958
  %v5215 = vrcp.pop %v4959
  %v5216 = vrcp.pop %v4960
  %v5217 = vrcp.pop %v4961
  %v5218 = vrcp.pop %v4962
  %v5219 = vrcp.pop %v4963
  %v5220 = vrcp.pop %v4964
  %v5221 = vrcp.pop %v4965
  %v5222 = vrcp.pop %v4966
  %v5223 = vrcp.pop %v4967
  %v5224 = vrcp.pop %v4968
  %v5225 = vrcp.pop %v4969
  %v5226 = vrcp.pop %v4970
  %v5227 = vrcp.pop %v4971
  %v5228 = vrcp.pop %v4972
  %v5229 = vrcp.pop %v4973
  %v5230 = vrcp.pop %v4974
  %v5231 = vrcp.pop %v4975
  %v5232 = vrcp.pop %v4976
  %v5233 = vrcp.pop %v4977
  %v5234 = vrcp.pop %v4978
  %v5235 = vrcp.pop %v4979
  %v5236 = vrcp.pop %v4980
  %v5237 = vrcp.pop %v4981
  %v5238 = vrcp.pop %v4982
  %v5239 = vrcp.pop %v4983
  %v5240 = vrcp.pop %v4984
  %v5241 = vrcp.pop %v4985
  %v5242 = vrcp.pop %v4986
  %v5243 = vrcp.pop %v4987
  %v5244 = vrcp.pop %v4988
  %v5245 = vrcp.pop %v4989
  %v5246 = vmul.f32 %v4478, %v4990
  %v5247 = vmul.f32 %v4479, %v4991
  %v5248 = vmul.f32 %v4480, %v4992
  %v5249 = vmul.f32 %v4481, %v4993
  %v5250 = vmul.f32 %v4482, %v4994
  %v5251 = vmul.f32 %v4483, %v4995
  %v5252 = vmul.f32 %v4484, %v4996
  %v5253 = vmul.f32 %v4485, %v4997
  %v5254 = vmul.f32 %v4486, %v4998
  %v5255 = vmul.f32 %v4487, %v4999
  %v5256 = vmul.f32 %v4488, %v5000
  %v5257 = vmul.f32 %v4489, %v5001
  %v5258 = vmul.f32 %v4490, %v5002
  %v5259 = vmul.f32 %v4491, %v5003
  %v5260 = vmul.f32 %v4492, %v5004
  %v5261 = vmul.f32 %v4493, %v5005
  %v5262 = vmul.f32 %v4494, %v5006
  %v5263 = vmul.f32 %v4495, %v5007
  %v5264 = vmul.f32 %v4496, %v5008
  %v5265 = vmul.f32 %v4497, %v5009
  %v5266 = vmul.f32 %v4498, %v5010
  %v5267 = vmul.f32 %v4499, %v5011
  %v5268 = vmul.f32 %v4500, %v5012
  %v5269 = vmul.f32 %v4501, %v5013
  %v5270 = vmul.f32 %v4502, %v5014
  %v5271 = vmul.f32 %v4503, %v5015
  %v5272 = vmul.f32 %v4504, %v5016
  %v5273 = vmul.f32 %v4505, %v5017
  %v5274 = vmul.f32 %v4506, %v5018
  %v5275 = vmul.f32 %v4507, %v5019
  %v5276 = vmul.f32 %v4508, %v5020
  %v5277 = vmul.f32 %v4509, %v5021
  %v5278 = vmul.f32 %v4510, %v5022
  %v5279 = vmul.f32 %v4511, %v5023
  %v5280 = vmul.f32 %v4512, %v5024
  %v5281 = vmul.f32 %v4513, %v5025
  %v5282 = vmul.f32 %v4514, %v5026
  %v5283 = vmul.f32 %v4515, %v5027
  %v5284 = vmul.f32 %v4516, %v5028
  %v5285 = vmul.f32 %v4517, %v5029
  %v5286 = vmul.f32 %v4518, %v5030
  %v5287 = vmul.f32 %v4519, %v5031
  %v5288 = vmul.f32 %v4520, %v5032
  %v5289 = vmul.f32 %v4521, %v5033
  %v5290 = vmul.f32 %v4522, %v5034
  %v5291 = vmul.f32 %v4523, %v5035
  %v5292 = vmul.f32 %v4524, %v5036
  %v5293 = vmul.f32 %v4525, %v5037
  %v5294 = vmul.f32 %v4526, %v5038
  %v5295 = vmul.f32 %v4527, %v5039
  %v5296 = vmul.f32 %v4528, %v5040
  %v5297 = vmul.f32 %v4529, %v5041
  %v5298 = vmul.f32 %v4530, %v5042
  %v5299 = vmul.f32 %v4531, %v5043
  %v5300 = vmul.f32 %v4532, %v5044
  %v5301 = vmul.f32 %v4533, %v5045
  %v5302 = vmul.f32 %v4534, %v5046
  %v5303 = vmul.f32 %v4535, %v5047
  %v5304 = vmul.f32 %v4536, %v5048
  %v5305 = vmul.f32 %v4537, %v5049
  %v5306 = vmul.f32 %v4538, %v5050
  %v5307 = vmul.f32 %v4539, %v5051
  %v5308 = vmul.f32 %v4540, %v5052
  %v5309 = vmul.f32 %v4541, %v5053
  %v5310 = vmul.f32 %v4542, %v5054
  %v5311 = vmul.f32 %v4543, %v5055
  %v5312 = vmul.f32 %v4544, %v5056
  %v5313 = vmul.f32 %v4545, %v5057
  %v5314 = vmul.f32 %v4546, %v5058
  %v5315 = vmul.f32 %v4547, %v5059
  %v5316 = vmul.f32 %v4548, %v5060
  %v5317 = vmul.f32 %v4549, %v5061
  %v5318 = vmul.f32 %v4550, %v5062
  %v5319 = vmul.f32 %v4551, %v5063
  %v5320 = vmul.f32 %v4552, %v5064
  %v5321 = vmul.f32 %v4553, %v5065
  %v5322 = vmul.f32 %v4554, %v5066
  %v5323 = vmul.f32 %v4555, %v5067
  %v5324 = vmul.f32 %v4556, %v5068
  %v5325 = vmul.f32 %v4557, %v5069
  %v5326 = vmul.f32 %v4558, %v5070
  %v5327 = vmul.f32 %v4559, %v5071
  %v5328 = vmul.f32 %v4560, %v5072
  %v5329 = vmul.f32 %v4561, %v5073
  %v5330 = vmul.f32 %v4562, %v5074
  %v5331 = vmul.f32 %v4563, %v5075
  %v5332 = vmul.f32 %v4564, %v5076
  %v5333 = vmul.f32 %v4565, %v5077
  %v5334 = vmul.f32 %v4566, %v5078
  %v5335 = vmul.f32 %v4567, %v5079
  %v5336 = vmul.f32 %v4568, %v5080
  %v5337 = vmul.f32 %v4569, %v5081
  %v5338 = vmul.f32 %v4570, %v5082
  %v5339 = vmul.f32 %v4571, %v5083
  %v5340 = vmul.f32 %v4572, %v5084
  %v5341 = vmul.f32 %v4573, %v5085
  %v5342 = vmul.f32 %v4574, %v5086
  %v5343 = vmul.f32 %v4575, %v5087
  %v5344 = vmul.f32 %v4576, %v5088
  %v5345 = vmul.f32 %v4577, %v5089
  %v5346 = vmul.f32 %v4578, %v5090
  %v5347 = vmul.f32 %v4579, %v5091
  %v5348 = vmul.f32 %v4580, %v5092
  %v5349 = vmul.f32 %v4581, %v5093
  %v5350 = vmul.f32 %v4582, %v5094
  %v5351 = vmul.f32 %v4583, %v5095
  %v5352 = vmul.f32 %v4584, %v5096
  %v5353 = vmul.f32 %v4585, %v5097
  %v5354 = vmul.f32 %v4586, %v5098
  %v5355 = vmul.f32 %v4587, %v5099
  %v5356 = vmul.f32 %v4588, %v5100
  %v5357 = vmul.f32 %v4589, %v5101
  %v5358 = vmul.f32 %v4590, %v5102
  %v5359 = vmul.f32 %v4591, %v5103
  %v5360 = vmul.f32 %v4592, %v5104
  %v5361 = vmul.f32 %v4593, %v5105
  %v5362 = vmul.f32 %v4594, %v5106
  %v5363 = vmul.f32 %v4595, %v5107
  %v5364 = vmul.f32 %v4596, %v5108
  %v5365 = vmul.f32 %v4597, %v5109
  %v5366 = vmul.f32 %v4598, %v5110
  %v5367 = vmul.f32 %v4599, %v5111
  %v5368 = vmul.f32 %v4600, %v5112
  %v5369 = vmul.f32 %v4601, %v5113
  %v5370 = vmul.f32 %v4602, %v5114
  %v5371 = vmul.f32 %v4603, %v5115
  %v5372 = vmul.f32 %v4604, %v5116
  %v5373 = vmul.f32 %v4605, %v5117
  %v5374 = vmul.f32 %v4606, %v5118
  %v5375 = vmul.f32 %v4607, %v5119
  %v5376 = vmul.f32 %v4608, %v5120
  %v5377 = vmul.f32 %v4609, %v5121
  %v5378 = vmul.f32 %v4610, %v5122
  %v5379 = vmul.f32 %v4611, %v5123
  %v5380 = vmul.f32 %v4612, %v5124
  %v5381 = vmul.f32 %v4613, %v5125
  %v5382 = vmul.f32 %v4614, %v5126
  %v5383 = vmul.f32 %v4615, %v5127
  %v5384 = vmul.f32 %v4616, %v5128
  %v5385 = vmul.f32 %v4617, %v5129
  %v5386 = vmul.f32 %v4618, %v5130
  %v5387 = vmul.f32 %v4619, %v5131
  %v5388 = vmul.f32 %v4620, %v5132
  %v5389 = vmul.f32 %v4621, %v5133
  %v5390 = vmul.f32 %v4622, %v5134
  %v5391 = vmul.f32 %v4623, %v5135
  %v5392 = vmul.f32 %v4624, %v5136
  %v5393 = vmul.f32 %v4625, %v5137
  %v5394 = vmul.f32 %v4626, %v5138
  %v5395 = vmul.f32 %v4627, %v5139
  %v5396 = vmul.f32 %v4628, %v5140
  %v5397 = vmul.f32 %v4629, %v5141
  %v5398 = vmul.f32 %v4630, %v5142
  %v5399 = vmul.f32 %v4631, %v5143
  %v5400 = vmul.f32 %v4632, %v5144
  %v5401 = vmul.f32 %v4633, %v5145
  %v5402 = vmul.f32 %v4634, %v5146
  %v5403 = vmul.f32 %v4635, %v5147
  %v5404 = vmul.f32 %v4636, %v5148
  %v5405 = vmul.f32 %v4637, %v5149
  %v5406 = vmul.f32 %v4638, %v5150
  %v5407 = vmul.f32 %v4639, %v5151
  %v5408 = vmul.f32 %v4640, %v5152
  %v5409 = vmul.f32 %v4641, %v5153
  %v5410 = vmul.f32 %v4642, %v5154
  %v5411 = vmul.f32 %v4643, %v5155
  %v5412 = vmul.f32 %v4644, %v5156
  %v5413 = vmul.f32 %v4645, %v5157
  %v5414 = vmul.f32 %v4646, %v5158
  %v5415 = vmul.f32 %v4647, %v5159
  %v5416 = vmul.f32 %v4648, %v5160
  %v5417 = vmul.f32 %v4649, %v5161
  %v5418 = vmul.f32 %v4650, %v5162
  %v5419 = vmul.f32 %v4651, %v5163
  %v5420 = vmul.f32 %v4652, %v5164
  %v5421 = vmul.f32 %v4653, %v5165
  %v5422 = vmul.f32 %v4654, %v5166
  %v5423 = vmul.f32 %v4655, %v5167
  %v5424 = vmul.f32 %v4656, %v5168
  %v5425 = vmul.f32 %v4657, %v5169
  %v5426 = vmul.f32 %v4658, %v5170
  %v5427 = vmul.f32 %v4659, %v5171
  %v5428 = vmul.f32 %v4660, %v5172
  %v5429 = vmul.f32 %v4661, %v5173
  %v5430 = vmul.f32 %v4662, %v5174
  %v5431 = vmul.f32 %v4663, %v5175
  %v5432 = vmul.f32 %v4664, %v5176
  %v5433 = vmul.f32 %v4665, %v5177
  %v5434 = vmul.f32 %v4666, %v5178
  %v5435 = vmul.f32 %v4667, %v5179
  %v5436 = vmul.f32 %v4668, %v5180
  %v5437 = vmul.f32 %v4669, %v5181
  %v5438 = vmul.f32 %v4670, %v5182
  %v5439 = vmul.f32 %v4671, %v5183
  %v5440 = vmul.f32 %v4672, %v5184
  %v5441 = vmul.f32 %v4673, %v5185
  %v5442 = vmul.f32 %v4674, %v5186
  %v5443 = vmul.f32 %v4675, %v5187
  %v5444 = vmul.f32 %v4676, %v5188
  %v5445 = vmul.f32 %v4677, %v5189
  %v5446 = vmul.f32 %v4678, %v5190
  %v5447 = vmul.f32 %v4679, %v5191
  %v5448 = vmul.f32 %v4680, %v5192
  %v5449 = vmul.f32 %v4681, %v5193
  %v5450 = vmul.f32 %v4682, %v5194
  %v5451 = vmul.f32 %v4683, %v5195
  %v5452 = vmul.f32 %v4684, %v5196
  %v5453 = vmul.f32 %v4685, %v5197
  %v5454 = vmul.f32 %v4686, %v5198
  %v5455 = vmul.f32 %v4687, %v5199
  %v5456 = vmul.f32 %v4688, %v5200
  %v5457 = vmul.f32 %v4689, %v5201
  %v5458 = vmul.f32 %v4690, %v5202
  %v5459 = vmul.f32 %v4691, %v5203
  %v5460 = vmul.f32 %v4692, %v5204
  %v5461 = vmul.f32 %v4693, %v5205
  %v5462 = vmul.f32 %v4694, %v5206
  %v5463 = vmul.f32 %v4695, %v5207
  %v5464 = vmul.f32 %v4696, %v5208
  %v5465 = vmul.f32 %v4697, %v5209
  %v5466 = vmul.f32 %v4698, %v5210
  %v5467 = vmul.f32 %v4699, %v5211
  %v5468 = vmul.f32 %v4700, %v5212
  %v5469 = vmul.f32 %v4701, %v5213
  %v5470 = vmul.f32 %v4702, %v5214
  %v5471 = vmul.f32 %v4703, %v5215
  %v5472 = vmul.f32 %v4704, %v5216
  %v5473 = vmul.f32 %v4705, %v5217
  %v5474 = vmul.f32 %v4706, %v5218
  %v5475 = vmul.f32 %v4707, %v5219
  %v5476 = vmul.f32 %v4708, %v5220
  %v5477 = vmul.f32 %v4709, %v5221
  %v5478 = vmul.f32 %v4710, %v5222
  %v5479 = vmul.f32 %v4711, %v5223
  %v5480 = vmul.f32 %v4712, %v5224
  %v5481 = vmul.f32 %v4713, %v5225
  %v5482 = vmul.f32 %v4714, %v5226
  %v5483 = vmul.f32 %v4715, %v5227
  %v5484 = vmul.f32 %v4716, %v5228
  %v5485 = vmul.f32 %v4717, %v5229
  %v5486 = vmul.f32 %v4718, %v5230
  %v5487 = vmul.f32 %v4719, %v5231
  %v5488 = vmul.f32 %v4720, %v5232
  %v5489 = vmul.f32 %v4721, %v5233
  %v5490 = vmul.f32 %v4722, %v5234
  %v5491 = vmul.f32 %v4723, %v5235
  %v5492 = vmul.f32 %v4724, %v5236
  %v5493 = vmul.f32 %v4725, %v5237
  %v5494 = vmul.f32 %v4726, %v5238
  %v5495 = vmul.f32 %v4727, %v5239
  %v5496 = vmul.f32 %v4728, %v5240
  %v5497 = vmul.f32 %v4729, %v5241
  %v5498 = vmul.f32 %v4730, %v5242
  %v5499 = vmul.f32 %v4731, %v5243
  %v5500 = vmul.f32 %v4732, %v5244
  %v5501 = vmul.f32 %v4733, %v5245
  %v5502 = vmul.f32 %v3198, %v5246
  %v5503 = vmul.f32 %v3199, %v5247
  %v5504 = vmul.f32 %v3200, %v5248
  %v5505 = vmul.f32 %v3201, %v5249
  %v5506 = vmul.f32 %v3202, %v5250
  %v5507 = vmul.f32 %v3203, %v5251
  %v5508 = vmul.f32 %v3204, %v5252
  %v5509 = vmul.f32 %v3205, %v5253
  %v5510 = vmul.f32 %v3206, %v5254
  %v5511 = vmul.f32 %v3207, %v5255
  %v5512 = vmul.f32 %v3208, %v5256
  %v5513 = vmul.f32 %v3209, %v5257
  %v5514 = vmul.f32 %v3210, %v5258
  %v5515 = vmul.f32 %v3211, %v5259
  %v5516 = vmul.f32 %v3212, %v5260
  %v5517 = vmul.f32 %v3213, %v5261
  %v5518 = vmul.f32 %v3214, %v5262
  %v5519 = vmul.f32 %v3215, %v5263
  %v5520 = vmul.f32 %v3216, %v5264
  %v5521 = vmul.f32 %v3217, %v5265
  %v5522 = vmul.f32 %v3218, %v5266
  %v5523 = vmul.f32 %v3219, %v5267
  %v5524 = vmul.f32 %v3220, %v5268
  %v5525 = vmul.f32 %v3221, %v5269
  %v5526 = vmul.f32 %v3222, %v5270
  %v5527 = vmul.f32 %v3223, %v5271
  %v5528 = vmul.f32 %v3224, %v5272
  %v5529 = vmul.f32 %v3225, %v5273
  %v5530 = vmul.f32 %v3226, %v5274
  %v5531 = vmul.f32 %v3227, %v5275
  %v5532 = vmul.f32 %v3228, %v5276
  %v5533 = vmul.f32 %v3229, %v5277
  %v5534 = vmul.f32 %v3230, %v5278
  %v5535 = vmul.f32 %v3231, %v5279
  %v5536 = vmul.f32 %v3232, %v5280
  %v5537 = vmul.f32 %v3233, %v5281
  %v5538 = vmul.f32 %v3234, %v5282
  %v5539 = vmul.f32 %v3235, %v5283
  %v5540 = vmul.f32 %v3236, %v5284
  %v5541 = vmul.f32 %v3237, %v5285
  %v5542 = vmul.f32 %v3238, %v5286
  %v5543 = vmul.f32 %v3239, %v5287
  %v5544 = vmul.f32 %v3240, %v5288
  %v5545 = vmul.f32 %v3241, %v5289
  %v5546 = vmul.f32 %v3242, %v5290
  %v5547 = vmul.f32 %v3243, %v5291
  %v5548 = vmul.f32 %v3244, %v5292
  %v5549 = vmul.f32 %v3245, %v5293
  %v5550 = vmul.f32 %v3246, %v5294
  %v5551 = vmul.f32 %v3247, %v5295
  %v5552 = vmul.f32 %v3248, %v5296
  %v5553 = vmul.f32 %v3249, %v5297
  %v5554 = vmul.f32 %v3250, %v5298
  %v5555 = vmul.f32 %v3251, %v5299
  %v5556 = vmul.f32 %v3252, %v5300
  %v5557 = vmul.f32 %v3253, %v5301
  %v5558 = vmul.f32 %v3254, %v5302
  %v5559 = vmul.f32 %v3255, %v5303
  %v5560 = vmul.f32 %v3256, %v5304
  %v5561 = vmul.f32 %v3257, %v5305
  %v5562 = vmul.f32 %v3258, %v5306
  %v5563 = vmul.f32 %v3259, %v5307
  %v5564 = vmul.f32 %v3260, %v5308
  %v5565 = vmul.f32 %v3261, %v5309
  %v5566 = vmul.f32 %v3262, %v5310
  %v5567 = vmul.f32 %v3263, %v5311
  %v5568 = vmul.f32 %v3264, %v5312
  %v5569 = vmul.f32 %v3265, %v5313
  %v5570 = vmul.f32 %v3266, %v5314
  %v5571 = vmul.f32 %v3267, %v5315
  %v5572 = vmul.f32 %v3268, %v5316
  %v5573 = vmul.f32 %v3269, %v5317
  %v5574 = vmul.f32 %v3270, %v5318
  %v5575 = vmul.f32 %v3271, %v5319
  %v5576 = vmul.f32 %v3272, %v5320
  %v5577 = vmul.f32 %v3273, %v5321
  %v5578 = vmul.f32 %v3274, %v5322
  %v5579 = vmul.f32 %v3275, %v5323
  %v5580 = vmul.f32 %v3276, %v5324
  %v5581 = vmul.f32 %v3277, %v5325
  %v5582 = vmul.f32 %v3278, %v5326
  %v5583 = vmul.f32 %v3279, %v5327
  %v5584 = vmul.f32 %v3280, %v5328
  %v5585 = vmul.f32 %v3281, %v5329
  %v5586 = vmul.f32 %v3282, %v5330
  %v5587 = vmul.f32 %v3283, %v5331
  %v5588 = vmul.f32 %v3284, %v5332
  %v5589 = vmul.f32 %v3285, %v5333
  %v5590 = vmul.f32 %v3286, %v5334
  %v5591 = vmul.f32 %v3287, %v5335
  %v5592 = vmul.f32 %v3288, %v5336
  %v5593 = vmul.f32 %v3289, %v5337
  %v5594 = vmul.f32 %v3290, %v5338
  %v5595 = vmul.f32 %v3291, %v5339
  %v5596 = vmul.f32 %v3292, %v5340
  %v5597 = vmul.f32 %v3293, %v5341
  %v5598 = vmul.f32 %v3294, %v5342
  %v5599 = vmul.f32 %v3295, %v5343
  %v5600 = vmul.f32 %v3296, %v5344
  %v5601 = vmul.f32 %v3297, %v5345
  %v5602 = vmul.f32 %v3298, %v5346
  %v5603 = vmul.f32 %v3299, %v5347
  %v5604 = vmul.f32 %v3300, %v5348
  %v5605 = vmul.f32 %v3301, %v5349
  %v5606 = vmul.f32 %v3302, %v5350
  %v5607 = vmul.f32 %v3303, %v5351
  %v5608 = vmul.f32 %v3304, %v5352
  %v5609 = vmul.f32 %v3305, %v5353
  %v5610 = vmul.f32 %v3306, %v5354
  %v5611 = vmul.f32 %v3307, %v5355
  %v5612 = vmul.f32 %v3308, %v5356
  %v5613 = vmul.f32 %v3309, %v5357
  %v5614 = vmul.f32 %v3310, %v5358
  %v5615 = vmul.f32 %v3311, %v5359
  %v5616 = vmul.f32 %v3312, %v5360
  %v5617 = vmul.f32 %v3313, %v5361
  %v5618 = vmul.f32 %v3314, %v5362
  %v5619 = vmul.f32 %v3315, %v5363
  %v5620 = vmul.f32 %v3316, %v5364
  %v5621 = vmul.f32 %v3317, %v5365
  %v5622 = vmul.f32 %v3318, %v5366
  %v5623 = vmul.f32 %v3319, %v5367
  %v5624 = vmul.f32 %v3320, %v5368
  %v5625 = vmul.f32 %v3321, %v5369
  %v5626 = vmul.f32 %v3322, %v5370
  %v5627 = vmul.f32 %v3323, %v5371
  %v5628 = vmul.f32 %v3324, %v5372
  %v5629 = vmul.f32 %v3325, %v5373
  %v5630 = vmul.f32 %v3326, %v5374
  %v5631 = vmul.f32 %v3327, %v5375
  %v5632 = vmul.f32 %v3328, %v5376
  %v5633 = vmul.f32 %v3329, %v5377
  %v5634 = vmul.f32 %v3330, %v5378
  %v5635 = vmul.f32 %v3331, %v5379
  %v5636 = vmul.f32 %v3332, %v5380
  %v5637 = vmul.f32 %v3333, %v5381
  %v5638 = vmul.f32 %v3334, %v5382
  %v5639 = vmul.f32 %v3335, %v5383
  %v5640 = vmul.f32 %v3336, %v5384
  %v5641 = vmul.f32 %v3337, %v5385
  %v5642 = vmul.f32 %v3338, %v5386
  %v5643 = vmul.f32 %v3339, %v5387
  %v5644 = vmul.f32 %v3340, %v5388
  %v5645 = vmul.f32 %v3341, %v5389
  %v5646 = vmul.f32 %v3342, %v5390
  %v5647 = vmul.f32 %v3343, %v5391
  %v5648 = vmul.f32 %v3344, %v5392
  %v5649 = vmul.f32 %v3345, %v5393
  %v5650 = vmul.f32 %v3346, %v5394
  %v5651 = vmul.f32 %v3347, %v5395
  %v5652 = vmul.f32 %v3348, %v5396
  %v5653 = vmul.f32 %v3349, %v5397
  %v5654 = vmul.f32 %v3350, %v5398
  %v5655 = vmul.f32 %v3351, %v5399
  %v5656 = vmul.f32 %v3352, %v5400
  %v5657 = vmul.f32 %v3353, %v5401
  %v5658 = vmul.f32 %v3354, %v5402
  %v5659 = vmul.f32 %v3355, %v5403
  %v5660 = vmul.f32 %v3356, %v5404
  %v5661 = vmul.f32 %v3357, %v5405
  %v5662 = vmul.f32 %v3358, %v5406
  %v5663 = vmul.f32 %v3359, %v5407
  %v5664 = vmul.f32 %v3360, %v5408
  %v5665 = vmul.f32 %v3361, %v5409
  %v5666 = vmul.f32 %v3362, %v5410
  %v5667 = vmul.f32 %v3363, %v5411
  %v5668 = vmul.f32 %v3364, %v5412
  %v5669 = vmul.f32 %v3365, %v5413
  %v5670 = vmul.f32 %v3366, %v5414
  %v5671 = vmul.f32 %v3367, %v5415
  %v5672 = vmul.f32 %v3368, %v5416
  %v5673 = vmul.f32 %v3369, %v5417
  %v5674 = vmul.f32 %v3370, %v5418
  %v5675 = vmul.f32 %v3371, %v5419
  %v5676 = vmul.f32 %v3372, %v5420
  %v5677 = vmul.f32 %v3373, %v5421
  %v5678 = vmul.f32 %v3374, %v5422
  %v5679 = vmul.f32 %v3375, %v5423
  %v5680 = vmul.f32 %v3376, %v5424
  %v5681 = vmul.f32 %v3377, %v5425
  %v5682 = vmul.f32 %v3378, %v5426
  %v5683 = vmul.f32 %v3379, %v5427
  %v5684 = vmul.f32 %v3380, %v5428
  %v5685 = vmul.f32 %v3381, %v5429
  %v5686 = vmul.f32 %v3382, %v5430
  %v5687 = vmul.f32 %v3383, %v5431
  %v5688 = vmul.f32 %v3384, %v5432
  %v5689 = vmul.f32 %v3385, %v5433
  %v5690 = vmul.f32 %v3386, %v5434
  %v5691 = vmul.f32 %v3387, %v5435
  %v5692 = vmul.f32 %v3388, %v5436
  %v5693 = vmul.f32 %v3389, %v5437
  %v5694 = vmul.f32 %v3390, %v5438
  %v5695 = vmul.f32 %v3391, %v5439
  %v5696 = vmul.f32 %v3392, %v5440
  %v5697 = vmul.f32 %v3393, %v5441
  %v5698 = vmul.f32 %v3394, %v5442
  %v5699 = vmul.f32 %v3395, %v5443
  %v5700 = vmul.f32 %v3396, %v5444
  %v5701 = vmul.f32 %v3397, %v5445
  %v5702 = vmul.f32 %v3398, %v5446
  %v5703 = vmul.f32 %v3399, %v5447
  %v5704 = vmul.f32 %v3400, %v5448
  %v5705 = vmul.f32 %v3401, %v5449
  %v5706 = vmul.f32 %v3402, %v5450
  %v5707 = vmul.f32 %v3403, %v5451
  %v5708 = vmul.f32 %v3404, %v5452
  %v5709 = vmul.f32 %v3405, %v5453
  %v5710 = vmul.f32 %v3406, %v5454
  %v5711 = vmul.f32 %v3407, %v5455
  %v5712 = vmul.f32 %v3408, %v5456
  %v5713 = vmul.f32 %v3409, %v5457
  %v5714 = vmul.f32 %v3410, %v5458
  %v5715 = vmul.f32 %v3411, %v5459
  %v5716 = vmul.f32 %v3412, %v5460
  %v5717 = vmul.f32 %v3413, %v5461
  %v5718 = vmul.f32 %v3414, %v5462
  %v5719 = vmul.f32 %v3415, %v5463
  %v5720 = vmul.f32 %v3416, %v5464
  %v5721 = vmul.f32 %v3417, %v5465
  %v5722 = vmul.f32 %v3418, %v5466
  %v5723 = vmul.f32 %v3419, %v5467
  %v5724 = vmul.f32 %v3420, %v5468
  %v5725 = vmul.f32 %v3421, %v5469
  %v5726 = vmul.f32 %v3422, %v5470
  %v5727 = vmul.f32 %v3423, %v5471
  %v5728 = vmul.f32 %v3424, %v5472
  %v5729 = vmul.f32 %v3425, %v5473
  %v5730 = vmul.f32 %v3426, %v5474
  %v5731 = vmul.f32 %v3427, %v5475
  %v5732 = vmul.f32 %v3428, %v5476
  %v5733 = vmul.f32 %v3429, %v5477
  %v5734 = vmul.f32 %v3430, %v5478
  %v5735 = vmul.f32 %v3431, %v5479
  %v5736 = vmul.f32 %v3432, %v5480
  %v5737 = vmul.f32 %v3433, %v5481
  %v5738 = vmul.f32 %v3434, %v5482
  %v5739 = vmul.f32 %v3435, %v5483
  %v5740 = vmul.f32 %v3436, %v5484
  %v5741 = vmul.f32 %v3437, %v5485
  %v5742 = vmul.f32 %v3438, %v5486
  %v5743 = vmul.f32 %v3439, %v5487
  %v5744 = vmul.f32 %v3440, %v5488
  %v5745 = vmul.f32 %v3441, %v5489
  %v5746 = vmul.f32 %v3442, %v5490
  %v5747 = vmul.f32 %v3443, %v5491
  %v5748 = vmul.f32 %v3444, %v5492
  %v5749 = vmul.f32 %v3445, %v5493
  %v5750 = vmul.f32 %v3446, %v5494
  %v5751 = vmul.f32 %v3447, %v5495
  %v5752 = vmul.f32 %v3448, %v5496
  %v5753 = vmul.f32 %v3449, %v5497
  %v5754 = vmul.f32 %v3450, %v5498
  %v5755 = vmul.f32 %v3451, %v5499
  %v5756 = vmul.f32 %v3452, %v5500
  %v5757 = vmul.f32 %v3453, %v5501
  %v5758 = vld [vmem:[%s4] sm:$0xff]
  %v5759 = vld [vmem:[%s4 + $0x8] sm:$0xff]
  %v5760 = vld [vmem:[%s4 + $0x10] sm:$0xff]
  %v5761 = vld [vmem:[%s4 + $0x18] sm:$0xff]
  %v5762 = vld [vmem:[%s4 + $0x20] sm:$0xff]
  %v5763 = vld [vmem:[%s4 + $0x28] sm:$0xff]
  %v5764 = vld [vmem:[%s4 + $0x30] sm:$0xff]
  %v5765 = vld [vmem:[%s4 + $0x38] sm:$0xff]
  %vm5766 = vcmask 261120
  %v5768 = vsel %vm5766, %v5758, 0
  %v5771 = vsel %vm5766, %v5759, 0
  %v5774 = vsel %vm5766, %v5760, 0
  %v5777 = vsel %vm5766, %v5761, 0
  %v5780 = vsel %vm5766, %v5762, 0
  %v5783 = vsel %vm5766, %v5763, 0
  %v5786 = vsel %vm5766, %v5764, 0
  %v5789 = vsel %vm5766, %v5765, 0
  %5791 = vmatprep.subr.mxu0 %v5503
  %5792 = vmatpush1.msra.mxu0 %v5502
  %5793 = vmatprep.subr.mxu0 %v5567
  %5794 = vmatpush1.msra.mxu0 %v5566
  %5795 = vmatprep.subr.mxu0 %v5631
  %5796 = vmatpush1.msra.mxu0 %v5630
  %5797 = vmatprep.subr.mxu0 %v5695
  %5798 = vmatpush1.msra.mxu0 %v5694
  %5799 = vmatprep.subr.mxu0 0.0
  %5800 = vmatpush1.msra.mxu0 0.0
  %5801 = vmatprep.subr.mxu0 0.0
  %5802 = vmatpush1.msra.mxu0 0.0
  %5803 = vmatprep.subr.mxu0 0.0
  %5804 = vmatpush1.msra.mxu0 0.0
  %5805 = vmatprep.subr.mxu0 0.0
  %5806 = vmatpush1.msra.mxu0 0.0
  %5807 = vmatprep.subr.mxu0 0.0
  %5808 = vmatpush1.msra.mxu0 0.0
  %5809 = vmatprep.subr.mxu0 0.0
  %5810 = vmatpush1.msra.mxu0 0.0
  %5811 = vmatprep.subr.mxu0 0.0
  %5812 = vmatpush1.msra.mxu0 0.0
  %5813 = vmatprep.subr.mxu0 0.0
  %5814 = vmatpush1.msra.mxu0 0.0
  %5815 = vmatprep.subr.mxu0 0.0
  %5816 = vmatpush1.msra.mxu0 0.0
  %5817 = vmatprep.subr.mxu0 0.0
  %5818 = vmatpush1.msra.mxu0 0.0
  %5819 = vmatprep.subr.mxu0 0.0
  %5820 = vmatpush1.msra.mxu0 0.0
  %5821 = vmatprep.subr.mxu0 0.0
  %5822 = vmatpush1.msra.mxu0 0.0
  %5823 = vmatprep.subr.mxu0 0.0
  %5824 = vmatpush1.msra.mxu0 0.0
  %5825 = vmatprep.subr.mxu0 0.0
  %5826 = vmatpush1.msra.mxu0 0.0
  %5827 = vmatprep.subr.mxu0 0.0
  %5828 = vmatpush1.msra.mxu0 0.0
  %5829 = vmatprep.subr.mxu0 0.0
  %5830 = vmatpush1.msra.mxu0 0.0
  %5831 = vmatprep.subr.mxu0 0.0
  %5832 = vmatpush1.msra.mxu0 0.0
  %5833 = vmatprep.subr.mxu0 0.0
  %5834 = vmatpush1.msra.mxu0 0.0
  %5835 = vmatprep.subr.mxu0 0.0
  %5836 = vmatpush1.msra.mxu0 0.0
  %5837 = vmatprep.subr.mxu0 0.0
  %5838 = vmatpush1.msra.mxu0 0.0
  %5839 = vmatprep.subr.mxu0 0.0
  %5840 = vmatpush1.msra.mxu0 0.0
  %5841 = vmatprep.subr.mxu0 0.0
  %5842 = vmatpush1.msra.mxu0 0.0
  %5843 = vmatprep.subr.mxu0 0.0
  %5844 = vmatpush1.msra.mxu0 0.0
  %5845 = vmatprep.subr.mxu0 0.0
  %5846 = vmatpush1.msra.mxu0 0.0
  %5847 = vmatprep.subr.mxu0 0.0
  %5848 = vmatpush1.msra.mxu0 0.0
  %5849 = vmatprep.subr.mxu0 0.0
  %5850 = vmatpush1.msra.mxu0 0.0
  %5851 = vmatprep.subr.mxu0 0.0
  %5852 = vmatpush1.msra.mxu0 0.0
  %5853 = vmatprep.subr.mxu0 0.0
  %5854 = vmatpush1.msra.mxu0 0.0
  %5855 = vmatprep.mubr.f32.mxu0 0.0
  %5856 = vmatmul.mubr.f32.gmra.mrb[0].mxu0 %v5768
  %v5857 = vpop.f32.mrb[0].mxu0
  %v5858 = vadd.f32 0.0, %v5857
  %v5859 = vpop.f32.mrb[0].mxu0
  %v5860 = vadd.f32 0.0, %v5859
  %5861 = vmatprep.mubr.f32.mxu0 0.0
  %5862 = vmatmul.mubr.f32.gmra.mrb[0].mxu0 %v5771
  %v5863 = vpop.f32.mrb[0].mxu0
  %v5864 = vadd.f32 0.0, %v5863
  %v5865 = vpop.f32.mrb[0].mxu0
  %v5866 = vadd.f32 0.0, %v5865
  %5867 = vmatprep.mubr.f32.mxu0 0.0
  %5868 = vmatmul.mubr.f32.gmra.mrb[0].mxu0 %v5774
  %v5869 = vpop.f32.mrb[0].mxu0
  %v5870 = vadd.f32 0.0, %v5869
  %v5871 = vpop.f32.mrb[0].mxu0
  %v5872 = vadd.f32 0.0, %v5871
  %5873 = vmatprep.mubr.f32.mxu0 0.0
  %5874 = vmatmul.mubr.f32.gmra.mrb[0].mxu0 %v5777
  %v5875 = vpop.f32.mrb[0].mxu0
  %v5876 = vadd.f32 0.0, %v5875
  %v5877 = vpop.f32.mrb[0].mxu0
  %v5878 = vadd.f32 0.0, %v5877
  %5879 = vmatprep.mubr.f32.mxu0 0.0
  %5880 = vmatmul.mubr.f32.gmra.mrb[0].mxu0 %v5780
  %v5881 = vpop.f32.mrb[0].mxu0
  %v5882 = vadd.f32 0.0, %v5881
  %v5883 = vpop.f32.mrb[0].mxu0
  %v5884 = vadd.f32 0.0, %v5883
  %5885 = vmatprep.mubr.f32.mxu0 0.0
  %5886 = vmatmul.mubr.f32.gmra.mrb[0].mxu0 %v5783
  %v5887 = vpop.f32.mrb[0].mxu0
  %v5888 = vadd.f32 0.0, %v5887
  %v5889 = vpop.f32.mrb[0].mxu0
  %v5890 = vadd.f32 0.0, %v5889
  %5891 = vmatprep.mubr.f32.mxu0 0.0
  %5892 = vmatmul.mubr.f32.gmra.mrb[0].mxu0 %v5786
  %v5893 = vpop.f32.mrb[0].mxu0
  %v5894 = vadd.f32 0.0, %v5893
  %v5895 = vpop.f32.mrb[0].mxu0
  %v5896 = vadd.f32 0.0, %v5895
  %5897 = vmatprep.mubr.f32.mxu0 0.0
  %5898 = vmatmul.mubr.f32.gmra.mrb[0].mxu0 %v5789
  %v5899 = vpop.f32.mrb[0].mxu0
  %v5900 = vadd.f32 0.0, %v5899
  %v5901 = vpop.f32.mrb[0].mxu0
  %v5902 = vadd.f32 0.0, %v5901
  %5903 = vdwg.mxu0
  %5904 = vmatprep.subr.mxu0 %v5505
  %5905 = vmatpush1.msra.mxu0 %v5504
  %5906 = vmatprep.subr.mxu0 %v5569
  %5907 = vmatpush1.msra.mxu0 %v5568
  %5908 = vmatprep.subr.mxu0 %v5633
  %5909 = vmatpush1.msra.mxu0 %v5632
  %5910 = vmatprep.subr.mxu0 %v5697
  %5911 = vmatpush1.msra.mxu0 %v5696
  %5912 = vmatprep.subr.mxu0 0.0
  %5913 = vmatpush1.msra.mxu0 0.0
  %5914 = vmatprep.subr.mxu0 0.0
  %5915 = vmatpush1.msra.mxu0 0.0
  %5916 = vmatprep.subr.mxu0 0.0
  %5917 = vmatpush1.msra.mxu0 0.0
  %5918 = vmatprep.subr.mxu0 0.0
  %5919 = vmatpush1.msra.mxu0 0.0
  %5920 = vmatprep.subr.mxu0 0.0
  %5921 = vmatpush1.msra.mxu0 0.0
  %5922 = vmatprep.subr.mxu0 0.0
  %5923 = vmatpush1.msra.mxu0 0.0
  %5924 = vmatprep.subr.mxu0 0.0
  %5925 = vmatpush1.msra.mxu0 0.0
  %5926 = vmatprep.subr.mxu0 0.0
  %5927 = vmatpush1.msra.mxu0 0.0
  %5928 = vmatprep.subr.mxu0 0.0
  %5929 = vmatpush1.msra.mxu0 0.0
  %5930 = vmatprep.subr.mxu0 0.0
  %5931 = vmatpush1.msra.mxu0 0.0
  %5932 = vmatprep.subr.mxu0 0.0
  %5933 = vmatpush1.msra.mxu0 0.0
  %5934 = vmatprep.subr.mxu0 0.0
  %5935 = vmatpush1.msra.mxu0 0.0
  %5936 = vmatprep.subr.mxu0 0.0
  %5937 = vmatpush1.msra.mxu0 0.0
  %5938 = vmatprep.subr.mxu0 0.0
  %5939 = vmatpush1.msra.mxu0 0.0
  %5940 = vmatprep.subr.mxu0 0.0
  %5941 = vmatpush1.msra.mxu0 0.0
  %5942 = vmatprep.subr.mxu0 0.0
  %5943 = vmatpush1.msra.mxu0 0.0
  %5944 = vmatprep.subr.mxu0 0.0
  %5945 = vmatpush1.msra.mxu0 0.0
  %5946 = vmatprep.subr.mxu0 0.0
  %5947 = vmatpush1.msra.mxu0 0.0
  %5948 = vmatprep.subr.mxu0 0.0
  %5949 = vmatpush1.msra.mxu0 0.0
  %5950 = vmatprep.subr.mxu0 0.0
  %5951 = vmatpush1.msra.mxu0 0.0
  %5952 = vmatprep.subr.mxu0 0.0
  %5953 = vmatpush1.msra.mxu0 0.0
  %5954 = vmatprep.subr.mxu0 0.0
  %5955 = vmatpush1.msra.mxu0 0.0
  %5956 = vmatprep.subr.mxu0 0.0
  %5957 = vmatpush1.msra.mxu0 0.0
  %5958 = vmatprep.subr.mxu0 0.0
  %5959 = vmatpush1.msra.mxu0 0.0
  %5960 = vmatprep.subr.mxu0 0.0
  %5961 = vmatpush1.msra.mxu0 0.0
  %5962 = vmatprep.subr.mxu0 0.0
  %5963 = vmatpush1.msra.mxu0 0.0
  %5964 = vmatprep.subr.mxu0 0.0
  %5965 = vmatpush1.msra.mxu0 0.0
  %5966 = vmatprep.subr.mxu0 0.0
  %5967 = vmatpush1.msra.mxu0 0.0
  %5968 = vmatprep.mubr.f32.mxu0 0.0
  %5969 = vmatmul.mubr.f32.gmra.mrb[0].mxu0 %v5768
  %v5970 = vpop.f32.mrb[0].mxu0
  %v5971 = vadd.f32 0.0, %v5970
  %v5972 = vpop.f32.mrb[0].mxu0
  %v5973 = vadd.f32 0.0, %v5972
  %5974 = vmatprep.mubr.f32.mxu0 0.0
  %5975 = vmatmul.mubr.f32.gmra.mrb[0].mxu0 %v5771
  %v5976 = vpop.f32.mrb[0].mxu0
  %v5977 = vadd.f32 0.0, %v5976
  %v5978 = vpop.f32.mrb[0].mxu0
  %v5979 = vadd.f32 0.0, %v5978
  %5980 = vmatprep.mubr.f32.mxu0 0.0
  %5981 = vmatmul.mubr.f32.gmra.mrb[0].mxu0 %v5774
  %v5982 = vpop.f32.mrb[0].mxu0
  %v5983 = vadd.f32 0.0, %v5982
  %v5984 = vpop.f32.mrb[0].mxu0
  %v5985 = vadd.f32 0.0, %v5984
  %5986 = vmatprep.mubr.f32.mxu0 0.0
  %5987 = vmatmul.mubr.f32.gmra.mrb[0].mxu0 %v5777
  %v5988 = vpop.f32.mrb[0].mxu0
  %v5989 = vadd.f32 0.0, %v5988
  %v5990 = vpop.f32.mrb[0].mxu0
  %v5991 = vadd.f32 0.0, %v5990
  %5992 = vmatprep.mubr.f32.mxu0 0.0
  %5993 = vmatmul.mubr.f32.gmra.mrb[0].mxu0 %v5780
  %v5994 = vpop.f32.mrb[0].mxu0
  %v5995 = vadd.f32 0.0, %v5994
  %v5996 = vpop.f32.mrb[0].mxu0
  %v5997 = vadd.f32 0.0, %v5996
  %5998 = vmatprep.mubr.f32.mxu0 0.0
  %5999 = vmatmul.mubr.f32.gmra.mrb[0].mxu0 %v5783
  %v6000 = vpop.f32.mrb[0].mxu0
  %v6001 = vadd.f32 0.0, %v6000
  %v6002 = vpop.f32.mrb[0].mxu0
  %v6003 = vadd.f32 0.0, %v6002
  %6004 = vmatprep.mubr.f32.mxu0 0.0
  %6005 = vmatmul.mubr.f32.gmra.mrb[0].mxu0 %v5786
  %v6006 = vpop.f32.mrb[0].mxu0
  %v6007 = vadd.f32 0.0, %v6006
  %v6008 = vpop.f32.mrb[0].mxu0
  %v6009 = vadd.f32 0.0, %v6008
  %6010 = vmatprep.mubr.f32.mxu0 0.0
  %6011 = vmatmul.mubr.f32.gmra.mrb[0].mxu0 %v5789
  %v6012 = vpop.f32.mrb[0].mxu0
  %v6013 = vadd.f32 0.0, %v6012
  %v6014 = vpop.f32.mrb[0].mxu0
  %v6015 = vadd.f32 0.0, %v6014
  %6016 = vdwg.mxu0
  %6017 = vmatprep.subr.mxu0 %v5507
  %6018 = vmatpush1.msra.mxu0 %v5506
  %6019 = vmatprep.subr.mxu0 %v5571
  %6020 = vmatpush1.msra.mxu0 %v5570
  %6021 = vmatprep.subr.mxu0 %v5635
  %6022 = vmatpush1.msra.mxu0 %v5634
  %6023 = vmatprep.subr.mxu0 %v5699
  %6024 = vmatpush1.msra.mxu0 %v5698
  %6025 = vmatprep.subr.mxu0 0.0
  %6026 = vmatpush1.msra.mxu0 0.0
  %6027 = vmatprep.subr.mxu0 0.0
  %6028 = vmatpush1.msra.mxu0 0.0
  %6029 = vmatprep.subr.mxu0 0.0
  %6030 = vmatpush1.msra.mxu0 0.0
  %6031 = vmatprep.subr.mxu0 0.0
  %6032 = vmatpush1.msra.mxu0 0.0
  %6033 = vmatprep.subr.mxu0 0.0
  %6034 = vmatpush1.msra.mxu0 0.0
  %6035 = vmatprep.subr.mxu0 0.0
  %6036 = vmatpush1.msra.mxu0 0.0
  %6037 = vmatprep.subr.mxu0 0.0
  %6038 = vmatpush1.msra.mxu0 0.0
  %6039 = vmatprep.subr.mxu0 0.0
  %6040 = vmatpush1.msra.mxu0 0.0
  %6041 = vmatprep.subr.mxu0 0.0
  %6042 = vmatpush1.msra.mxu0 0.0
  %6043 = vmatprep.subr.mxu0 0.0
  %6044 = vmatpush1.msra.mxu0 0.0
  %6045 = vmatprep.subr.mxu0 0.0
  %6046 = vmatpush1.msra.mxu0 0.0
  %6047 = vmatprep.subr.mxu0 0.0
  %6048 = vmatpush1.msra.mxu0 0.0
  %6049 = vmatprep.subr.mxu0 0.0
  %6050 = vmatpush1.msra.mxu0 0.0
  %6051 = vmatprep.subr.mxu0 0.0
  %6052 = vmatpush1.msra.mxu0 0.0
  %6053 = vmatprep.subr.mxu0 0.0
  %6054 = vmatpush1.msra.mxu0 0.0
  %6055 = vmatprep.subr.mxu0 0.0
  %6056 = vmatpush1.msra.mxu0 0.0
  %6057 = vmatprep.subr.mxu0 0.0
  %6058 = vmatpush1.msra.mxu0 0.0
  %6059 = vmatprep.subr.mxu0 0.0
  %6060 = vmatpush1.msra.mxu0 0.0
  %6061 = vmatprep.subr.mxu0 0.0
  %6062 = vmatpush1.msra.mxu0 0.0
  %6063 = vmatprep.subr.mxu0 0.0
  %6064 = vmatpush1.msra.mxu0 0.0
  %6065 = vmatprep.subr.mxu0 0.0
  %6066 = vmatpush1.msra.mxu0 0.0
  %6067 = vmatprep.subr.mxu0 0.0
  %6068 = vmatpush1.msra.mxu0 0.0
  %6069 = vmatprep.subr.mxu0 0.0
  %6070 = vmatpush1.msra.mxu0 0.0
  %6071 = vmatprep.subr.mxu0 0.0
  %6072 = vmatpush1.msra.mxu0 0.0
  %6073 = vmatprep.subr.mxu0 0.0
  %6074 = vmatpush1.msra.mxu0 0.0
  %6075 = vmatprep.subr.mxu0 0.0
  %6076 = vmatpush1.msra.mxu0 0.0
  %6077 = vmatprep.subr.mxu0 0.0
  %6078 = vmatpush1.msra.mxu0 0.0
  %6079 = vmatprep.subr.mxu0 0.0
  %6080 = vmatpush1.msra.mxu0 0.0
  %6081 = vmatprep.mubr.f32.mxu0 0.0
  %6082 = vmatmul.mubr.f32.gmra.mrb[0].mxu0 %v5768
  %v6083 = vpop.f32.mrb[0].mxu0
  %v6084 = vadd.f32 0.0, %v6083
  %v6085 = vpop.f32.mrb[0].mxu0
  %v6086 = vadd.f32 0.0, %v6085
  %6087 = vmatprep.mubr.f32.mxu0 0.0
  %6088 = vmatmul.mubr.f32.gmra.mrb[0].mxu0 %v5771
  %v6089 = vpop.f32.mrb[0].mxu0
  %v6090 = vadd.f32 0.0, %v6089
  %v6091 = vpop.f32.mrb[0].mxu0
  %v6092 = vadd.f32 0.0, %v6091
  %6093 = vmatprep.mubr.f32.mxu0 0.0
  %6094 = vmatmul.mubr.f32.gmra.mrb[0].mxu0 %v5774
  %v6095 = vpop.f32.mrb[0].mxu0
  %v6096 = vadd.f32 0.0, %v6095
  %v6097 = vpop.f32.mrb[0].mxu0
  %v6098 = vadd.f32 0.0, %v6097
  %6099 = vmatprep.mubr.f32.mxu0 0.0
  %6100 = vmatmul.mubr.f32.gmra.mrb[0].mxu0 %v5777
  %v6101 = vpop.f32.mrb[0].mxu0
  %v6102 = vadd.f32 0.0, %v6101
  %v6103 = vpop.f32.mrb[0].mxu0
  %v6104 = vadd.f32 0.0, %v6103
  %6105 = vmatprep.mubr.f32.mxu0 0.0
  %6106 = vmatmul.mubr.f32.gmra.mrb[0].mxu0 %v5780
  %v6107 = vpop.f32.mrb[0].mxu0
  %v6108 = vadd.f32 0.0, %v6107
  %v6109 = vpop.f32.mrb[0].mxu0
  %v6110 = vadd.f32 0.0, %v6109
  %6111 = vmatprep.mubr.f32.mxu0 0.0
  %6112 = vmatmul.mubr.f32.gmra.mrb[0].mxu0 %v5783
  %v6113 = vpop.f32.mrb[0].mxu0
  %v6114 = vadd.f32 0.0, %v6113
  %v6115 = vpop.f32.mrb[0].mxu0
  %v6116 = vadd.f32 0.0, %v6115
  %6117 = vmatprep.mubr.f32.mxu0 0.0
  %6118 = vmatmul.mubr.f32.gmra.mrb[0].mxu0 %v5786
  %v6119 = vpop.f32.mrb[0].mxu0
  %v6120 = vadd.f32 0.0, %v6119
  %v6121 = vpop.f32.mrb[0].mxu0
  %v6122 = vadd.f32 0.0, %v6121
  %6123 = vmatprep.mubr.f32.mxu0 0.0
  %6124 = vmatmul.mubr.f32.gmra.mrb[0].mxu0 %v5789
  %v6125 = vpop.f32.mrb[0].mxu0
  %v6126 = vadd.f32 0.0, %v6125
  %v6127 = vpop.f32.mrb[0].mxu0
  %v6128 = vadd.f32 0.0, %v6127
  %6129 = vdwg.mxu0
  %6130 = vmatprep.subr.mxu0 %v5509
  %6131 = vmatpush1.msra.mxu0 %v5508
  %6132 = vmatprep.subr.mxu0 %v5573
  %6133 = vmatpush1.msra.mxu0 %v5572
  %6134 = vmatprep.subr.mxu0 %v5637
  %6135 = vmatpush1.msra.mxu0 %v5636
  %6136 = vmatprep.subr.mxu0 %v5701
  %6137 = vmatpush1.msra.mxu0 %v5700
  %6138 = vmatprep.subr.mxu0 0.0
  %6139 = vmatpush1.msra.mxu0 0.0
  %6140 = vmatprep.subr.mxu0 0.0
  %6141 = vmatpush1.msra.mxu0 0.0
  %6142 = vmatprep.subr.mxu0 0.0
  %6143 = vmatpush1.msra.mxu0 0.0
  %6144 = vmatprep.subr.mxu0 0.0
  %6145 = vmatpush1.msra.mxu0 0.0
  %6146 = vmatprep.subr.mxu0 0.0
  %6147 = vmatpush1.msra.mxu0 0.0
  %6148 = vmatprep.subr.mxu0 0.0
  %6149 = vmatpush1.msra.mxu0 0.0
  %6150 = vmatprep.subr.mxu0 0.0
  %6151 = vmatpush1.msra.mxu0 0.0
  %6152 = vmatprep.subr.mxu0 0.0
  %6153 = vmatpush1.msra.mxu0 0.0
  %6154 = vmatprep.subr.mxu0 0.0
  %6155 = vmatpush1.msra.mxu0 0.0
  %6156 = vmatprep.subr.mxu0 0.0
  %6157 = vmatpush1.msra.mxu0 0.0
  %6158 = vmatprep.subr.mxu0 0.0
  %6159 = vmatpush1.msra.mxu0 0.0
  %6160 = vmatprep.subr.mxu0 0.0
  %6161 = vmatpush1.msra.mxu0 0.0
  %6162 = vmatprep.subr.mxu0 0.0
  %6163 = vmatpush1.msra.mxu0 0.0
  %6164 = vmatprep.subr.mxu0 0.0
  %6165 = vmatpush1.msra.mxu0 0.0
  %6166 = vmatprep.subr.mxu0 0.0
  %6167 = vmatpush1.msra.mxu0 0.0
  %6168 = vmatprep.subr.mxu0 0.0
  %6169 = vmatpush1.msra.mxu0 0.0
  %6170 = vmatprep.subr.mxu0 0.0
  %6171 = vmatpush1.msra.mxu0 0.0
  %6172 = vmatprep.subr.mxu0 0.0
  %6173 = vmatpush1.msra.mxu0 0.0
  %6174 = vmatprep.subr.mxu0 0.0
  %6175 = vmatpush1.msra.mxu0 0.0
  %6176 = vmatprep.subr.mxu0 0.0
  %6177 = vmatpush1.msra.mxu0 0.0
  %6178 = vmatprep.subr.mxu0 0.0
  %6179 = vmatpush1.msra.mxu0 0.0
  %6180 = vmatprep.subr.mxu0 0.0
  %6181 = vmatpush1.msra.mxu0 0.0
  %6182 = vmatprep.subr.mxu0 0.0
  %6183 = vmatpush1.msra.mxu0 0.0
  %6184 = vmatprep.subr.mxu0 0.0
  %6185 = vmatpush1.msra.mxu0 0.0
  %6186 = vmatprep.subr.mxu0 0.0
  %6187 = vmatpush1.msra.mxu0 0.0
  %6188 = vmatprep.subr.mxu0 0.0
  %6189 = vmatpush1.msra.mxu0 0.0
  %6190 = vmatprep.subr.mxu0 0.0
  %6191 = vmatpush1.msra.mxu0 0.0
  %6192 = vmatprep.subr.mxu0 0.0
  %6193 = vmatpush1.msra.mxu0 0.0
  %6194 = vmatprep.mubr.f32.mxu0 0.0
  %6195 = vmatmul.mubr.f32.gmra.mrb[0].mxu0 %v5768
  %v6196 = vpop.f32.mrb[0].mxu0
  %v6197 = vadd.f32 0.0, %v6196
  %v6198 = vpop.f32.mrb[0].mxu0
  %v6199 = vadd.f32 0.0, %v6198
  %6200 = vmatprep.mubr.f32.mxu0 0.0
  %6201 = vmatmul.mubr.f32.gmra.mrb[0].mxu0 %v5771
  %v6202 = vpop.f32.mrb[0].mxu0
  %v6203 = vadd.f32 0.0, %v6202
  %v6204 = vpop.f32.mrb[0].mxu0
  %v6205 = vadd.f32 0.0, %v6204
  %6206 = vmatprep.mubr.f32.mxu0 0.0
  %6207 = vmatmul.mubr.f32.gmra.mrb[0].mxu0 %v5774
  %v6208 = vpop.f32.mrb[0].mxu0
  %v6209 = vadd.f32 0.0, %v6208
  %v6210 = vpop.f32.mrb[0].mxu0
  %v6211 = vadd.f32 0.0, %v6210
  %6212 = vmatprep.mubr.f32.mxu0 0.0
  %6213 = vmatmul.mubr.f32.gmra.mrb[0].mxu0 %v5777
  %v6214 = vpop.f32.mrb[0].mxu0
  %v6215 = vadd.f32 0.0, %v6214
  %v6216 = vpop.f32.mrb[0].mxu0
  %v6217 = vadd.f32 0.0, %v6216
  %6218 = vmatprep.mubr.f32.mxu0 0.0
  %6219 = vmatmul.mubr.f32.gmra.mrb[0].mxu0 %v5780
  %v6220 = vpop.f32.mrb[0].mxu0
  %v6221 = vadd.f32 0.0, %v6220
  %v6222 = vpop.f32.mrb[0].mxu0
  %v6223 = vadd.f32 0.0, %v6222
  %6224 = vmatprep.mubr.f32.mxu0 0.0
  %6225 = vmatmul.mubr.f32.gmra.mrb[0].mxu0 %v5783
  %v6226 = vpop.f32.mrb[0].mxu0
  %v6227 = vadd.f32 0.0, %v6226
  %v6228 = vpop.f32.mrb[0].mxu0
  %v6229 = vadd.f32 0.0, %v6228
  %6230 = vmatprep.mubr.f32.mxu0 0.0
  %6231 = vmatmul.mubr.f32.gmra.mrb[0].mxu0 %v5786
  %v6232 = vpop.f32.mrb[0].mxu0
  %v6233 = vadd.f32 0.0, %v6232
  %v6234 = vpop.f32.mrb[0].mxu0
  %v6235 = vadd.f32 0.0, %v6234
  %6236 = vmatprep.mubr.f32.mxu0 0.0
  %6237 = vmatmul.mubr.f32.gmra.mrb[0].mxu0 %v5789
  %v6238 = vpop.f32.mrb[0].mxu0
  %v6239 = vadd.f32 0.0, %v6238
  %v6240 = vpop.f32.mrb[0].mxu0
  %v6241 = vadd.f32 0.0, %v6240
  %6242 = vdwg.mxu0
  %6243 = vmatprep.subr.mxu0 %v5511
  %6244 = vmatpush1.msra.mxu0 %v5510
  %6245 = vmatprep.subr.mxu0 %v5575
  %6246 = vmatpush1.msra.mxu0 %v5574
  %6247 = vmatprep.subr.mxu0 %v5639
  %6248 = vmatpush1.msra.mxu0 %v5638
  %6249 = vmatprep.subr.mxu0 %v5703
  %6250 = vmatpush1.msra.mxu0 %v5702
  %6251 = vmatprep.subr.mxu0 0.0
  %6252 = vmatpush1.msra.mxu0 0.0
  %6253 = vmatprep.subr.mxu0 0.0
  %6254 = vmatpush1.msra.mxu0 0.0
  %6255 = vmatprep.subr.mxu0 0.0
  %6256 = vmatpush1.msra.mxu0 0.0
  %6257 = vmatprep.subr.mxu0 0.0
  %6258 = vmatpush1.msra.mxu0 0.0
  %6259 = vmatprep.subr.mxu0 0.0
  %6260 = vmatpush1.msra.mxu0 0.0
  %6261 = vmatprep.subr.mxu0 0.0
  %6262 = vmatpush1.msra.mxu0 0.0
  %6263 = vmatprep.subr.mxu0 0.0
  %6264 = vmatpush1.msra.mxu0 0.0
  %6265 = vmatprep.subr.mxu0 0.0
  %6266 = vmatpush1.msra.mxu0 0.0
  %6267 = vmatprep.subr.mxu0 0.0
  %6268 = vmatpush1.msra.mxu0 0.0
  %6269 = vmatprep.subr.mxu0 0.0
  %6270 = vmatpush1.msra.mxu0 0.0
  %6271 = vmatprep.subr.mxu0 0.0
  %6272 = vmatpush1.msra.mxu0 0.0
  %6273 = vmatprep.subr.mxu0 0.0
  %6274 = vmatpush1.msra.mxu0 0.0
  %6275 = vmatprep.subr.mxu0 0.0
  %6276 = vmatpush1.msra.mxu0 0.0
  %6277 = vmatprep.subr.mxu0 0.0
  %6278 = vmatpush1.msra.mxu0 0.0
  %6279 = vmatprep.subr.mxu0 0.0
  %6280 = vmatpush1.msra.mxu0 0.0
  %6281 = vmatprep.subr.mxu0 0.0
  %6282 = vmatpush1.msra.mxu0 0.0
  %6283 = vmatprep.subr.mxu0 0.0
  %6284 = vmatpush1.msra.mxu0 0.0
  %6285 = vmatprep.subr.mxu0 0.0
  %6286 = vmatpush1.msra.mxu0 0.0
  %6287 = vmatprep.subr.mxu0 0.0
  %6288 = vmatpush1.msra.mxu0 0.0
  %6289 = vmatprep.subr.mxu0 0.0
  %6290 = vmatpush1.msra.mxu0 0.0
  %6291 = vmatprep.subr.mxu0 0.0
  %6292 = vmatpush1.msra.mxu0 0.0
  %6293 = vmatprep.subr.mxu0 0.0
  %6294 = vmatpush1.msra.mxu0 0.0
  %6295 = vmatprep.subr.mxu0 0.0
  %6296 = vmatpush1.msra.mxu0 0.0
  %6297 = vmatprep.subr.mxu0 0.0
  %6298 = vmatpush1.msra.mxu0 0.0
  %6299 = vmatprep.subr.mxu0 0.0
  %6300 = vmatpush1.msra.mxu0 0.0
  %6301 = vmatprep.subr.mxu0 0.0
  %6302 = vmatpush1.msra.mxu0 0.0
  %6303 = vmatprep.subr.mxu0 0.0
  %6304 = vmatpush1.msra.mxu0 0.0
  %6305 = vmatprep.subr.mxu0 0.0
  %6306 = vmatpush1.msra.mxu0 0.0
  %6307 = vmatprep.mubr.f32.mxu0 0.0
  %6308 = vmatmul.mubr.f32.gmra.mrb[0].mxu0 %v5768
  %v6309 = vpop.f32.mrb[0].mxu0
  %v6310 = vadd.f32 0.0, %v6309
  %v6311 = vpop.f32.mrb[0].mxu0
  %v6312 = vadd.f32 0.0, %v6311
  %6313 = vmatprep.mubr.f32.mxu0 0.0
  %6314 = vmatmul.mubr.f32.gmra.mrb[0].mxu0 %v5771
  %v6315 = vpop.f32.mrb[0].mxu0
  %v6316 = vadd.f32 0.0, %v6315
  %v6317 = vpop.f32.mrb[0].mxu0
  %v6318 = vadd.f32 0.0, %v6317
  %6319 = vmatprep.mubr.f32.mxu0 0.0
  %6320 = vmatmul.mubr.f32.gmra.mrb[0].mxu0 %v5774
  %v6321 = vpop.f32.mrb[0].mxu0
  %v6322 = vadd.f32 0.0, %v6321
  %v6323 = vpop.f32.mrb[0].mxu0
  %v6324 = vadd.f32 0.0, %v6323
  %6325 = vmatprep.mubr.f32.mxu0 0.0
  %6326 = vmatmul.mubr.f32.gmra.mrb[0].mxu0 %v5777
  %v6327 = vpop.f32.mrb[0].mxu0
  %v6328 = vadd.f32 0.0, %v6327
  %v6329 = vpop.f32.mrb[0].mxu0
  %v6330 = vadd.f32 0.0, %v6329
  %6331 = vmatprep.mubr.f32.mxu0 0.0
  %6332 = vmatmul.mubr.f32.gmra.mrb[0].mxu0 %v5780
  %v6333 = vpop.f32.mrb[0].mxu0
  %v6334 = vadd.f32 0.0, %v6333
  %v6335 = vpop.f32.mrb[0].mxu0
  %v6336 = vadd.f32 0.0, %v6335
  %6337 = vmatprep.mubr.f32.mxu0 0.0
  %6338 = vmatmul.mubr.f32.gmra.mrb[0].mxu0 %v5783
  %v6339 = vpop.f32.mrb[0].mxu0
  %v6340 = vadd.f32 0.0, %v6339
  %v6341 = vpop.f32.mrb[0].mxu0
  %v6342 = vadd.f32 0.0, %v6341
  %6343 = vmatprep.mubr.f32.mxu0 0.0
  %6344 = vmatmul.mubr.f32.gmra.mrb[0].mxu0 %v5786
  %v6345 = vpop.f32.mrb[0].mxu0
  %v6346 = vadd.f32 0.0, %v6345
  %v6347 = vpop.f32.mrb[0].mxu0
  %v6348 = vadd.f32 0.0, %v6347
  %6349 = vmatprep.mubr.f32.mxu0 0.0
  %6350 = vmatmul.mubr.f32.gmra.mrb[0].mxu0 %v5789
  %v6351 = vpop.f32.mrb[0].mxu0
  %v6352 = vadd.f32 0.0, %v6351
  %v6353 = vpop.f32.mrb[0].mxu0
  %v6354 = vadd.f32 0.0, %v6353
  %6355 = vdwg.mxu0
  %6356 = vmatprep.subr.mxu0 %v5513
  %6357 = vmatpush1.msra.mxu0 %v5512
  %6358 = vmatprep.subr.mxu0 %v5577
  %6359 = vmatpush1.msra.mxu0 %v5576
  %6360 = vmatprep.subr.mxu0 %v5641
  %6361 = vmatpush1.msra.mxu0 %v5640
  %6362 = vmatprep.subr.mxu0 %v5705
  %6363 = vmatpush1.msra.mxu0 %v5704
  %6364 = vmatprep.subr.mxu0 0.0
  %6365 = vmatpush1.msra.mxu0 0.0
  %6366 = vmatprep.subr.mxu0 0.0
  %6367 = vmatpush1.msra.mxu0 0.0
  %6368 = vmatprep.subr.mxu0 0.0
  %6369 = vmatpush1.msra.mxu0 0.0
  %6370 = vmatprep.subr.mxu0 0.0
  %6371 = vmatpush1.msra.mxu0 0.0
  %6372 = vmatprep.subr.mxu0 0.0
  %6373 = vmatpush1.msra.mxu0 0.0
  %6374 = vmatprep.subr.mxu0 0.0
  %6375 = vmatpush1.msra.mxu0 0.0
  %6376 = vmatprep.subr.mxu0 0.0
  %6377 = vmatpush1.msra.mxu0 0.0
  %6378 = vmatprep.subr.mxu0 0.0
  %6379 = vmatpush1.msra.mxu0 0.0
  %6380 = vmatprep.subr.mxu0 0.0
  %6381 = vmatpush1.msra.mxu0 0.0
  %6382 = vmatprep.subr.mxu0 0.0
  %6383 = vmatpush1.msra.mxu0 0.0
  %6384 = vmatprep.subr.mxu0 0.0
  %6385 = vmatpush1.msra.mxu0 0.0
  %6386 = vmatprep.subr.mxu0 0.0
  %6387 = vmatpush1.msra.mxu0 0.0
  %6388 = vmatprep.subr.mxu0 0.0
  %6389 = vmatpush1.msra.mxu0 0.0
  %6390 = vmatprep.subr.mxu0 0.0
  %6391 = vmatpush1.msra.mxu0 0.0
  %6392 = vmatprep.subr.mxu0 0.0
  %6393 = vmatpush1.msra.mxu0 0.0
  %6394 = vmatprep.subr.mxu0 0.0
  %6395 = vmatpush1.msra.mxu0 0.0
  %6396 = vmatprep.subr.mxu0 0.0
  %6397 = vmatpush1.msra.mxu0 0.0
  %6398 = vmatprep.subr.mxu0 0.0
  %6399 = vmatpush1.msra.mxu0 0.0
  %6400 = vmatprep.subr.mxu0 0.0
  %6401 = vmatpush1.msra.mxu0 0.0
  %6402 = vmatprep.subr.mxu0 0.0
  %6403 = vmatpush1.msra.mxu0 0.0
  %6404 = vmatprep.subr.mxu0 0.0
  %6405 = vmatpush1.msra.mxu0 0.0
  %6406 = vmatprep.subr.mxu0 0.0
  %6407 = vmatpush1.msra.mxu0 0.0
  %6408 = vmatprep.subr.mxu0 0.0
  %6409 = vmatpush1.msra.mxu0 0.0
  %6410 = vmatprep.subr.mxu0 0.0
  %6411 = vmatpush1.msra.mxu0 0.0
  %6412 = vmatprep.subr.mxu0 0.0
  %6413 = vmatpush1.msra.mxu0 0.0
  %6414 = vmatprep.subr.mxu0 0.0
  %6415 = vmatpush1.msra.mxu0 0.0
  %6416 = vmatprep.subr.mxu0 0.0
  %6417 = vmatpush1.msra.mxu0 0.0
  %6418 = vmatprep.subr.mxu0 0.0
  %6419 = vmatpush1.msra.mxu0 0.0
  %6420 = vmatprep.mubr.f32.mxu0 0.0
  %6421 = vmatmul.mubr.f32.gmra.mrb[0].mxu0 %v5768
  %v6422 = vpop.f32.mrb[0].mxu0
  %v6423 = vadd.f32 0.0, %v6422
  %v6424 = vpop.f32.mrb[0].mxu0
  %v6425 = vadd.f32 0.0, %v6424
  %6426 = vmatprep.mubr.f32.mxu0 0.0
  %6427 = vmatmul.mubr.f32.gmra.mrb[0].mxu0 %v5771
  %v6428 = vpop.f32.mrb[0].mxu0
  %v6429 = vadd.f32 0.0, %v6428
  %v6430 = vpop.f32.mrb[0].mxu0
  %v6431 = vadd.f32 0.0, %v6430
  %6432 = vmatprep.mubr.f32.mxu0 0.0
  %6433 = vmatmul.mubr.f32.gmra.mrb[0].mxu0 %v5774
  %v6434 = vpop.f32.mrb[0].mxu0
  %v6435 = vadd.f32 0.0, %v6434
  %v6436 = vpop.f32.mrb[0].mxu0
  %v6437 = vadd.f32 0.0, %v6436
  %6438 = vmatprep.mubr.f32.mxu0 0.0
  %6439 = vmatmul.mubr.f32.gmra.mrb[0].mxu0 %v5777
  %v6440 = vpop.f32.mrb[0].mxu0
  %v6441 = vadd.f32 0.0, %v6440
  %v6442 = vpop.f32.mrb[0].mxu0
  %v6443 = vadd.f32 0.0, %v6442
  %6444 = vmatprep.mubr.f32.mxu0 0.0
  %6445 = vmatmul.mubr.f32.gmra.mrb[0].mxu0 %v5780
  %v6446 = vpop.f32.mrb[0].mxu0
  %v6447 = vadd.f32 0.0, %v6446
  %v6448 = vpop.f32.mrb[0].mxu0
  %v6449 = vadd.f32 0.0, %v6448
  %6450 = vmatprep.mubr.f32.mxu0 0.0
  %6451 = vmatmul.mubr.f32.gmra.mrb[0].mxu0 %v5783
  %v6452 = vpop.f32.mrb[0].mxu0
  %v6453 = vadd.f32 0.0, %v6452
  %v6454 = vpop.f32.mrb[0].mxu0
  %v6455 = vadd.f32 0.0, %v6454
  %6456 = vmatprep.mubr.f32.mxu0 0.0
  %6457 = vmatmul.mubr.f32.gmra.mrb[0].mxu0 %v5786
  %v6458 = vpop.f32.mrb[0].mxu0
  %v6459 = vadd.f32 0.0, %v6458
  %v6460 = vpop.f32.mrb[0].mxu0
  %v6461 = vadd.f32 0.0, %v6460
  %6462 = vmatprep.mubr.f32.mxu0 0.0
  %6463 = vmatmul.mubr.f32.gmra.mrb[0].mxu0 %v5789
  %v6464 = vpop.f32.mrb[0].mxu0
  %v6465 = vadd.f32 0.0, %v6464
  %v6466 = vpop.f32.mrb[0].mxu0
  %v6467 = vadd.f32 0.0, %v6466
  %6468 = vdwg.mxu0
  %6469 = vmatprep.subr.mxu0 %v5515
  %6470 = vmatpush1.msra.mxu0 %v5514
  %6471 = vmatprep.subr.mxu0 %v5579
  %6472 = vmatpush1.msra.mxu0 %v5578
  %6473 = vmatprep.subr.mxu0 %v5643
  %6474 = vmatpush1.msra.mxu0 %v5642
  %6475 = vmatprep.subr.mxu0 %v5707
  %6476 = vmatpush1.msra.mxu0 %v5706
  %6477 = vmatprep.subr.mxu0 0.0
  %6478 = vmatpush1.msra.mxu0 0.0
  %6479 = vmatprep.subr.mxu0 0.0
  %6480 = vmatpush1.msra.mxu0 0.0
  %6481 = vmatprep.subr.mxu0 0.0
  %6482 = vmatpush1.msra.mxu0 0.0
  %6483 = vmatprep.subr.mxu0 0.0
  %6484 = vmatpush1.msra.mxu0 0.0
  %6485 = vmatprep.subr.mxu0 0.0
  %6486 = vmatpush1.msra.mxu0 0.0
  %6487 = vmatprep.subr.mxu0 0.0
  %6488 = vmatpush1.msra.mxu0 0.0
  %6489 = vmatprep.subr.mxu0 0.0
  %6490 = vmatpush1.msra.mxu0 0.0
  %6491 = vmatprep.subr.mxu0 0.0
  %6492 = vmatpush1.msra.mxu0 0.0
  %6493 = vmatprep.subr.mxu0 0.0
  %6494 = vmatpush1.msra.mxu0 0.0
  %6495 = vmatprep.subr.mxu0 0.0
  %6496 = vmatpush1.msra.mxu0 0.0
  %6497 = vmatprep.subr.mxu0 0.0
  %6498 = vmatpush1.msra.mxu0 0.0
  %6499 = vmatprep.subr.mxu0 0.0
  %6500 = vmatpush1.msra.mxu0 0.0
  %6501 = vmatprep.subr.mxu0 0.0
  %6502 = vmatpush1.msra.mxu0 0.0
  %6503 = vmatprep.subr.mxu0 0.0
  %6504 = vmatpush1.msra.mxu0 0.0
  %6505 = vmatprep.subr.mxu0 0.0
  %6506 = vmatpush1.msra.mxu0 0.0
  %6507 = vmatprep.subr.mxu0 0.0
  %6508 = vmatpush1.msra.mxu0 0.0
  %6509 = vmatprep.subr.mxu0 0.0
  %6510 = vmatpush1.msra.mxu0 0.0
  %6511 = vmatprep.subr.mxu0 0.0
  %6512 = vmatpush1.msra.mxu0 0.0
  %6513 = vmatprep.subr.mxu0 0.0
  %6514 = vmatpush1.msra.mxu0 0.0
  %6515 = vmatprep.subr.mxu0 0.0
  %6516 = vmatpush1.msra.mxu0 0.0
  %6517 = vmatprep.subr.mxu0 0.0
  %6518 = vmatpush1.msra.mxu0 0.0
  %6519 = vmatprep.subr.mxu0 0.0
  %6520 = vmatpush1.msra.mxu0 0.0
  %6521 = vmatprep.subr.mxu0 0.0
  %6522 = vmatpush1.msra.mxu0 0.0
  %6523 = vmatprep.subr.mxu0 0.0
  %6524 = vmatpush1.msra.mxu0 0.0
  %6525 = vmatprep.subr.mxu0 0.0
  %6526 = vmatpush1.msra.mxu0 0.0
  %6527 = vmatprep.subr.mxu0 0.0
  %6528 = vmatpush1.msra.mxu0 0.0
  %6529 = vmatprep.subr.mxu0 0.0
  %6530 = vmatpush1.msra.mxu0 0.0
  %6531 = vmatprep.subr.mxu0 0.0
  %6532 = vmatpush1.msra.mxu0 0.0
  %6533 = vmatprep.mubr.f32.mxu0 0.0
  %6534 = vmatmul.mubr.f32.gmra.mrb[0].mxu0 %v5768
  %v6535 = vpop.f32.mrb[0].mxu0
  %v6536 = vadd.f32 0.0, %v6535
  %v6537 = vpop.f32.mrb[0].mxu0
  %v6538 = vadd.f32 0.0, %v6537
  %6539 = vmatprep.mubr.f32.mxu0 0.0
  %6540 = vmatmul.mubr.f32.gmra.mrb[0].mxu0 %v5771
  %v6541 = vpop.f32.mrb[0].mxu0
  %v6542 = vadd.f32 0.0, %v6541
  %v6543 = vpop.f32.mrb[0].mxu0
  %v6544 = vadd.f32 0.0, %v6543
  %6545 = vmatprep.mubr.f32.mxu0 0.0
  %6546 = vmatmul.mubr.f32.gmra.mrb[0].mxu0 %v5774
  %v6547 = vpop.f32.mrb[0].mxu0
  %v6548 = vadd.f32 0.0, %v6547
  %v6549 = vpop.f32.mrb[0].mxu0
  %v6550 = vadd.f32 0.0, %v6549
  %6551 = vmatprep.mubr.f32.mxu0 0.0
  %6552 = vmatmul.mubr.f32.gmra.mrb[0].mxu0 %v5777
  %v6553 = vpop.f32.mrb[0].mxu0
  %v6554 = vadd.f32 0.0, %v6553
  %v6555 = vpop.f32.mrb[0].mxu0
  %v6556 = vadd.f32 0.0, %v6555
  %6557 = vmatprep.mubr.f32.mxu0 0.0
  %6558 = vmatmul.mubr.f32.gmra.mrb[0].mxu0 %v5780
  %v6559 = vpop.f32.mrb[0].mxu0
  %v6560 = vadd.f32 0.0, %v6559
  %v6561 = vpop.f32.mrb[0].mxu0
  %v6562 = vadd.f32 0.0, %v6561
  %6563 = vmatprep.mubr.f32.mxu0 0.0
  %6564 = vmatmul.mubr.f32.gmra.mrb[0].mxu0 %v5783
  %v6565 = vpop.f32.mrb[0].mxu0
  %v6566 = vadd.f32 0.0, %v6565
  %v6567 = vpop.f32.mrb[0].mxu0
  %v6568 = vadd.f32 0.0, %v6567
  %6569 = vmatprep.mubr.f32.mxu0 0.0
  %6570 = vmatmul.mubr.f32.gmra.mrb[0].mxu0 %v5786
  %v6571 = vpop.f32.mrb[0].mxu0
  %v6572 = vadd.f32 0.0, %v6571
  %v6573 = vpop.f32.mrb[0].mxu0
  %v6574 = vadd.f32 0.0, %v6573
  %6575 = vmatprep.mubr.f32.mxu0 0.0
  %6576 = vmatmul.mubr.f32.gmra.mrb[0].mxu0 %v5789
  %v6577 = vpop.f32.mrb[0].mxu0
  %v6578 = vadd.f32 0.0, %v6577
  %v6579 = vpop.f32.mrb[0].mxu0
  %v6580 = vadd.f32 0.0, %v6579
  %6581 = vdwg.mxu0
  %6582 = vmatprep.subr.mxu0 %v5517
  %6583 = vmatpush1.msra.mxu0 %v5516
  %6584 = vmatprep.subr.mxu0 %v5581
  %6585 = vmatpush1.msra.mxu0 %v5580
  %6586 = vmatprep.subr.mxu0 %v5645
  %6587 = vmatpush1.msra.mxu0 %v5644
  %6588 = vmatprep.subr.mxu0 %v5709
  %6589 = vmatpush1.msra.mxu0 %v5708
  %6590 = vmatprep.subr.mxu0 0.0
  %6591 = vmatpush1.msra.mxu0 0.0
  %6592 = vmatprep.subr.mxu0 0.0
  %6593 = vmatpush1.msra.mxu0 0.0
  %6594 = vmatprep.subr.mxu0 0.0
  %6595 = vmatpush1.msra.mxu0 0.0
  %6596 = vmatprep.subr.mxu0 0.0
  %6597 = vmatpush1.msra.mxu0 0.0
  %6598 = vmatprep.subr.mxu0 0.0
  %6599 = vmatpush1.msra.mxu0 0.0
  %6600 = vmatprep.subr.mxu0 0.0
  %6601 = vmatpush1.msra.mxu0 0.0
  %6602 = vmatprep.subr.mxu0 0.0
  %6603 = vmatpush1.msra.mxu0 0.0
  %6604 = vmatprep.subr.mxu0 0.0
  %6605 = vmatpush1.msra.mxu0 0.0
  %6606 = vmatprep.subr.mxu0 0.0
  %6607 = vmatpush1.msra.mxu0 0.0
  %6608 = vmatprep.subr.mxu0 0.0
  %6609 = vmatpush1.msra.mxu0 0.0
  %6610 = vmatprep.subr.mxu0 0.0
  %6611 = vmatpush1.msra.mxu0 0.0
  %6612 = vmatprep.subr.mxu0 0.0
  %6613 = vmatpush1.msra.mxu0 0.0
  %6614 = vmatprep.subr.mxu0 0.0
  %6615 = vmatpush1.msra.mxu0 0.0
  %6616 = vmatprep.subr.mxu0 0.0
  %6617 = vmatpush1.msra.mxu0 0.0
  %6618 = vmatprep.subr.mxu0 0.0
  %6619 = vmatpush1.msra.mxu0 0.0
  %6620 = vmatprep.subr.mxu0 0.0
  %6621 = vmatpush1.msra.mxu0 0.0
  %6622 = vmatprep.subr.mxu0 0.0
  %6623 = vmatpush1.msra.mxu0 0.0
  %6624 = vmatprep.subr.mxu0 0.0
  %6625 = vmatpush1.msra.mxu0 0.0
  %6626 = vmatprep.subr.mxu0 0.0
  %6627 = vmatpush1.msra.mxu0 0.0
  %6628 = vmatprep.subr.mxu0 0.0
  %6629 = vmatpush1.msra.mxu0 0.0
  %6630 = vmatprep.subr.mxu0 0.0
  %6631 = vmatpush1.msra.mxu0 0.0
  %6632 = vmatprep.subr.mxu0 0.0
  %6633 = vmatpush1.msra.mxu0 0.0
  %6634 = vmatprep.subr.mxu0 0.0
  %6635 = vmatpush1.msra.mxu0 0.0
  %6636 = vmatprep.subr.mxu0 0.0
  %6637 = vmatpush1.msra.mxu0 0.0
  %6638 = vmatprep.subr.mxu0 0.0
  %6639 = vmatpush1.msra.mxu0 0.0
  %6640 = vmatprep.subr.mxu0 0.0
  %6641 = vmatpush1.msra.mxu0 0.0
  %6642 = vmatprep.subr.mxu0 0.0
  %6643 = vmatpush1.msra.mxu0 0.0
  %6644 = vmatprep.subr.mxu0 0.0
  %6645 = vmatpush1.msra.mxu0 0.0
  %6646 = vmatprep.mubr.f32.mxu0 0.0
  %6647 = vmatmul.mubr.f32.gmra.mrb[0].mxu0 %v5768
  %v6648 = vpop.f32.mrb[0].mxu0
  %v6649 = vadd.f32 0.0, %v6648
  %v6650 = vpop.f32.mrb[0].mxu0
  %v6651 = vadd.f32 0.0, %v6650
  %6652 = vmatprep.mubr.f32.mxu0 0.0
  %6653 = vmatmul.mubr.f32.gmra.mrb[0].mxu0 %v5771
  %v6654 = vpop.f32.mrb[0].mxu0
  %v6655 = vadd.f32 0.0, %v6654
  %v6656 = vpop.f32.mrb[0].mxu0
  %v6657 = vadd.f32 0.0, %v6656
  %6658 = vmatprep.mubr.f32.mxu0 0.0
  %6659 = vmatmul.mubr.f32.gmra.mrb[0].mxu0 %v5774
  %v6660 = vpop.f32.mrb[0].mxu0
  %v6661 = vadd.f32 0.0, %v6660
  %v6662 = vpop.f32.mrb[0].mxu0
  %v6663 = vadd.f32 0.0, %v6662
  %6664 = vmatprep.mubr.f32.mxu0 0.0
  %6665 = vmatmul.mubr.f32.gmra.mrb[0].mxu0 %v5777
  %v6666 = vpop.f32.mrb[0].mxu0
  %v6667 = vadd.f32 0.0, %v6666
  %v6668 = vpop.f32.mrb[0].mxu0
  %v6669 = vadd.f32 0.0, %v6668
  %6670 = vmatprep.mubr.f32.mxu0 0.0
  %6671 = vmatmul.mubr.f32.gmra.mrb[0].mxu0 %v5780
  %v6672 = vpop.f32.mrb[0].mxu0
  %v6673 = vadd.f32 0.0, %v6672
  %v6674 = vpop.f32.mrb[0].mxu0
  %v6675 = vadd.f32 0.0, %v6674
  %6676 = vmatprep.mubr.f32.mxu0 0.0
  %6677 = vmatmul.mubr.f32.gmra.mrb[0].mxu0 %v5783
  %v6678 = vpop.f32.mrb[0].mxu0
  %v6679 = vadd.f32 0.0, %v6678
  %v6680 = vpop.f32.mrb[0].mxu0
  %v6681 = vadd.f32 0.0, %v6680
  %6682 = vmatprep.mubr.f32.mxu0 0.0
  %6683 = vmatmul.mubr.f32.gmra.mrb[0].mxu0 %v5786
  %v6684 = vpop.f32.mrb[0].mxu0
  %v6685 = vadd.f32 0.0, %v6684
  %v6686 = vpop.f32.mrb[0].mxu0
  %v6687 = vadd.f32 0.0, %v6686
  %6688 = vmatprep.mubr.f32.mxu0 0.0
  %6689 = vmatmul.mubr.f32.gmra.mrb[0].mxu0 %v5789
  %v6690 = vpop.f32.mrb[0].mxu0
  %v6691 = vadd.f32 0.0, %v6690
  %v6692 = vpop.f32.mrb[0].mxu0
  %v6693 = vadd.f32 0.0, %v6692
  %6694 = vdwg.mxu0
  %6695 = vmatprep.subr.mxu0 %v5519
  %6696 = vmatpush1.msra.mxu0 %v5518
  %6697 = vmatprep.subr.mxu0 %v5583
  %6698 = vmatpush1.msra.mxu0 %v5582
  %6699 = vmatprep.subr.mxu0 %v5647
  %6700 = vmatpush1.msra.mxu0 %v5646
  %6701 = vmatprep.subr.mxu0 %v5711
  %6702 = vmatpush1.msra.mxu0 %v5710
  %6703 = vmatprep.subr.mxu0 0.0
  %6704 = vmatpush1.msra.mxu0 0.0
  %6705 = vmatprep.subr.mxu0 0.0
  %6706 = vmatpush1.msra.mxu0 0.0
  %6707 = vmatprep.subr.mxu0 0.0
  %6708 = vmatpush1.msra.mxu0 0.0
  %6709 = vmatprep.subr.mxu0 0.0
  %6710 = vmatpush1.msra.mxu0 0.0
  %6711 = vmatprep.subr.mxu0 0.0
  %6712 = vmatpush1.msra.mxu0 0.0
  %6713 = vmatprep.subr.mxu0 0.0
  %6714 = vmatpush1.msra.mxu0 0.0
  %6715 = vmatprep.subr.mxu0 0.0
  %6716 = vmatpush1.msra.mxu0 0.0
  %6717 = vmatprep.subr.mxu0 0.0
  %6718 = vmatpush1.msra.mxu0 0.0
  %6719 = vmatprep.subr.mxu0 0.0
  %6720 = vmatpush1.msra.mxu0 0.0
  %6721 = vmatprep.subr.mxu0 0.0
  %6722 = vmatpush1.msra.mxu0 0.0
  %6723 = vmatprep.subr.mxu0 0.0
  %6724 = vmatpush1.msra.mxu0 0.0
  %6725 = vmatprep.subr.mxu0 0.0
  %6726 = vmatpush1.msra.mxu0 0.0
  %6727 = vmatprep.subr.mxu0 0.0
  %6728 = vmatpush1.msra.mxu0 0.0
  %6729 = vmatprep.subr.mxu0 0.0
  %6730 = vmatpush1.msra.mxu0 0.0
  %6731 = vmatprep.subr.mxu0 0.0
  %6732 = vmatpush1.msra.mxu0 0.0
  %6733 = vmatprep.subr.mxu0 0.0
  %6734 = vmatpush1.msra.mxu0 0.0
  %6735 = vmatprep.subr.mxu0 0.0
  %6736 = vmatpush1.msra.mxu0 0.0
  %6737 = vmatprep.subr.mxu0 0.0
  %6738 = vmatpush1.msra.mxu0 0.0
  %6739 = vmatprep.subr.mxu0 0.0
  %6740 = vmatpush1.msra.mxu0 0.0
  %6741 = vmatprep.subr.mxu0 0.0
  %6742 = vmatpush1.msra.mxu0 0.0
  %6743 = vmatprep.subr.mxu0 0.0
  %6744 = vmatpush1.msra.mxu0 0.0
  %6745 = vmatprep.subr.mxu0 0.0
  %6746 = vmatpush1.msra.mxu0 0.0
  %6747 = vmatprep.subr.mxu0 0.0
  %6748 = vmatpush1.msra.mxu0 0.0
  %6749 = vmatprep.subr.mxu0 0.0
  %6750 = vmatpush1.msra.mxu0 0.0
  %6751 = vmatprep.subr.mxu0 0.0
  %6752 = vmatpush1.msra.mxu0 0.0
  %6753 = vmatprep.subr.mxu0 0.0
  %6754 = vmatpush1.msra.mxu0 0.0
  %6755 = vmatprep.subr.mxu0 0.0
  %6756 = vmatpush1.msra.mxu0 0.0
  %6757 = vmatprep.subr.mxu0 0.0
  %6758 = vmatpush1.msra.mxu0 0.0
  %6759 = vmatprep.mubr.f32.mxu0 0.0
  %6760 = vmatmul.mubr.f32.gmra.mrb[0].mxu0 %v5768
  %v6761 = vpop.f32.mrb[0].mxu0
  %v6762 = vadd.f32 0.0, %v6761
  %v6763 = vpop.f32.mrb[0].mxu0
  %v6764 = vadd.f32 0.0, %v6763
  %6765 = vmatprep.mubr.f32.mxu0 0.0
  %6766 = vmatmul.mubr.f32.gmra.mrb[0].mxu0 %v5771
  %v6767 = vpop.f32.mrb[0].mxu0
  %v6768 = vadd.f32 0.0, %v6767
  %v6769 = vpop.f32.mrb[0].mxu0
  %v6770 = vadd.f32 0.0, %v6769
  %6771 = vmatprep.mubr.f32.mxu0 0.0
  %6772 = vmatmul.mubr.f32.gmra.mrb[0].mxu0 %v5774
  %v6773 = vpop.f32.mrb[0].mxu0
  %v6774 = vadd.f32 0.0, %v6773
  %v6775 = vpop.f32.mrb[0].mxu0
  %v6776 = vadd.f32 0.0, %v6775
  %6777 = vmatprep.mubr.f32.mxu0 0.0
  %6778 = vmatmul.mubr.f32.gmra.mrb[0].mxu0 %v5777
  %v6779 = vpop.f32.mrb[0].mxu0
  %v6780 = vadd.f32 0.0, %v6779
  %v6781 = vpop.f32.mrb[0].mxu0
  %v6782 = vadd.f32 0.0, %v6781
  %6783 = vmatprep.mubr.f32.mxu0 0.0
  %6784 = vmatmul.mubr.f32.gmra.mrb[0].mxu0 %v5780
  %v6785 = vpop.f32.mrb[0].mxu0
  %v6786 = vadd.f32 0.0, %v6785
  %v6787 = vpop.f32.mrb[0].mxu0
  %v6788 = vadd.f32 0.0, %v6787
  %6789 = vmatprep.mubr.f32.mxu0 0.0
  %6790 = vmatmul.mubr.f32.gmra.mrb[0].mxu0 %v5783
  %v6791 = vpop.f32.mrb[0].mxu0
  %v6792 = vadd.f32 0.0, %v6791
  %v6793 = vpop.f32.mrb[0].mxu0
  %v6794 = vadd.f32 0.0, %v6793
  %6795 = vmatprep.mubr.f32.mxu0 0.0
  %6796 = vmatmul.mubr.f32.gmra.mrb[0].mxu0 %v5786
  %v6797 = vpop.f32.mrb[0].mxu0
  %v6798 = vadd.f32 0.0, %v6797
  %v6799 = vpop.f32.mrb[0].mxu0
  %v6800 = vadd.f32 0.0, %v6799
  %6801 = vmatprep.mubr.f32.mxu0 0.0
  %6802 = vmatmul.mubr.f32.gmra.mrb[0].mxu0 %v5789
  %v6803 = vpop.f32.mrb[0].mxu0
  %v6804 = vadd.f32 0.0, %v6803
  %v6805 = vpop.f32.mrb[0].mxu0
  %v6806 = vadd.f32 0.0, %v6805
  %6807 = vdwg.mxu0
  %6808 = vmatprep.subr.mxu0 %v5521
  %6809 = vmatpush1.msra.mxu0 %v5520
  %6810 = vmatprep.subr.mxu0 %v5585
  %6811 = vmatpush1.msra.mxu0 %v5584
  %6812 = vmatprep.subr.mxu0 %v5649
  %6813 = vmatpush1.msra.mxu0 %v5648
  %6814 = vmatprep.subr.mxu0 %v5713
  %6815 = vmatpush1.msra.mxu0 %v5712
  %6816 = vmatprep.subr.mxu0 0.0
  %6817 = vmatpush1.msra.mxu0 0.0
  %6818 = vmatprep.subr.mxu0 0.0
  %6819 = vmatpush1.msra.mxu0 0.0
  %6820 = vmatprep.subr.mxu0 0.0
  %6821 = vmatpush1.msra.mxu0 0.0
  %6822 = vmatprep.subr.mxu0 0.0
  %6823 = vmatpush1.msra.mxu0 0.0
  %6824 = vmatprep.subr.mxu0 0.0
  %6825 = vmatpush1.msra.mxu0 0.0
  %6826 = vmatprep.subr.mxu0 0.0
  %6827 = vmatpush1.msra.mxu0 0.0
  %6828 = vmatprep.subr.mxu0 0.0
  %6829 = vmatpush1.msra.mxu0 0.0
  %6830 = vmatprep.subr.mxu0 0.0
  %6831 = vmatpush1.msra.mxu0 0.0
  %6832 = vmatprep.subr.mxu0 0.0
  %6833 = vmatpush1.msra.mxu0 0.0
  %6834 = vmatprep.subr.mxu0 0.0
  %6835 = vmatpush1.msra.mxu0 0.0
  %6836 = vmatprep.subr.mxu0 0.0
  %6837 = vmatpush1.msra.mxu0 0.0
  %6838 = vmatprep.subr.mxu0 0.0
  %6839 = vmatpush1.msra.mxu0 0.0
  %6840 = vmatprep.subr.mxu0 0.0
  %6841 = vmatpush1.msra.mxu0 0.0
  %6842 = vmatprep.subr.mxu0 0.0
  %6843 = vmatpush1.msra.mxu0 0.0
  %6844 = vmatprep.subr.mxu0 0.0
  %6845 = vmatpush1.msra.mxu0 0.0
  %6846 = vmatprep.subr.mxu0 0.0
  %6847 = vmatpush1.msra.mxu0 0.0
  %6848 = vmatprep.subr.mxu0 0.0
  %6849 = vmatpush1.msra.mxu0 0.0
  %6850 = vmatprep.subr.mxu0 0.0
  %6851 = vmatpush1.msra.mxu0 0.0
  %6852 = vmatprep.subr.mxu0 0.0
  %6853 = vmatpush1.msra.mxu0 0.0
  %6854 = vmatprep.subr.mxu0 0.0
  %6855 = vmatpush1.msra.mxu0 0.0
  %6856 = vmatprep.subr.mxu0 0.0
  %6857 = vmatpush1.msra.mxu0 0.0
  %6858 = vmatprep.subr.mxu0 0.0
  %6859 = vmatpush1.msra.mxu0 0.0
  %6860 = vmatprep.subr.mxu0 0.0
  %6861 = vmatpush1.msra.mxu0 0.0
  %6862 = vmatprep.subr.mxu0 0.0
  %6863 = vmatpush1.msra.mxu0 0.0
  %6864 = vmatprep.subr.mxu0 0.0
  %6865 = vmatpush1.msra.mxu0 0.0
  %6866 = vmatprep.subr.mxu0 0.0
  %6867 = vmatpush1.msra.mxu0 0.0
  %6868 = vmatprep.subr.mxu0 0.0
  %6869 = vmatpush1.msra.mxu0 0.0
  %6870 = vmatprep.subr.mxu0 0.0
  %6871 = vmatpush1.msra.mxu0 0.0
  %6872 = vmatprep.mubr.f32.mxu0 0.0
  %6873 = vmatmul.mubr.f32.gmra.mrb[0].mxu0 %v5768
  %v6874 = vpop.f32.mrb[0].mxu0
  %v6875 = vadd.f32 0.0, %v6874
  %v6876 = vpop.f32.mrb[0].mxu0
  %v6877 = vadd.f32 0.0, %v6876
  %6878 = vmatprep.mubr.f32.mxu0 0.0
  %6879 = vmatmul.mubr.f32.gmra.mrb[0].mxu0 %v5771
  %v6880 = vpop.f32.mrb[0].mxu0
  %v6881 = vadd.f32 0.0, %v6880
  %v6882 = vpop.f32.mrb[0].mxu0
  %v6883 = vadd.f32 0.0, %v6882
  %6884 = vmatprep.mubr.f32.mxu0 0.0
  %6885 = vmatmul.mubr.f32.gmra.mrb[0].mxu0 %v5774
  %v6886 = vpop.f32.mrb[0].mxu0
  %v6887 = vadd.f32 0.0, %v6886
  %v6888 = vpop.f32.mrb[0].mxu0
  %v6889 = vadd.f32 0.0, %v6888
  %6890 = vmatprep.mubr.f32.mxu0 0.0
  %6891 = vmatmul.mubr.f32.gmra.mrb[0].mxu0 %v5777
  %v6892 = vpop.f32.mrb[0].mxu0
  %v6893 = vadd.f32 0.0, %v6892
  %v6894 = vpop.f32.mrb[0].mxu0
  %v6895 = vadd.f32 0.0, %v6894
  %6896 = vmatprep.mubr.f32.mxu0 0.0
  %6897 = vmatmul.mubr.f32.gmra.mrb[0].mxu0 %v5780
  %v6898 = vpop.f32.mrb[0].mxu0
  %v6899 = vadd.f32 0.0, %v6898
  %v6900 = vpop.f32.mrb[0].mxu0
  %v6901 = vadd.f32 0.0, %v6900
  %6902 = vmatprep.mubr.f32.mxu0 0.0
  %6903 = vmatmul.mubr.f32.gmra.mrb[0].mxu0 %v5783
  %v6904 = vpop.f32.mrb[0].mxu0
  %v6905 = vadd.f32 0.0, %v6904
  %v6906 = vpop.f32.mrb[0].mxu0
  %v6907 = vadd.f32 0.0, %v6906
  %6908 = vmatprep.mubr.f32.mxu0 0.0
  %6909 = vmatmul.mubr.f32.gmra.mrb[0].mxu0 %v5786
  %v6910 = vpop.f32.mrb[0].mxu0
  %v6911 = vadd.f32 0.0, %v6910
  %v6912 = vpop.f32.mrb[0].mxu0
  %v6913 = vadd.f32 0.0, %v6912
  %6914 = vmatprep.mubr.f32.mxu0 0.0
  %6915 = vmatmul.mubr.f32.gmra.mrb[0].mxu0 %v5789
  %v6916 = vpop.f32.mrb[0].mxu0
  %v6917 = vadd.f32 0.0, %v6916
  %v6918 = vpop.f32.mrb[0].mxu0
  %v6919 = vadd.f32 0.0, %v6918
  %6920 = vdwg.mxu0
  %6921 = vmatprep.subr.mxu0 %v5523
  %6922 = vmatpush1.msra.mxu0 %v5522
  %6923 = vmatprep.subr.mxu0 %v5587
  %6924 = vmatpush1.msra.mxu0 %v5586
  %6925 = vmatprep.subr.mxu0 %v5651
  %6926 = vmatpush1.msra.mxu0 %v5650
  %6927 = vmatprep.subr.mxu0 %v5715
  %6928 = vmatpush1.msra.mxu0 %v5714
  %6929 = vmatprep.subr.mxu0 0.0
  %6930 = vmatpush1.msra.mxu0 0.0
  %6931 = vmatprep.subr.mxu0 0.0
  %6932 = vmatpush1.msra.mxu0 0.0
  %6933 = vmatprep.subr.mxu0 0.0
  %6934 = vmatpush1.msra.mxu0 0.0
  %6935 = vmatprep.subr.mxu0 0.0
  %6936 = vmatpush1.msra.mxu0 0.0
  %6937 = vmatprep.subr.mxu0 0.0
  %6938 = vmatpush1.msra.mxu0 0.0
  %6939 = vmatprep.subr.mxu0 0.0
  %6940 = vmatpush1.msra.mxu0 0.0
  %6941 = vmatprep.subr.mxu0 0.0
  %6942 = vmatpush1.msra.mxu0 0.0
  %6943 = vmatprep.subr.mxu0 0.0
  %6944 = vmatpush1.msra.mxu0 0.0
  %6945 = vmatprep.subr.mxu0 0.0
  %6946 = vmatpush1.msra.mxu0 0.0
  %6947 = vmatprep.subr.mxu0 0.0
  %6948 = vmatpush1.msra.mxu0 0.0
  %6949 = vmatprep.subr.mxu0 0.0
  %6950 = vmatpush1.msra.mxu0 0.0
  %6951 = vmatprep.subr.mxu0 0.0
  %6952 = vmatpush1.msra.mxu0 0.0
  %6953 = vmatprep.subr.mxu0 0.0
  %6954 = vmatpush1.msra.mxu0 0.0
  %6955 = vmatprep.subr.mxu0 0.0
  %6956 = vmatpush1.msra.mxu0 0.0
  %6957 = vmatprep.subr.mxu0 0.0
  %6958 = vmatpush1.msra.mxu0 0.0
  %6959 = vmatprep.subr.mxu0 0.0
  %6960 = vmatpush1.msra.mxu0 0.0
  %6961 = vmatprep.subr.mxu0 0.0
  %6962 = vmatpush1.msra.mxu0 0.0
  %6963 = vmatprep.subr.mxu0 0.0
  %6964 = vmatpush1.msra.mxu0 0.0
  %6965 = vmatprep.subr.mxu0 0.0
  %6966 = vmatpush1.msra.mxu0 0.0
  %6967 = vmatprep.subr.mxu0 0.0
  %6968 = vmatpush1.msra.mxu0 0.0
  %6969 = vmatprep.subr.mxu0 0.0
  %6970 = vmatpush1.msra.mxu0 0.0
  %6971 = vmatprep.subr.mxu0 0.0
  %6972 = vmatpush1.msra.mxu0 0.0
  %6973 = vmatprep.subr.mxu0 0.0
  %6974 = vmatpush1.msra.mxu0 0.0
  %6975 = vmatprep.subr.mxu0 0.0
  %6976 = vmatpush1.msra.mxu0 0.0
  %6977 = vmatprep.subr.mxu0 0.0
  %6978 = vmatpush1.msra.mxu0 0.0
  %6979 = vmatprep.subr.mxu0 0.0
  %6980 = vmatpush1.msra.mxu0 0.0
  %6981 = vmatprep.subr.mxu0 0.0
  %6982 = vmatpush1.msra.mxu0 0.0
  %6983 = vmatprep.subr.mxu0 0.0
  %6984 = vmatpush1.msra.mxu0 0.0
  %6985 = vmatprep.mubr.f32.mxu0 0.0
  %6986 = vmatmul.mubr.f32.gmra.mrb[0].mxu0 %v5768
  %v6987 = vpop.f32.mrb[0].mxu0
  %v6988 = vadd.f32 0.0, %v6987
  %v6989 = vpop.f32.mrb[0].mxu0
  %v6990 = vadd.f32 0.0, %v6989
  %6991 = vmatprep.mubr.f32.mxu0 0.0
  %6992 = vmatmul.mubr.f32.gmra.mrb[0].mxu0 %v5771
  %v6993 = vpop.f32.mrb[0].mxu0
  %v6994 = vadd.f32 0.0, %v6993
  %v6995 = vpop.f32.mrb[0].mxu0
  %v6996 = vadd.f32 0.0, %v6995
  %6997 = vmatprep.mubr.f32.mxu0 0.0
  %6998 = vmatmul.mubr.f32.gmra.mrb[0].mxu0 %v5774
  %v6999 = vpop.f32.mrb[0].mxu0
  %v7000 = vadd.f32 0.0, %v6999
  %v7001 = vpop.f32.mrb[0].mxu0
  %v7002 = vadd.f32 0.0, %v7001
  %7003 = vmatprep.mubr.f32.mxu0 0.0
  %7004 = vmatmul.mubr.f32.gmra.mrb[0].mxu0 %v5777
  %v7005 = vpop.f32.mrb[0].mxu0
  %v7006 = vadd.f32 0.0, %v7005
  %v7007 = vpop.f32.mrb[0].mxu0
  %v7008 = vadd.f32 0.0, %v7007
  %7009 = vmatprep.mubr.f32.mxu0 0.0
  %7010 = vmatmul.mubr.f32.gmra.mrb[0].mxu0 %v5780
  %v7011 = vpop.f32.mrb[0].mxu0
  %v7012 = vadd.f32 0.0, %v7011
  %v7013 = vpop.f32.mrb[0].mxu0
  %v7014 = vadd.f32 0.0, %v7013
  %7015 = vmatprep.mubr.f32.mxu0 0.0
  %7016 = vmatmul.mubr.f32.gmra.mrb[0].mxu0 %v5783
  %v7017 = vpop.f32.mrb[0].mxu0
  %v7018 = vadd.f32 0.0, %v7017
  %v7019 = vpop.f32.mrb[0].mxu0
  %v7020 = vadd.f32 0.0, %v7019
  %7021 = vmatprep.mubr.f32.mxu0 0.0
  %7022 = vmatmul.mubr.f32.gmra.mrb[0].mxu0 %v5786
  %v7023 = vpop.f32.mrb[0].mxu0
  %v7024 = vadd.f32 0.0, %v7023
  %v7025 = vpop.f32.mrb[0].mxu0
  %v7026 = vadd.f32 0.0, %v7025
  %7027 = vmatprep.mubr.f32.mxu0 0.0
  %7028 = vmatmul.mubr.f32.gmra.mrb[0].mxu0 %v5789
  %v7029 = vpop.f32.mrb[0].mxu0
  %v7030 = vadd.f32 0.0, %v7029
  %v7031 = vpop.f32.mrb[0].mxu0
  %v7032 = vadd.f32 0.0, %v7031
  %7033 = vdwg.mxu0
  %7034 = vmatprep.subr.mxu0 %v5525
  %7035 = vmatpush1.msra.mxu0 %v5524
  %7036 = vmatprep.subr.mxu0 %v5589
  %7037 = vmatpush1.msra.mxu0 %v5588
  %7038 = vmatprep.subr.mxu0 %v5653
  %7039 = vmatpush1.msra.mxu0 %v5652
  %7040 = vmatprep.subr.mxu0 %v5717
  %7041 = vmatpush1.msra.mxu0 %v5716
  %7042 = vmatprep.subr.mxu0 0.0
  %7043 = vmatpush1.msra.mxu0 0.0
  %7044 = vmatprep.subr.mxu0 0.0
  %7045 = vmatpush1.msra.mxu0 0.0
  %7046 = vmatprep.subr.mxu0 0.0
  %7047 = vmatpush1.msra.mxu0 0.0
  %7048 = vmatprep.subr.mxu0 0.0
  %7049 = vmatpush1.msra.mxu0 0.0
  %7050 = vmatprep.subr.mxu0 0.0
  %7051 = vmatpush1.msra.mxu0 0.0
  %7052 = vmatprep.subr.mxu0 0.0
  %7053 = vmatpush1.msra.mxu0 0.0
  %7054 = vmatprep.subr.mxu0 0.0
  %7055 = vmatpush1.msra.mxu0 0.0
  %7056 = vmatprep.subr.mxu0 0.0
  %7057 = vmatpush1.msra.mxu0 0.0
  %7058 = vmatprep.subr.mxu0 0.0
  %7059 = vmatpush1.msra.mxu0 0.0
  %7060 = vmatprep.subr.mxu0 0.0
  %7061 = vmatpush1.msra.mxu0 0.0
  %7062 = vmatprep.subr.mxu0 0.0
  %7063 = vmatpush1.msra.mxu0 0.0
  %7064 = vmatprep.subr.mxu0 0.0
  %7065 = vmatpush1.msra.mxu0 0.0
  %7066 = vmatprep.subr.mxu0 0.0
  %7067 = vmatpush1.msra.mxu0 0.0
  %7068 = vmatprep.subr.mxu0 0.0
  %7069 = vmatpush1.msra.mxu0 0.0
  %7070 = vmatprep.subr.mxu0 0.0
  %7071 = vmatpush1.msra.mxu0 0.0
  %7072 = vmatprep.subr.mxu0 0.0
  %7073 = vmatpush1.msra.mxu0 0.0
  %7074 = vmatprep.subr.mxu0 0.0
  %7075 = vmatpush1.msra.mxu0 0.0
  %7076 = vmatprep.subr.mxu0 0.0
  %7077 = vmatpush1.msra.mxu0 0.0
  %7078 = vmatprep.subr.mxu0 0.0
  %7079 = vmatpush1.msra.mxu0 0.0
  %7080 = vmatprep.subr.mxu0 0.0
  %7081 = vmatpush1.msra.mxu0 0.0
  %7082 = vmatprep.subr.mxu0 0.0
  %7083 = vmatpush1.msra.mxu0 0.0
  %7084 = vmatprep.subr.mxu0 0.0
  %7085 = vmatpush1.msra.mxu0 0.0
  %7086 = vmatprep.subr.mxu0 0.0
  %7087 = vmatpush1.msra.mxu0 0.0
  %7088 = vmatprep.subr.mxu0 0.0
  %7089 = vmatpush1.msra.mxu0 0.0
  %7090 = vmatprep.subr.mxu0 0.0
  %7091 = vmatpush1.msra.mxu0 0.0
  %7092 = vmatprep.subr.mxu0 0.0
  %7093 = vmatpush1.msra.mxu0 0.0
  %7094 = vmatprep.subr.mxu0 0.0
  %7095 = vmatpush1.msra.mxu0 0.0
  %7096 = vmatprep.subr.mxu0 0.0
  %7097 = vmatpush1.msra.mxu0 0.0
  %7098 = vmatprep.mubr.f32.mxu0 0.0
  %7099 = vmatmul.mubr.f32.gmra.mrb[0].mxu0 %v5768
  %v7100 = vpop.f32.mrb[0].mxu0
  %v7101 = vadd.f32 0.0, %v7100
  %v7102 = vpop.f32.mrb[0].mxu0
  %v7103 = vadd.f32 0.0, %v7102
  %7104 = vmatprep.mubr.f32.mxu0 0.0
  %7105 = vmatmul.mubr.f32.gmra.mrb[0].mxu0 %v5771
  %v7106 = vpop.f32.mrb[0].mxu0
  %v7107 = vadd.f32 0.0, %v7106
  %v7108 = vpop.f32.mrb[0].mxu0
  %v7109 = vadd.f32 0.0, %v7108
  %7110 = vmatprep.mubr.f32.mxu0 0.0
  %7111 = vmatmul.mubr.f32.gmra.mrb[0].mxu0 %v5774
  %v7112 = vpop.f32.mrb[0].mxu0
  %v7113 = vadd.f32 0.0, %v7112
  %v7114 = vpop.f32.mrb[0].mxu0
  %v7115 = vadd.f32 0.0, %v7114
  %7116 = vmatprep.mubr.f32.mxu0 0.0
  %7117 = vmatmul.mubr.f32.gmra.mrb[0].mxu0 %v5777
  %v7118 = vpop.f32.mrb[0].mxu0
  %v7119 = vadd.f32 0.0, %v7118
  %v7120 = vpop.f32.mrb[0].mxu0
  %v7121 = vadd.f32 0.0, %v7120
  %7122 = vmatprep.mubr.f32.mxu0 0.0
  %7123 = vmatmul.mubr.f32.gmra.mrb[0].mxu0 %v5780
  %v7124 = vpop.f32.mrb[0].mxu0
  %v7125 = vadd.f32 0.0, %v7124
  %v7126 = vpop.f32.mrb[0].mxu0
  %v7127 = vadd.f32 0.0, %v7126
  %7128 = vmatprep.mubr.f32.mxu0 0.0
  %7129 = vmatmul.mubr.f32.gmra.mrb[0].mxu0 %v5783
  %v7130 = vpop.f32.mrb[0].mxu0
  %v7131 = vadd.f32 0.0, %v7130
  %v7132 = vpop.f32.mrb[0].mxu0
  %v7133 = vadd.f32 0.0, %v7132
  %7134 = vmatprep.mubr.f32.mxu0 0.0
  %7135 = vmatmul.mubr.f32.gmra.mrb[0].mxu0 %v5786
  %v7136 = vpop.f32.mrb[0].mxu0
  %v7137 = vadd.f32 0.0, %v7136
  %v7138 = vpop.f32.mrb[0].mxu0
  %v7139 = vadd.f32 0.0, %v7138
  %7140 = vmatprep.mubr.f32.mxu0 0.0
  %7141 = vmatmul.mubr.f32.gmra.mrb[0].mxu0 %v5789
  %v7142 = vpop.f32.mrb[0].mxu0
  %v7143 = vadd.f32 0.0, %v7142
  %v7144 = vpop.f32.mrb[0].mxu0
  %v7145 = vadd.f32 0.0, %v7144
  %7146 = vdwg.mxu0
  %7147 = vmatprep.subr.mxu0 %v5527
  %7148 = vmatpush1.msra.mxu0 %v5526
  %7149 = vmatprep.subr.mxu0 %v5591
  %7150 = vmatpush1.msra.mxu0 %v5590
  %7151 = vmatprep.subr.mxu0 %v5655
  %7152 = vmatpush1.msra.mxu0 %v5654
  %7153 = vmatprep.subr.mxu0 %v5719
  %7154 = vmatpush1.msra.mxu0 %v5718
  %7155 = vmatprep.subr.mxu0 0.0
  %7156 = vmatpush1.msra.mxu0 0.0
  %7157 = vmatprep.subr.mxu0 0.0
  %7158 = vmatpush1.msra.mxu0 0.0
  %7159 = vmatprep.subr.mxu0 0.0
  %7160 = vmatpush1.msra.mxu0 0.0
  %7161 = vmatprep.subr.mxu0 0.0
  %7162 = vmatpush1.msra.mxu0 0.0
  %7163 = vmatprep.subr.mxu0 0.0
  %7164 = vmatpush1.msra.mxu0 0.0
  %7165 = vmatprep.subr.mxu0 0.0
  %7166 = vmatpush1.msra.mxu0 0.0
  %7167 = vmatprep.subr.mxu0 0.0
  %7168 = vmatpush1.msra.mxu0 0.0
  %7169 = vmatprep.subr.mxu0 0.0
  %7170 = vmatpush1.msra.mxu0 0.0
  %7171 = vmatprep.subr.mxu0 0.0
  %7172 = vmatpush1.msra.mxu0 0.0
  %7173 = vmatprep.subr.mxu0 0.0
  %7174 = vmatpush1.msra.mxu0 0.0
  %7175 = vmatprep.subr.mxu0 0.0
  %7176 = vmatpush1.msra.mxu0 0.0
  %7177 = vmatprep.subr.mxu0 0.0
  %7178 = vmatpush1.msra.mxu0 0.0
  %7179 = vmatprep.subr.mxu0 0.0
  %7180 = vmatpush1.msra.mxu0 0.0
  %7181 = vmatprep.subr.mxu0 0.0
  %7182 = vmatpush1.msra.mxu0 0.0
  %7183 = vmatprep.subr.mxu0 0.0
  %7184 = vmatpush1.msra.mxu0 0.0
  %7185 = vmatprep.subr.mxu0 0.0
  %7186 = vmatpush1.msra.mxu0 0.0
  %7187 = vmatprep.subr.mxu0 0.0
  %7188 = vmatpush1.msra.mxu0 0.0
  %7189 = vmatprep.subr.mxu0 0.0
  %7190 = vmatpush1.msra.mxu0 0.0
  %7191 = vmatprep.subr.mxu0 0.0
  %7192 = vmatpush1.msra.mxu0 0.0
  %7193 = vmatprep.subr.mxu0 0.0
  %7194 = vmatpush1.msra.mxu0 0.0
  %7195 = vmatprep.subr.mxu0 0.0
  %7196 = vmatpush1.msra.mxu0 0.0
  %7197 = vmatprep.subr.mxu0 0.0
  %7198 = vmatpush1.msra.mxu0 0.0
  %7199 = vmatprep.subr.mxu0 0.0
  %7200 = vmatpush1.msra.mxu0 0.0
  %7201 = vmatprep.subr.mxu0 0.0
  %7202 = vmatpush1.msra.mxu0 0.0
  %7203 = vmatprep.subr.mxu0 0.0
  %7204 = vmatpush1.msra.mxu0 0.0
  %7205 = vmatprep.subr.mxu0 0.0
  %7206 = vmatpush1.msra.mxu0 0.0
  %7207 = vmatprep.subr.mxu0 0.0
  %7208 = vmatpush1.msra.mxu0 0.0
  %7209 = vmatprep.subr.mxu0 0.0
  %7210 = vmatpush1.msra.mxu0 0.0
  %7211 = vmatprep.mubr.f32.mxu0 0.0
  %7212 = vmatmul.mubr.f32.gmra.mrb[0].mxu0 %v5768
  %v7213 = vpop.f32.mrb[0].mxu0
  %v7214 = vadd.f32 0.0, %v7213
  %v7215 = vpop.f32.mrb[0].mxu0
  %v7216 = vadd.f32 0.0, %v7215
  %7217 = vmatprep.mubr.f32.mxu0 0.0
  %7218 = vmatmul.mubr.f32.gmra.mrb[0].mxu0 %v5771
  %v7219 = vpop.f32.mrb[0].mxu0
  %v7220 = vadd.f32 0.0, %v7219
  %v7221 = vpop.f32.mrb[0].mxu0
  %v7222 = vadd.f32 0.0, %v7221
  %7223 = vmatprep.mubr.f32.mxu0 0.0
  %7224 = vmatmul.mubr.f32.gmra.mrb[0].mxu0 %v5774
  %v7225 = vpop.f32.mrb[0].mxu0
  %v7226 = vadd.f32 0.0, %v7225
  %v7227 = vpop.f32.mrb[0].mxu0
  %v7228 = vadd.f32 0.0, %v7227
  %7229 = vmatprep.mubr.f32.mxu0 0.0
  %7230 = vmatmul.mubr.f32.gmra.mrb[0].mxu0 %v5777
  %v7231 = vpop.f32.mrb[0].mxu0
  %v7232 = vadd.f32 0.0, %v7231
  %v7233 = vpop.f32.mrb[0].mxu0
  %v7234 = vadd.f32 0.0, %v7233
  %7235 = vmatprep.mubr.f32.mxu0 0.0
  %7236 = vmatmul.mubr.f32.gmra.mrb[0].mxu0 %v5780
  %v7237 = vpop.f32.mrb[0].mxu0
  %v7238 = vadd.f32 0.0, %v7237
  %v7239 = vpop.f32.mrb[0].mxu0
  %v7240 = vadd.f32 0.0, %v7239
  %7241 = vmatprep.mubr.f32.mxu0 0.0
  %7242 = vmatmul.mubr.f32.gmra.mrb[0].mxu0 %v5783
  %v7243 = vpop.f32.mrb[0].mxu0
  %v7244 = vadd.f32 0.0, %v7243
  %v7245 = vpop.f32.mrb[0].mxu0
  %v7246 = vadd.f32 0.0, %v7245
  %7247 = vmatprep.mubr.f32.mxu0 0.0
  %7248 = vmatmul.mubr.f32.gmra.mrb[0].mxu0 %v5786
  %v7249 = vpop.f32.mrb[0].mxu0
  %v7250 = vadd.f32 0.0, %v7249
  %v7251 = vpop.f32.mrb[0].mxu0
  %v7252 = vadd.f32 0.0, %v7251
  %7253 = vmatprep.mubr.f32.mxu0 0.0
  %7254 = vmatmul.mubr.f32.gmra.mrb[0].mxu0 %v5789
  %v7255 = vpop.f32.mrb[0].mxu0
  %v7256 = vadd.f32 0.0, %v7255
  %v7257 = vpop.f32.mrb[0].mxu0
  %v7258 = vadd.f32 0.0, %v7257
  %7259 = vdwg.mxu0
  %7260 = vmatprep.subr.mxu0 %v5529
  %7261 = vmatpush1.msra.mxu0 %v5528
  %7262 = vmatprep.subr.mxu0 %v5593
  %7263 = vmatpush1.msra.mxu0 %v5592
  %7264 = vmatprep.subr.mxu0 %v5657
  %7265 = vmatpush1.msra.mxu0 %v5656
  %7266 = vmatprep.subr.mxu0 %v5721
  %7267 = vmatpush1.msra.mxu0 %v5720
  %7268 = vmatprep.subr.mxu0 0.0
  %7269 = vmatpush1.msra.mxu0 0.0
  %7270 = vmatprep.subr.mxu0 0.0
  %7271 = vmatpush1.msra.mxu0 0.0
  %7272 = vmatprep.subr.mxu0 0.0
  %7273 = vmatpush1.msra.mxu0 0.0
  %7274 = vmatprep.subr.mxu0 0.0
  %7275 = vmatpush1.msra.mxu0 0.0
  %7276 = vmatprep.subr.mxu0 0.0
  %7277 = vmatpush1.msra.mxu0 0.0
  %7278 = vmatprep.subr.mxu0 0.0
  %7279 = vmatpush1.msra.mxu0 0.0
  %7280 = vmatprep.subr.mxu0 0.0
  %7281 = vmatpush1.msra.mxu0 0.0
  %7282 = vmatprep.subr.mxu0 0.0
  %7283 = vmatpush1.msra.mxu0 0.0
  %7284 = vmatprep.subr.mxu0 0.0
  %7285 = vmatpush1.msra.mxu0 0.0
  %7286 = vmatprep.subr.mxu0 0.0
  %7287 = vmatpush1.msra.mxu0 0.0
  %7288 = vmatprep.subr.mxu0 0.0
  %7289 = vmatpush1.msra.mxu0 0.0
  %7290 = vmatprep.subr.mxu0 0.0
  %7291 = vmatpush1.msra.mxu0 0.0
  %7292 = vmatprep.subr.mxu0 0.0
  %7293 = vmatpush1.msra.mxu0 0.0
  %7294 = vmatprep.subr.mxu0 0.0
  %7295 = vmatpush1.msra.mxu0 0.0
  %7296 = vmatprep.subr.mxu0 0.0
  %7297 = vmatpush1.msra.mxu0 0.0
  %7298 = vmatprep.subr.mxu0 0.0
  %7299 = vmatpush1.msra.mxu0 0.0
  %7300 = vmatprep.subr.mxu0 0.0
  %7301 = vmatpush1.msra.mxu0 0.0
  %7302 = vmatprep.subr.mxu0 0.0
  %7303 = vmatpush1.msra.mxu0 0.0
  %7304 = vmatprep.subr.mxu0 0.0
  %7305 = vmatpush1.msra.mxu0 0.0
  %7306 = vmatprep.subr.mxu0 0.0
  %7307 = vmatpush1.msra.mxu0 0.0
  %7308 = vmatprep.subr.mxu0 0.0
  %7309 = vmatpush1.msra.mxu0 0.0
  %7310 = vmatprep.subr.mxu0 0.0
  %7311 = vmatpush1.msra.mxu0 0.0
  %7312 = vmatprep.subr.mxu0 0.0
  %7313 = vmatpush1.msra.mxu0 0.0
  %7314 = vmatprep.subr.mxu0 0.0
  %7315 = vmatpush1.msra.mxu0 0.0
  %7316 = vmatprep.subr.mxu0 0.0
  %7317 = vmatpush1.msra.mxu0 0.0
  %7318 = vmatprep.subr.mxu0 0.0
  %7319 = vmatpush1.msra.mxu0 0.0
  %7320 = vmatprep.subr.mxu0 0.0
  %7321 = vmatpush1.msra.mxu0 0.0
  %7322 = vmatprep.subr.mxu0 0.0
  %7323 = vmatpush1.msra.mxu0 0.0
  %7324 = vmatprep.mubr.f32.mxu0 0.0
  %7325 = vmatmul.mubr.f32.gmra.mrb[0].mxu0 %v5768
  %v7326 = vpop.f32.mrb[0].mxu0
  %v7327 = vadd.f32 0.0, %v7326
  %v7328 = vpop.f32.mrb[0].mxu0
  %v7329 = vadd.f32 0.0, %v7328
  %7330 = vmatprep.mubr.f32.mxu0 0.0
  %7331 = vmatmul.mubr.f32.gmra.mrb[0].mxu0 %v5771
  %v7332 = vpop.f32.mrb[0].mxu0
  %v7333 = vadd.f32 0.0, %v7332
  %v7334 = vpop.f32.mrb[0].mxu0
  %v7335 = vadd.f32 0.0, %v7334
  %7336 = vmatprep.mubr.f32.mxu0 0.0
  %7337 = vmatmul.mubr.f32.gmra.mrb[0].mxu0 %v5774
  %v7338 = vpop.f32.mrb[0].mxu0
  %v7339 = vadd.f32 0.0, %v7338
  %v7340 = vpop.f32.mrb[0].mxu0
  %v7341 = vadd.f32 0.0, %v7340
  %7342 = vmatprep.mubr.f32.mxu0 0.0
  %7343 = vmatmul.mubr.f32.gmra.mrb[0].mxu0 %v5777
  %v7344 = vpop.f32.mrb[0].mxu0
  %v7345 = vadd.f32 0.0, %v7344
  %v7346 = vpop.f32.mrb[0].mxu0
  %v7347 = vadd.f32 0.0, %v7346
  %7348 = vmatprep.mubr.f32.mxu0 0.0
  %7349 = vmatmul.mubr.f32.gmra.mrb[0].mxu0 %v5780
  %v7350 = vpop.f32.mrb[0].mxu0
  %v7351 = vadd.f32 0.0, %v7350
  %v7352 = vpop.f32.mrb[0].mxu0
  %v7353 = vadd.f32 0.0, %v7352
  %7354 = vmatprep.mubr.f32.mxu0 0.0
  %7355 = vmatmul.mubr.f32.gmra.mrb[0].mxu0 %v5783
  %v7356 = vpop.f32.mrb[0].mxu0
  %v7357 = vadd.f32 0.0, %v7356
  %v7358 = vpop.f32.mrb[0].mxu0
  %v7359 = vadd.f32 0.0, %v7358
  %7360 = vmatprep.mubr.f32.mxu0 0.0
  %7361 = vmatmul.mubr.f32.gmra.mrb[0].mxu0 %v5786
  %v7362 = vpop.f32.mrb[0].mxu0
  %v7363 = vadd.f32 0.0, %v7362
  %v7364 = vpop.f32.mrb[0].mxu0
  %v7365 = vadd.f32 0.0, %v7364
  %7366 = vmatprep.mubr.f32.mxu0 0.0
  %7367 = vmatmul.mubr.f32.gmra.mrb[0].mxu0 %v5789
  %v7368 = vpop.f32.mrb[0].mxu0
  %v7369 = vadd.f32 0.0, %v7368
  %v7370 = vpop.f32.mrb[0].mxu0
  %v7371 = vadd.f32 0.0, %v7370
  %7372 = vdwg.mxu0
  %7373 = vmatprep.subr.mxu0 %v5531
  %7374 = vmatpush1.msra.mxu0 %v5530
  %7375 = vmatprep.subr.mxu0 %v5595
  %7376 = vmatpush1.msra.mxu0 %v5594
  %7377 = vmatprep.subr.mxu0 %v5659
  %7378 = vmatpush1.msra.mxu0 %v5658
  %7379 = vmatprep.subr.mxu0 %v5723
  %7380 = vmatpush1.msra.mxu0 %v5722
  %7381 = vmatprep.subr.mxu0 0.0
  %7382 = vmatpush1.msra.mxu0 0.0
  %7383 = vmatprep.subr.mxu0 0.0
  %7384 = vmatpush1.msra.mxu0 0.0
  %7385 = vmatprep.subr.mxu0 0.0
  %7386 = vmatpush1.msra.mxu0 0.0
  %7387 = vmatprep.subr.mxu0 0.0
  %7388 = vmatpush1.msra.mxu0 0.0
  %7389 = vmatprep.subr.mxu0 0.0
  %7390 = vmatpush1.msra.mxu0 0.0
  %7391 = vmatprep.subr.mxu0 0.0
  %7392 = vmatpush1.msra.mxu0 0.0
  %7393 = vmatprep.subr.mxu0 0.0
  %7394 = vmatpush1.msra.mxu0 0.0
  %7395 = vmatprep.subr.mxu0 0.0
  %7396 = vmatpush1.msra.mxu0 0.0
  %7397 = vmatprep.subr.mxu0 0.0
  %7398 = vmatpush1.msra.mxu0 0.0
  %7399 = vmatprep.subr.mxu0 0.0
  %7400 = vmatpush1.msra.mxu0 0.0
  %7401 = vmatprep.subr.mxu0 0.0
  %7402 = vmatpush1.msra.mxu0 0.0
  %7403 = vmatprep.subr.mxu0 0.0
  %7404 = vmatpush1.msra.mxu0 0.0
  %7405 = vmatprep.subr.mxu0 0.0
  %7406 = vmatpush1.msra.mxu0 0.0
  %7407 = vmatprep.subr.mxu0 0.0
  %7408 = vmatpush1.msra.mxu0 0.0
  %7409 = vmatprep.subr.mxu0 0.0
  %7410 = vmatpush1.msra.mxu0 0.0
  %7411 = vmatprep.subr.mxu0 0.0
  %7412 = vmatpush1.msra.mxu0 0.0
  %7413 = vmatprep.subr.mxu0 0.0
  %7414 = vmatpush1.msra.mxu0 0.0
  %7415 = vmatprep.subr.mxu0 0.0
  %7416 = vmatpush1.msra.mxu0 0.0
  %7417 = vmatprep.subr.mxu0 0.0
  %7418 = vmatpush1.msra.mxu0 0.0
  %7419 = vmatprep.subr.mxu0 0.0
  %7420 = vmatpush1.msra.mxu0 0.0
  %7421 = vmatprep.subr.mxu0 0.0
  %7422 = vmatpush1.msra.mxu0 0.0
  %7423 = vmatprep.subr.mxu0 0.0
  %7424 = vmatpush1.msra.mxu0 0.0
  %7425 = vmatprep.subr.mxu0 0.0
  %7426 = vmatpush1.msra.mxu0 0.0
  %7427 = vmatprep.subr.mxu0 0.0
  %7428 = vmatpush1.msra.mxu0 0.0
  %7429 = vmatprep.subr.mxu0 0.0
  %7430 = vmatpush1.msra.mxu0 0.0
  %7431 = vmatprep.subr.mxu0 0.0
  %7432 = vmatpush1.msra.mxu0 0.0
  %7433 = vmatprep.subr.mxu0 0.0
  %7434 = vmatpush1.msra.mxu0 0.0
  %7435 = vmatprep.subr.mxu0 0.0
  %7436 = vmatpush1.msra.mxu0 0.0
  %7437 = vmatprep.mubr.f32.mxu0 0.0
  %7438 = vmatmul.mubr.f32.gmra.mrb[0].mxu0 %v5768
  %v7439 = vpop.f32.mrb[0].mxu0
  %v7440 = vadd.f32 0.0, %v7439
  %v7441 = vpop.f32.mrb[0].mxu0
  %v7442 = vadd.f32 0.0, %v7441
  %7443 = vmatprep.mubr.f32.mxu0 0.0
  %7444 = vmatmul.mubr.f32.gmra.mrb[0].mxu0 %v5771
  %v7445 = vpop.f32.mrb[0].mxu0
  %v7446 = vadd.f32 0.0, %v7445
  %v7447 = vpop.f32.mrb[0].mxu0
  %v7448 = vadd.f32 0.0, %v7447
  %7449 = vmatprep.mubr.f32.mxu0 0.0
  %7450 = vmatmul.mubr.f32.gmra.mrb[0].mxu0 %v5774
  %v7451 = vpop.f32.mrb[0].mxu0
  %v7452 = vadd.f32 0.0, %v7451
  %v7453 = vpop.f32.mrb[0].mxu0
  %v7454 = vadd.f32 0.0, %v7453
  %7455 = vmatprep.mubr.f32.mxu0 0.0
  %7456 = vmatmul.mubr.f32.gmra.mrb[0].mxu0 %v5777
  %v7457 = vpop.f32.mrb[0].mxu0
  %v7458 = vadd.f32 0.0, %v7457
  %v7459 = vpop.f32.mrb[0].mxu0
  %v7460 = vadd.f32 0.0, %v7459
  %7461 = vmatprep.mubr.f32.mxu0 0.0
  %7462 = vmatmul.mubr.f32.gmra.mrb[0].mxu0 %v5780
  %v7463 = vpop.f32.mrb[0].mxu0
  %v7464 = vadd.f32 0.0, %v7463
  %v7465 = vpop.f32.mrb[0].mxu0
  %v7466 = vadd.f32 0.0, %v7465
  %7467 = vmatprep.mubr.f32.mxu0 0.0
  %7468 = vmatmul.mubr.f32.gmra.mrb[0].mxu0 %v5783
  %v7469 = vpop.f32.mrb[0].mxu0
  %v7470 = vadd.f32 0.0, %v7469
  %v7471 = vpop.f32.mrb[0].mxu0
  %v7472 = vadd.f32 0.0, %v7471
  %7473 = vmatprep.mubr.f32.mxu0 0.0
  %7474 = vmatmul.mubr.f32.gmra.mrb[0].mxu0 %v5786
  %v7475 = vpop.f32.mrb[0].mxu0
  %v7476 = vadd.f32 0.0, %v7475
  %v7477 = vpop.f32.mrb[0].mxu0
  %v7478 = vadd.f32 0.0, %v7477
  %7479 = vmatprep.mubr.f32.mxu0 0.0
  %7480 = vmatmul.mubr.f32.gmra.mrb[0].mxu0 %v5789
  %v7481 = vpop.f32.mrb[0].mxu0
  %v7482 = vadd.f32 0.0, %v7481
  %v7483 = vpop.f32.mrb[0].mxu0
  %v7484 = vadd.f32 0.0, %v7483
  %7485 = vdwg.mxu0
  %7486 = vmatprep.subr.mxu0 %v5533
  %7487 = vmatpush1.msra.mxu0 %v5532
  %7488 = vmatprep.subr.mxu0 %v5597
  %7489 = vmatpush1.msra.mxu0 %v5596
  %7490 = vmatprep.subr.mxu0 %v5661
  %7491 = vmatpush1.msra.mxu0 %v5660
  %7492 = vmatprep.subr.mxu0 %v5725
  %7493 = vmatpush1.msra.mxu0 %v5724
  %7494 = vmatprep.subr.mxu0 0.0
  %7495 = vmatpush1.msra.mxu0 0.0
  %7496 = vmatprep.subr.mxu0 0.0
  %7497 = vmatpush1.msra.mxu0 0.0
  %7498 = vmatprep.subr.mxu0 0.0
  %7499 = vmatpush1.msra.mxu0 0.0
  %7500 = vmatprep.subr.mxu0 0.0
  %7501 = vmatpush1.msra.mxu0 0.0
  %7502 = vmatprep.subr.mxu0 0.0
  %7503 = vmatpush1.msra.mxu0 0.0
  %7504 = vmatprep.subr.mxu0 0.0
  %7505 = vmatpush1.msra.mxu0 0.0
  %7506 = vmatprep.subr.mxu0 0.0
  %7507 = vmatpush1.msra.mxu0 0.0
  %7508 = vmatprep.subr.mxu0 0.0
  %7509 = vmatpush1.msra.mxu0 0.0
  %7510 = vmatprep.subr.mxu0 0.0
  %7511 = vmatpush1.msra.mxu0 0.0
  %7512 = vmatprep.subr.mxu0 0.0
  %7513 = vmatpush1.msra.mxu0 0.0
  %7514 = vmatprep.subr.mxu0 0.0
  %7515 = vmatpush1.msra.mxu0 0.0
  %7516 = vmatprep.subr.mxu0 0.0
  %7517 = vmatpush1.msra.mxu0 0.0
  %7518 = vmatprep.subr.mxu0 0.0
  %7519 = vmatpush1.msra.mxu0 0.0
  %7520 = vmatprep.subr.mxu0 0.0
  %7521 = vmatpush1.msra.mxu0 0.0
  %7522 = vmatprep.subr.mxu0 0.0
  %7523 = vmatpush1.msra.mxu0 0.0
  %7524 = vmatprep.subr.mxu0 0.0
  %7525 = vmatpush1.msra.mxu0 0.0
  %7526 = vmatprep.subr.mxu0 0.0
  %7527 = vmatpush1.msra.mxu0 0.0
  %7528 = vmatprep.subr.mxu0 0.0
  %7529 = vmatpush1.msra.mxu0 0.0
  %7530 = vmatprep.subr.mxu0 0.0
  %7531 = vmatpush1.msra.mxu0 0.0
  %7532 = vmatprep.subr.mxu0 0.0
  %7533 = vmatpush1.msra.mxu0 0.0
  %7534 = vmatprep.subr.mxu0 0.0
  %7535 = vmatpush1.msra.mxu0 0.0
  %7536 = vmatprep.subr.mxu0 0.0
  %7537 = vmatpush1.msra.mxu0 0.0
  %7538 = vmatprep.subr.mxu0 0.0
  %7539 = vmatpush1.msra.mxu0 0.0
  %7540 = vmatprep.subr.mxu0 0.0
  %7541 = vmatpush1.msra.mxu0 0.0
  %7542 = vmatprep.subr.mxu0 0.0
  %7543 = vmatpush1.msra.mxu0 0.0
  %7544 = vmatprep.subr.mxu0 0.0
  %7545 = vmatpush1.msra.mxu0 0.0
  %7546 = vmatprep.subr.mxu0 0.0
  %7547 = vmatpush1.msra.mxu0 0.0
  %7548 = vmatprep.subr.mxu0 0.0
  %7549 = vmatpush1.msra.mxu0 0.0
  %7550 = vmatprep.mubr.f32.mxu0 0.0
  %7551 = vmatmul.mubr.f32.gmra.mrb[0].mxu0 %v5768
  %v7552 = vpop.f32.mrb[0].mxu0
  %v7553 = vadd.f32 0.0, %v7552
  %v7554 = vpop.f32.mrb[0].mxu0
  %v7555 = vadd.f32 0.0, %v7554
  %7556 = vmatprep.mubr.f32.mxu0 0.0
  %7557 = vmatmul.mubr.f32.gmra.mrb[0].mxu0 %v5771
  %v7558 = vpop.f32.mrb[0].mxu0
  %v7559 = vadd.f32 0.0, %v7558
  %v7560 = vpop.f32.mrb[0].mxu0
  %v7561 = vadd.f32 0.0, %v7560
  %7562 = vmatprep.mubr.f32.mxu0 0.0
  %7563 = vmatmul.mubr.f32.gmra.mrb[0].mxu0 %v5774
  %v7564 = vpop.f32.mrb[0].mxu0
  %v7565 = vadd.f32 0.0, %v7564
  %v7566 = vpop.f32.mrb[0].mxu0
  %v7567 = vadd.f32 0.0, %v7566
  %7568 = vmatprep.mubr.f32.mxu0 0.0
  %7569 = vmatmul.mubr.f32.gmra.mrb[0].mxu0 %v5777
  %v7570 = vpop.f32.mrb[0].mxu0
  %v7571 = vadd.f32 0.0, %v7570
  %v7572 = vpop.f32.mrb[0].mxu0
  %v7573 = vadd.f32 0.0, %v7572
  %7574 = vmatprep.mubr.f32.mxu0 0.0
  %7575 = vmatmul.mubr.f32.gmra.mrb[0].mxu0 %v5780
  %v7576 = vpop.f32.mrb[0].mxu0
  %v7577 = vadd.f32 0.0, %v7576
  %v7578 = vpop.f32.mrb[0].mxu0
  %v7579 = vadd.f32 0.0, %v7578
  %7580 = vmatprep.mubr.f32.mxu0 0.0
  %7581 = vmatmul.mubr.f32.gmra.mrb[0].mxu0 %v5783
  %v7582 = vpop.f32.mrb[0].mxu0
  %v7583 = vadd.f32 0.0, %v7582
  %v7584 = vpop.f32.mrb[0].mxu0
  %v7585 = vadd.f32 0.0, %v7584
  %7586 = vmatprep.mubr.f32.mxu0 0.0
  %7587 = vmatmul.mubr.f32.gmra.mrb[0].mxu0 %v5786
  %v7588 = vpop.f32.mrb[0].mxu0
  %v7589 = vadd.f32 0.0, %v7588
  %v7590 = vpop.f32.mrb[0].mxu0
  %v7591 = vadd.f32 0.0, %v7590
  %7592 = vmatprep.mubr.f32.mxu0 0.0
  %7593 = vmatmul.mubr.f32.gmra.mrb[0].mxu0 %v5789
  %v7594 = vpop.f32.mrb[0].mxu0
  %v7595 = vadd.f32 0.0, %v7594
  %v7596 = vpop.f32.mrb[0].mxu0
  %v7597 = vadd.f32 0.0, %v7596
  %7598 = vdwg.mxu0
  %7599 = vmatprep.subr.mxu0 %v5535
  %7600 = vmatpush1.msra.mxu0 %v5534
  %7601 = vmatprep.subr.mxu0 %v5599
  %7602 = vmatpush1.msra.mxu0 %v5598
  %7603 = vmatprep.subr.mxu0 %v5663
  %7604 = vmatpush1.msra.mxu0 %v5662
  %7605 = vmatprep.subr.mxu0 %v5727
  %7606 = vmatpush1.msra.mxu0 %v5726
  %7607 = vmatprep.subr.mxu0 0.0
  %7608 = vmatpush1.msra.mxu0 0.0
  %7609 = vmatprep.subr.mxu0 0.0
  %7610 = vmatpush1.msra.mxu0 0.0
  %7611 = vmatprep.subr.mxu0 0.0
  %7612 = vmatpush1.msra.mxu0 0.0
  %7613 = vmatprep.subr.mxu0 0.0
  %7614 = vmatpush1.msra.mxu0 0.0
  %7615 = vmatprep.subr.mxu0 0.0
  %7616 = vmatpush1.msra.mxu0 0.0
  %7617 = vmatprep.subr.mxu0 0.0
  %7618 = vmatpush1.msra.mxu0 0.0
  %7619 = vmatprep.subr.mxu0 0.0
  %7620 = vmatpush1.msra.mxu0 0.0
  %7621 = vmatprep.subr.mxu0 0.0
  %7622 = vmatpush1.msra.mxu0 0.0
  %7623 = vmatprep.subr.mxu0 0.0
  %7624 = vmatpush1.msra.mxu0 0.0
  %7625 = vmatprep.subr.mxu0 0.0
  %7626 = vmatpush1.msra.mxu0 0.0
  %7627 = vmatprep.subr.mxu0 0.0
  %7628 = vmatpush1.msra.mxu0 0.0
  %7629 = vmatprep.subr.mxu0 0.0
  %7630 = vmatpush1.msra.mxu0 0.0
  %7631 = vmatprep.subr.mxu0 0.0
  %7632 = vmatpush1.msra.mxu0 0.0
  %7633 = vmatprep.subr.mxu0 0.0
  %7634 = vmatpush1.msra.mxu0 0.0
  %7635 = vmatprep.subr.mxu0 0.0
  %7636 = vmatpush1.msra.mxu0 0.0
  %7637 = vmatprep.subr.mxu0 0.0
  %7638 = vmatpush1.msra.mxu0 0.0
  %7639 = vmatprep.subr.mxu0 0.0
  %7640 = vmatpush1.msra.mxu0 0.0
  %7641 = vmatprep.subr.mxu0 0.0
  %7642 = vmatpush1.msra.mxu0 0.0
  %7643 = vmatprep.subr.mxu0 0.0
  %7644 = vmatpush1.msra.mxu0 0.0
  %7645 = vmatprep.subr.mxu0 0.0
  %7646 = vmatpush1.msra.mxu0 0.0
  %7647 = vmatprep.subr.mxu0 0.0
  %7648 = vmatpush1.msra.mxu0 0.0
  %7649 = vmatprep.subr.mxu0 0.0
  %7650 = vmatpush1.msra.mxu0 0.0
  %7651 = vmatprep.subr.mxu0 0.0
  %7652 = vmatpush1.msra.mxu0 0.0
  %7653 = vmatprep.subr.mxu0 0.0
  %7654 = vmatpush1.msra.mxu0 0.0
  %7655 = vmatprep.subr.mxu0 0.0
  %7656 = vmatpush1.msra.mxu0 0.0
  %7657 = vmatprep.subr.mxu0 0.0
  %7658 = vmatpush1.msra.mxu0 0.0
  %7659 = vmatprep.subr.mxu0 0.0
  %7660 = vmatpush1.msra.mxu0 0.0
  %7661 = vmatprep.subr.mxu0 0.0
  %7662 = vmatpush1.msra.mxu0 0.0
  %7663 = vmatprep.mubr.f32.mxu0 0.0
  %7664 = vmatmul.mubr.f32.gmra.mrb[0].mxu0 %v5768
  %v7665 = vpop.f32.mrb[0].mxu0
  %v7666 = vadd.f32 0.0, %v7665
  %v7667 = vpop.f32.mrb[0].mxu0
  %v7668 = vadd.f32 0.0, %v7667
  %7669 = vmatprep.mubr.f32.mxu0 0.0
  %7670 = vmatmul.mubr.f32.gmra.mrb[0].mxu0 %v5771
  %v7671 = vpop.f32.mrb[0].mxu0
  %v7672 = vadd.f32 0.0, %v7671
  %v7673 = vpop.f32.mrb[0].mxu0
  %v7674 = vadd.f32 0.0, %v7673
  %7675 = vmatprep.mubr.f32.mxu0 0.0
  %7676 = vmatmul.mubr.f32.gmra.mrb[0].mxu0 %v5774
  %v7677 = vpop.f32.mrb[0].mxu0
  %v7678 = vadd.f32 0.0, %v7677
  %v7679 = vpop.f32.mrb[0].mxu0
  %v7680 = vadd.f32 0.0, %v7679
  %7681 = vmatprep.mubr.f32.mxu0 0.0
  %7682 = vmatmul.mubr.f32.gmra.mrb[0].mxu0 %v5777
  %v7683 = vpop.f32.mrb[0].mxu0
  %v7684 = vadd.f32 0.0, %v7683
  %v7685 = vpop.f32.mrb[0].mxu0
  %v7686 = vadd.f32 0.0, %v7685
  %7687 = vmatprep.mubr.f32.mxu0 0.0
  %7688 = vmatmul.mubr.f32.gmra.mrb[0].mxu0 %v5780
  %v7689 = vpop.f32.mrb[0].mxu0
  %v7690 = vadd.f32 0.0, %v7689
  %v7691 = vpop.f32.mrb[0].mxu0
  %v7692 = vadd.f32 0.0, %v7691
  %7693 = vmatprep.mubr.f32.mxu0 0.0
  %7694 = vmatmul.mubr.f32.gmra.mrb[0].mxu0 %v5783
  %v7695 = vpop.f32.mrb[0].mxu0
  %v7696 = vadd.f32 0.0, %v7695
  %v7697 = vpop.f32.mrb[0].mxu0
  %v7698 = vadd.f32 0.0, %v7697
  %7699 = vmatprep.mubr.f32.mxu0 0.0
  %7700 = vmatmul.mubr.f32.gmra.mrb[0].mxu0 %v5786
  %v7701 = vpop.f32.mrb[0].mxu0
  %v7702 = vadd.f32 0.0, %v7701
  %v7703 = vpop.f32.mrb[0].mxu0
  %v7704 = vadd.f32 0.0, %v7703
  %7705 = vmatprep.mubr.f32.mxu0 0.0
  %7706 = vmatmul.mubr.f32.gmra.mrb[0].mxu0 %v5789
  %v7707 = vpop.f32.mrb[0].mxu0
  %v7708 = vadd.f32 0.0, %v7707
  %v7709 = vpop.f32.mrb[0].mxu0
  %v7710 = vadd.f32 0.0, %v7709
  %7711 = vdwg.mxu0
  %7712 = vmatprep.subr.mxu0 %v5537
  %7713 = vmatpush1.msra.mxu0 %v5536
  %7714 = vmatprep.subr.mxu0 %v5601
  %7715 = vmatpush1.msra.mxu0 %v5600
  %7716 = vmatprep.subr.mxu0 %v5665
  %7717 = vmatpush1.msra.mxu0 %v5664
  %7718 = vmatprep.subr.mxu0 %v5729
  %7719 = vmatpush1.msra.mxu0 %v5728
  %7720 = vmatprep.subr.mxu0 0.0
  %7721 = vmatpush1.msra.mxu0 0.0
  %7722 = vmatprep.subr.mxu0 0.0
  %7723 = vmatpush1.msra.mxu0 0.0
  %7724 = vmatprep.subr.mxu0 0.0
  %7725 = vmatpush1.msra.mxu0 0.0
  %7726 = vmatprep.subr.mxu0 0.0
  %7727 = vmatpush1.msra.mxu0 0.0
  %7728 = vmatprep.subr.mxu0 0.0
  %7729 = vmatpush1.msra.mxu0 0.0
  %7730 = vmatprep.subr.mxu0 0.0
  %7731 = vmatpush1.msra.mxu0 0.0
  %7732 = vmatprep.subr.mxu0 0.0
  %7733 = vmatpush1.msra.mxu0 0.0
  %7734 = vmatprep.subr.mxu0 0.0
  %7735 = vmatpush1.msra.mxu0 0.0
  %7736 = vmatprep.subr.mxu0 0.0
  %7737 = vmatpush1.msra.mxu0 0.0
  %7738 = vmatprep.subr.mxu0 0.0
  %7739 = vmatpush1.msra.mxu0 0.0
  %7740 = vmatprep.subr.mxu0 0.0
  %7741 = vmatpush1.msra.mxu0 0.0
  %7742 = vmatprep.subr.mxu0 0.0
  %7743 = vmatpush1.msra.mxu0 0.0
  %7744 = vmatprep.subr.mxu0 0.0
  %7745 = vmatpush1.msra.mxu0 0.0
  %7746 = vmatprep.subr.mxu0 0.0
  %7747 = vmatpush1.msra.mxu0 0.0
  %7748 = vmatprep.subr.mxu0 0.0
  %7749 = vmatpush1.msra.mxu0 0.0
  %7750 = vmatprep.subr.mxu0 0.0
  %7751 = vmatpush1.msra.mxu0 0.0
  %7752 = vmatprep.subr.mxu0 0.0
  %7753 = vmatpush1.msra.mxu0 0.0
  %7754 = vmatprep.subr.mxu0 0.0
  %7755 = vmatpush1.msra.mxu0 0.0
  %7756 = vmatprep.subr.mxu0 0.0
  %7757 = vmatpush1.msra.mxu0 0.0
  %7758 = vmatprep.subr.mxu0 0.0
  %7759 = vmatpush1.msra.mxu0 0.0
  %7760 = vmatprep.subr.mxu0 0.0
  %7761 = vmatpush1.msra.mxu0 0.0
  %7762 = vmatprep.subr.mxu0 0.0
  %7763 = vmatpush1.msra.mxu0 0.0
  %7764 = vmatprep.subr.mxu0 0.0
  %7765 = vmatpush1.msra.mxu0 0.0
  %7766 = vmatprep.subr.mxu0 0.0
  %7767 = vmatpush1.msra.mxu0 0.0
  %7768 = vmatprep.subr.mxu0 0.0
  %7769 = vmatpush1.msra.mxu0 0.0
  %7770 = vmatprep.subr.mxu0 0.0
  %7771 = vmatpush1.msra.mxu0 0.0
  %7772 = vmatprep.subr.mxu0 0.0
  %7773 = vmatpush1.msra.mxu0 0.0
  %7774 = vmatprep.subr.mxu0 0.0
  %7775 = vmatpush1.msra.mxu0 0.0
  %7776 = vmatprep.mubr.f32.mxu0 0.0
  %7777 = vmatmul.mubr.f32.gmra.mrb[0].mxu0 %v5768
  %v7778 = vpop.f32.mrb[0].mxu0
  %v7779 = vadd.f32 0.0, %v7778
  %v7780 = vpop.f32.mrb[0].mxu0
  %v7781 = vadd.f32 0.0, %v7780
  %7782 = vmatprep.mubr.f32.mxu0 0.0
  %7783 = vmatmul.mubr.f32.gmra.mrb[0].mxu0 %v5771
  %v7784 = vpop.f32.mrb[0].mxu0
  %v7785 = vadd.f32 0.0, %v7784
  %v7786 = vpop.f32.mrb[0].mxu0
  %v7787 = vadd.f32 0.0, %v7786
  %7788 = vmatprep.mubr.f32.mxu0 0.0
  %7789 = vmatmul.mubr.f32.gmra.mrb[0].mxu0 %v5774
  %v7790 = vpop.f32.mrb[0].mxu0
  %v7791 = vadd.f32 0.0, %v7790
  %v7792 = vpop.f32.mrb[0].mxu0
  %v7793 = vadd.f32 0.0, %v7792
  %7794 = vmatprep.mubr.f32.mxu0 0.0
  %7795 = vmatmul.mubr.f32.gmra.mrb[0].mxu0 %v5777
  %v7796 = vpop.f32.mrb[0].mxu0
  %v7797 = vadd.f32 0.0, %v7796
  %v7798 = vpop.f32.mrb[0].mxu0
  %v7799 = vadd.f32 0.0, %v7798
  %7800 = vmatprep.mubr.f32.mxu0 0.0
  %7801 = vmatmul.mubr.f32.gmra.mrb[0].mxu0 %v5780
  %v7802 = vpop.f32.mrb[0].mxu0
  %v7803 = vadd.f32 0.0, %v7802
  %v7804 = vpop.f32.mrb[0].mxu0
  %v7805 = vadd.f32 0.0, %v7804
  %7806 = vmatprep.mubr.f32.mxu0 0.0
  %7807 = vmatmul.mubr.f32.gmra.mrb[0].mxu0 %v5783
  %v7808 = vpop.f32.mrb[0].mxu0
  %v7809 = vadd.f32 0.0, %v7808
  %v7810 = vpop.f32.mrb[0].mxu0
  %v7811 = vadd.f32 0.0, %v7810
  %7812 = vmatprep.mubr.f32.mxu0 0.0
  %7813 = vmatmul.mubr.f32.gmra.mrb[0].mxu0 %v5786
  %v7814 = vpop.f32.mrb[0].mxu0
  %v7815 = vadd.f32 0.0, %v7814
  %v7816 = vpop.f32.mrb[0].mxu0
  %v7817 = vadd.f32 0.0, %v7816
  %7818 = vmatprep.mubr.f32.mxu0 0.0
  %7819 = vmatmul.mubr.f32.gmra.mrb[0].mxu0 %v5789
  %v7820 = vpop.f32.mrb[0].mxu0
  %v7821 = vadd.f32 0.0, %v7820
  %v7822 = vpop.f32.mrb[0].mxu0
  %v7823 = vadd.f32 0.0, %v7822
  %7824 = vdwg.mxu0
  %7825 = vmatprep.subr.mxu0 %v5539
  %7826 = vmatpush1.msra.mxu0 %v5538
  %7827 = vmatprep.subr.mxu0 %v5603
  %7828 = vmatpush1.msra.mxu0 %v5602
  %7829 = vmatprep.subr.mxu0 %v5667
  %7830 = vmatpush1.msra.mxu0 %v5666
  %7831 = vmatprep.subr.mxu0 %v5731
  %7832 = vmatpush1.msra.mxu0 %v5730
  %7833 = vmatprep.subr.mxu0 0.0
  %7834 = vmatpush1.msra.mxu0 0.0
  %7835 = vmatprep.subr.mxu0 0.0
  %7836 = vmatpush1.msra.mxu0 0.0
  %7837 = vmatprep.subr.mxu0 0.0
  %7838 = vmatpush1.msra.mxu0 0.0
  %7839 = vmatprep.subr.mxu0 0.0
  %7840 = vmatpush1.msra.mxu0 0.0
  %7841 = vmatprep.subr.mxu0 0.0
  %7842 = vmatpush1.msra.mxu0 0.0
  %7843 = vmatprep.subr.mxu0 0.0
  %7844 = vmatpush1.msra.mxu0 0.0
  %7845 = vmatprep.subr.mxu0 0.0
  %7846 = vmatpush1.msra.mxu0 0.0
  %7847 = vmatprep.subr.mxu0 0.0
  %7848 = vmatpush1.msra.mxu0 0.0
  %7849 = vmatprep.subr.mxu0 0.0
  %7850 = vmatpush1.msra.mxu0 0.0
  %7851 = vmatprep.subr.mxu0 0.0
  %7852 = vmatpush1.msra.mxu0 0.0
  %7853 = vmatprep.subr.mxu0 0.0
  %7854 = vmatpush1.msra.mxu0 0.0
  %7855 = vmatprep.subr.mxu0 0.0
  %7856 = vmatpush1.msra.mxu0 0.0
  %7857 = vmatprep.subr.mxu0 0.0
  %7858 = vmatpush1.msra.mxu0 0.0
  %7859 = vmatprep.subr.mxu0 0.0
  %7860 = vmatpush1.msra.mxu0 0.0
  %7861 = vmatprep.subr.mxu0 0.0
  %7862 = vmatpush1.msra.mxu0 0.0
  %7863 = vmatprep.subr.mxu0 0.0
  %7864 = vmatpush1.msra.mxu0 0.0
  %7865 = vmatprep.subr.mxu0 0.0
  %7866 = vmatpush1.msra.mxu0 0.0
  %7867 = vmatprep.subr.mxu0 0.0
  %7868 = vmatpush1.msra.mxu0 0.0
  %7869 = vmatprep.subr.mxu0 0.0
  %7870 = vmatpush1.msra.mxu0 0.0
  %7871 = vmatprep.subr.mxu0 0.0
  %7872 = vmatpush1.msra.mxu0 0.0
  %7873 = vmatprep.subr.mxu0 0.0
  %7874 = vmatpush1.msra.mxu0 0.0
  %7875 = vmatprep.subr.mxu0 0.0
  %7876 = vmatpush1.msra.mxu0 0.0
  %7877 = vmatprep.subr.mxu0 0.0
  %7878 = vmatpush1.msra.mxu0 0.0
  %7879 = vmatprep.subr.mxu0 0.0
  %7880 = vmatpush1.msra.mxu0 0.0
  %7881 = vmatprep.subr.mxu0 0.0
  %7882 = vmatpush1.msra.mxu0 0.0
  %7883 = vmatprep.subr.mxu0 0.0
  %7884 = vmatpush1.msra.mxu0 0.0
  %7885 = vmatprep.subr.mxu0 0.0
  %7886 = vmatpush1.msra.mxu0 0.0
  %7887 = vmatprep.subr.mxu0 0.0
  %7888 = vmatpush1.msra.mxu0 0.0
  %7889 = vmatprep.mubr.f32.mxu0 0.0
  %7890 = vmatmul.mubr.f32.gmra.mrb[0].mxu0 %v5768
  %v7891 = vpop.f32.mrb[0].mxu0
  %v7892 = vadd.f32 0.0, %v7891
  %v7893 = vpop.f32.mrb[0].mxu0
  %v7894 = vadd.f32 0.0, %v7893
  %7895 = vmatprep.mubr.f32.mxu0 0.0
  %7896 = vmatmul.mubr.f32.gmra.mrb[0].mxu0 %v5771
  %v7897 = vpop.f32.mrb[0].mxu0
  %v7898 = vadd.f32 0.0, %v7897
  %v7899 = vpop.f32.mrb[0].mxu0
  %v7900 = vadd.f32 0.0, %v7899
  %7901 = vmatprep.mubr.f32.mxu0 0.0
  %7902 = vmatmul.mubr.f32.gmra.mrb[0].mxu0 %v5774
  %v7903 = vpop.f32.mrb[0].mxu0
  %v7904 = vadd.f32 0.0, %v7903
  %v7905 = vpop.f32.mrb[0].mxu0
  %v7906 = vadd.f32 0.0, %v7905
  %7907 = vmatprep.mubr.f32.mxu0 0.0
  %7908 = vmatmul.mubr.f32.gmra.mrb[0].mxu0 %v5777
  %v7909 = vpop.f32.mrb[0].mxu0
  %v7910 = vadd.f32 0.0, %v7909
  %v7911 = vpop.f32.mrb[0].mxu0
  %v7912 = vadd.f32 0.0, %v7911
  %7913 = vmatprep.mubr.f32.mxu0 0.0
  %7914 = vmatmul.mubr.f32.gmra.mrb[0].mxu0 %v5780
  %v7915 = vpop.f32.mrb[0].mxu0
  %v7916 = vadd.f32 0.0, %v7915
  %v7917 = vpop.f32.mrb[0].mxu0
  %v7918 = vadd.f32 0.0, %v7917
  %7919 = vmatprep.mubr.f32.mxu0 0.0
  %7920 = vmatmul.mubr.f32.gmra.mrb[0].mxu0 %v5783
  %v7921 = vpop.f32.mrb[0].mxu0
  %v7922 = vadd.f32 0.0, %v7921
  %v7923 = vpop.f32.mrb[0].mxu0
  %v7924 = vadd.f32 0.0, %v7923
  %7925 = vmatprep.mubr.f32.mxu0 0.0
  %7926 = vmatmul.mubr.f32.gmra.mrb[0].mxu0 %v5786
  %v7927 = vpop.f32.mrb[0].mxu0
  %v7928 = vadd.f32 0.0, %v7927
  %v7929 = vpop.f32.mrb[0].mxu0
  %v7930 = vadd.f32 0.0, %v7929
  %7931 = vmatprep.mubr.f32.mxu0 0.0
  %7932 = vmatmul.mubr.f32.gmra.mrb[0].mxu0 %v5789
  %v7933 = vpop.f32.mrb[0].mxu0
  %v7934 = vadd.f32 0.0, %v7933
  %v7935 = vpop.f32.mrb[0].mxu0
  %v7936 = vadd.f32 0.0, %v7935
  %7937 = vdwg.mxu0
  %7938 = vmatprep.subr.mxu0 %v5541
  %7939 = vmatpush1.msra.mxu0 %v5540
  %7940 = vmatprep.subr.mxu0 %v5605
  %7941 = vmatpush1.msra.mxu0 %v5604
  %7942 = vmatprep.subr.mxu0 %v5669
  %7943 = vmatpush1.msra.mxu0 %v5668
  %7944 = vmatprep.subr.mxu0 %v5733
  %7945 = vmatpush1.msra.mxu0 %v5732
  %7946 = vmatprep.subr.mxu0 0.0
  %7947 = vmatpush1.msra.mxu0 0.0
  %7948 = vmatprep.subr.mxu0 0.0
  %7949 = vmatpush1.msra.mxu0 0.0
  %7950 = vmatprep.subr.mxu0 0.0
  %7951 = vmatpush1.msra.mxu0 0.0
  %7952 = vmatprep.subr.mxu0 0.0
  %7953 = vmatpush1.msra.mxu0 0.0
  %7954 = vmatprep.subr.mxu0 0.0
  %7955 = vmatpush1.msra.mxu0 0.0
  %7956 = vmatprep.subr.mxu0 0.0
  %7957 = vmatpush1.msra.mxu0 0.0
  %7958 = vmatprep.subr.mxu0 0.0
  %7959 = vmatpush1.msra.mxu0 0.0
  %7960 = vmatprep.subr.mxu0 0.0
  %7961 = vmatpush1.msra.mxu0 0.0
  %7962 = vmatprep.subr.mxu0 0.0
  %7963 = vmatpush1.msra.mxu0 0.0
  %7964 = vmatprep.subr.mxu0 0.0
  %7965 = vmatpush1.msra.mxu0 0.0
  %7966 = vmatprep.subr.mxu0 0.0
  %7967 = vmatpush1.msra.mxu0 0.0
  %7968 = vmatprep.subr.mxu0 0.0
  %7969 = vmatpush1.msra.mxu0 0.0
  %7970 = vmatprep.subr.mxu0 0.0
  %7971 = vmatpush1.msra.mxu0 0.0
  %7972 = vmatprep.subr.mxu0 0.0
  %7973 = vmatpush1.msra.mxu0 0.0
  %7974 = vmatprep.subr.mxu0 0.0
  %7975 = vmatpush1.msra.mxu0 0.0
  %7976 = vmatprep.subr.mxu0 0.0
  %7977 = vmatpush1.msra.mxu0 0.0
  %7978 = vmatprep.subr.mxu0 0.0
  %7979 = vmatpush1.msra.mxu0 0.0
  %7980 = vmatprep.subr.mxu0 0.0
  %7981 = vmatpush1.msra.mxu0 0.0
  %7982 = vmatprep.subr.mxu0 0.0
  %7983 = vmatpush1.msra.mxu0 0.0
  %7984 = vmatprep.subr.mxu0 0.0
  %7985 = vmatpush1.msra.mxu0 0.0
  %7986 = vmatprep.subr.mxu0 0.0
  %7987 = vmatpush1.msra.mxu0 0.0
  %7988 = vmatprep.subr.mxu0 0.0
  %7989 = vmatpush1.msra.mxu0 0.0
  %7990 = vmatprep.subr.mxu0 0.0
  %7991 = vmatpush1.msra.mxu0 0.0
  %7992 = vmatprep.subr.mxu0 0.0
  %7993 = vmatpush1.msra.mxu0 0.0
  %7994 = vmatprep.subr.mxu0 0.0
  %7995 = vmatpush1.msra.mxu0 0.0
  %7996 = vmatprep.subr.mxu0 0.0
  %7997 = vmatpush1.msra.mxu0 0.0
  %7998 = vmatprep.subr.mxu0 0.0
  %7999 = vmatpush1.msra.mxu0 0.0
  %8000 = vmatprep.subr.mxu0 0.0
  %8001 = vmatpush1.msra.mxu0 0.0
  %8002 = vmatprep.mubr.f32.mxu0 0.0
  %8003 = vmatmul.mubr.f32.gmra.mrb[0].mxu0 %v5768
  %v8004 = vpop.f32.mrb[0].mxu0
  %v8005 = vadd.f32 0.0, %v8004
  %v8006 = vpop.f32.mrb[0].mxu0
  %v8007 = vadd.f32 0.0, %v8006
  %8008 = vmatprep.mubr.f32.mxu0 0.0
  %8009 = vmatmul.mubr.f32.gmra.mrb[0].mxu0 %v5771
  %v8010 = vpop.f32.mrb[0].mxu0
  %v8011 = vadd.f32 0.0, %v8010
  %v8012 = vpop.f32.mrb[0].mxu0
  %v8013 = vadd.f32 0.0, %v8012
  %8014 = vmatprep.mubr.f32.mxu0 0.0
  %8015 = vmatmul.mubr.f32.gmra.mrb[0].mxu0 %v5774
  %v8016 = vpop.f32.mrb[0].mxu0
  %v8017 = vadd.f32 0.0, %v8016
  %v8018 = vpop.f32.mrb[0].mxu0
  %v8019 = vadd.f32 0.0, %v8018
  %8020 = vmatprep.mubr.f32.mxu0 0.0
  %8021 = vmatmul.mubr.f32.gmra.mrb[0].mxu0 %v5777
  %v8022 = vpop.f32.mrb[0].mxu0
  %v8023 = vadd.f32 0.0, %v8022
  %v8024 = vpop.f32.mrb[0].mxu0
  %v8025 = vadd.f32 0.0, %v8024
  %8026 = vmatprep.mubr.f32.mxu0 0.0
  %8027 = vmatmul.mubr.f32.gmra.mrb[0].mxu0 %v5780
  %v8028 = vpop.f32.mrb[0].mxu0
  %v8029 = vadd.f32 0.0, %v8028
  %v8030 = vpop.f32.mrb[0].mxu0
  %v8031 = vadd.f32 0.0, %v8030
  %8032 = vmatprep.mubr.f32.mxu0 0.0
  %8033 = vmatmul.mubr.f32.gmra.mrb[0].mxu0 %v5783
  %v8034 = vpop.f32.mrb[0].mxu0
  %v8035 = vadd.f32 0.0, %v8034
  %v8036 = vpop.f32.mrb[0].mxu0
  %v8037 = vadd.f32 0.0, %v8036
  %8038 = vmatprep.mubr.f32.mxu0 0.0
  %8039 = vmatmul.mubr.f32.gmra.mrb[0].mxu0 %v5786
  %v8040 = vpop.f32.mrb[0].mxu0
  %v8041 = vadd.f32 0.0, %v8040
  %v8042 = vpop.f32.mrb[0].mxu0
  %v8043 = vadd.f32 0.0, %v8042
  %8044 = vmatprep.mubr.f32.mxu0 0.0
  %8045 = vmatmul.mubr.f32.gmra.mrb[0].mxu0 %v5789
  %v8046 = vpop.f32.mrb[0].mxu0
  %v8047 = vadd.f32 0.0, %v8046
  %v8048 = vpop.f32.mrb[0].mxu0
  %v8049 = vadd.f32 0.0, %v8048
  %8050 = vdwg.mxu0
  %8051 = vmatprep.subr.mxu0 %v5543
  %8052 = vmatpush1.msra.mxu0 %v5542
  %8053 = vmatprep.subr.mxu0 %v5607
  %8054 = vmatpush1.msra.mxu0 %v5606
  %8055 = vmatprep.subr.mxu0 %v5671
  %8056 = vmatpush1.msra.mxu0 %v5670
  %8057 = vmatprep.subr.mxu0 %v5735
  %8058 = vmatpush1.msra.mxu0 %v5734
  %8059 = vmatprep.subr.mxu0 0.0
  %8060 = vmatpush1.msra.mxu0 0.0
  %8061 = vmatprep.subr.mxu0 0.0
  %8062 = vmatpush1.msra.mxu0 0.0
  %8063 = vmatprep.subr.mxu0 0.0
  %8064 = vmatpush1.msra.mxu0 0.0
  %8065 = vmatprep.subr.mxu0 0.0
  %8066 = vmatpush1.msra.mxu0 0.0
  %8067 = vmatprep.subr.mxu0 0.0
  %8068 = vmatpush1.msra.mxu0 0.0
  %8069 = vmatprep.subr.mxu0 0.0
  %8070 = vmatpush1.msra.mxu0 0.0
  %8071 = vmatprep.subr.mxu0 0.0
  %8072 = vmatpush1.msra.mxu0 0.0
  %8073 = vmatprep.subr.mxu0 0.0
  %8074 = vmatpush1.msra.mxu0 0.0
  %8075 = vmatprep.subr.mxu0 0.0
  %8076 = vmatpush1.msra.mxu0 0.0
  %8077 = vmatprep.subr.mxu0 0.0
  %8078 = vmatpush1.msra.mxu0 0.0
  %8079 = vmatprep.subr.mxu0 0.0
  %8080 = vmatpush1.msra.mxu0 0.0
  %8081 = vmatprep.subr.mxu0 0.0
  %8082 = vmatpush1.msra.mxu0 0.0
  %8083 = vmatprep.subr.mxu0 0.0
  %8084 = vmatpush1.msra.mxu0 0.0
  %8085 = vmatprep.subr.mxu0 0.0
  %8086 = vmatpush1.msra.mxu0 0.0
  %8087 = vmatprep.subr.mxu0 0.0
  %8088 = vmatpush1.msra.mxu0 0.0
  %8089 = vmatprep.subr.mxu0 0.0
  %8090 = vmatpush1.msra.mxu0 0.0
  %8091 = vmatprep.subr.mxu0 0.0
  %8092 = vmatpush1.msra.mxu0 0.0
  %8093 = vmatprep.subr.mxu0 0.0
  %8094 = vmatpush1.msra.mxu0 0.0
  %8095 = vmatprep.subr.mxu0 0.0
  %8096 = vmatpush1.msra.mxu0 0.0
  %8097 = vmatprep.subr.mxu0 0.0
  %8098 = vmatpush1.msra.mxu0 0.0
  %8099 = vmatprep.subr.mxu0 0.0
  %8100 = vmatpush1.msra.mxu0 0.0
  %8101 = vmatprep.subr.mxu0 0.0
  %8102 = vmatpush1.msra.mxu0 0.0
  %8103 = vmatprep.subr.mxu0 0.0
  %8104 = vmatpush1.msra.mxu0 0.0
  %8105 = vmatprep.subr.mxu0 0.0
  %8106 = vmatpush1.msra.mxu0 0.0
  %8107 = vmatprep.subr.mxu0 0.0
  %8108 = vmatpush1.msra.mxu0 0.0
  %8109 = vmatprep.subr.mxu0 0.0
  %8110 = vmatpush1.msra.mxu0 0.0
  %8111 = vmatprep.subr.mxu0 0.0
  %8112 = vmatpush1.msra.mxu0 0.0
  %8113 = vmatprep.subr.mxu0 0.0
  %8114 = vmatpush1.msra.mxu0 0.0
  %8115 = vmatprep.mubr.f32.mxu0 0.0
  %8116 = vmatmul.mubr.f32.gmra.mrb[0].mxu0 %v5768
  %v8117 = vpop.f32.mrb[0].mxu0
  %v8118 = vadd.f32 0.0, %v8117
  %v8119 = vpop.f32.mrb[0].mxu0
  %v8120 = vadd.f32 0.0, %v8119
  %8121 = vmatprep.mubr.f32.mxu0 0.0
  %8122 = vmatmul.mubr.f32.gmra.mrb[0].mxu0 %v5771
  %v8123 = vpop.f32.mrb[0].mxu0
  %v8124 = vadd.f32 0.0, %v8123
  %v8125 = vpop.f32.mrb[0].mxu0
  %v8126 = vadd.f32 0.0, %v8125
  %8127 = vmatprep.mubr.f32.mxu0 0.0
  %8128 = vmatmul.mubr.f32.gmra.mrb[0].mxu0 %v5774
  %v8129 = vpop.f32.mrb[0].mxu0
  %v8130 = vadd.f32 0.0, %v8129
  %v8131 = vpop.f32.mrb[0].mxu0
  %v8132 = vadd.f32 0.0, %v8131
  %8133 = vmatprep.mubr.f32.mxu0 0.0
  %8134 = vmatmul.mubr.f32.gmra.mrb[0].mxu0 %v5777
  %v8135 = vpop.f32.mrb[0].mxu0
  %v8136 = vadd.f32 0.0, %v8135
  %v8137 = vpop.f32.mrb[0].mxu0
  %v8138 = vadd.f32 0.0, %v8137
  %8139 = vmatprep.mubr.f32.mxu0 0.0
  %8140 = vmatmul.mubr.f32.gmra.mrb[0].mxu0 %v5780
  %v8141 = vpop.f32.mrb[0].mxu0
  %v8142 = vadd.f32 0.0, %v8141
  %v8143 = vpop.f32.mrb[0].mxu0
  %v8144 = vadd.f32 0.0, %v8143
  %8145 = vmatprep.mubr.f32.mxu0 0.0
  %8146 = vmatmul.mubr.f32.gmra.mrb[0].mxu0 %v5783
  %v8147 = vpop.f32.mrb[0].mxu0
  %v8148 = vadd.f32 0.0, %v8147
  %v8149 = vpop.f32.mrb[0].mxu0
  %v8150 = vadd.f32 0.0, %v8149
  %8151 = vmatprep.mubr.f32.mxu0 0.0
  %8152 = vmatmul.mubr.f32.gmra.mrb[0].mxu0 %v5786
  %v8153 = vpop.f32.mrb[0].mxu0
  %v8154 = vadd.f32 0.0, %v8153
  %v8155 = vpop.f32.mrb[0].mxu0
  %v8156 = vadd.f32 0.0, %v8155
  %8157 = vmatprep.mubr.f32.mxu0 0.0
  %8158 = vmatmul.mubr.f32.gmra.mrb[0].mxu0 %v5789
  %v8159 = vpop.f32.mrb[0].mxu0
  %v8160 = vadd.f32 0.0, %v8159
  %v8161 = vpop.f32.mrb[0].mxu0
  %v8162 = vadd.f32 0.0, %v8161
  %8163 = vdwg.mxu0
  %8164 = vmatprep.subr.mxu0 %v5545
  %8165 = vmatpush1.msra.mxu0 %v5544
  %8166 = vmatprep.subr.mxu0 %v5609
  %8167 = vmatpush1.msra.mxu0 %v5608
  %8168 = vmatprep.subr.mxu0 %v5673
  %8169 = vmatpush1.msra.mxu0 %v5672
  %8170 = vmatprep.subr.mxu0 %v5737
  %8171 = vmatpush1.msra.mxu0 %v5736
  %8172 = vmatprep.subr.mxu0 0.0
  %8173 = vmatpush1.msra.mxu0 0.0
  %8174 = vmatprep.subr.mxu0 0.0
  %8175 = vmatpush1.msra.mxu0 0.0
  %8176 = vmatprep.subr.mxu0 0.0
  %8177 = vmatpush1.msra.mxu0 0.0
  %8178 = vmatprep.subr.mxu0 0.0
  %8179 = vmatpush1.msra.mxu0 0.0
  %8180 = vmatprep.subr.mxu0 0.0
  %8181 = vmatpush1.msra.mxu0 0.0
  %8182 = vmatprep.subr.mxu0 0.0
  %8183 = vmatpush1.msra.mxu0 0.0
  %8184 = vmatprep.subr.mxu0 0.0
  %8185 = vmatpush1.msra.mxu0 0.0
  %8186 = vmatprep.subr.mxu0 0.0
  %8187 = vmatpush1.msra.mxu0 0.0
  %8188 = vmatprep.subr.mxu0 0.0
  %8189 = vmatpush1.msra.mxu0 0.0
  %8190 = vmatprep.subr.mxu0 0.0
  %8191 = vmatpush1.msra.mxu0 0.0
  %8192 = vmatprep.subr.mxu0 0.0
  %8193 = vmatpush1.msra.mxu0 0.0
  %8194 = vmatprep.subr.mxu0 0.0
  %8195 = vmatpush1.msra.mxu0 0.0
  %8196 = vmatprep.subr.mxu0 0.0
  %8197 = vmatpush1.msra.mxu0 0.0
  %8198 = vmatprep.subr.mxu0 0.0
  %8199 = vmatpush1.msra.mxu0 0.0
  %8200 = vmatprep.subr.mxu0 0.0
  %8201 = vmatpush1.msra.mxu0 0.0
  %8202 = vmatprep.subr.mxu0 0.0
  %8203 = vmatpush1.msra.mxu0 0.0
  %8204 = vmatprep.subr.mxu0 0.0
  %8205 = vmatpush1.msra.mxu0 0.0
  %8206 = vmatprep.subr.mxu0 0.0
  %8207 = vmatpush1.msra.mxu0 0.0
  %8208 = vmatprep.subr.mxu0 0.0
  %8209 = vmatpush1.msra.mxu0 0.0
  %8210 = vmatprep.subr.mxu0 0.0
  %8211 = vmatpush1.msra.mxu0 0.0
  %8212 = vmatprep.subr.mxu0 0.0
  %8213 = vmatpush1.msra.mxu0 0.0
  %8214 = vmatprep.subr.mxu0 0.0
  %8215 = vmatpush1.msra.mxu0 0.0
  %8216 = vmatprep.subr.mxu0 0.0
  %8217 = vmatpush1.msra.mxu0 0.0
  %8218 = vmatprep.subr.mxu0 0.0
  %8219 = vmatpush1.msra.mxu0 0.0
  %8220 = vmatprep.subr.mxu0 0.0
  %8221 = vmatpush1.msra.mxu0 0.0
  %8222 = vmatprep.subr.mxu0 0.0
  %8223 = vmatpush1.msra.mxu0 0.0
  %8224 = vmatprep.subr.mxu0 0.0
  %8225 = vmatpush1.msra.mxu0 0.0
  %8226 = vmatprep.subr.mxu0 0.0
  %8227 = vmatpush1.msra.mxu0 0.0
  %8228 = vmatprep.mubr.f32.mxu0 0.0
  %8229 = vmatmul.mubr.f32.gmra.mrb[0].mxu0 %v5768
  %v8230 = vpop.f32.mrb[0].mxu0
  %v8231 = vadd.f32 0.0, %v8230
  %v8232 = vpop.f32.mrb[0].mxu0
  %v8233 = vadd.f32 0.0, %v8232
  %8234 = vmatprep.mubr.f32.mxu0 0.0
  %8235 = vmatmul.mubr.f32.gmra.mrb[0].mxu0 %v5771
  %v8236 = vpop.f32.mrb[0].mxu0
  %v8237 = vadd.f32 0.0, %v8236
  %v8238 = vpop.f32.mrb[0].mxu0
  %v8239 = vadd.f32 0.0, %v8238
  %8240 = vmatprep.mubr.f32.mxu0 0.0
  %8241 = vmatmul.mubr.f32.gmra.mrb[0].mxu0 %v5774
  %v8242 = vpop.f32.mrb[0].mxu0
  %v8243 = vadd.f32 0.0, %v8242
  %v8244 = vpop.f32.mrb[0].mxu0
  %v8245 = vadd.f32 0.0, %v8244
  %8246 = vmatprep.mubr.f32.mxu0 0.0
  %8247 = vmatmul.mubr.f32.gmra.mrb[0].mxu0 %v5777
  %v8248 = vpop.f32.mrb[0].mxu0
  %v8249 = vadd.f32 0.0, %v8248
  %v8250 = vpop.f32.mrb[0].mxu0
  %v8251 = vadd.f32 0.0, %v8250
  %8252 = vmatprep.mubr.f32.mxu0 0.0
  %8253 = vmatmul.mubr.f32.gmra.mrb[0].mxu0 %v5780
  %v8254 = vpop.f32.mrb[0].mxu0
  %v8255 = vadd.f32 0.0, %v8254
  %v8256 = vpop.f32.mrb[0].mxu0
  %v8257 = vadd.f32 0.0, %v8256
  %8258 = vmatprep.mubr.f32.mxu0 0.0
  %8259 = vmatmul.mubr.f32.gmra.mrb[0].mxu0 %v5783
  %v8260 = vpop.f32.mrb[0].mxu0
  %v8261 = vadd.f32 0.0, %v8260
  %v8262 = vpop.f32.mrb[0].mxu0
  %v8263 = vadd.f32 0.0, %v8262
  %8264 = vmatprep.mubr.f32.mxu0 0.0
  %8265 = vmatmul.mubr.f32.gmra.mrb[0].mxu0 %v5786
  %v8266 = vpop.f32.mrb[0].mxu0
  %v8267 = vadd.f32 0.0, %v8266
  %v8268 = vpop.f32.mrb[0].mxu0
  %v8269 = vadd.f32 0.0, %v8268
  %8270 = vmatprep.mubr.f32.mxu0 0.0
  %8271 = vmatmul.mubr.f32.gmra.mrb[0].mxu0 %v5789
  %v8272 = vpop.f32.mrb[0].mxu0
  %v8273 = vadd.f32 0.0, %v8272
  %v8274 = vpop.f32.mrb[0].mxu0
  %v8275 = vadd.f32 0.0, %v8274
  %8276 = vdwg.mxu0
  %8277 = vmatprep.subr.mxu0 %v5547
  %8278 = vmatpush1.msra.mxu0 %v5546
  %8279 = vmatprep.subr.mxu0 %v5611
  %8280 = vmatpush1.msra.mxu0 %v5610
  %8281 = vmatprep.subr.mxu0 %v5675
  %8282 = vmatpush1.msra.mxu0 %v5674
  %8283 = vmatprep.subr.mxu0 %v5739
  %8284 = vmatpush1.msra.mxu0 %v5738
  %8285 = vmatprep.subr.mxu0 0.0
  %8286 = vmatpush1.msra.mxu0 0.0
  %8287 = vmatprep.subr.mxu0 0.0
  %8288 = vmatpush1.msra.mxu0 0.0
  %8289 = vmatprep.subr.mxu0 0.0
  %8290 = vmatpush1.msra.mxu0 0.0
  %8291 = vmatprep.subr.mxu0 0.0
  %8292 = vmatpush1.msra.mxu0 0.0
  %8293 = vmatprep.subr.mxu0 0.0
  %8294 = vmatpush1.msra.mxu0 0.0
  %8295 = vmatprep.subr.mxu0 0.0
  %8296 = vmatpush1.msra.mxu0 0.0
  %8297 = vmatprep.subr.mxu0 0.0
  %8298 = vmatpush1.msra.mxu0 0.0
  %8299 = vmatprep.subr.mxu0 0.0
  %8300 = vmatpush1.msra.mxu0 0.0
  %8301 = vmatprep.subr.mxu0 0.0
  %8302 = vmatpush1.msra.mxu0 0.0
  %8303 = vmatprep.subr.mxu0 0.0
  %8304 = vmatpush1.msra.mxu0 0.0
  %8305 = vmatprep.subr.mxu0 0.0
  %8306 = vmatpush1.msra.mxu0 0.0
  %8307 = vmatprep.subr.mxu0 0.0
  %8308 = vmatpush1.msra.mxu0 0.0
  %8309 = vmatprep.subr.mxu0 0.0
  %8310 = vmatpush1.msra.mxu0 0.0
  %8311 = vmatprep.subr.mxu0 0.0
  %8312 = vmatpush1.msra.mxu0 0.0
  %8313 = vmatprep.subr.mxu0 0.0
  %8314 = vmatpush1.msra.mxu0 0.0
  %8315 = vmatprep.subr.mxu0 0.0
  %8316 = vmatpush1.msra.mxu0 0.0
  %8317 = vmatprep.subr.mxu0 0.0
  %8318 = vmatpush1.msra.mxu0 0.0
  %8319 = vmatprep.subr.mxu0 0.0
  %8320 = vmatpush1.msra.mxu0 0.0
  %8321 = vmatprep.subr.mxu0 0.0
  %8322 = vmatpush1.msra.mxu0 0.0
  %8323 = vmatprep.subr.mxu0 0.0
  %8324 = vmatpush1.msra.mxu0 0.0
  %8325 = vmatprep.subr.mxu0 0.0
  %8326 = vmatpush1.msra.mxu0 0.0
  %8327 = vmatprep.subr.mxu0 0.0
  %8328 = vmatpush1.msra.mxu0 0.0
  %8329 = vmatprep.subr.mxu0 0.0
  %8330 = vmatpush1.msra.mxu0 0.0
  %8331 = vmatprep.subr.mxu0 0.0
  %8332 = vmatpush1.msra.mxu0 0.0
  %8333 = vmatprep.subr.mxu0 0.0
  %8334 = vmatpush1.msra.mxu0 0.0
  %8335 = vmatprep.subr.mxu0 0.0
  %8336 = vmatpush1.msra.mxu0 0.0
  %8337 = vmatprep.subr.mxu0 0.0
  %8338 = vmatpush1.msra.mxu0 0.0
  %8339 = vmatprep.subr.mxu0 0.0
  %8340 = vmatpush1.msra.mxu0 0.0
  %8341 = vmatprep.mubr.f32.mxu0 0.0
  %8342 = vmatmul.mubr.f32.gmra.mrb[0].mxu0 %v5768
  %v8343 = vpop.f32.mrb[0].mxu0
  %v8344 = vadd.f32 0.0, %v8343
  %v8345 = vpop.f32.mrb[0].mxu0
  %v8346 = vadd.f32 0.0, %v8345
  %8347 = vmatprep.mubr.f32.mxu0 0.0
  %8348 = vmatmul.mubr.f32.gmra.mrb[0].mxu0 %v5771
  %v8349 = vpop.f32.mrb[0].mxu0
  %v8350 = vadd.f32 0.0, %v8349
  %v8351 = vpop.f32.mrb[0].mxu0
  %v8352 = vadd.f32 0.0, %v8351
  %8353 = vmatprep.mubr.f32.mxu0 0.0
  %8354 = vmatmul.mubr.f32.gmra.mrb[0].mxu0 %v5774
  %v8355 = vpop.f32.mrb[0].mxu0
  %v8356 = vadd.f32 0.0, %v8355
  %v8357 = vpop.f32.mrb[0].mxu0
  %v8358 = vadd.f32 0.0, %v8357
  %8359 = vmatprep.mubr.f32.mxu0 0.0
  %8360 = vmatmul.mubr.f32.gmra.mrb[0].mxu0 %v5777
  %v8361 = vpop.f32.mrb[0].mxu0
  %v8362 = vadd.f32 0.0, %v8361
  %v8363 = vpop.f32.mrb[0].mxu0
  %v8364 = vadd.f32 0.0, %v8363
  %8365 = vmatprep.mubr.f32.mxu0 0.0
  %8366 = vmatmul.mubr.f32.gmra.mrb[0].mxu0 %v5780
  %v8367 = vpop.f32.mrb[0].mxu0
  %v8368 = vadd.f32 0.0, %v8367
  %v8369 = vpop.f32.mrb[0].mxu0
  %v8370 = vadd.f32 0.0, %v8369
  %8371 = vmatprep.mubr.f32.mxu0 0.0
  %8372 = vmatmul.mubr.f32.gmra.mrb[0].mxu0 %v5783
  %v8373 = vpop.f32.mrb[0].mxu0
  %v8374 = vadd.f32 0.0, %v8373
  %v8375 = vpop.f32.mrb[0].mxu0
  %v8376 = vadd.f32 0.0, %v8375
  %8377 = vmatprep.mubr.f32.mxu0 0.0
  %8378 = vmatmul.mubr.f32.gmra.mrb[0].mxu0 %v5786
  %v8379 = vpop.f32.mrb[0].mxu0
  %v8380 = vadd.f32 0.0, %v8379
  %v8381 = vpop.f32.mrb[0].mxu0
  %v8382 = vadd.f32 0.0, %v8381
  %8383 = vmatprep.mubr.f32.mxu0 0.0
  %8384 = vmatmul.mubr.f32.gmra.mrb[0].mxu0 %v5789
  %v8385 = vpop.f32.mrb[0].mxu0
  %v8386 = vadd.f32 0.0, %v8385
  %v8387 = vpop.f32.mrb[0].mxu0
  %v8388 = vadd.f32 0.0, %v8387
  %8389 = vdwg.mxu0
  %8390 = vmatprep.subr.mxu0 %v5549
  %8391 = vmatpush1.msra.mxu0 %v5548
  %8392 = vmatprep.subr.mxu0 %v5613
  %8393 = vmatpush1.msra.mxu0 %v5612
  %8394 = vmatprep.subr.mxu0 %v5677
  %8395 = vmatpush1.msra.mxu0 %v5676
  %8396 = vmatprep.subr.mxu0 %v5741
  %8397 = vmatpush1.msra.mxu0 %v5740
  %8398 = vmatprep.subr.mxu0 0.0
  %8399 = vmatpush1.msra.mxu0 0.0
  %8400 = vmatprep.subr.mxu0 0.0
  %8401 = vmatpush1.msra.mxu0 0.0
  %8402 = vmatprep.subr.mxu0 0.0
  %8403 = vmatpush1.msra.mxu0 0.0
  %8404 = vmatprep.subr.mxu0 0.0
  %8405 = vmatpush1.msra.mxu0 0.0
  %8406 = vmatprep.subr.mxu0 0.0
  %8407 = vmatpush1.msra.mxu0 0.0
  %8408 = vmatprep.subr.mxu0 0.0
  %8409 = vmatpush1.msra.mxu0 0.0
  %8410 = vmatprep.subr.mxu0 0.0
  %8411 = vmatpush1.msra.mxu0 0.0
  %8412 = vmatprep.subr.mxu0 0.0
  %8413 = vmatpush1.msra.mxu0 0.0
  %8414 = vmatprep.subr.mxu0 0.0
  %8415 = vmatpush1.msra.mxu0 0.0
  %8416 = vmatprep.subr.mxu0 0.0
  %8417 = vmatpush1.msra.mxu0 0.0
  %8418 = vmatprep.subr.mxu0 0.0
  %8419 = vmatpush1.msra.mxu0 0.0
  %8420 = vmatprep.subr.mxu0 0.0
  %8421 = vmatpush1.msra.mxu0 0.0
  %8422 = vmatprep.subr.mxu0 0.0
  %8423 = vmatpush1.msra.mxu0 0.0
  %8424 = vmatprep.subr.mxu0 0.0
  %8425 = vmatpush1.msra.mxu0 0.0
  %8426 = vmatprep.subr.mxu0 0.0
  %8427 = vmatpush1.msra.mxu0 0.0
  %8428 = vmatprep.subr.mxu0 0.0
  %8429 = vmatpush1.msra.mxu0 0.0
  %8430 = vmatprep.subr.mxu0 0.0
  %8431 = vmatpush1.msra.mxu0 0.0
  %8432 = vmatprep.subr.mxu0 0.0
  %8433 = vmatpush1.msra.mxu0 0.0
  %8434 = vmatprep.subr.mxu0 0.0
  %8435 = vmatpush1.msra.mxu0 0.0
  %8436 = vmatprep.subr.mxu0 0.0
  %8437 = vmatpush1.msra.mxu0 0.0
  %8438 = vmatprep.subr.mxu0 0.0
  %8439 = vmatpush1.msra.mxu0 0.0
  %8440 = vmatprep.subr.mxu0 0.0
  %8441 = vmatpush1.msra.mxu0 0.0
  %8442 = vmatprep.subr.mxu0 0.0
  %8443 = vmatpush1.msra.mxu0 0.0
  %8444 = vmatprep.subr.mxu0 0.0
  %8445 = vmatpush1.msra.mxu0 0.0
  %8446 = vmatprep.subr.mxu0 0.0
  %8447 = vmatpush1.msra.mxu0 0.0
  %8448 = vmatprep.subr.mxu0 0.0
  %8449 = vmatpush1.msra.mxu0 0.0
  %8450 = vmatprep.subr.mxu0 0.0
  %8451 = vmatpush1.msra.mxu0 0.0
  %8452 = vmatprep.subr.mxu0 0.0
  %8453 = vmatpush1.msra.mxu0 0.0
  %8454 = vmatprep.mubr.f32.mxu0 0.0
  %8455 = vmatmul.mubr.f32.gmra.mrb[0].mxu0 %v5768
  %v8456 = vpop.f32.mrb[0].mxu0
  %v8457 = vadd.f32 0.0, %v8456
  %v8458 = vpop.f32.mrb[0].mxu0
  %v8459 = vadd.f32 0.0, %v8458
  %8460 = vmatprep.mubr.f32.mxu0 0.0
  %8461 = vmatmul.mubr.f32.gmra.mrb[0].mxu0 %v5771
  %v8462 = vpop.f32.mrb[0].mxu0
  %v8463 = vadd.f32 0.0, %v8462
  %v8464 = vpop.f32.mrb[0].mxu0
  %v8465 = vadd.f32 0.0, %v8464
  %8466 = vmatprep.mubr.f32.mxu0 0.0
  %8467 = vmatmul.mubr.f32.gmra.mrb[0].mxu0 %v5774
  %v8468 = vpop.f32.mrb[0].mxu0
  %v8469 = vadd.f32 0.0, %v8468
  %v8470 = vpop.f32.mrb[0].mxu0
  %v8471 = vadd.f32 0.0, %v8470
  %8472 = vmatprep.mubr.f32.mxu0 0.0
  %8473 = vmatmul.mubr.f32.gmra.mrb[0].mxu0 %v5777
  %v8474 = vpop.f32.mrb[0].mxu0
  %v8475 = vadd.f32 0.0, %v8474
  %v8476 = vpop.f32.mrb[0].mxu0
  %v8477 = vadd.f32 0.0, %v8476
  %8478 = vmatprep.mubr.f32.mxu0 0.0
  %8479 = vmatmul.mubr.f32.gmra.mrb[0].mxu0 %v5780
  %v8480 = vpop.f32.mrb[0].mxu0
  %v8481 = vadd.f32 0.0, %v8480
  %v8482 = vpop.f32.mrb[0].mxu0
  %v8483 = vadd.f32 0.0, %v8482
  %8484 = vmatprep.mubr.f32.mxu0 0.0
  %8485 = vmatmul.mubr.f32.gmra.mrb[0].mxu0 %v5783
  %v8486 = vpop.f32.mrb[0].mxu0
  %v8487 = vadd.f32 0.0, %v8486
  %v8488 = vpop.f32.mrb[0].mxu0
  %v8489 = vadd.f32 0.0, %v8488
  %8490 = vmatprep.mubr.f32.mxu0 0.0
  %8491 = vmatmul.mubr.f32.gmra.mrb[0].mxu0 %v5786
  %v8492 = vpop.f32.mrb[0].mxu0
  %v8493 = vadd.f32 0.0, %v8492
  %v8494 = vpop.f32.mrb[0].mxu0
  %v8495 = vadd.f32 0.0, %v8494
  %8496 = vmatprep.mubr.f32.mxu0 0.0
  %8497 = vmatmul.mubr.f32.gmra.mrb[0].mxu0 %v5789
  %v8498 = vpop.f32.mrb[0].mxu0
  %v8499 = vadd.f32 0.0, %v8498
  %v8500 = vpop.f32.mrb[0].mxu0
  %v8501 = vadd.f32 0.0, %v8500
  %8502 = vdwg.mxu0
  %8503 = vmatprep.subr.mxu0 %v5551
  %8504 = vmatpush1.msra.mxu0 %v5550
  %8505 = vmatprep.subr.mxu0 %v5615
  %8506 = vmatpush1.msra.mxu0 %v5614
  %8507 = vmatprep.subr.mxu0 %v5679
  %8508 = vmatpush1.msra.mxu0 %v5678
  %8509 = vmatprep.subr.mxu0 %v5743
  %8510 = vmatpush1.msra.mxu0 %v5742
  %8511 = vmatprep.subr.mxu0 0.0
  %8512 = vmatpush1.msra.mxu0 0.0
  %8513 = vmatprep.subr.mxu0 0.0
  %8514 = vmatpush1.msra.mxu0 0.0
  %8515 = vmatprep.subr.mxu0 0.0
  %8516 = vmatpush1.msra.mxu0 0.0
  %8517 = vmatprep.subr.mxu0 0.0
  %8518 = vmatpush1.msra.mxu0 0.0
  %8519 = vmatprep.subr.mxu0 0.0
  %8520 = vmatpush1.msra.mxu0 0.0
  %8521 = vmatprep.subr.mxu0 0.0
  %8522 = vmatpush1.msra.mxu0 0.0
  %8523 = vmatprep.subr.mxu0 0.0
  %8524 = vmatpush1.msra.mxu0 0.0
  %8525 = vmatprep.subr.mxu0 0.0
  %8526 = vmatpush1.msra.mxu0 0.0
  %8527 = vmatprep.subr.mxu0 0.0
  %8528 = vmatpush1.msra.mxu0 0.0
  %8529 = vmatprep.subr.mxu0 0.0
  %8530 = vmatpush1.msra.mxu0 0.0
  %8531 = vmatprep.subr.mxu0 0.0
  %8532 = vmatpush1.msra.mxu0 0.0
  %8533 = vmatprep.subr.mxu0 0.0
  %8534 = vmatpush1.msra.mxu0 0.0
  %8535 = vmatprep.subr.mxu0 0.0
  %8536 = vmatpush1.msra.mxu0 0.0
  %8537 = vmatprep.subr.mxu0 0.0
  %8538 = vmatpush1.msra.mxu0 0.0
  %8539 = vmatprep.subr.mxu0 0.0
  %8540 = vmatpush1.msra.mxu0 0.0
  %8541 = vmatprep.subr.mxu0 0.0
  %8542 = vmatpush1.msra.mxu0 0.0
  %8543 = vmatprep.subr.mxu0 0.0
  %8544 = vmatpush1.msra.mxu0 0.0
  %8545 = vmatprep.subr.mxu0 0.0
  %8546 = vmatpush1.msra.mxu0 0.0
  %8547 = vmatprep.subr.mxu0 0.0
  %8548 = vmatpush1.msra.mxu0 0.0
  %8549 = vmatprep.subr.mxu0 0.0
  %8550 = vmatpush1.msra.mxu0 0.0
  %8551 = vmatprep.subr.mxu0 0.0
  %8552 = vmatpush1.msra.mxu0 0.0
  %8553 = vmatprep.subr.mxu0 0.0
  %8554 = vmatpush1.msra.mxu0 0.0
  %8555 = vmatprep.subr.mxu0 0.0
  %8556 = vmatpush1.msra.mxu0 0.0
  %8557 = vmatprep.subr.mxu0 0.0
  %8558 = vmatpush1.msra.mxu0 0.0
  %8559 = vmatprep.subr.mxu0 0.0
  %8560 = vmatpush1.msra.mxu0 0.0
  %8561 = vmatprep.subr.mxu0 0.0
  %8562 = vmatpush1.msra.mxu0 0.0
  %8563 = vmatprep.subr.mxu0 0.0
  %8564 = vmatpush1.msra.mxu0 0.0
  %8565 = vmatprep.subr.mxu0 0.0
  %8566 = vmatpush1.msra.mxu0 0.0
  %8567 = vmatprep.mubr.f32.mxu0 0.0
  %8568 = vmatmul.mubr.f32.gmra.mrb[0].mxu0 %v5768
  %v8569 = vpop.f32.mrb[0].mxu0
  %v8570 = vadd.f32 0.0, %v8569
  %v8571 = vpop.f32.mrb[0].mxu0
  %v8572 = vadd.f32 0.0, %v8571
  %8573 = vmatprep.mubr.f32.mxu0 0.0
  %8574 = vmatmul.mubr.f32.gmra.mrb[0].mxu0 %v5771
  %v8575 = vpop.f32.mrb[0].mxu0
  %v8576 = vadd.f32 0.0, %v8575
  %v8577 = vpop.f32.mrb[0].mxu0
  %v8578 = vadd.f32 0.0, %v8577
  %8579 = vmatprep.mubr.f32.mxu0 0.0
  %8580 = vmatmul.mubr.f32.gmra.mrb[0].mxu0 %v5774
  %v8581 = vpop.f32.mrb[0].mxu0
  %v8582 = vadd.f32 0.0, %v8581
  %v8583 = vpop.f32.mrb[0].mxu0
  %v8584 = vadd.f32 0.0, %v8583
  %8585 = vmatprep.mubr.f32.mxu0 0.0
  %8586 = vmatmul.mubr.f32.gmra.mrb[0].mxu0 %v5777
  %v8587 = vpop.f32.mrb[0].mxu0
  %v8588 = vadd.f32 0.0, %v8587
  %v8589 = vpop.f32.mrb[0].mxu0
  %v8590 = vadd.f32 0.0, %v8589
  %8591 = vmatprep.mubr.f32.mxu0 0.0
  %8592 = vmatmul.mubr.f32.gmra.mrb[0].mxu0 %v5780
  %v8593 = vpop.f32.mrb[0].mxu0
  %v8594 = vadd.f32 0.0, %v8593
  %v8595 = vpop.f32.mrb[0].mxu0
  %v8596 = vadd.f32 0.0, %v8595
  %8597 = vmatprep.mubr.f32.mxu0 0.0
  %8598 = vmatmul.mubr.f32.gmra.mrb[0].mxu0 %v5783
  %v8599 = vpop.f32.mrb[0].mxu0
  %v8600 = vadd.f32 0.0, %v8599
  %v8601 = vpop.f32.mrb[0].mxu0
  %v8602 = vadd.f32 0.0, %v8601
  %8603 = vmatprep.mubr.f32.mxu0 0.0
  %8604 = vmatmul.mubr.f32.gmra.mrb[0].mxu0 %v5786
  %v8605 = vpop.f32.mrb[0].mxu0
  %v8606 = vadd.f32 0.0, %v8605
  %v8607 = vpop.f32.mrb[0].mxu0
  %v8608 = vadd.f32 0.0, %v8607
  %8609 = vmatprep.mubr.f32.mxu0 0.0
  %8610 = vmatmul.mubr.f32.gmra.mrb[0].mxu0 %v5789
  %v8611 = vpop.f32.mrb[0].mxu0
  %v8612 = vadd.f32 0.0, %v8611
  %v8613 = vpop.f32.mrb[0].mxu0
  %v8614 = vadd.f32 0.0, %v8613
  %8615 = vdwg.mxu0
  %8616 = vmatprep.subr.mxu0 %v5553
  %8617 = vmatpush1.msra.mxu0 %v5552
  %8618 = vmatprep.subr.mxu0 %v5617
  %8619 = vmatpush1.msra.mxu0 %v5616
  %8620 = vmatprep.subr.mxu0 %v5681
  %8621 = vmatpush1.msra.mxu0 %v5680
  %8622 = vmatprep.subr.mxu0 %v5745
  %8623 = vmatpush1.msra.mxu0 %v5744
  %8624 = vmatprep.subr.mxu0 0.0
  %8625 = vmatpush1.msra.mxu0 0.0
  %8626 = vmatprep.subr.mxu0 0.0
  %8627 = vmatpush1.msra.mxu0 0.0
  %8628 = vmatprep.subr.mxu0 0.0
  %8629 = vmatpush1.msra.mxu0 0.0
  %8630 = vmatprep.subr.mxu0 0.0
  %8631 = vmatpush1.msra.mxu0 0.0
  %8632 = vmatprep.subr.mxu0 0.0
  %8633 = vmatpush1.msra.mxu0 0.0
  %8634 = vmatprep.subr.mxu0 0.0
  %8635 = vmatpush1.msra.mxu0 0.0
  %8636 = vmatprep.subr.mxu0 0.0
  %8637 = vmatpush1.msra.mxu0 0.0
  %8638 = vmatprep.subr.mxu0 0.0
  %8639 = vmatpush1.msra.mxu0 0.0
  %8640 = vmatprep.subr.mxu0 0.0
  %8641 = vmatpush1.msra.mxu0 0.0
  %8642 = vmatprep.subr.mxu0 0.0
  %8643 = vmatpush1.msra.mxu0 0.0
  %8644 = vmatprep.subr.mxu0 0.0
  %8645 = vmatpush1.msra.mxu0 0.0
  %8646 = vmatprep.subr.mxu0 0.0
  %8647 = vmatpush1.msra.mxu0 0.0
  %8648 = vmatprep.subr.mxu0 0.0
  %8649 = vmatpush1.msra.mxu0 0.0
  %8650 = vmatprep.subr.mxu0 0.0
  %8651 = vmatpush1.msra.mxu0 0.0
  %8652 = vmatprep.subr.mxu0 0.0
  %8653 = vmatpush1.msra.mxu0 0.0
  %8654 = vmatprep.subr.mxu0 0.0
  %8655 = vmatpush1.msra.mxu0 0.0
  %8656 = vmatprep.subr.mxu0 0.0
  %8657 = vmatpush1.msra.mxu0 0.0
  %8658 = vmatprep.subr.mxu0 0.0
  %8659 = vmatpush1.msra.mxu0 0.0
  %8660 = vmatprep.subr.mxu0 0.0
  %8661 = vmatpush1.msra.mxu0 0.0
  %8662 = vmatprep.subr.mxu0 0.0
  %8663 = vmatpush1.msra.mxu0 0.0
  %8664 = vmatprep.subr.mxu0 0.0
  %8665 = vmatpush1.msra.mxu0 0.0
  %8666 = vmatprep.subr.mxu0 0.0
  %8667 = vmatpush1.msra.mxu0 0.0
  %8668 = vmatprep.subr.mxu0 0.0
  %8669 = vmatpush1.msra.mxu0 0.0
  %8670 = vmatprep.subr.mxu0 0.0
  %8671 = vmatpush1.msra.mxu0 0.0
  %8672 = vmatprep.subr.mxu0 0.0
  %8673 = vmatpush1.msra.mxu0 0.0
  %8674 = vmatprep.subr.mxu0 0.0
  %8675 = vmatpush1.msra.mxu0 0.0
  %8676 = vmatprep.subr.mxu0 0.0
  %8677 = vmatpush1.msra.mxu0 0.0
  %8678 = vmatprep.subr.mxu0 0.0
  %8679 = vmatpush1.msra.mxu0 0.0
  %8680 = vmatprep.mubr.f32.mxu0 0.0
  %8681 = vmatmul.mubr.f32.gmra.mrb[0].mxu0 %v5768
  %v8682 = vpop.f32.mrb[0].mxu0
  %v8683 = vadd.f32 0.0, %v8682
  %v8684 = vpop.f32.mrb[0].mxu0
  %v8685 = vadd.f32 0.0, %v8684
  %8686 = vmatprep.mubr.f32.mxu0 0.0
  %8687 = vmatmul.mubr.f32.gmra.mrb[0].mxu0 %v5771
  %v8688 = vpop.f32.mrb[0].mxu0
  %v8689 = vadd.f32 0.0, %v8688
  %v8690 = vpop.f32.mrb[0].mxu0
  %v8691 = vadd.f32 0.0, %v8690
  %8692 = vmatprep.mubr.f32.mxu0 0.0
  %8693 = vmatmul.mubr.f32.gmra.mrb[0].mxu0 %v5774
  %v8694 = vpop.f32.mrb[0].mxu0
  %v8695 = vadd.f32 0.0, %v8694
  %v8696 = vpop.f32.mrb[0].mxu0
  %v8697 = vadd.f32 0.0, %v8696
  %8698 = vmatprep.mubr.f32.mxu0 0.0
  %8699 = vmatmul.mubr.f32.gmra.mrb[0].mxu0 %v5777
  %v8700 = vpop.f32.mrb[0].mxu0
  %v8701 = vadd.f32 0.0, %v8700
  %v8702 = vpop.f32.mrb[0].mxu0
  %v8703 = vadd.f32 0.0, %v8702
  %8704 = vmatprep.mubr.f32.mxu0 0.0
  %8705 = vmatmul.mubr.f32.gmra.mrb[0].mxu0 %v5780
  %v8706 = vpop.f32.mrb[0].mxu0
  %v8707 = vadd.f32 0.0, %v8706
  %v8708 = vpop.f32.mrb[0].mxu0
  %v8709 = vadd.f32 0.0, %v8708
  %8710 = vmatprep.mubr.f32.mxu0 0.0
  %8711 = vmatmul.mubr.f32.gmra.mrb[0].mxu0 %v5783
  %v8712 = vpop.f32.mrb[0].mxu0
  %v8713 = vadd.f32 0.0, %v8712
  %v8714 = vpop.f32.mrb[0].mxu0
  %v8715 = vadd.f32 0.0, %v8714
  %8716 = vmatprep.mubr.f32.mxu0 0.0
  %8717 = vmatmul.mubr.f32.gmra.mrb[0].mxu0 %v5786
  %v8718 = vpop.f32.mrb[0].mxu0
  %v8719 = vadd.f32 0.0, %v8718
  %v8720 = vpop.f32.mrb[0].mxu0
  %v8721 = vadd.f32 0.0, %v8720
  %8722 = vmatprep.mubr.f32.mxu0 0.0
  %8723 = vmatmul.mubr.f32.gmra.mrb[0].mxu0 %v5789
  %v8724 = vpop.f32.mrb[0].mxu0
  %v8725 = vadd.f32 0.0, %v8724
  %v8726 = vpop.f32.mrb[0].mxu0
  %v8727 = vadd.f32 0.0, %v8726
  %8728 = vdwg.mxu0
  %8729 = vmatprep.subr.mxu0 %v5555
  %8730 = vmatpush1.msra.mxu0 %v5554
  %8731 = vmatprep.subr.mxu0 %v5619
  %8732 = vmatpush1.msra.mxu0 %v5618
  %8733 = vmatprep.subr.mxu0 %v5683
  %8734 = vmatpush1.msra.mxu0 %v5682
  %8735 = vmatprep.subr.mxu0 %v5747
  %8736 = vmatpush1.msra.mxu0 %v5746
  %8737 = vmatprep.subr.mxu0 0.0
  %8738 = vmatpush1.msra.mxu0 0.0
  %8739 = vmatprep.subr.mxu0 0.0
  %8740 = vmatpush1.msra.mxu0 0.0
  %8741 = vmatprep.subr.mxu0 0.0
  %8742 = vmatpush1.msra.mxu0 0.0
  %8743 = vmatprep.subr.mxu0 0.0
  %8744 = vmatpush1.msra.mxu0 0.0
  %8745 = vmatprep.subr.mxu0 0.0
  %8746 = vmatpush1.msra.mxu0 0.0
  %8747 = vmatprep.subr.mxu0 0.0
  %8748 = vmatpush1.msra.mxu0 0.0
  %8749 = vmatprep.subr.mxu0 0.0
  %8750 = vmatpush1.msra.mxu0 0.0
  %8751 = vmatprep.subr.mxu0 0.0
  %8752 = vmatpush1.msra.mxu0 0.0
  %8753 = vmatprep.subr.mxu0 0.0
  %8754 = vmatpush1.msra.mxu0 0.0
  %8755 = vmatprep.subr.mxu0 0.0
  %8756 = vmatpush1.msra.mxu0 0.0
  %8757 = vmatprep.subr.mxu0 0.0
  %8758 = vmatpush1.msra.mxu0 0.0
  %8759 = vmatprep.subr.mxu0 0.0
  %8760 = vmatpush1.msra.mxu0 0.0
  %8761 = vmatprep.subr.mxu0 0.0
  %8762 = vmatpush1.msra.mxu0 0.0
  %8763 = vmatprep.subr.mxu0 0.0
  %8764 = vmatpush1.msra.mxu0 0.0
  %8765 = vmatprep.subr.mxu0 0.0
  %8766 = vmatpush1.msra.mxu0 0.0
  %8767 = vmatprep.subr.mxu0 0.0
  %8768 = vmatpush1.msra.mxu0 0.0
  %8769 = vmatprep.subr.mxu0 0.0
  %8770 = vmatpush1.msra.mxu0 0.0
  %8771 = vmatprep.subr.mxu0 0.0
  %8772 = vmatpush1.msra.mxu0 0.0
  %8773 = vmatprep.subr.mxu0 0.0
  %8774 = vmatpush1.msra.mxu0 0.0
  %8775 = vmatprep.subr.mxu0 0.0
  %8776 = vmatpush1.msra.mxu0 0.0
  %8777 = vmatprep.subr.mxu0 0.0
  %8778 = vmatpush1.msra.mxu0 0.0
  %8779 = vmatprep.subr.mxu0 0.0
  %8780 = vmatpush1.msra.mxu0 0.0
  %8781 = vmatprep.subr.mxu0 0.0
  %8782 = vmatpush1.msra.mxu0 0.0
  %8783 = vmatprep.subr.mxu0 0.0
  %8784 = vmatpush1.msra.mxu0 0.0
  %8785 = vmatprep.subr.mxu0 0.0
  %8786 = vmatpush1.msra.mxu0 0.0
  %8787 = vmatprep.subr.mxu0 0.0
  %8788 = vmatpush1.msra.mxu0 0.0
  %8789 = vmatprep.subr.mxu0 0.0
  %8790 = vmatpush1.msra.mxu0 0.0
  %8791 = vmatprep.subr.mxu0 0.0
  %8792 = vmatpush1.msra.mxu0 0.0
  %8793 = vmatprep.mubr.f32.mxu0 0.0
  %8794 = vmatmul.mubr.f32.gmra.mrb[0].mxu0 %v5768
  %v8795 = vpop.f32.mrb[0].mxu0
  %v8796 = vadd.f32 0.0, %v8795
  %v8797 = vpop.f32.mrb[0].mxu0
  %v8798 = vadd.f32 0.0, %v8797
  %8799 = vmatprep.mubr.f32.mxu0 0.0
  %8800 = vmatmul.mubr.f32.gmra.mrb[0].mxu0 %v5771
  %v8801 = vpop.f32.mrb[0].mxu0
  %v8802 = vadd.f32 0.0, %v8801
  %v8803 = vpop.f32.mrb[0].mxu0
  %v8804 = vadd.f32 0.0, %v8803
  %8805 = vmatprep.mubr.f32.mxu0 0.0
  %8806 = vmatmul.mubr.f32.gmra.mrb[0].mxu0 %v5774
  %v8807 = vpop.f32.mrb[0].mxu0
  %v8808 = vadd.f32 0.0, %v8807
  %v8809 = vpop.f32.mrb[0].mxu0
  %v8810 = vadd.f32 0.0, %v8809
  %8811 = vmatprep.mubr.f32.mxu0 0.0
  %8812 = vmatmul.mubr.f32.gmra.mrb[0].mxu0 %v5777
  %v8813 = vpop.f32.mrb[0].mxu0
  %v8814 = vadd.f32 0.0, %v8813
  %v8815 = vpop.f32.mrb[0].mxu0
  %v8816 = vadd.f32 0.0, %v8815
  %8817 = vmatprep.mubr.f32.mxu0 0.0
  %8818 = vmatmul.mubr.f32.gmra.mrb[0].mxu0 %v5780
  %v8819 = vpop.f32.mrb[0].mxu0
  %v8820 = vadd.f32 0.0, %v8819
  %v8821 = vpop.f32.mrb[0].mxu0
  %v8822 = vadd.f32 0.0, %v8821
  %8823 = vmatprep.mubr.f32.mxu0 0.0
  %8824 = vmatmul.mubr.f32.gmra.mrb[0].mxu0 %v5783
  %v8825 = vpop.f32.mrb[0].mxu0
  %v8826 = vadd.f32 0.0, %v8825
  %v8827 = vpop.f32.mrb[0].mxu0
  %v8828 = vadd.f32 0.0, %v8827
  %8829 = vmatprep.mubr.f32.mxu0 0.0
  %8830 = vmatmul.mubr.f32.gmra.mrb[0].mxu0 %v5786
  %v8831 = vpop.f32.mrb[0].mxu0
  %v8832 = vadd.f32 0.0, %v8831
  %v8833 = vpop.f32.mrb[0].mxu0
  %v8834 = vadd.f32 0.0, %v8833
  %8835 = vmatprep.mubr.f32.mxu0 0.0
  %8836 = vmatmul.mubr.f32.gmra.mrb[0].mxu0 %v5789
  %v8837 = vpop.f32.mrb[0].mxu0
  %v8838 = vadd.f32 0.0, %v8837
  %v8839 = vpop.f32.mrb[0].mxu0
  %v8840 = vadd.f32 0.0, %v8839
  %8841 = vdwg.mxu0
  %8842 = vmatprep.subr.mxu0 %v5557
  %8843 = vmatpush1.msra.mxu0 %v5556
  %8844 = vmatprep.subr.mxu0 %v5621
  %8845 = vmatpush1.msra.mxu0 %v5620
  %8846 = vmatprep.subr.mxu0 %v5685
  %8847 = vmatpush1.msra.mxu0 %v5684
  %8848 = vmatprep.subr.mxu0 %v5749
  %8849 = vmatpush1.msra.mxu0 %v5748
  %8850 = vmatprep.subr.mxu0 0.0
  %8851 = vmatpush1.msra.mxu0 0.0
  %8852 = vmatprep.subr.mxu0 0.0
  %8853 = vmatpush1.msra.mxu0 0.0
  %8854 = vmatprep.subr.mxu0 0.0
  %8855 = vmatpush1.msra.mxu0 0.0
  %8856 = vmatprep.subr.mxu0 0.0
  %8857 = vmatpush1.msra.mxu0 0.0
  %8858 = vmatprep.subr.mxu0 0.0
  %8859 = vmatpush1.msra.mxu0 0.0
  %8860 = vmatprep.subr.mxu0 0.0
  %8861 = vmatpush1.msra.mxu0 0.0
  %8862 = vmatprep.subr.mxu0 0.0
  %8863 = vmatpush1.msra.mxu0 0.0
  %8864 = vmatprep.subr.mxu0 0.0
  %8865 = vmatpush1.msra.mxu0 0.0
  %8866 = vmatprep.subr.mxu0 0.0
  %8867 = vmatpush1.msra.mxu0 0.0
  %8868 = vmatprep.subr.mxu0 0.0
  %8869 = vmatpush1.msra.mxu0 0.0
  %8870 = vmatprep.subr.mxu0 0.0
  %8871 = vmatpush1.msra.mxu0 0.0
  %8872 = vmatprep.subr.mxu0 0.0
  %8873 = vmatpush1.msra.mxu0 0.0
  %8874 = vmatprep.subr.mxu0 0.0
  %8875 = vmatpush1.msra.mxu0 0.0
  %8876 = vmatprep.subr.mxu0 0.0
  %8877 = vmatpush1.msra.mxu0 0.0
  %8878 = vmatprep.subr.mxu0 0.0
  %8879 = vmatpush1.msra.mxu0 0.0
  %8880 = vmatprep.subr.mxu0 0.0
  %8881 = vmatpush1.msra.mxu0 0.0
  %8882 = vmatprep.subr.mxu0 0.0
  %8883 = vmatpush1.msra.mxu0 0.0
  %8884 = vmatprep.subr.mxu0 0.0
  %8885 = vmatpush1.msra.mxu0 0.0
  %8886 = vmatprep.subr.mxu0 0.0
  %8887 = vmatpush1.msra.mxu0 0.0
  %8888 = vmatprep.subr.mxu0 0.0
  %8889 = vmatpush1.msra.mxu0 0.0
  %8890 = vmatprep.subr.mxu0 0.0
  %8891 = vmatpush1.msra.mxu0 0.0
  %8892 = vmatprep.subr.mxu0 0.0
  %8893 = vmatpush1.msra.mxu0 0.0
  %8894 = vmatprep.subr.mxu0 0.0
  %8895 = vmatpush1.msra.mxu0 0.0
  %8896 = vmatprep.subr.mxu0 0.0
  %8897 = vmatpush1.msra.mxu0 0.0
  %8898 = vmatprep.subr.mxu0 0.0
  %8899 = vmatpush1.msra.mxu0 0.0
  %8900 = vmatprep.subr.mxu0 0.0
  %8901 = vmatpush1.msra.mxu0 0.0
  %8902 = vmatprep.subr.mxu0 0.0
  %8903 = vmatpush1.msra.mxu0 0.0
  %8904 = vmatprep.subr.mxu0 0.0
  %8905 = vmatpush1.msra.mxu0 0.0
  %8906 = vmatprep.mubr.f32.mxu0 0.0
  %8907 = vmatmul.mubr.f32.gmra.mrb[0].mxu0 %v5768
  %v8908 = vpop.f32.mrb[0].mxu0
  %v8909 = vadd.f32 0.0, %v8908
  %v8910 = vpop.f32.mrb[0].mxu0
  %v8911 = vadd.f32 0.0, %v8910
  %8912 = vmatprep.mubr.f32.mxu0 0.0
  %8913 = vmatmul.mubr.f32.gmra.mrb[0].mxu0 %v5771
  %v8914 = vpop.f32.mrb[0].mxu0
  %v8915 = vadd.f32 0.0, %v8914
  %v8916 = vpop.f32.mrb[0].mxu0
  %v8917 = vadd.f32 0.0, %v8916
  %8918 = vmatprep.mubr.f32.mxu0 0.0
  %8919 = vmatmul.mubr.f32.gmra.mrb[0].mxu0 %v5774
  %v8920 = vpop.f32.mrb[0].mxu0
  %v8921 = vadd.f32 0.0, %v8920
  %v8922 = vpop.f32.mrb[0].mxu0
  %v8923 = vadd.f32 0.0, %v8922
  %8924 = vmatprep.mubr.f32.mxu0 0.0
  %8925 = vmatmul.mubr.f32.gmra.mrb[0].mxu0 %v5777
  %v8926 = vpop.f32.mrb[0].mxu0
  %v8927 = vadd.f32 0.0, %v8926
  %v8928 = vpop.f32.mrb[0].mxu0
  %v8929 = vadd.f32 0.0, %v8928
  %8930 = vmatprep.mubr.f32.mxu0 0.0
  %8931 = vmatmul.mubr.f32.gmra.mrb[0].mxu0 %v5780
  %v8932 = vpop.f32.mrb[0].mxu0
  %v8933 = vadd.f32 0.0, %v8932
  %v8934 = vpop.f32.mrb[0].mxu0
  %v8935 = vadd.f32 0.0, %v8934
  %8936 = vmatprep.mubr.f32.mxu0 0.0
  %8937 = vmatmul.mubr.f32.gmra.mrb[0].mxu0 %v5783
  %v8938 = vpop.f32.mrb[0].mxu0
  %v8939 = vadd.f32 0.0, %v8938
  %v8940 = vpop.f32.mrb[0].mxu0
  %v8941 = vadd.f32 0.0, %v8940
  %8942 = vmatprep.mubr.f32.mxu0 0.0
  %8943 = vmatmul.mubr.f32.gmra.mrb[0].mxu0 %v5786
  %v8944 = vpop.f32.mrb[0].mxu0
  %v8945 = vadd.f32 0.0, %v8944
  %v8946 = vpop.f32.mrb[0].mxu0
  %v8947 = vadd.f32 0.0, %v8946
  %8948 = vmatprep.mubr.f32.mxu0 0.0
  %8949 = vmatmul.mubr.f32.gmra.mrb[0].mxu0 %v5789
  %v8950 = vpop.f32.mrb[0].mxu0
  %v8951 = vadd.f32 0.0, %v8950
  %v8952 = vpop.f32.mrb[0].mxu0
  %v8953 = vadd.f32 0.0, %v8952
  %8954 = vdwg.mxu0
  %8955 = vmatprep.subr.mxu0 %v5559
  %8956 = vmatpush1.msra.mxu0 %v5558
  %8957 = vmatprep.subr.mxu0 %v5623
  %8958 = vmatpush1.msra.mxu0 %v5622
  %8959 = vmatprep.subr.mxu0 %v5687
  %8960 = vmatpush1.msra.mxu0 %v5686
  %8961 = vmatprep.subr.mxu0 %v5751
  %8962 = vmatpush1.msra.mxu0 %v5750
  %8963 = vmatprep.subr.mxu0 0.0
  %8964 = vmatpush1.msra.mxu0 0.0
  %8965 = vmatprep.subr.mxu0 0.0
  %8966 = vmatpush1.msra.mxu0 0.0
  %8967 = vmatprep.subr.mxu0 0.0
  %8968 = vmatpush1.msra.mxu0 0.0
  %8969 = vmatprep.subr.mxu0 0.0
  %8970 = vmatpush1.msra.mxu0 0.0
  %8971 = vmatprep.subr.mxu0 0.0
  %8972 = vmatpush1.msra.mxu0 0.0
  %8973 = vmatprep.subr.mxu0 0.0
  %8974 = vmatpush1.msra.mxu0 0.0
  %8975 = vmatprep.subr.mxu0 0.0
  %8976 = vmatpush1.msra.mxu0 0.0
  %8977 = vmatprep.subr.mxu0 0.0
  %8978 = vmatpush1.msra.mxu0 0.0
  %8979 = vmatprep.subr.mxu0 0.0
  %8980 = vmatpush1.msra.mxu0 0.0
  %8981 = vmatprep.subr.mxu0 0.0
  %8982 = vmatpush1.msra.mxu0 0.0
  %8983 = vmatprep.subr.mxu0 0.0
  %8984 = vmatpush1.msra.mxu0 0.0
  %8985 = vmatprep.subr.mxu0 0.0
  %8986 = vmatpush1.msra.mxu0 0.0
  %8987 = vmatprep.subr.mxu0 0.0
  %8988 = vmatpush1.msra.mxu0 0.0
  %8989 = vmatprep.subr.mxu0 0.0
  %8990 = vmatpush1.msra.mxu0 0.0
  %8991 = vmatprep.subr.mxu0 0.0
  %8992 = vmatpush1.msra.mxu0 0.0
  %8993 = vmatprep.subr.mxu0 0.0
  %8994 = vmatpush1.msra.mxu0 0.0
  %8995 = vmatprep.subr.mxu0 0.0
  %8996 = vmatpush1.msra.mxu0 0.0
  %8997 = vmatprep.subr.mxu0 0.0
  %8998 = vmatpush1.msra.mxu0 0.0
  %8999 = vmatprep.subr.mxu0 0.0
  %9000 = vmatpush1.msra.mxu0 0.0
  %9001 = vmatprep.subr.mxu0 0.0
  %9002 = vmatpush1.msra.mxu0 0.0
  %9003 = vmatprep.subr.mxu0 0.0
  %9004 = vmatpush1.msra.mxu0 0.0
  %9005 = vmatprep.subr.mxu0 0.0
  %9006 = vmatpush1.msra.mxu0 0.0
  %9007 = vmatprep.subr.mxu0 0.0
  %9008 = vmatpush1.msra.mxu0 0.0
  %9009 = vmatprep.subr.mxu0 0.0
  %9010 = vmatpush1.msra.mxu0 0.0
  %9011 = vmatprep.subr.mxu0 0.0
  %9012 = vmatpush1.msra.mxu0 0.0
  %9013 = vmatprep.subr.mxu0 0.0
  %9014 = vmatpush1.msra.mxu0 0.0
  %9015 = vmatprep.subr.mxu0 0.0
  %9016 = vmatpush1.msra.mxu0 0.0
  %9017 = vmatprep.subr.mxu0 0.0
  %9018 = vmatpush1.msra.mxu0 0.0
  %9019 = vmatprep.mubr.f32.mxu0 0.0
  %9020 = vmatmul.mubr.f32.gmra.mrb[0].mxu0 %v5768
  %v9021 = vpop.f32.mrb[0].mxu0
  %v9022 = vadd.f32 0.0, %v9021
  %v9023 = vpop.f32.mrb[0].mxu0
  %v9024 = vadd.f32 0.0, %v9023
  %9025 = vmatprep.mubr.f32.mxu0 0.0
  %9026 = vmatmul.mubr.f32.gmra.mrb[0].mxu0 %v5771
  %v9027 = vpop.f32.mrb[0].mxu0
  %v9028 = vadd.f32 0.0, %v9027
  %v9029 = vpop.f32.mrb[0].mxu0
  %v9030 = vadd.f32 0.0, %v9029
  %9031 = vmatprep.mubr.f32.mxu0 0.0
  %9032 = vmatmul.mubr.f32.gmra.mrb[0].mxu0 %v5774
  %v9033 = vpop.f32.mrb[0].mxu0
  %v9034 = vadd.f32 0.0, %v9033
  %v9035 = vpop.f32.mrb[0].mxu0
  %v9036 = vadd.f32 0.0, %v9035
  %9037 = vmatprep.mubr.f32.mxu0 0.0
  %9038 = vmatmul.mubr.f32.gmra.mrb[0].mxu0 %v5777
  %v9039 = vpop.f32.mrb[0].mxu0
  %v9040 = vadd.f32 0.0, %v9039
  %v9041 = vpop.f32.mrb[0].mxu0
  %v9042 = vadd.f32 0.0, %v9041
  %9043 = vmatprep.mubr.f32.mxu0 0.0
  %9044 = vmatmul.mubr.f32.gmra.mrb[0].mxu0 %v5780
  %v9045 = vpop.f32.mrb[0].mxu0
  %v9046 = vadd.f32 0.0, %v9045
  %v9047 = vpop.f32.mrb[0].mxu0
  %v9048 = vadd.f32 0.0, %v9047
  %9049 = vmatprep.mubr.f32.mxu0 0.0
  %9050 = vmatmul.mubr.f32.gmra.mrb[0].mxu0 %v5783
  %v9051 = vpop.f32.mrb[0].mxu0
  %v9052 = vadd.f32 0.0, %v9051
  %v9053 = vpop.f32.mrb[0].mxu0
  %v9054 = vadd.f32 0.0, %v9053
  %9055 = vmatprep.mubr.f32.mxu0 0.0
  %9056 = vmatmul.mubr.f32.gmra.mrb[0].mxu0 %v5786
  %v9057 = vpop.f32.mrb[0].mxu0
  %v9058 = vadd.f32 0.0, %v9057
  %v9059 = vpop.f32.mrb[0].mxu0
  %v9060 = vadd.f32 0.0, %v9059
  %9061 = vmatprep.mubr.f32.mxu0 0.0
  %9062 = vmatmul.mubr.f32.gmra.mrb[0].mxu0 %v5789
  %v9063 = vpop.f32.mrb[0].mxu0
  %v9064 = vadd.f32 0.0, %v9063
  %v9065 = vpop.f32.mrb[0].mxu0
  %v9066 = vadd.f32 0.0, %v9065
  %9067 = vdwg.mxu0
  %9068 = vmatprep.subr.mxu0 %v5561
  %9069 = vmatpush1.msra.mxu0 %v5560
  %9070 = vmatprep.subr.mxu0 %v5625
  %9071 = vmatpush1.msra.mxu0 %v5624
  %9072 = vmatprep.subr.mxu0 %v5689
  %9073 = vmatpush1.msra.mxu0 %v5688
  %9074 = vmatprep.subr.mxu0 %v5753
  %9075 = vmatpush1.msra.mxu0 %v5752
  %9076 = vmatprep.subr.mxu0 0.0
  %9077 = vmatpush1.msra.mxu0 0.0
  %9078 = vmatprep.subr.mxu0 0.0
  %9079 = vmatpush1.msra.mxu0 0.0
  %9080 = vmatprep.subr.mxu0 0.0
  %9081 = vmatpush1.msra.mxu0 0.0
  %9082 = vmatprep.subr.mxu0 0.0
  %9083 = vmatpush1.msra.mxu0 0.0
  %9084 = vmatprep.subr.mxu0 0.0
  %9085 = vmatpush1.msra.mxu0 0.0
  %9086 = vmatprep.subr.mxu0 0.0
  %9087 = vmatpush1.msra.mxu0 0.0
  %9088 = vmatprep.subr.mxu0 0.0
  %9089 = vmatpush1.msra.mxu0 0.0
  %9090 = vmatprep.subr.mxu0 0.0
  %9091 = vmatpush1.msra.mxu0 0.0
  %9092 = vmatprep.subr.mxu0 0.0
  %9093 = vmatpush1.msra.mxu0 0.0
  %9094 = vmatprep.subr.mxu0 0.0
  %9095 = vmatpush1.msra.mxu0 0.0
  %9096 = vmatprep.subr.mxu0 0.0
  %9097 = vmatpush1.msra.mxu0 0.0
  %9098 = vmatprep.subr.mxu0 0.0
  %9099 = vmatpush1.msra.mxu0 0.0
  %9100 = vmatprep.subr.mxu0 0.0
  %9101 = vmatpush1.msra.mxu0 0.0
  %9102 = vmatprep.subr.mxu0 0.0
  %9103 = vmatpush1.msra.mxu0 0.0
  %9104 = vmatprep.subr.mxu0 0.0
  %9105 = vmatpush1.msra.mxu0 0.0
  %9106 = vmatprep.subr.mxu0 0.0
  %9107 = vmatpush1.msra.mxu0 0.0
  %9108 = vmatprep.subr.mxu0 0.0
  %9109 = vmatpush1.msra.mxu0 0.0
  %9110 = vmatprep.subr.mxu0 0.0
  %9111 = vmatpush1.msra.mxu0 0.0
  %9112 = vmatprep.subr.mxu0 0.0
  %9113 = vmatpush1.msra.mxu0 0.0
  %9114 = vmatprep.subr.mxu0 0.0
  %9115 = vmatpush1.msra.mxu0 0.0
  %9116 = vmatprep.subr.mxu0 0.0
  %9117 = vmatpush1.msra.mxu0 0.0
  %9118 = vmatprep.subr.mxu0 0.0
  %9119 = vmatpush1.msra.mxu0 0.0
  %9120 = vmatprep.subr.mxu0 0.0
  %9121 = vmatpush1.msra.mxu0 0.0
  %9122 = vmatprep.subr.mxu0 0.0
  %9123 = vmatpush1.msra.mxu0 0.0
  %9124 = vmatprep.subr.mxu0 0.0
  %9125 = vmatpush1.msra.mxu0 0.0
  %9126 = vmatprep.subr.mxu0 0.0
  %9127 = vmatpush1.msra.mxu0 0.0
  %9128 = vmatprep.subr.mxu0 0.0
  %9129 = vmatpush1.msra.mxu0 0.0
  %9130 = vmatprep.subr.mxu0 0.0
  %9131 = vmatpush1.msra.mxu0 0.0
  %9132 = vmatprep.mubr.f32.mxu0 0.0
  %9133 = vmatmul.mubr.f32.gmra.mrb[0].mxu0 %v5768
  %v9134 = vpop.f32.mrb[0].mxu0
  %v9135 = vadd.f32 0.0, %v9134
  %v9136 = vpop.f32.mrb[0].mxu0
  %v9137 = vadd.f32 0.0, %v9136
  %9138 = vmatprep.mubr.f32.mxu0 0.0
  %9139 = vmatmul.mubr.f32.gmra.mrb[0].mxu0 %v5771
  %v9140 = vpop.f32.mrb[0].mxu0
  %v9141 = vadd.f32 0.0, %v9140
  %v9142 = vpop.f32.mrb[0].mxu0
  %v9143 = vadd.f32 0.0, %v9142
  %9144 = vmatprep.mubr.f32.mxu0 0.0
  %9145 = vmatmul.mubr.f32.gmra.mrb[0].mxu0 %v5774
  %v9146 = vpop.f32.mrb[0].mxu0
  %v9147 = vadd.f32 0.0, %v9146
  %v9148 = vpop.f32.mrb[0].mxu0
  %v9149 = vadd.f32 0.0, %v9148
  %9150 = vmatprep.mubr.f32.mxu0 0.0
  %9151 = vmatmul.mubr.f32.gmra.mrb[0].mxu0 %v5777
  %v9152 = vpop.f32.mrb[0].mxu0
  %v9153 = vadd.f32 0.0, %v9152
  %v9154 = vpop.f32.mrb[0].mxu0
  %v9155 = vadd.f32 0.0, %v9154
  %9156 = vmatprep.mubr.f32.mxu0 0.0
  %9157 = vmatmul.mubr.f32.gmra.mrb[0].mxu0 %v5780
  %v9158 = vpop.f32.mrb[0].mxu0
  %v9159 = vadd.f32 0.0, %v9158
  %v9160 = vpop.f32.mrb[0].mxu0
  %v9161 = vadd.f32 0.0, %v9160
  %9162 = vmatprep.mubr.f32.mxu0 0.0
  %9163 = vmatmul.mubr.f32.gmra.mrb[0].mxu0 %v5783
  %v9164 = vpop.f32.mrb[0].mxu0
  %v9165 = vadd.f32 0.0, %v9164
  %v9166 = vpop.f32.mrb[0].mxu0
  %v9167 = vadd.f32 0.0, %v9166
  %9168 = vmatprep.mubr.f32.mxu0 0.0
  %9169 = vmatmul.mubr.f32.gmra.mrb[0].mxu0 %v5786
  %v9170 = vpop.f32.mrb[0].mxu0
  %v9171 = vadd.f32 0.0, %v9170
  %v9172 = vpop.f32.mrb[0].mxu0
  %v9173 = vadd.f32 0.0, %v9172
  %9174 = vmatprep.mubr.f32.mxu0 0.0
  %9175 = vmatmul.mubr.f32.gmra.mrb[0].mxu0 %v5789
  %v9176 = vpop.f32.mrb[0].mxu0
  %v9177 = vadd.f32 0.0, %v9176
  %v9178 = vpop.f32.mrb[0].mxu0
  %v9179 = vadd.f32 0.0, %v9178
  %9180 = vdwg.mxu0
  %9181 = vmatprep.subr.mxu0 %v5563
  %9182 = vmatpush1.msra.mxu0 %v5562
  %9183 = vmatprep.subr.mxu0 %v5627
  %9184 = vmatpush1.msra.mxu0 %v5626
  %9185 = vmatprep.subr.mxu0 %v5691
  %9186 = vmatpush1.msra.mxu0 %v5690
  %9187 = vmatprep.subr.mxu0 %v5755
  %9188 = vmatpush1.msra.mxu0 %v5754
  %9189 = vmatprep.subr.mxu0 0.0
  %9190 = vmatpush1.msra.mxu0 0.0
  %9191 = vmatprep.subr.mxu0 0.0
  %9192 = vmatpush1.msra.mxu0 0.0
  %9193 = vmatprep.subr.mxu0 0.0
  %9194 = vmatpush1.msra.mxu0 0.0
  %9195 = vmatprep.subr.mxu0 0.0
  %9196 = vmatpush1.msra.mxu0 0.0
  %9197 = vmatprep.subr.mxu0 0.0
  %9198 = vmatpush1.msra.mxu0 0.0
  %9199 = vmatprep.subr.mxu0 0.0
  %9200 = vmatpush1.msra.mxu0 0.0
  %9201 = vmatprep.subr.mxu0 0.0
  %9202 = vmatpush1.msra.mxu0 0.0
  %9203 = vmatprep.subr.mxu0 0.0
  %9204 = vmatpush1.msra.mxu0 0.0
  %9205 = vmatprep.subr.mxu0 0.0
  %9206 = vmatpush1.msra.mxu0 0.0
  %9207 = vmatprep.subr.mxu0 0.0
  %9208 = vmatpush1.msra.mxu0 0.0
  %9209 = vmatprep.subr.mxu0 0.0
  %9210 = vmatpush1.msra.mxu0 0.0
  %9211 = vmatprep.subr.mxu0 0.0
  %9212 = vmatpush1.msra.mxu0 0.0
  %9213 = vmatprep.subr.mxu0 0.0
  %9214 = vmatpush1.msra.mxu0 0.0
  %9215 = vmatprep.subr.mxu0 0.0
  %9216 = vmatpush1.msra.mxu0 0.0
  %9217 = vmatprep.subr.mxu0 0.0
  %9218 = vmatpush1.msra.mxu0 0.0
  %9219 = vmatprep.subr.mxu0 0.0
  %9220 = vmatpush1.msra.mxu0 0.0
  %9221 = vmatprep.subr.mxu0 0.0
  %9222 = vmatpush1.msra.mxu0 0.0
  %9223 = vmatprep.subr.mxu0 0.0
  %9224 = vmatpush1.msra.mxu0 0.0
  %9225 = vmatprep.subr.mxu0 0.0
  %9226 = vmatpush1.msra.mxu0 0.0
  %9227 = vmatprep.subr.mxu0 0.0
  %9228 = vmatpush1.msra.mxu0 0.0
  %9229 = vmatprep.subr.mxu0 0.0
  %9230 = vmatpush1.msra.mxu0 0.0
  %9231 = vmatprep.subr.mxu0 0.0
  %9232 = vmatpush1.msra.mxu0 0.0
  %9233 = vmatprep.subr.mxu0 0.0
  %9234 = vmatpush1.msra.mxu0 0.0
  %9235 = vmatprep.subr.mxu0 0.0
  %9236 = vmatpush1.msra.mxu0 0.0
  %9237 = vmatprep.subr.mxu0 0.0
  %9238 = vmatpush1.msra.mxu0 0.0
  %9239 = vmatprep.subr.mxu0 0.0
  %9240 = vmatpush1.msra.mxu0 0.0
  %9241 = vmatprep.subr.mxu0 0.0
  %9242 = vmatpush1.msra.mxu0 0.0
  %9243 = vmatprep.subr.mxu0 0.0
  %9244 = vmatpush1.msra.mxu0 0.0
  %9245 = vmatprep.mubr.f32.mxu0 0.0
  %9246 = vmatmul.mubr.f32.gmra.mrb[0].mxu0 %v5768
  %v9247 = vpop.f32.mrb[0].mxu0
  %v9248 = vadd.f32 0.0, %v9247
  %v9249 = vpop.f32.mrb[0].mxu0
  %v9250 = vadd.f32 0.0, %v9249
  %9251 = vmatprep.mubr.f32.mxu0 0.0
  %9252 = vmatmul.mubr.f32.gmra.mrb[0].mxu0 %v5771
  %v9253 = vpop.f32.mrb[0].mxu0
  %v9254 = vadd.f32 0.0, %v9253
  %v9255 = vpop.f32.mrb[0].mxu0
  %v9256 = vadd.f32 0.0, %v9255
  %9257 = vmatprep.mubr.f32.mxu0 0.0
  %9258 = vmatmul.mubr.f32.gmra.mrb[0].mxu0 %v5774
  %v9259 = vpop.f32.mrb[0].mxu0
  %v9260 = vadd.f32 0.0, %v9259
  %v9261 = vpop.f32.mrb[0].mxu0
  %v9262 = vadd.f32 0.0, %v9261
  %9263 = vmatprep.mubr.f32.mxu0 0.0
  %9264 = vmatmul.mubr.f32.gmra.mrb[0].mxu0 %v5777
  %v9265 = vpop.f32.mrb[0].mxu0
  %v9266 = vadd.f32 0.0, %v9265
  %v9267 = vpop.f32.mrb[0].mxu0
  %v9268 = vadd.f32 0.0, %v9267
  %9269 = vmatprep.mubr.f32.mxu0 0.0
  %9270 = vmatmul.mubr.f32.gmra.mrb[0].mxu0 %v5780
  %v9271 = vpop.f32.mrb[0].mxu0
  %v9272 = vadd.f32 0.0, %v9271
  %v9273 = vpop.f32.mrb[0].mxu0
  %v9274 = vadd.f32 0.0, %v9273
  %9275 = vmatprep.mubr.f32.mxu0 0.0
  %9276 = vmatmul.mubr.f32.gmra.mrb[0].mxu0 %v5783
  %v9277 = vpop.f32.mrb[0].mxu0
  %v9278 = vadd.f32 0.0, %v9277
  %v9279 = vpop.f32.mrb[0].mxu0
  %v9280 = vadd.f32 0.0, %v9279
  %9281 = vmatprep.mubr.f32.mxu0 0.0
  %9282 = vmatmul.mubr.f32.gmra.mrb[0].mxu0 %v5786
  %v9283 = vpop.f32.mrb[0].mxu0
  %v9284 = vadd.f32 0.0, %v9283
  %v9285 = vpop.f32.mrb[0].mxu0
  %v9286 = vadd.f32 0.0, %v9285
  %9287 = vmatprep.mubr.f32.mxu0 0.0
  %9288 = vmatmul.mubr.f32.gmra.mrb[0].mxu0 %v5789
  %v9289 = vpop.f32.mrb[0].mxu0
  %v9290 = vadd.f32 0.0, %v9289
  %v9291 = vpop.f32.mrb[0].mxu0
  %v9292 = vadd.f32 0.0, %v9291
  %9293 = vdwg.mxu0
  %9294 = vmatprep.subr.mxu0 %v5565
  %9295 = vmatpush1.msra.mxu0 %v5564
  %9296 = vmatprep.subr.mxu0 %v5629
  %9297 = vmatpush1.msra.mxu0 %v5628
  %9298 = vmatprep.subr.mxu0 %v5693
  %9299 = vmatpush1.msra.mxu0 %v5692
  %9300 = vmatprep.subr.mxu0 %v5757
  %9301 = vmatpush1.msra.mxu0 %v5756
  %9302 = vmatprep.subr.mxu0 0.0
  %9303 = vmatpush1.msra.mxu0 0.0
  %9304 = vmatprep.subr.mxu0 0.0
  %9305 = vmatpush1.msra.mxu0 0.0
  %9306 = vmatprep.subr.mxu0 0.0
  %9307 = vmatpush1.msra.mxu0 0.0
  %9308 = vmatprep.subr.mxu0 0.0
  %9309 = vmatpush1.msra.mxu0 0.0
  %9310 = vmatprep.subr.mxu0 0.0
  %9311 = vmatpush1.msra.mxu0 0.0
  %9312 = vmatprep.subr.mxu0 0.0
  %9313 = vmatpush1.msra.mxu0 0.0
  %9314 = vmatprep.subr.mxu0 0.0
  %9315 = vmatpush1.msra.mxu0 0.0
  %9316 = vmatprep.subr.mxu0 0.0
  %9317 = vmatpush1.msra.mxu0 0.0
  %9318 = vmatprep.subr.mxu0 0.0
  %9319 = vmatpush1.msra.mxu0 0.0
  %9320 = vmatprep.subr.mxu0 0.0
  %9321 = vmatpush1.msra.mxu0 0.0
  %9322 = vmatprep.subr.mxu0 0.0
  %9323 = vmatpush1.msra.mxu0 0.0
  %9324 = vmatprep.subr.mxu0 0.0
  %9325 = vmatpush1.msra.mxu0 0.0
  %9326 = vmatprep.subr.mxu0 0.0
  %9327 = vmatpush1.msra.mxu0 0.0
  %9328 = vmatprep.subr.mxu0 0.0
  %9329 = vmatpush1.msra.mxu0 0.0
  %9330 = vmatprep.subr.mxu0 0.0
  %9331 = vmatpush1.msra.mxu0 0.0
  %9332 = vmatprep.subr.mxu0 0.0
  %9333 = vmatpush1.msra.mxu0 0.0
  %9334 = vmatprep.subr.mxu0 0.0
  %9335 = vmatpush1.msra.mxu0 0.0
  %9336 = vmatprep.subr.mxu0 0.0
  %9337 = vmatpush1.msra.mxu0 0.0
  %9338 = vmatprep.subr.mxu0 0.0
  %9339 = vmatpush1.msra.mxu0 0.0
  %9340 = vmatprep.subr.mxu0 0.0
  %9341 = vmatpush1.msra.mxu0 0.0
  %9342 = vmatprep.subr.mxu0 0.0
  %9343 = vmatpush1.msra.mxu0 0.0
  %9344 = vmatprep.subr.mxu0 0.0
  %9345 = vmatpush1.msra.mxu0 0.0
  %9346 = vmatprep.subr.mxu0 0.0
  %9347 = vmatpush1.msra.mxu0 0.0
  %9348 = vmatprep.subr.mxu0 0.0
  %9349 = vmatpush1.msra.mxu0 0.0
  %9350 = vmatprep.subr.mxu0 0.0
  %9351 = vmatpush1.msra.mxu0 0.0
  %9352 = vmatprep.subr.mxu0 0.0
  %9353 = vmatpush1.msra.mxu0 0.0
  %9354 = vmatprep.subr.mxu0 0.0
  %9355 = vmatpush1.msra.mxu0 0.0
  %9356 = vmatprep.subr.mxu0 0.0
  %9357 = vmatpush1.msra.mxu0 0.0
  %9358 = vmatprep.mubr.f32.mxu0 0.0
  %9359 = vmatmul.mubr.f32.gmra.mrb[0].mxu0 %v5768
  %v9360 = vpop.f32.mrb[0].mxu0
  %v9361 = vadd.f32 0.0, %v9360
  %v9362 = vpop.f32.mrb[0].mxu0
  %v9363 = vadd.f32 0.0, %v9362
  %9364 = vmatprep.mubr.f32.mxu0 0.0
  %9365 = vmatmul.mubr.f32.gmra.mrb[0].mxu0 %v5771
  %v9366 = vpop.f32.mrb[0].mxu0
  %v9367 = vadd.f32 0.0, %v9366
  %v9368 = vpop.f32.mrb[0].mxu0
  %v9369 = vadd.f32 0.0, %v9368
  %9370 = vmatprep.mubr.f32.mxu0 0.0
  %9371 = vmatmul.mubr.f32.gmra.mrb[0].mxu0 %v5774
  %v9372 = vpop.f32.mrb[0].mxu0
  %v9373 = vadd.f32 0.0, %v9372
  %v9374 = vpop.f32.mrb[0].mxu0
  %v9375 = vadd.f32 0.0, %v9374
  %9376 = vmatprep.mubr.f32.mxu0 0.0
  %9377 = vmatmul.mubr.f32.gmra.mrb[0].mxu0 %v5777
  %v9378 = vpop.f32.mrb[0].mxu0
  %v9379 = vadd.f32 0.0, %v9378
  %v9380 = vpop.f32.mrb[0].mxu0
  %v9381 = vadd.f32 0.0, %v9380
  %9382 = vmatprep.mubr.f32.mxu0 0.0
  %9383 = vmatmul.mubr.f32.gmra.mrb[0].mxu0 %v5780
  %v9384 = vpop.f32.mrb[0].mxu0
  %v9385 = vadd.f32 0.0, %v9384
  %v9386 = vpop.f32.mrb[0].mxu0
  %v9387 = vadd.f32 0.0, %v9386
  %9388 = vmatprep.mubr.f32.mxu0 0.0
  %9389 = vmatmul.mubr.f32.gmra.mrb[0].mxu0 %v5783
  %v9390 = vpop.f32.mrb[0].mxu0
  %v9391 = vadd.f32 0.0, %v9390
  %v9392 = vpop.f32.mrb[0].mxu0
  %v9393 = vadd.f32 0.0, %v9392
  %9394 = vmatprep.mubr.f32.mxu0 0.0
  %9395 = vmatmul.mubr.f32.gmra.mrb[0].mxu0 %v5786
  %v9396 = vpop.f32.mrb[0].mxu0
  %v9397 = vadd.f32 0.0, %v9396
  %v9398 = vpop.f32.mrb[0].mxu0
  %v9399 = vadd.f32 0.0, %v9398
  %9400 = vmatprep.mubr.f32.mxu0 0.0
  %9401 = vmatmul.mubr.f32.gmra.mrb[0].mxu0 %v5789
  %v9402 = vpop.f32.mrb[0].mxu0
  %v9403 = vadd.f32 0.0, %v9402
  %v9404 = vpop.f32.mrb[0].mxu0
  %v9405 = vadd.f32 0.0, %v9404
  %9406 = vdwg.mxu0
  %v9407 = vmax.f32 %v5858, %v5860
  %v9408 = vmax.f32 %v5864, %v5866
  %v9409 = vmax.f32 %v5870, %v5872
  %v9410 = vmax.f32 %v5876, %v5878
  %v9411 = vmax.f32 %v5882, %v5884
  %v9412 = vmax.f32 %v5888, %v5890
  %v9413 = vmax.f32 %v5894, %v5896
  %v9414 = vmax.f32 %v5900, %v5902
  %v9415 = vmax.f32 %v9407, %v5971
  %v9416 = vmax.f32 %v9408, %v5977
  %v9417 = vmax.f32 %v9409, %v5983
  %v9418 = vmax.f32 %v9410, %v5989
  %v9419 = vmax.f32 %v9411, %v5995
  %v9420 = vmax.f32 %v9412, %v6001
  %v9421 = vmax.f32 %v9413, %v6007
  %v9422 = vmax.f32 %v9414, %v6013
  %v9423 = vmax.f32 %v9415, %v5973
  %v9424 = vmax.f32 %v9416, %v5979
  %v9425 = vmax.f32 %v9417, %v5985
  %v9426 = vmax.f32 %v9418, %v5991
  %v9427 = vmax.f32 %v9419, %v5997
  %v9428 = vmax.f32 %v9420, %v6003
  %v9429 = vmax.f32 %v9421, %v6009
  %v9430 = vmax.f32 %v9422, %v6015
  %v9431 = vmax.f32 %v9423, %v6084
  %v9432 = vmax.f32 %v9424, %v6090
  %v9433 = vmax.f32 %v9425, %v6096
  %v9434 = vmax.f32 %v9426, %v6102
  %v9435 = vmax.f32 %v9427, %v6108
  %v9436 = vmax.f32 %v9428, %v6114
  %v9437 = vmax.f32 %v9429, %v6120
  %v9438 = vmax.f32 %v9430, %v6126
  %v9439 = vmax.f32 %v9431, %v6086
  %v9440 = vmax.f32 %v9432, %v6092
  %v9441 = vmax.f32 %v9433, %v6098
  %v9442 = vmax.f32 %v9434, %v6104
  %v9443 = vmax.f32 %v9435, %v6110
  %v9444 = vmax.f32 %v9436, %v6116
  %v9445 = vmax.f32 %v9437, %v6122
  %v9446 = vmax.f32 %v9438, %v6128
  %v9447 = vmax.f32 %v9439, %v6197
  %v9448 = vmax.f32 %v9440, %v6203
  %v9449 = vmax.f32 %v9441, %v6209
  %v9450 = vmax.f32 %v9442, %v6215
  %v9451 = vmax.f32 %v9443, %v6221
  %v9452 = vmax.f32 %v9444, %v6227
  %v9453 = vmax.f32 %v9445, %v6233
  %v9454 = vmax.f32 %v9446, %v6239
  %v9455 = vmax.f32 %v9447, %v6199
  %v9456 = vmax.f32 %v9448, %v6205
  %v9457 = vmax.f32 %v9449, %v6211
  %v9458 = vmax.f32 %v9450, %v6217
  %v9459 = vmax.f32 %v9451, %v6223
  %v9460 = vmax.f32 %v9452, %v6229
  %v9461 = vmax.f32 %v9453, %v6235
  %v9462 = vmax.f32 %v9454, %v6241
  %v9463 = vmax.f32 %v9455, %v6310
  %v9464 = vmax.f32 %v9456, %v6316
  %v9465 = vmax.f32 %v9457, %v6322
  %v9466 = vmax.f32 %v9458, %v6328
  %v9467 = vmax.f32 %v9459, %v6334
  %v9468 = vmax.f32 %v9460, %v6340
  %v9469 = vmax.f32 %v9461, %v6346
  %v9470 = vmax.f32 %v9462, %v6352
  %v9471 = vmax.f32 %v9463, %v6312
  %v9472 = vmax.f32 %v9464, %v6318
  %v9473 = vmax.f32 %v9465, %v6324
  %v9474 = vmax.f32 %v9466, %v6330
  %v9475 = vmax.f32 %v9467, %v6336
  %v9476 = vmax.f32 %v9468, %v6342
  %v9477 = vmax.f32 %v9469, %v6348
  %v9478 = vmax.f32 %v9470, %v6354
  %v9479 = vmax.f32 %v9471, %v6423
  %v9480 = vmax.f32 %v9472, %v6429
  %v9481 = vmax.f32 %v9473, %v6435
  %v9482 = vmax.f32 %v9474, %v6441
  %v9483 = vmax.f32 %v9475, %v6447
  %v9484 = vmax.f32 %v9476, %v6453
  %v9485 = vmax.f32 %v9477, %v6459
  %v9486 = vmax.f32 %v9478, %v6465
  %v9487 = vmax.f32 %v9479, %v6425
  %v9488 = vmax.f32 %v9480, %v6431
  %v9489 = vmax.f32 %v9481, %v6437
  %v9490 = vmax.f32 %v9482, %v6443
  %v9491 = vmax.f32 %v9483, %v6449
  %v9492 = vmax.f32 %v9484, %v6455
  %v9493 = vmax.f32 %v9485, %v6461
  %v9494 = vmax.f32 %v9486, %v6467
  %v9495 = vmax.f32 %v9487, %v6536
  %v9496 = vmax.f32 %v9488, %v6542
  %v9497 = vmax.f32 %v9489, %v6548
  %v9498 = vmax.f32 %v9490, %v6554
  %v9499 = vmax.f32 %v9491, %v6560
  %v9500 = vmax.f32 %v9492, %v6566
  %v9501 = vmax.f32 %v9493, %v6572
  %v9502 = vmax.f32 %v9494, %v6578
  %v9503 = vmax.f32 %v9495, %v6538
  %v9504 = vmax.f32 %v9496, %v6544
  %v9505 = vmax.f32 %v9497, %v6550
  %v9506 = vmax.f32 %v9498, %v6556
  %v9507 = vmax.f32 %v9499, %v6562
  %v9508 = vmax.f32 %v9500, %v6568
  %v9509 = vmax.f32 %v9501, %v6574
  %v9510 = vmax.f32 %v9502, %v6580
  %v9511 = vmax.f32 %v9503, %v6649
  %v9512 = vmax.f32 %v9504, %v6655
  %v9513 = vmax.f32 %v9505, %v6661
  %v9514 = vmax.f32 %v9506, %v6667
  %v9515 = vmax.f32 %v9507, %v6673
  %v9516 = vmax.f32 %v9508, %v6679
  %v9517 = vmax.f32 %v9509, %v6685
  %v9518 = vmax.f32 %v9510, %v6691
  %v9519 = vmax.f32 %v9511, %v6651
  %v9520 = vmax.f32 %v9512, %v6657
  %v9521 = vmax.f32 %v9513, %v6663
  %v9522 = vmax.f32 %v9514, %v6669
  %v9523 = vmax.f32 %v9515, %v6675
  %v9524 = vmax.f32 %v9516, %v6681
  %v9525 = vmax.f32 %v9517, %v6687
  %v9526 = vmax.f32 %v9518, %v6693
  %v9527 = vmax.f32 %v9519, %v6762
  %v9528 = vmax.f32 %v9520, %v6768
  %v9529 = vmax.f32 %v9521, %v6774
  %v9530 = vmax.f32 %v9522, %v6780
  %v9531 = vmax.f32 %v9523, %v6786
  %v9532 = vmax.f32 %v9524, %v6792
  %v9533 = vmax.f32 %v9525, %v6798
  %v9534 = vmax.f32 %v9526, %v6804
  %v9535 = vmax.f32 %v9527, %v6764
  %v9536 = vmax.f32 %v9528, %v6770
  %v9537 = vmax.f32 %v9529, %v6776
  %v9538 = vmax.f32 %v9530, %v6782
  %v9539 = vmax.f32 %v9531, %v6788
  %v9540 = vmax.f32 %v9532, %v6794
  %v9541 = vmax.f32 %v9533, %v6800
  %v9542 = vmax.f32 %v9534, %v6806
  %v9543 = vmax.f32 %v9535, %v6875
  %v9544 = vmax.f32 %v9536, %v6881
  %v9545 = vmax.f32 %v9537, %v6887
  %v9546 = vmax.f32 %v9538, %v6893
  %v9547 = vmax.f32 %v9539, %v6899
  %v9548 = vmax.f32 %v9540, %v6905
  %v9549 = vmax.f32 %v9541, %v6911
  %v9550 = vmax.f32 %v9542, %v6917
  %v9551 = vmax.f32 %v9543, %v6877
  %v9552 = vmax.f32 %v9544, %v6883
  %v9553 = vmax.f32 %v9545, %v6889
  %v9554 = vmax.f32 %v9546, %v6895
  %v9555 = vmax.f32 %v9547, %v6901
  %v9556 = vmax.f32 %v9548, %v6907
  %v9557 = vmax.f32 %v9549, %v6913
  %v9558 = vmax.f32 %v9550, %v6919
  %v9559 = vmax.f32 %v9551, %v6988
  %v9560 = vmax.f32 %v9552, %v6994
  %v9561 = vmax.f32 %v9553, %v7000
  %v9562 = vmax.f32 %v9554, %v7006
  %v9563 = vmax.f32 %v9555, %v7012
  %v9564 = vmax.f32 %v9556, %v7018
  %v9565 = vmax.f32 %v9557, %v7024
  %v9566 = vmax.f32 %v9558, %v7030
  %v9567 = vmax.f32 %v9559, %v6990
  %v9568 = vmax.f32 %v9560, %v6996
  %v9569 = vmax.f32 %v9561, %v7002
  %v9570 = vmax.f32 %v9562, %v7008
  %v9571 = vmax.f32 %v9563, %v7014
  %v9572 = vmax.f32 %v9564, %v7020
  %v9573 = vmax.f32 %v9565, %v7026
  %v9574 = vmax.f32 %v9566, %v7032
  %v9575 = vmax.f32 %v9567, %v7101
  %v9576 = vmax.f32 %v9568, %v7107
  %v9577 = vmax.f32 %v9569, %v7113
  %v9578 = vmax.f32 %v9570, %v7119
  %v9579 = vmax.f32 %v9571, %v7125
  %v9580 = vmax.f32 %v9572, %v7131
  %v9581 = vmax.f32 %v9573, %v7137
  %v9582 = vmax.f32 %v9574, %v7143
  %v9583 = vmax.f32 %v9575, %v7103
  %v9584 = vmax.f32 %v9576, %v7109
  %v9585 = vmax.f32 %v9577, %v7115
  %v9586 = vmax.f32 %v9578, %v7121
  %v9587 = vmax.f32 %v9579, %v7127
  %v9588 = vmax.f32 %v9580, %v7133
  %v9589 = vmax.f32 %v9581, %v7139
  %v9590 = vmax.f32 %v9582, %v7145
  %v9591 = vmax.f32 %v9583, %v7214
  %v9592 = vmax.f32 %v9584, %v7220
  %v9593 = vmax.f32 %v9585, %v7226
  %v9594 = vmax.f32 %v9586, %v7232
  %v9595 = vmax.f32 %v9587, %v7238
  %v9596 = vmax.f32 %v9588, %v7244
  %v9597 = vmax.f32 %v9589, %v7250
  %v9598 = vmax.f32 %v9590, %v7256
  %v9599 = vmax.f32 %v9591, %v7216
  %v9600 = vmax.f32 %v9592, %v7222
  %v9601 = vmax.f32 %v9593, %v7228
  %v9602 = vmax.f32 %v9594, %v7234
  %v9603 = vmax.f32 %v9595, %v7240
  %v9604 = vmax.f32 %v9596, %v7246
  %v9605 = vmax.f32 %v9597, %v7252
  %v9606 = vmax.f32 %v9598, %v7258
  %v9607 = vmax.f32 %v9599, %v7327
  %v9608 = vmax.f32 %v9600, %v7333
  %v9609 = vmax.f32 %v9601, %v7339
  %v9610 = vmax.f32 %v9602, %v7345
  %v9611 = vmax.f32 %v9603, %v7351
  %v9612 = vmax.f32 %v9604, %v7357
  %v9613 = vmax.f32 %v9605, %v7363
  %v9614 = vmax.f32 %v9606, %v7369
  %v9615 = vmax.f32 %v9607, %v7329
  %v9616 = vmax.f32 %v9608, %v7335
  %v9617 = vmax.f32 %v9609, %v7341
  %v9618 = vmax.f32 %v9610, %v7347
  %v9619 = vmax.f32 %v9611, %v7353
  %v9620 = vmax.f32 %v9612, %v7359
  %v9621 = vmax.f32 %v9613, %v7365
  %v9622 = vmax.f32 %v9614, %v7371
  %v9623 = vmax.f32 %v9615, %v7440
  %v9624 = vmax.f32 %v9616, %v7446
  %v9625 = vmax.f32 %v9617, %v7452
  %v9626 = vmax.f32 %v9618, %v7458
  %v9627 = vmax.f32 %v9619, %v7464
  %v9628 = vmax.f32 %v9620, %v7470
  %v9629 = vmax.f32 %v9621, %v7476
  %v9630 = vmax.f32 %v9622, %v7482
  %v9631 = vmax.f32 %v9623, %v7442
  %v9632 = vmax.f32 %v9624, %v7448
  %v9633 = vmax.f32 %v9625, %v7454
  %v9634 = vmax.f32 %v9626, %v7460
  %v9635 = vmax.f32 %v9627, %v7466
  %v9636 = vmax.f32 %v9628, %v7472
  %v9637 = vmax.f32 %v9629, %v7478
  %v9638 = vmax.f32 %v9630, %v7484
  %v9639 = vmax.f32 %v9631, %v7553
  %v9640 = vmax.f32 %v9632, %v7559
  %v9641 = vmax.f32 %v9633, %v7565
  %v9642 = vmax.f32 %v9634, %v7571
  %v9643 = vmax.f32 %v9635, %v7577
  %v9644 = vmax.f32 %v9636, %v7583
  %v9645 = vmax.f32 %v9637, %v7589
  %v9646 = vmax.f32 %v9638, %v7595
  %v9647 = vmax.f32 %v9639, %v7555
  %v9648 = vmax.f32 %v9640, %v7561
  %v9649 = vmax.f32 %v9641, %v7567
  %v9650 = vmax.f32 %v9642, %v7573
  %v9651 = vmax.f32 %v9643, %v7579
  %v9652 = vmax.f32 %v9644, %v7585
  %v9653 = vmax.f32 %v9645, %v7591
  %v9654 = vmax.f32 %v9646, %v7597
  %v9655 = vmax.f32 %v9647, %v7666
  %v9656 = vmax.f32 %v9648, %v7672
  %v9657 = vmax.f32 %v9649, %v7678
  %v9658 = vmax.f32 %v9650, %v7684
  %v9659 = vmax.f32 %v9651, %v7690
  %v9660 = vmax.f32 %v9652, %v7696
  %v9661 = vmax.f32 %v9653, %v7702
  %v9662 = vmax.f32 %v9654, %v7708
  %v9663 = vmax.f32 %v9655, %v7668
  %v9664 = vmax.f32 %v9656, %v7674
  %v9665 = vmax.f32 %v9657, %v7680
  %v9666 = vmax.f32 %v9658, %v7686
  %v9667 = vmax.f32 %v9659, %v7692
  %v9668 = vmax.f32 %v9660, %v7698
  %v9669 = vmax.f32 %v9661, %v7704
  %v9670 = vmax.f32 %v9662, %v7710
  %v9671 = vmax.f32 %v9663, %v7779
  %v9672 = vmax.f32 %v9664, %v7785
  %v9673 = vmax.f32 %v9665, %v7791
  %v9674 = vmax.f32 %v9666, %v7797
  %v9675 = vmax.f32 %v9667, %v7803
  %v9676 = vmax.f32 %v9668, %v7809
  %v9677 = vmax.f32 %v9669, %v7815
  %v9678 = vmax.f32 %v9670, %v7821
  %v9679 = vmax.f32 %v9671, %v7781
  %v9680 = vmax.f32 %v9672, %v7787
  %v9681 = vmax.f32 %v9673, %v7793
  %v9682 = vmax.f32 %v9674, %v7799
  %v9683 = vmax.f32 %v9675, %v7805
  %v9684 = vmax.f32 %v9676, %v7811
  %v9685 = vmax.f32 %v9677, %v7817
  %v9686 = vmax.f32 %v9678, %v7823
  %v9687 = vmax.f32 %v9679, %v7892
  %v9688 = vmax.f32 %v9680, %v7898
  %v9689 = vmax.f32 %v9681, %v7904
  %v9690 = vmax.f32 %v9682, %v7910
  %v9691 = vmax.f32 %v9683, %v7916
  %v9692 = vmax.f32 %v9684, %v7922
  %v9693 = vmax.f32 %v9685, %v7928
  %v9694 = vmax.f32 %v9686, %v7934
  %v9695 = vmax.f32 %v9687, %v7894
  %v9696 = vmax.f32 %v9688, %v7900
  %v9697 = vmax.f32 %v9689, %v7906
  %v9698 = vmax.f32 %v9690, %v7912
  %v9699 = vmax.f32 %v9691, %v7918
  %v9700 = vmax.f32 %v9692, %v7924
  %v9701 = vmax.f32 %v9693, %v7930
  %v9702 = vmax.f32 %v9694, %v7936
  %v9703 = vmax.f32 %v9695, %v8005
  %v9704 = vmax.f32 %v9696, %v8011
  %v9705 = vmax.f32 %v9697, %v8017
  %v9706 = vmax.f32 %v9698, %v8023
  %v9707 = vmax.f32 %v9699, %v8029
  %v9708 = vmax.f32 %v9700, %v8035
  %v9709 = vmax.f32 %v9701, %v8041
  %v9710 = vmax.f32 %v9702, %v8047
  %v9711 = vmax.f32 %v9703, %v8007
  %v9712 = vmax.f32 %v9704, %v8013
  %v9713 = vmax.f32 %v9705, %v8019
  %v9714 = vmax.f32 %v9706, %v8025
  %v9715 = vmax.f32 %v9707, %v8031
  %v9716 = vmax.f32 %v9708, %v8037
  %v9717 = vmax.f32 %v9709, %v8043
  %v9718 = vmax.f32 %v9710, %v8049
  %v9719 = vmax.f32 %v9711, %v8118
  %v9720 = vmax.f32 %v9712, %v8124
  %v9721 = vmax.f32 %v9713, %v8130
  %v9722 = vmax.f32 %v9714, %v8136
  %v9723 = vmax.f32 %v9715, %v8142
  %v9724 = vmax.f32 %v9716, %v8148
  %v9725 = vmax.f32 %v9717, %v8154
  %v9726 = vmax.f32 %v9718, %v8160
  %v9727 = vmax.f32 %v9719, %v8120
  %v9728 = vmax.f32 %v9720, %v8126
  %v9729 = vmax.f32 %v9721, %v8132
  %v9730 = vmax.f32 %v9722, %v8138
  %v9731 = vmax.f32 %v9723, %v8144
  %v9732 = vmax.f32 %v9724, %v8150
  %v9733 = vmax.f32 %v9725, %v8156
  %v9734 = vmax.f32 %v9726, %v8162
  %v9735 = vmax.f32 %v9727, %v8231
  %v9736 = vmax.f32 %v9728, %v8237
  %v9737 = vmax.f32 %v9729, %v8243
  %v9738 = vmax.f32 %v9730, %v8249
  %v9739 = vmax.f32 %v9731, %v8255
  %v9740 = vmax.f32 %v9732, %v8261
  %v9741 = vmax.f32 %v9733, %v8267
  %v9742 = vmax.f32 %v9734, %v8273
  %v9743 = vmax.f32 %v9735, %v8233
  %v9744 = vmax.f32 %v9736, %v8239
  %v9745 = vmax.f32 %v9737, %v8245
  %v9746 = vmax.f32 %v9738, %v8251
  %v9747 = vmax.f32 %v9739, %v8257
  %v9748 = vmax.f32 %v9740, %v8263
  %v9749 = vmax.f32 %v9741, %v8269
  %v9750 = vmax.f32 %v9742, %v8275
  %v9751 = vmax.f32 %v9743, %v8344
  %v9752 = vmax.f32 %v9744, %v8350
  %v9753 = vmax.f32 %v9745, %v8356
  %v9754 = vmax.f32 %v9746, %v8362
  %v9755 = vmax.f32 %v9747, %v8368
  %v9756 = vmax.f32 %v9748, %v8374
  %v9757 = vmax.f32 %v9749, %v8380
  %v9758 = vmax.f32 %v9750, %v8386
  %v9759 = vmax.f32 %v9751, %v8346
  %v9760 = vmax.f32 %v9752, %v8352
  %v9761 = vmax.f32 %v9753, %v8358
  %v9762 = vmax.f32 %v9754, %v8364
  %v9763 = vmax.f32 %v9755, %v8370
  %v9764 = vmax.f32 %v9756, %v8376
  %v9765 = vmax.f32 %v9757, %v8382
  %v9766 = vmax.f32 %v9758, %v8388
  %v9767 = vmax.f32 %v9759, %v8457
  %v9768 = vmax.f32 %v9760, %v8463
  %v9769 = vmax.f32 %v9761, %v8469
  %v9770 = vmax.f32 %v9762, %v8475
  %v9771 = vmax.f32 %v9763, %v8481
  %v9772 = vmax.f32 %v9764, %v8487
  %v9773 = vmax.f32 %v9765, %v8493
  %v9774 = vmax.f32 %v9766, %v8499
  %v9775 = vmax.f32 %v9767, %v8459
  %v9776 = vmax.f32 %v9768, %v8465
  %v9777 = vmax.f32 %v9769, %v8471
  %v9778 = vmax.f32 %v9770, %v8477
  %v9779 = vmax.f32 %v9771, %v8483
  %v9780 = vmax.f32 %v9772, %v8489
  %v9781 = vmax.f32 %v9773, %v8495
  %v9782 = vmax.f32 %v9774, %v8501
  %v9783 = vmax.f32 %v9775, %v8570
  %v9784 = vmax.f32 %v9776, %v8576
  %v9785 = vmax.f32 %v9777, %v8582
  %v9786 = vmax.f32 %v9778, %v8588
  %v9787 = vmax.f32 %v9779, %v8594
  %v9788 = vmax.f32 %v9780, %v8600
  %v9789 = vmax.f32 %v9781, %v8606
  %v9790 = vmax.f32 %v9782, %v8612
  %v9791 = vmax.f32 %v9783, %v8572
  %v9792 = vmax.f32 %v9784, %v8578
  %v9793 = vmax.f32 %v9785, %v8584
  %v9794 = vmax.f32 %v9786, %v8590
  %v9795 = vmax.f32 %v9787, %v8596
  %v9796 = vmax.f32 %v9788, %v8602
  %v9797 = vmax.f32 %v9789, %v8608
  %v9798 = vmax.f32 %v9790, %v8614
  %v9799 = vmax.f32 %v9791, %v8683
  %v9800 = vmax.f32 %v9792, %v8689
  %v9801 = vmax.f32 %v9793, %v8695
  %v9802 = vmax.f32 %v9794, %v8701
  %v9803 = vmax.f32 %v9795, %v8707
  %v9804 = vmax.f32 %v9796, %v8713
  %v9805 = vmax.f32 %v9797, %v8719
  %v9806 = vmax.f32 %v9798, %v8725
  %v9807 = vmax.f32 %v9799, %v8685
  %v9808 = vmax.f32 %v9800, %v8691
  %v9809 = vmax.f32 %v9801, %v8697
  %v9810 = vmax.f32 %v9802, %v8703
  %v9811 = vmax.f32 %v9803, %v8709
  %v9812 = vmax.f32 %v9804, %v8715
  %v9813 = vmax.f32 %v9805, %v8721
  %v9814 = vmax.f32 %v9806, %v8727
  %v9815 = vmax.f32 %v9807, %v8796
  %v9816 = vmax.f32 %v9808, %v8802
  %v9817 = vmax.f32 %v9809, %v8808
  %v9818 = vmax.f32 %v9810, %v8814
  %v9819 = vmax.f32 %v9811, %v8820
  %v9820 = vmax.f32 %v9812, %v8826
  %v9821 = vmax.f32 %v9813, %v8832
  %v9822 = vmax.f32 %v9814, %v8838
  %v9823 = vmax.f32 %v9815, %v8798
  %v9824 = vmax.f32 %v9816, %v8804
  %v9825 = vmax.f32 %v9817, %v8810
  %v9826 = vmax.f32 %v9818, %v8816
  %v9827 = vmax.f32 %v9819, %v8822
  %v9828 = vmax.f32 %v9820, %v8828
  %v9829 = vmax.f32 %v9821, %v8834
  %v9830 = vmax.f32 %v9822, %v8840
  %v9831 = vmax.f32 %v9823, %v8909
  %v9832 = vmax.f32 %v9824, %v8915
  %v9833 = vmax.f32 %v9825, %v8921
  %v9834 = vmax.f32 %v9826, %v8927
  %v9835 = vmax.f32 %v9827, %v8933
  %v9836 = vmax.f32 %v9828, %v8939
  %v9837 = vmax.f32 %v9829, %v8945
  %v9838 = vmax.f32 %v9830, %v8951
  %v9839 = vmax.f32 %v9831, %v8911
  %v9840 = vmax.f32 %v9832, %v8917
  %v9841 = vmax.f32 %v9833, %v8923
  %v9842 = vmax.f32 %v9834, %v8929
  %v9843 = vmax.f32 %v9835, %v8935
  %v9844 = vmax.f32 %v9836, %v8941
  %v9845 = vmax.f32 %v9837, %v8947
  %v9846 = vmax.f32 %v9838, %v8953
  %v9847 = vmax.f32 %v9839, %v9022
  %v9848 = vmax.f32 %v9840, %v9028
  %v9849 = vmax.f32 %v9841, %v9034
  %v9850 = vmax.f32 %v9842, %v9040
  %v9851 = vmax.f32 %v9843, %v9046
  %v9852 = vmax.f32 %v9844, %v9052
  %v9853 = vmax.f32 %v9845, %v9058
  %v9854 = vmax.f32 %v9846, %v9064
  %v9855 = vmax.f32 %v9847, %v9024
  %v9856 = vmax.f32 %v9848, %v9030
  %v9857 = vmax.f32 %v9849, %v9036
  %v9858 = vmax.f32 %v9850, %v9042
  %v9859 = vmax.f32 %v9851, %v9048
  %v9860 = vmax.f32 %v9852, %v9054
  %v9861 = vmax.f32 %v9853, %v9060
  %v9862 = vmax.f32 %v9854, %v9066
  %v9863 = vmax.f32 %v9855, %v9135
  %v9864 = vmax.f32 %v9856, %v9141
  %v9865 = vmax.f32 %v9857, %v9147
  %v9866 = vmax.f32 %v9858, %v9153
  %v9867 = vmax.f32 %v9859, %v9159
  %v9868 = vmax.f32 %v9860, %v9165
  %v9869 = vmax.f32 %v9861, %v9171
  %v9870 = vmax.f32 %v9862, %v9177
  %v9871 = vmax.f32 %v9863, %v9137
  %v9872 = vmax.f32 %v9864, %v9143
  %v9873 = vmax.f32 %v9865, %v9149
  %v9874 = vmax.f32 %v9866, %v9155
  %v9875 = vmax.f32 %v9867, %v9161
  %v9876 = vmax.f32 %v9868, %v9167
  %v9877 = vmax.f32 %v9869, %v9173
  %v9878 = vmax.f32 %v9870, %v9179
  %v9879 = vmax.f32 %v9871, %v9248
  %v9880 = vmax.f32 %v9872, %v9254
  %v9881 = vmax.f32 %v9873, %v9260
  %v9882 = vmax.f32 %v9874, %v9266
  %v9883 = vmax.f32 %v9875, %v9272
  %v9884 = vmax.f32 %v9876, %v9278
  %v9885 = vmax.f32 %v9877, %v9284
  %v9886 = vmax.f32 %v9878, %v9290
  %v9887 = vmax.f32 %v9879, %v9250
  %v9888 = vmax.f32 %v9880, %v9256
  %v9889 = vmax.f32 %v9881, %v9262
  %v9890 = vmax.f32 %v9882, %v9268
  %v9891 = vmax.f32 %v9883, %v9274
  %v9892 = vmax.f32 %v9884, %v9280
  %v9893 = vmax.f32 %v9885, %v9286
  %v9894 = vmax.f32 %v9886, %v9292
  %v9895 = vmax.f32 %v9887, %v9361
  %v9896 = vmax.f32 %v9888, %v9367
  %v9897 = vmax.f32 %v9889, %v9373
  %v9898 = vmax.f32 %v9890, %v9379
  %v9899 = vmax.f32 %v9891, %v9385
  %v9900 = vmax.f32 %v9892, %v9391
  %v9901 = vmax.f32 %v9893, %v9397
  %v9902 = vmax.f32 %v9894, %v9403
  %v9903 = vmax.f32 %v9895, %v9363
  %v9904 = vmax.f32 %v9896, %v9369
  %v9905 = vmax.f32 %v9897, %v9375
  %v9906 = vmax.f32 %v9898, %v9381
  %v9907 = vmax.f32 %v9899, %v9387
  %v9908 = vmax.f32 %v9900, %v9393
  %v9909 = vmax.f32 %v9901, %v9399
  %v9910 = vmax.f32 %v9902, %v9405
  %v9911 = vld [vmem:[%s5] sm:$0xff]
  %v9912 = vld [vmem:[%s5 + $0x8] sm:$0xff]
  %v9913 = vld [vmem:[%s5 + $0x10] sm:$0xff]
  %v9914 = vld [vmem:[%s5 + $0x18] sm:$0xff]
  %v9915 = vld [vmem:[%s5 + $0x20] sm:$0xff]
  %v9916 = vld [vmem:[%s5 + $0x28] sm:$0xff]
  %v9917 = vld [vmem:[%s5 + $0x30] sm:$0xff]
  %v9918 = vld [vmem:[%s5 + $0x38] sm:$0xff]
  %9920 = vset.pattern.permute.xlu0 0
  %9921 = vperm.xlu0 %9920, %v9911
  %v9922 = vpop.permute.xlu0 %9921
  %9925 = vset.pattern.permute.xlu0 0
  %9926 = vperm.xlu0 %9925, %v9912
  %v9927 = vpop.permute.xlu0 %9926
  %9930 = vset.pattern.permute.xlu0 0
  %9931 = vperm.xlu0 %9930, %v9913
  %v9932 = vpop.permute.xlu0 %9931
  %9935 = vset.pattern.permute.xlu0 0
  %9936 = vperm.xlu0 %9935, %v9914
  %v9937 = vpop.permute.xlu0 %9936
  %9940 = vset.pattern.permute.xlu0 0
  %9941 = vperm.xlu0 %9940, %v9915
  %v9942 = vpop.permute.xlu0 %9941
  %9945 = vset.pattern.permute.xlu0 0
  %9946 = vperm.xlu0 %9945, %v9916
  %v9947 = vpop.permute.xlu0 %9946
  %9950 = vset.pattern.permute.xlu0 0
  %9951 = vperm.xlu0 %9950, %v9917
  %v9952 = vpop.permute.xlu0 %9951
  %9955 = vset.pattern.permute.xlu0 0
  %9956 = vperm.xlu0 %9955, %v9918
  %v9957 = vpop.permute.xlu0 %9956
  %v9959 = vadd.f32 %v9903, %v9922
  %v9960 = vadd.f32 %v9904, %v9927
  %v9961 = vadd.f32 %v9905, %v9932
  %v9962 = vadd.f32 %v9906, %v9937
  %v9963 = vadd.f32 %v9907, %v9942
  %v9964 = vadd.f32 %v9908, %v9947
  %v9965 = vadd.f32 %v9909, %v9952
  %v9966 = vadd.f32 %v9910, %v9957
  %v9967 = vld [vmem:[%s1] sm:$0xff]
  %v9968 = vld [vmem:[%s6] sm:$0xff]
  %v9969 = vld [vmem:[%s6 + $0x8] sm:$0xff]
  %v9970 = vld [vmem:[%s6 + $0x10] sm:$0xff]
  %v9971 = vld [vmem:[%s6 + $0x18] sm:$0xff]
  %v9972 = vld [vmem:[%s7] sm:$0xff]
  %v9973 = vld [vmem:[%s7 + $0x8] sm:$0xff]
  %v9974 = vld [vmem:[%s7 + $0x10] sm:$0xff]
  %v9975 = vld [vmem:[%s7 + $0x18] sm:$0xff]
  %vm9976 = vcmask 64512
  %v9978 = vsel %vm9976, %v9972, 0
  %v9981 = vsel %vm9976, %v9973, 0
  %v9984 = vsel %vm9976, %v9974, 0
  %v9987 = vsel %vm9976, %v9975, 0
  %9989 = vmatprep.subr.mxu0 0.0
  %9990 = vmatpush1.msra.mxu0 %v9967
  %9991 = vmatprep.subr.mxu0 0.0
  %9992 = vmatpush1.msra.mxu0 0.0
  %9993 = vmatprep.subr.mxu0 0.0
  %9994 = vmatpush1.msra.mxu0 0.0
  %9995 = vmatprep.subr.mxu0 0.0
  %9996 = vmatpush1.msra.mxu0 0.0
  %9997 = vmatprep.subr.mxu0 0.0
  %9998 = vmatpush1.msra.mxu0 0.0
  %9999 = vmatprep.subr.mxu0 0.0
  %10000 = vmatpush1.msra.mxu0 0.0
  %10001 = vmatprep.subr.mxu0 0.0
  %10002 = vmatpush1.msra.mxu0 0.0
  %10003 = vmatprep.subr.mxu0 0.0
  %10004 = vmatpush1.msra.mxu0 0.0
  %10005 = vmatprep.subr.mxu0 0.0
  %10006 = vmatpush1.msra.mxu0 0.0
  %10007 = vmatprep.subr.mxu0 0.0
  %10008 = vmatpush1.msra.mxu0 0.0
  %10009 = vmatprep.subr.mxu0 0.0
  %10010 = vmatpush1.msra.mxu0 0.0
  %10011 = vmatprep.subr.mxu0 0.0
  %10012 = vmatpush1.msra.mxu0 0.0
  %10013 = vmatprep.subr.mxu0 0.0
  %10014 = vmatpush1.msra.mxu0 0.0
  %10015 = vmatprep.subr.mxu0 0.0
  %10016 = vmatpush1.msra.mxu0 0.0
  %10017 = vmatprep.subr.mxu0 0.0
  %10018 = vmatpush1.msra.mxu0 0.0
  %10019 = vmatprep.subr.mxu0 0.0
  %10020 = vmatpush1.msra.mxu0 0.0
  %10021 = vmatprep.subr.mxu0 0.0
  %10022 = vmatpush1.msra.mxu0 0.0
  %10023 = vmatprep.subr.mxu0 0.0
  %10024 = vmatpush1.msra.mxu0 0.0
  %10025 = vmatprep.subr.mxu0 0.0
  %10026 = vmatpush1.msra.mxu0 0.0
  %10027 = vmatprep.subr.mxu0 0.0
  %10028 = vmatpush1.msra.mxu0 0.0
  %10029 = vmatprep.subr.mxu0 0.0
  %10030 = vmatpush1.msra.mxu0 0.0
  %10031 = vmatprep.subr.mxu0 0.0
  %10032 = vmatpush1.msra.mxu0 0.0
  %10033 = vmatprep.subr.mxu0 0.0
  %10034 = vmatpush1.msra.mxu0 0.0
  %10035 = vmatprep.subr.mxu0 0.0
  %10036 = vmatpush1.msra.mxu0 0.0
  %10037 = vmatprep.subr.mxu0 0.0
  %10038 = vmatpush1.msra.mxu0 0.0
  %10039 = vmatprep.subr.mxu0 0.0
  %10040 = vmatpush1.msra.mxu0 0.0
  %10041 = vmatprep.subr.mxu0 0.0
  %10042 = vmatpush1.msra.mxu0 0.0
  %10043 = vmatprep.subr.mxu0 0.0
  %10044 = vmatpush1.msra.mxu0 0.0
  %10045 = vmatprep.subr.mxu0 0.0
  %10046 = vmatpush1.msra.mxu0 0.0
  %10047 = vmatprep.subr.mxu0 0.0
  %10048 = vmatpush1.msra.mxu0 0.0
  %10049 = vmatprep.subr.mxu0 0.0
  %10050 = vmatpush1.msra.mxu0 0.0
  %10051 = vmatprep.subr.mxu0 0.0
  %10052 = vmatpush1.msra.mxu0 0.0
  %10053 = vmatprep.mubr.f32.mxu0 0.0
  %10054 = vmatmul.mubr.f32.gmra.mrb[0].mxu0 %v9978
  %v10055 = vpop.f32.mrb[0].mxu0
  %v10056 = vadd.f32 0.0, %v10055
  %v10057 = vpop.f32.mrb[0].mxu0
  %10058 = vmatprep.mubr.f32.mxu0 0.0
  %10059 = vmatmul.mubr.f32.gmra.mrb[0].mxu0 %v9981
  %v10060 = vpop.f32.mrb[0].mxu0
  %v10061 = vadd.f32 0.0, %v10060
  %v10062 = vpop.f32.mrb[0].mxu0
  %10063 = vmatprep.mubr.f32.mxu0 0.0
  %10064 = vmatmul.mubr.f32.gmra.mrb[0].mxu0 %v9984
  %v10065 = vpop.f32.mrb[0].mxu0
  %v10066 = vadd.f32 0.0, %v10065
  %v10067 = vpop.f32.mrb[0].mxu0
  %10068 = vmatprep.mubr.f32.mxu0 0.0
  %10069 = vmatmul.mubr.f32.gmra.mrb[0].mxu0 %v9987
  %v10070 = vpop.f32.mrb[0].mxu0
  %v10071 = vadd.f32 0.0, %v10070
  %v10072 = vpop.f32.mrb[0].mxu0
  %10073 = vdwg.mxu0
  %vm10074 = vcmask 523264
  %v10076 = vsel %vm10074, %v9968, 0
  %v10079 = vsel %vm10074, %v9969, 0
  %v10082 = vsel %vm10074, %v9970, 0
  %v10085 = vsel %vm10074, %v9971, 0
  %10087 = vmatprep.subr.mxu0 0.0
  %10088 = vmatpush1.msra.mxu0 %v9959
  %10089 = vmatprep.subr.mxu0 0.0
  %10090 = vmatpush1.msra.mxu0 %v9960
  %10091 = vmatprep.subr.mxu0 0.0
  %10092 = vmatpush1.msra.mxu0 %v9961
  %10093 = vmatprep.subr.mxu0 0.0
  %10094 = vmatpush1.msra.mxu0 %v9962
  %10095 = vmatprep.subr.mxu0 0.0
  %10096 = vmatpush1.msra.mxu0 %v9963
  %10097 = vmatprep.subr.mxu0 0.0
  %10098 = vmatpush1.msra.mxu0 %v9964
  %10099 = vmatprep.subr.mxu0 0.0
  %10100 = vmatpush1.msra.mxu0 %v9965
  %10101 = vmatprep.subr.mxu0 0.0
  %10102 = vmatpush1.msra.mxu0 %v9966
  %10103 = vmatprep.subr.mxu0 0.0
  %10104 = vmatpush1.msra.mxu0 0.0
  %10105 = vmatprep.subr.mxu0 0.0
  %10106 = vmatpush1.msra.mxu0 0.0
  %10107 = vmatprep.subr.mxu0 0.0
  %10108 = vmatpush1.msra.mxu0 0.0
  %10109 = vmatprep.subr.mxu0 0.0
  %10110 = vmatpush1.msra.mxu0 0.0
  %10111 = vmatprep.subr.mxu0 0.0
  %10112 = vmatpush1.msra.mxu0 0.0
  %10113 = vmatprep.subr.mxu0 0.0
  %10114 = vmatpush1.msra.mxu0 0.0
  %10115 = vmatprep.subr.mxu0 0.0
  %10116 = vmatpush1.msra.mxu0 0.0
  %10117 = vmatprep.subr.mxu0 0.0
  %10118 = vmatpush1.msra.mxu0 0.0
  %10119 = vmatprep.subr.mxu0 0.0
  %10120 = vmatpush1.msra.mxu0 0.0
  %10121 = vmatprep.subr.mxu0 0.0
  %10122 = vmatpush1.msra.mxu0 0.0
  %10123 = vmatprep.subr.mxu0 0.0
  %10124 = vmatpush1.msra.mxu0 0.0
  %10125 = vmatprep.subr.mxu0 0.0
  %10126 = vmatpush1.msra.mxu0 0.0
  %10127 = vmatprep.subr.mxu0 0.0
  %10128 = vmatpush1.msra.mxu0 0.0
  %10129 = vmatprep.subr.mxu0 0.0
  %10130 = vmatpush1.msra.mxu0 0.0
  %10131 = vmatprep.subr.mxu0 0.0
  %10132 = vmatpush1.msra.mxu0 0.0
  %10133 = vmatprep.subr.mxu0 0.0
  %10134 = vmatpush1.msra.mxu0 0.0
  %10135 = vmatprep.subr.mxu0 0.0
  %10136 = vmatpush1.msra.mxu0 0.0
  %10137 = vmatprep.subr.mxu0 0.0
  %10138 = vmatpush1.msra.mxu0 0.0
  %10139 = vmatprep.subr.mxu0 0.0
  %10140 = vmatpush1.msra.mxu0 0.0
  %10141 = vmatprep.subr.mxu0 0.0
  %10142 = vmatpush1.msra.mxu0 0.0
  %10143 = vmatprep.subr.mxu0 0.0
  %10144 = vmatpush1.msra.mxu0 0.0
  %10145 = vmatprep.subr.mxu0 0.0
  %10146 = vmatpush1.msra.mxu0 0.0
  %10147 = vmatprep.subr.mxu0 0.0
  %10148 = vmatpush1.msra.mxu0 0.0
  %10149 = vmatprep.subr.mxu0 0.0
  %10150 = vmatpush1.msra.mxu0 0.0
  %10151 = vmatprep.mubr.f32.mxu0 0.0
  %10152 = vmatmul.mubr.f32.gmra.mrb[0].mxu0 %v10076
  %v10153 = vpop.f32.mrb[0].mxu0
  %v10154 = vadd.f32 %v10056, %v10153
  %v10155 = vpop.f32.mrb[0].mxu0
  %10156 = vmatprep.mubr.f32.mxu0 0.0
  %10157 = vmatmul.mubr.f32.gmra.mrb[0].mxu0 %v10079
  %v10158 = vpop.f32.mrb[0].mxu0
  %v10159 = vadd.f32 %v10061, %v10158
  %v10160 = vpop.f32.mrb[0].mxu0
  %10161 = vmatprep.mubr.f32.mxu0 0.0
  %10162 = vmatmul.mubr.f32.gmra.mrb[0].mxu0 %v10082
  %v10163 = vpop.f32.mrb[0].mxu0
  %v10164 = vadd.f32 %v10066, %v10163
  %v10165 = vpop.f32.mrb[0].mxu0
  %10166 = vmatprep.mubr.f32.mxu0 0.0
  %10167 = vmatmul.mubr.f32.gmra.mrb[0].mxu0 %v10085
  %v10168 = vpop.f32.mrb[0].mxu0
  %v10169 = vadd.f32 %v10071, %v10168
  %v10170 = vpop.f32.mrb[0].mxu0
  %10171 = vdwg.mxu0
  %v10172 = vld [vmem:[%s8] sm:$0xff]
  %v10173 = vld [vmem:[%s8 + $0x8] sm:$0xff]
  %v10174 = vld [vmem:[%s8 + $0x10] sm:$0xff]
  %v10175 = vld [vmem:[%s8 + $0x18] sm:$0xff]
  %10177 = vset.pattern.permute.xlu0 0
  %10178 = vperm.xlu0 %10177, %v10172
  %v10179 = vpop.permute.xlu0 %10178
  %10182 = vset.pattern.permute.xlu0 0
  %10183 = vperm.xlu0 %10182, %v10173
  %v10184 = vpop.permute.xlu0 %10183
  %10187 = vset.pattern.permute.xlu0 0
  %10188 = vperm.xlu0 %10187, %v10174
  %v10189 = vpop.permute.xlu0 %10188
  %10192 = vset.pattern.permute.xlu0 0
  %10193 = vperm.xlu0 %10192, %v10175
  %v10194 = vpop.permute.xlu0 %10193
  %v10196 = vadd.f32 %v10154, %v10179
  %v10197 = vadd.f32 %v10159, %v10184
  %v10198 = vadd.f32 %v10164, %v10189
  %v10199 = vadd.f32 %v10169, %v10194
  %v10200 = vmin.f32 %v10196, 20.0
  %v10201 = vmin.f32 %v10197, 20.0
  %v10202 = vmin.f32 %v10198, 20.0
  %v10203 = vmin.f32 %v10199, 20.0
  %v10204 = vmul.f32 %v10200, 1.442695
  %v10205 = vpow.pop %v10204
  %v10206 = vmul.f32 %v10201, 1.442695
  %v10207 = vpow.pop %v10206
  %v10208 = vmul.f32 %v10202, 1.442695
  %v10209 = vpow.pop %v10208
  %v10210 = vmul.f32 %v10203, 1.442695
  %v10211 = vpow.pop %v10210
  %v10212 = vadd.f32 %v10205, 2.0
  %v10213 = vadd.f32 %v10207, 2.0
  %v10214 = vadd.f32 %v10209, 2.0
  %v10215 = vadd.f32 %v10211, 2.0
  %v10216 = vmul.f32 %v10205, %v10212
  %v10217 = vmul.f32 %v10207, %v10213
  %v10218 = vmul.f32 %v10209, %v10214
  %v10219 = vmul.f32 %v10211, %v10215
  %v10220 = vadd.f32 %v10216, 2.0
  %v10221 = vadd.f32 %v10217, 2.0
  %v10222 = vadd.f32 %v10218, 2.0
  %v10223 = vadd.f32 %v10219, 2.0
  %v10224 = vrcp.pop %v10220
  %v10225 = vrcp.pop %v10221
  %v10226 = vrcp.pop %v10222
  %v10227 = vrcp.pop %v10223
  %v10228 = vmul.f32 %v10216, %v10224
  %v10229 = vmul.f32 %v10217, %v10225
  %v10230 = vmul.f32 %v10218, %v10226
  %v10231 = vmul.f32 %v10219, %v10227
  %v10232 = vmul.f32 %v10196, %v10228
  %v10233 = vmul.f32 %v10197, %v10229
  %v10234 = vmul.f32 %v10198, %v10230
  %v10235 = vmul.f32 %v10199, %v10231
  %v10236 = vld [vmem:[%s9] sm:$0xff]
  %v10237 = vld [vmem:[%s9 + $0x8] sm:$0xff]
  %v10238 = vld [vmem:[%s9 + $0x10] sm:$0xff]
  %v10239 = vld [vmem:[%s9 + $0x18] sm:$0xff]
  %v10240 = vld [vmem:[%s10] sm:$0xff]
  %v10241 = vld [vmem:[%s10 + $0x8] sm:$0xff]
  %v10242 = vld [vmem:[%s10 + $0x10] sm:$0xff]
  %v10243 = vld [vmem:[%s10 + $0x18] sm:$0xff]
  %10245 = vset.pattern.permute.xlu0 0
  %10246 = vperm.xlu0 %10245, %v10240
  %v10247 = vpop.permute.xlu0 %10246
  %10250 = vset.pattern.permute.xlu0 0
  %10251 = vperm.xlu0 %10250, %v10241
  %v10252 = vpop.permute.xlu0 %10251
  %10255 = vset.pattern.permute.xlu0 0
  %10256 = vperm.xlu0 %10255, %v10242
  %v10257 = vpop.permute.xlu0 %10256
  %10260 = vset.pattern.permute.xlu0 0
  %10261 = vperm.xlu0 %10260, %v10243
  %v10262 = vpop.permute.xlu0 %10261
  %v10265 = vsel %vm5766, %v10236, 0
  %v10268 = vsel %vm5766, %v10237, 0
  %v10271 = vsel %vm5766, %v10238, 0
  %v10274 = vsel %vm5766, %v10239, 0
  %10276 = vmatprep.subr.mxu0 0.0
  %10277 = vmatpush1.msra.mxu0 %v10232
  %10278 = vmatprep.subr.mxu0 0.0
  %10279 = vmatpush1.msra.mxu0 %v10233
  %10280 = vmatprep.subr.mxu0 0.0
  %10281 = vmatpush1.msra.mxu0 %v10234
  %10282 = vmatprep.subr.mxu0 0.0
  %10283 = vmatpush1.msra.mxu0 %v10235
  %10284 = vmatprep.subr.mxu0 0.0
  %10285 = vmatpush1.msra.mxu0 0.0
  %10286 = vmatprep.subr.mxu0 0.0
  %10287 = vmatpush1.msra.mxu0 0.0
  %10288 = vmatprep.subr.mxu0 0.0
  %10289 = vmatpush1.msra.mxu0 0.0
  %10290 = vmatprep.subr.mxu0 0.0
  %10291 = vmatpush1.msra.mxu0 0.0
  %10292 = vmatprep.subr.mxu0 0.0
  %10293 = vmatpush1.msra.mxu0 0.0
  %10294 = vmatprep.subr.mxu0 0.0
  %10295 = vmatpush1.msra.mxu0 0.0
  %10296 = vmatprep.subr.mxu0 0.0
  %10297 = vmatpush1.msra.mxu0 0.0
  %10298 = vmatprep.subr.mxu0 0.0
  %10299 = vmatpush1.msra.mxu0 0.0
  %10300 = vmatprep.subr.mxu0 0.0
  %10301 = vmatpush1.msra.mxu0 0.0
  %10302 = vmatprep.subr.mxu0 0.0
  %10303 = vmatpush1.msra.mxu0 0.0
  %10304 = vmatprep.subr.mxu0 0.0
  %10305 = vmatpush1.msra.mxu0 0.0
  %10306 = vmatprep.subr.mxu0 0.0
  %10307 = vmatpush1.msra.mxu0 0.0
  %10308 = vmatprep.subr.mxu0 0.0
  %10309 = vmatpush1.msra.mxu0 0.0
  %10310 = vmatprep.subr.mxu0 0.0
  %10311 = vmatpush1.msra.mxu0 0.0
  %10312 = vmatprep.subr.mxu0 0.0
  %10313 = vmatpush1.msra.mxu0 0.0
  %10314 = vmatprep.subr.mxu0 0.0
  %10315 = vmatpush1.msra.mxu0 0.0
  %10316 = vmatprep.subr.mxu0 0.0
  %10317 = vmatpush1.msra.mxu0 0.0
  %10318 = vmatprep.subr.mxu0 0.0
  %10319 = vmatpush1.msra.mxu0 0.0
  %10320 = vmatprep.subr.mxu0 0.0
  %10321 = vmatpush1.msra.mxu0 0.0
  %10322 = vmatprep.subr.mxu0 0.0
  %10323 = vmatpush1.msra.mxu0 0.0
  %10324 = vmatprep.subr.mxu0 0.0
  %10325 = vmatpush1.msra.mxu0 0.0
  %10326 = vmatprep.subr.mxu0 0.0
  %10327 = vmatpush1.msra.mxu0 0.0
  %10328 = vmatprep.subr.mxu0 0.0
  %10329 = vmatpush1.msra.mxu0 0.0
  %10330 = vmatprep.subr.mxu0 0.0
  %10331 = vmatpush1.msra.mxu0 0.0
  %10332 = vmatprep.subr.mxu0 0.0
  %10333 = vmatpush1.msra.mxu0 0.0
  %10334 = vmatprep.subr.mxu0 0.0
  %10335 = vmatpush1.msra.mxu0 0.0
  %10336 = vmatprep.subr.mxu0 0.0
  %10337 = vmatpush1.msra.mxu0 0.0
  %10338 = vmatprep.subr.mxu0 0.0
  %10339 = vmatpush1.msra.mxu0 0.0
  %10340 = vmatprep.mubr.f32.mxu0 0.0
  %10341 = vmatmul.mubr.f32.gmra.mrb[0].mxu0 %v10265
  %v10342 = vpop.f32.mrb[0].mxu0
  %v10343 = vadd.f32 %v10247, %v10342
  %v10344 = vpop.f32.mrb[0].mxu0
  %10345 = vmatprep.mubr.f32.mxu0 0.0
  %10346 = vmatmul.mubr.f32.gmra.mrb[0].mxu0 %v10268
  %v10347 = vpop.f32.mrb[0].mxu0
  %v10348 = vadd.f32 %v10252, %v10347
  %v10349 = vpop.f32.mrb[0].mxu0
  %10350 = vmatprep.mubr.f32.mxu0 0.0
  %10351 = vmatmul.mubr.f32.gmra.mrb[0].mxu0 %v10271
  %v10352 = vpop.f32.mrb[0].mxu0
  %v10353 = vadd.f32 %v10257, %v10352
  %v10354 = vpop.f32.mrb[0].mxu0
  %10355 = vmatprep.mubr.f32.mxu0 0.0
  %10356 = vmatmul.mubr.f32.gmra.mrb[0].mxu0 %v10274
  %v10357 = vpop.f32.mrb[0].mxu0
  %v10358 = vadd.f32 %v10262, %v10357
  %v10359 = vpop.f32.mrb[0].mxu0
  %10360 = vdwg.mxu0
  %v10361 = vmin.f32 %v10343, 20.0
  %v10362 = vmin.f32 %v10348, 20.0
  %v10363 = vmin.f32 %v10353, 20.0
  %v10364 = vmin.f32 %v10358, 20.0
  %v10365 = vmul.f32 %v10361, 1.442695
  %v10366 = vpow.pop %v10365
  %v10367 = vmul.f32 %v10362, 1.442695
  %v10368 = vpow.pop %v10367
  %v10369 = vmul.f32 %v10363, 1.442695
  %v10370 = vpow.pop %v10369
  %v10371 = vmul.f32 %v10364, 1.442695
  %v10372 = vpow.pop %v10371
  %v10373 = vadd.f32 %v10366, 2.0
  %v10374 = vadd.f32 %v10368, 2.0
  %v10375 = vadd.f32 %v10370, 2.0
  %v10376 = vadd.f32 %v10372, 2.0
  %v10377 = vmul.f32 %v10366, %v10373
  %v10378 = vmul.f32 %v10368, %v10374
  %v10379 = vmul.f32 %v10370, %v10375
  %v10380 = vmul.f32 %v10372, %v10376
  %v10381 = vadd.f32 %v10377, 2.0
  %v10382 = vadd.f32 %v10378, 2.0
  %v10383 = vadd.f32 %v10379, 2.0
  %v10384 = vadd.f32 %v10380, 2.0
  %v10385 = vrcp.pop %v10381
  %v10386 = vrcp.pop %v10382
  %v10387 = vrcp.pop %v10383
  %v10388 = vrcp.pop %v10384
  %v10389 = vmul.f32 %v10377, %v10385
  %v10390 = vmul.f32 %v10378, %v10386
  %v10391 = vmul.f32 %v10379, %v10387
  %v10392 = vmul.f32 %v10380, %v10388
  %v10393 = vmul.f32 %v10343, %v10389
  %v10394 = vmul.f32 %v10348, %v10390
  %v10395 = vmul.f32 %v10353, %v10391
  %v10396 = vmul.f32 %v10358, %v10392
  %v10397 = vld [vmem:[%s11] sm:$0x1]
  %v10398 = vld [vmem:[#allocation2] sm:$0x1]
  %10400 = vset.pattern.permute.xlu0 0
  %10401 = vperm.xlu0 %10400, %v10398
  %v10402 = vpop.permute.xlu0 %10401
  %v10404 = vlaneseq
  %v10405 = vshrl.u32 %v10404, 7
  %v10406 = vsub.s32 0, %v10405
  %v10407 = vrot.slane %v10402, %v10406
  %v10409 = vsel %vm5766, %v10397, 0
  %10411 = vmatprep.subr.mxu0 0.0
  %10412 = vmatpush1.msra.mxu0 %v10393
  %10413 = vmatprep.subr.mxu0 0.0
  %10414 = vmatpush1.msra.mxu0 %v10394
  %10415 = vmatprep.subr.mxu0 0.0
  %10416 = vmatpush1.msra.mxu0 %v10395
  %10417 = vmatprep.subr.mxu0 0.0
  %10418 = vmatpush1.msra.mxu0 %v10396
  %10419 = vmatprep.subr.mxu0 0.0
  %10420 = vmatpush1.msra.mxu0 0.0
  %10421 = vmatprep.subr.mxu0 0.0
  %10422 = vmatpush1.msra.mxu0 0.0
  %10423 = vmatprep.subr.mxu0 0.0
  %10424 = vmatpush1.msra.mxu0 0.0
  %10425 = vmatprep.subr.mxu0 0.0
  %10426 = vmatpush1.msra.mxu0 0.0
  %10427 = vmatprep.subr.mxu0 0.0
  %10428 = vmatpush1.msra.mxu0 0.0
  %10429 = vmatprep.subr.mxu0 0.0
  %10430 = vmatpush1.msra.mxu0 0.0
  %10431 = vmatprep.subr.mxu0 0.0
  %10432 = vmatpush1.msra.mxu0 0.0
  %10433 = vmatprep.subr.mxu0 0.0
  %10434 = vmatpush1.msra.mxu0 0.0
  %10435 = vmatprep.subr.mxu0 0.0
  %10436 = vmatpush1.msra.mxu0 0.0
  %10437 = vmatprep.subr.mxu0 0.0
  %10438 = vmatpush1.msra.mxu0 0.0
  %10439 = vmatprep.subr.mxu0 0.0
  %10440 = vmatpush1.msra.mxu0 0.0
  %10441 = vmatprep.subr.mxu0 0.0
  %10442 = vmatpush1.msra.mxu0 0.0
  %10443 = vmatprep.subr.mxu0 0.0
  %10444 = vmatpush1.msra.mxu0 0.0
  %10445 = vmatprep.subr.mxu0 0.0
  %10446 = vmatpush1.msra.mxu0 0.0
  %10447 = vmatprep.subr.mxu0 0.0
  %10448 = vmatpush1.msra.mxu0 0.0
  %10449 = vmatprep.subr.mxu0 0.0
  %10450 = vmatpush1.msra.mxu0 0.0
  %10451 = vmatprep.subr.mxu0 0.0
  %10452 = vmatpush1.msra.mxu0 0.0
  %10453 = vmatprep.subr.mxu0 0.0
  %10454 = vmatpush1.msra.mxu0 0.0
  %10455 = vmatprep.subr.mxu0 0.0
  %10456 = vmatpush1.msra.mxu0 0.0
  %10457 = vmatprep.subr.mxu0 0.0
  %10458 = vmatpush1.msra.mxu0 0.0
  %10459 = vmatprep.subr.mxu0 0.0
  %10460 = vmatpush1.msra.mxu0 0.0
  %10461 = vmatprep.subr.mxu0 0.0
  %10462 = vmatpush1.msra.mxu0 0.0
  %10463 = vmatprep.subr.mxu0 0.0
  %10464 = vmatpush1.msra.mxu0 0.0
  %10465 = vmatprep.subr.mxu0 0.0
  %10466 = vmatpush1.msra.mxu0 0.0
  %10467 = vmatprep.subr.mxu0 0.0
  %10468 = vmatpush1.msra.mxu0 0.0
  %10469 = vmatprep.subr.mxu0 0.0
  %10470 = vmatpush1.msra.mxu0 0.0
  %10471 = vmatprep.subr.mxu0 0.0
  %10472 = vmatpush1.msra.mxu0 0.0
  %10473 = vmatprep.subr.mxu0 0.0
  %10474 = vmatpush1.msra.mxu0 0.0
  %10475 = vmatprep.mubr.f32.mxu0 0.0
  %10476 = vmatmul.mubr.f32.gmra.mrb[0].mxu0 %v10409
  %v10477 = vpop.f32.mrb[0].mxu0
  %v10478 = vadd.f32 %v10407, %v10477
  %v10479 = vpop.f32.mrb[0].mxu0
  %10480 = vdwg.mxu0
  %10481 = vst [vmem:[%s13] sm:$0x1] %v10478
  // Predicated region
  $region54: #{point_critic_forward.1} parent=0 // pred_check
    _
  $region55: #{point_critic_forward.1} parent=0 // pred_check_branch
    %10483 = sbr.rel (0) target = $region57
  $region56: #{point_critic_forward.1} parent=0 // pred_region
    _
  $region57: #{point_critic_forward.1} parent=0 // pred_fallthru
    _
  // Predicated region
  $region58: #{point_critic_forward.1} parent=0 // pred_check
    _
  $region59: #{point_critic_forward.1} parent=0 // pred_check_branch
    %10485 = sbr.rel (0) target = $region61
  $region60: #{point_critic_forward.1} parent=0 // pred_region
    _
  $region61: #{point_critic_forward.1} parent=0 // pred_fallthru
    _

</llo_original>
